<compile_context>
chip_gen: v6e
topology: v6e:2x2x1
jax: 0.10.0
libtpu: 0.0.40
codegen_flags: <defaults>
</compile_context>

<pallas_src>
import jax
import jax.numpy as jnp
from jax.experimental import pallas as pl
from jax.experimental.pallas import tpu as pltpu

LANE = 128  # gate-column pitch (lane-tile aligned)


def _round_up(n, m):
    return ((n + m - 1) // m) * m


# ------------------------------ in-kernel LSTM cell ----------------------------
def _lstm_cell(g_pre, h, c, w_hh):
    """One LSTM step.
    g_pre: (B, 4*P) precomputed input projection (bias already folded in).
    w_hh:  (H, 4*P) recurrent weights; gate g lives in columns [g*P, g*P+H).
    Gate order matches PyTorch: i, f, g, o."""
    H = w_hh.shape[0]
    P = w_hh.shape[1] // 4
    gates = g_pre + jnp.dot(h, w_hh, preferred_element_type=jnp.float32)
    i = jax.nn.sigmoid(gates[:, 0 * P:0 * P + H])
    f = jax.nn.sigmoid(gates[:, 1 * P:1 * P + H])
    g = jnp.tanh(gates[:, 2 * P:2 * P + H])
    o = jax.nn.sigmoid(gates[:, 3 * P:3 * P + H])
    c = f * c + i * g
    h = o * jnp.tanh(c)
    return h, c


# ------------------------------ fused model kernel -----------------------------
def _autoencoder_kernel(x_ref,
                        wih1_ref, whh1_ref, b1_ref,     # Encoder.rnn1 (F  -> 2E)
                        wih2_ref, whh2_ref, b2_ref,     # Encoder.rnn2 (2E -> E)
                        wih3_ref, whh3_ref, b3_ref,     # Decoder.rnn1 (E  -> E)
                        wih4_ref, whh4_ref, b4_ref,     # Decoder.rnn2 (E  -> 2E)
                        wout_ref, bout_ref,             # output Linear (2E -> F)
                        out_ref,                        # (T, B, F) time-major
                        xg_sc, d2_sc):
    T, B, F = x_ref.shape
    H1 = whh1_ref.shape[0]   # 2E
    H2 = whh2_ref.shape[0]   # E (bottleneck)
    H3 = whh3_ref.shape[0]   # E
    H4 = whh4_ref.shape[0]   # 2E
    P1 = whh1_ref.shape[1] // 4

    # -------------- Encoder: enc1 & enc2 interleaved per time step -------------
    # enc1 input projection for all T steps in ONE matmul, time-major scratch.
    xg_sc[...] = (jnp.dot(x_ref[...].reshape(T * B, F), wih1_ref[...],
                          preferred_element_type=jnp.float32)
                  + b1_ref[...]).reshape(T, B, 4 * P1)

    w_hh1 = whh1_ref[...]
    w_ih2 = wih2_ref[...]
    w_hh2 = whh2_ref[...]
    bias2 = b2_ref[...]

    h1 = jnp.zeros((B, H1), jnp.float32); c1 = jnp.zeros((B, H1), jnp.float32)
    h2 = jnp.zeros((B, H2), jnp.float32); c2 = jnp.zeros((B, H2), jnp.float32)
    for t in range(T):  # static T -> fully unrolled recurrence
        h1, c1 = _lstm_cell(xg_sc[t], h1, c1, w_hh1)
        # enc2's input projection from the just-produced h1_t (tiny dot).
        g2 = jnp.dot(h1, w_ih2, preferred_element_type=jnp.float32) + bias2
        h2, c2 = _lstm_cell(g2, h2, c2, w_hh2)

    z = h2                                             # bottleneck (B, E)

    # -------------- Decoder: dec1 & dec2 interleaved per time step -------------
    # dec1 input is z at every step -> project ONCE and reuse.
    zg = jnp.dot(z, wih3_ref[...], preferred_element_type=jnp.float32) + b3_ref[...]
    w_hh3 = whh3_ref[...]
    w_ih4 = wih4_ref[...]
    w_hh4 = whh4_ref[...]
    bias4 = b4_ref[...]

    h3 = jnp.zeros((B, H3), jnp.float32); c3 = jnp.zeros((B, H3), jnp.float32)
    h4 = jnp.zeros((B, H4), jnp.float32); c4 = jnp.zeros((B, H4), jnp.float32)
    for t in range(T):
        h3, c3 = _lstm_cell(zg, h3, c3, w_hh3)
        g4 = jnp.dot(h3, w_ih4, preferred_element_type=jnp.float32) + bias4
        h4, c4 = _lstm_cell(g4, h4, c4, w_hh4)
        d2_sc[t] = h4                                  # leading-index store

    # -------------------- Output linear, single write-back ---------------------
    y = (jnp.dot(d2_sc[...].reshape(T * B, H4), wout_ref[...],
                 preferred_element_type=jnp.float32) + bout_ref[...])
    out_ref[...] = y.reshape(T, B, F)


def lstm_autoencoder_forward(packed, x):
    """x: (B, T, n_features) batch_first, same as the PyTorch module.
    `packed` holds kernel-layout (gate-column padded) parameters."""
    B, T, F = x.shape
    H4 = packed["dec2"]["w_hh"].shape[0]
    P1 = packed["enc1"]["w_hh"].shape[1] // 4
    x_tm = jnp.transpose(x, (1, 0, 2))                 # time-major for the kernel
    vmem = pltpu.MemorySpace.VMEM
    y_tm = pl.pallas_call(
        _autoencoder_kernel,
        out_shape=jax.ShapeDtypeStruct((T, B, F), jnp.float32),
        in_specs=[pl.BlockSpec(memory_space=vmem)] * 15,
        out_specs=pl.BlockSpec(memory_space=vmem),
        scratch_shapes=[
            pltpu.VMEM((T, B, 4 * P1), jnp.float32),   # enc1 input projections
            pltpu.VMEM((T, B, H4), jnp.float32),       # dec2 hidden sequence
        ],
    )(x_tm,
      packed["enc1"]["w_ih"], packed["enc1"]["w_hh"], packed["enc1"]["b"],
      packed["enc2"]["w_ih"], packed["enc2"]["w_hh"], packed["enc2"]["b"],
      packed["dec1"]["w_ih"], packed["dec1"]["w_hh"], packed["dec1"]["b"],
      packed["dec2"]["w_ih"], packed["dec2"]["w_hh"], packed["dec2"]["b"],
      packed["out_w"], packed["out_b"])
    return jnp.transpose(y_tm, (1, 0, 2))              # back to batch_first


lstm_autoencoder_forward_jit = jax.jit(lstm_autoencoder_forward)


# ------------------------------- Parameter setup -------------------------------
def init_params(key, n_features, embedding_dim):
    """PyTorch-shaped params: weights pre-transposed to (in, 4H), fused b_ih+b_hh,
    gate order i,f,g,o (contiguous, unpadded)."""
    E = embedding_dim
    Hd = 2 * E

    def init_lstm(k, D, H):
        k1, k2, k3, k4 = jax.random.split(k, 4)
        s = 1.0 / jnp.sqrt(jnp.float32(H))
        return dict(
            w_ih=jax.random.uniform(k1, (D, 4 * H), jnp.float32, -s, s),
            w_hh=jax.random.uniform(k2, (H, 4 * H), jnp.float32, -s, s),
            b=(jax.random.uniform(k3, (4 * H,), jnp.float32, -s, s)
               + jax.random.uniform(k4, (4 * H,), jnp.float32, -s, s)
               ).reshape(1, 4 * H),
        )

    keys = jax.random.split(key, 5)
    params = dict(
        enc1=init_lstm(keys[0], n_features, Hd),   # Encoder.rnn1
        enc2=init_lstm(keys[1], Hd, E),            # Encoder.rnn2
        dec1=init_lstm(keys[2], E, E),             # Decoder.rnn1
        dec2=init_lstm(keys[3], E, Hd),            # Decoder.rnn2
    )
    kw, kb = jax.random.split(keys[4])
    s = 1.0 / jnp.sqrt(jnp.float32(Hd))
    params["out_w"] = jax.random.uniform(kw, (Hd, n_features), jnp.float32, -s, s)
    params["out_b"] = jax.random.uniform(kb, (1, n_features), jnp.float32, -s, s)
    return params


def _pad_gate_cols(w, H):
    """(.., 4H) gate-major [i|f|g|o] -> (.., 4P): gate g at cols [g*P, g*P+H), rest 0."""
    P = _round_up(H, LANE)
    parts = []
    for g in range(4):
        blk = w[..., g * H:(g + 1) * H]
        parts.append(jnp.pad(blk, [(0, 0)] * (w.ndim - 1) + [(0, P - H)]))
    return jnp.concatenate(parts, axis=-1)


def pack_params(params):
    """Convert PyTorch-layout params to the kernel's lane-aligned gate layout."""
    packed = {}
    for name in ("enc1", "enc2", "dec1", "dec2"):
        p = params[name]
        H = p["w_hh"].shape[0]
        packed[name] = dict(
            w_ih=_pad_gate_cols(p["w_ih"], H),
            w_hh=_pad_gate_cols(p["w_hh"], H),
            b=_pad_gate_cols(p["b"], H),
        )
    packed["out_w"] = params["out_w"]
    packed["out_b"] = params["out_b"]
    return packed


# ------------------------------ Pure-JAX reference ------------------------------
def _lstm_ref(x_tbd, w_ih, w_hh, b):
    T, B, D = x_tbd.shape
    H = w_hh.shape[0]

    def step(carry, x_t):
        h, c = carry
        gates = x_t @ w_ih + h @ w_hh + b
        i = jax.nn.sigmoid(gates[:, :H])
        f = jax.nn.sigmoid(gates[:, H:2 * H])
        g = jnp.tanh(gates[:, 2 * H:3 * H])
        o = jax.nn.sigmoid(gates[:, 3 * H:])
        c = f * c + i * g
        h = o * jnp.tanh(c)
        return (h, c), h

    (h, _), ys = jax.lax.scan(step, (jnp.zeros((B, H)), jnp.zeros((B, H))), x_tbd)
    return ys, h


def forward_ref(params, x):
    B, T, F = x.shape
    x_t = jnp.transpose(x, (1, 0, 2))
    h1, _ = _lstm_ref(x_t, **params["enc1"])
    _, z = _lstm_ref(h1, **params["enc2"])
    E = z.shape[-1]
    dz = jnp.broadcast_to(z[None, :, :], (T, B, E))
    d1, _ = _lstm_ref(dz, **params["dec1"])
    d2, _ = _lstm_ref(d1, **params["dec2"])
    # PyTorch reshapes batch_first: (B, T, 2E) -> (B*T, 2E) -> linear -> (B, T, F)
    d2_bt = jnp.transpose(d2, (1, 0, 2)).reshape(B * T, 2 * E)
    y = d2_bt @ params["out_w"] + params["out_b"]
    return y.reshape(B, T, F)


# ------------------------------------- Main -------------------------------------
if __name__ == "__main__":
    B, T, F, E = 2, 8, 4, 32   # batch, seq_len, n_features, embedding_dim
    key = jax.random.PRNGKey(0)
    kx, kp = jax.random.split(key)
    x = jax.random.normal(kx, (B, T, F), jnp.float32)
    params = init_params(kp, n_features=F, embedding_dim=E)
    packed = pack_params(params)   # one-time layout conversion, outside the jit

    y = lstm_autoencoder_forward_jit(packed, x)
    y = jax.block_until_ready(y)
    assert y.shape == (B, T, F)

    y_ref = forward_ref(params, x)
    assert jnp.allclose(y, y_ref, atol=1e-4, rtol=1e-4), "mismatch vs JAX reference"

    print("KERNEL_OK")
</pallas_src>

<mosaic_0001>
module attributes {stable_mosaic.version = 11 : i64} {
  func.func @_autoencoder_kernel(%arg0: memref<8x2x4xf32, #tpu.memory_space<vmem>>, %arg1: memref<4x512xf32, #tpu.memory_space<vmem>>, %arg2: memref<64x512xf32, #tpu.memory_space<vmem>>, %arg3: memref<1x512xf32, #tpu.memory_space<vmem>>, %arg4: memref<64x512xf32, #tpu.memory_space<vmem>>, %arg5: memref<32x512xf32, #tpu.memory_space<vmem>>, %arg6: memref<1x512xf32, #tpu.memory_space<vmem>>, %arg7: memref<32x512xf32, #tpu.memory_space<vmem>>, %arg8: memref<32x512xf32, #tpu.memory_space<vmem>>, %arg9: memref<1x512xf32, #tpu.memory_space<vmem>>, %arg10: memref<32x512xf32, #tpu.memory_space<vmem>>, %arg11: memref<64x512xf32, #tpu.memory_space<vmem>>, %arg12: memref<1x512xf32, #tpu.memory_space<vmem>>, %arg13: memref<64x4xf32, #tpu.memory_space<vmem>>, %arg14: memref<1x4xf32, #tpu.memory_space<vmem>>, %arg15: memref<8x2x4xf32, #tpu.memory_space<vmem>>, %arg16: memref<8x2x512xf32, #tpu.memory_space<vmem>>, %arg17: memref<8x2x64xf32, #tpu.memory_space<vmem>>) attributes {dimension_semantics = [], scalar_prefetch = 0 : i64, scratch_operands = 2 : i64, tpu.core_type = #tpu.core_type<tc>} {
    %c0 = arith.constant 0 : index
    %c0_0 = arith.constant 0 : index
    %c0_1 = arith.constant 0 : index
    %0 = vector.load %arg0[%c0, %c0_0, %c0_1] : memref<8x2x4xf32, #tpu.memory_space<vmem>>, vector<8x2x4xf32>
    %1 = vector.shape_cast %0 : vector<8x2x4xf32> to vector<16x4xf32>
    %c0_2 = arith.constant 0 : index
    %c0_3 = arith.constant 0 : index
    %2 = vector.load %arg1[%c0_2, %c0_3] : memref<4x512xf32, #tpu.memory_space<vmem>>, vector<4x512xf32>
    %cst = arith.constant dense<0.000000e+00> : vector<16x512xf32>
    %3 = tpu.matmul %1, %2, %cst {dimension_numbers = #tpu.dot_dimension_numbers<[1], [0], [0], [1], [0, 0, 1, 1], [], []>} : vector<16x4xf32>, vector<4x512xf32>, vector<16x512xf32> -> vector<16x512xf32>
    %c0_4 = arith.constant 0 : index
    %c0_5 = arith.constant 0 : index
    %4 = vector.load %arg3[%c0_4, %c0_5] : memref<1x512xf32, #tpu.memory_space<vmem>>, vector<1x512xf32>
    %5 = vector.broadcast %4 : vector<1x512xf32> to vector<16x512xf32>
    %6 = arith.addf %3, %5 : vector<16x512xf32>
    %7 = vector.shape_cast %6 : vector<16x512xf32> to vector<8x2x512xf32>
    %c0_6 = arith.constant 0 : index
    %c0_7 = arith.constant 0 : index
    %c0_8 = arith.constant 0 : index
    %8 = vector.load %arg16[%c0_6, %c0_7, %c0_8] : memref<8x2x512xf32, #tpu.memory_space<vmem>>, vector<8x2x512xf32>
    tpu.vector_store %arg16[%c0_6, %c0_7, %c0_8], %7 {strides = array<i32>} : memref<8x2x512xf32, #tpu.memory_space<vmem>>, vector<8x2x512xf32>,
    %c0_9 = arith.constant 0 : index
    %c0_10 = arith.constant 0 : index
    %9 = vector.load %arg2[%c0_9, %c0_10] : memref<64x512xf32, #tpu.memory_space<vmem>>, vector<64x512xf32>
    %c0_11 = arith.constant 0 : index
    %c0_12 = arith.constant 0 : index
    %10 = vector.load %arg4[%c0_11, %c0_12] : memref<64x512xf32, #tpu.memory_space<vmem>>, vector<64x512xf32>
    %c0_13 = arith.constant 0 : index
    %c0_14 = arith.constant 0 : index
    %11 = vector.load %arg5[%c0_13, %c0_14] : memref<32x512xf32, #tpu.memory_space<vmem>>, vector<32x512xf32>
    %c0_15 = arith.constant 0 : index
    %c0_16 = arith.constant 0 : index
    %12 = vector.load %arg6[%c0_15, %c0_16] : memref<1x512xf32, #tpu.memory_space<vmem>>, vector<1x512xf32>
    %cst_17 = arith.constant 0.000000e+00 : f32
    %13 = vector.broadcast %cst_17 : f32 to vector<2x64xf32>
    %cst_18 = arith.constant 0.000000e+00 : f32
    %14 = vector.broadcast %cst_18 : f32 to vector<2x64xf32>
    %cst_19 = arith.constant 0.000000e+00 : f32
    %15 = vector.broadcast %cst_19 : f32 to vector<2x32xf32>
    %cst_20 = arith.constant 0.000000e+00 : f32
    %16 = vector.broadcast %cst_20 : f32 to vector<2x32xf32>
    %c0_21 = arith.constant 0 : index
    %c0_22 = arith.constant 0 : index
    %c0_23 = arith.constant 0 : index
    %17 = vector.load %arg16[%c0_21, %c0_22, %c0_23] : memref<8x2x512xf32, #tpu.memory_space<vmem>>, vector<1x2x512xf32>
    %18 = vector.shape_cast %17 : vector<1x2x512xf32> to vector<2x512xf32>
    %cst_24 = arith.constant dense<0.000000e+00> : vector<2x512xf32>
    %19 = tpu.matmul %13, %9, %cst_24 {dimension_numbers = #tpu.dot_dimension_numbers<[1], [0], [0], [1], [0, 0, 1, 1], [], []>} : vector<2x64xf32>, vector<64x512xf32>, vector<2x512xf32> -> vector<2x512xf32>
    %20 = arith.addf %18, %19 : vector<2x512xf32>
    %21 = vector.extract_strided_slice %20 {offsets = [0, 0], sizes = [2, 64], strides = [1, 1]} : vector<2x512xf32> to vector<2x64xf32>
    %22 = arith.negf %21 : vector<2x64xf32>
    %23 = math.exp %22 : vector<2x64xf32>
    %cst_25 = arith.constant 1.000000e+00 : f32
    %24 = vector.broadcast %cst_25 : f32 to vector<2x64xf32>
    %25 = arith.addf %24, %23 : vector<2x64xf32>
    %26 = arith.divf %24, %25 : vector<2x64xf32>
    %27 = vector.extract_strided_slice %20 {offsets = [0, 128], sizes = [2, 64], strides = [1, 1]} : vector<2x512xf32> to vector<2x64xf32>
    %28 = arith.negf %27 : vector<2x64xf32>
    %29 = math.exp %28 : vector<2x64xf32>
    %cst_26 = arith.constant 1.000000e+00 : f32
    %30 = vector.broadcast %cst_26 : f32 to vector<2x64xf32>
    %31 = arith.addf %30, %29 : vector<2x64xf32>
    %32 = arith.divf %30, %31 : vector<2x64xf32>
    %33 = vector.extract_strided_slice %20 {offsets = [0, 256], sizes = [2, 64], strides = [1, 1]} : vector<2x512xf32> to vector<2x64xf32>
    %34 = math.tanh %33 : vector<2x64xf32>
    %35 = vector.extract_strided_slice %20 {offsets = [0, 384], sizes = [2, 64], strides = [1, 1]} : vector<2x512xf32> to vector<2x64xf32>
    %36 = arith.negf %35 : vector<2x64xf32>
    %37 = math.exp %36 : vector<2x64xf32>
    %cst_27 = arith.constant 1.000000e+00 : f32
    %38 = vector.broadcast %cst_27 : f32 to vector<2x64xf32>
    %39 = arith.addf %38, %37 : vector<2x64xf32>
    %40 = arith.divf %38, %39 : vector<2x64xf32>
    %41 = arith.mulf %32, %14 : vector<2x64xf32>
    %42 = arith.mulf %26, %34 : vector<2x64xf32>
    %43 = arith.addf %41, %42 : vector<2x64xf32>
    %44 = math.tanh %43 : vector<2x64xf32>
    %45 = arith.mulf %40, %44 : vector<2x64xf32>
    %cst_28 = arith.constant dense<0.000000e+00> : vector<2x512xf32>
    %46 = tpu.matmul %45, %10, %cst_28 {dimension_numbers = #tpu.dot_dimension_numbers<[1], [0], [0], [1], [0, 0, 1, 1], [], []>} : vector<2x64xf32>, vector<64x512xf32>, vector<2x512xf32> -> vector<2x512xf32>
    %47 = vector.broadcast %12 : vector<1x512xf32> to vector<2x512xf32>
    %48 = arith.addf %46, %47 : vector<2x512xf32>
    %cst_29 = arith.constant dense<0.000000e+00> : vector<2x512xf32>
    %49 = tpu.matmul %15, %11, %cst_29 {dimension_numbers = #tpu.dot_dimension_numbers<[1], [0], [0], [1], [0, 0, 1, 1], [], []>} : vector<2x32xf32>, vector<32x512xf32>, vector<2x512xf32> -> vector<2x512xf32>
    %50 = arith.addf %48, %49 : vector<2x512xf32>
    %51 = vector.extract_strided_slice %50 {offsets = [0, 0], sizes = [2, 32], strides = [1, 1]} : vector<2x512xf32> to vector<2x32xf32>
    %52 = arith.negf %51 : vector<2x32xf32>
    %53 = math.exp %52 : vector<2x32xf32>
    %cst_30 = arith.constant 1.000000e+00 : f32
    %54 = vector.broadcast %cst_30 : f32 to vector<2x32xf32>
    %55 = arith.addf %54, %53 : vector<2x32xf32>
    %56 = arith.divf %54, %55 : vector<2x32xf32>
    %57 = vector.extract_strided_slice %50 {offsets = [0, 128], sizes = [2, 32], strides = [1, 1]} : vector<2x512xf32> to vector<2x32xf32>
    %58 = arith.negf %57 : vector<2x32xf32>
    %59 = math.exp %58 : vector<2x32xf32>
    %cst_31 = arith.constant 1.000000e+00 : f32
    %60 = vector.broadcast %cst_31 : f32 to vector<2x32xf32>
    %61 = arith.addf %60, %59 : vector<2x32xf32>
    %62 = arith.divf %60, %61 : vector<2x32xf32>
    %63 = vector.extract_strided_slice %50 {offsets = [0, 256], sizes = [2, 32], strides = [1, 1]} : vector<2x512xf32> to vector<2x32xf32>
    %64 = math.tanh %63 : vector<2x32xf32>
    %65 = vector.extract_strided_slice %50 {offsets = [0, 384], sizes = [2, 32], strides = [1, 1]} : vector<2x512xf32> to vector<2x32xf32>
    %66 = arith.negf %65 : vector<2x32xf32>
    %67 = math.exp %66 : vector<2x32xf32>
    %cst_32 = arith.constant 1.000000e+00 : f32
    %68 = vector.broadcast %cst_32 : f32 to vector<2x32xf32>
    %69 = arith.addf %68, %67 : vector<2x32xf32>
    %70 = arith.divf %68, %69 : vector<2x32xf32>
    %71 = arith.mulf %62, %16 : vector<2x32xf32>
    %72 = arith.mulf %56, %64 : vector<2x32xf32>
    %73 = arith.addf %71, %72 : vector<2x32xf32>
    %74 = math.tanh %73 : vector<2x32xf32>
    %75 = arith.mulf %70, %74 : vector<2x32xf32>
    %c1 = arith.constant 1 : index
    %c0_33 = arith.constant 0 : index
    %c0_34 = arith.constant 0 : index
    %76 = vector.load %arg16[%c1, %c0_33, %c0_34] : memref<8x2x512xf32, #tpu.memory_space<vmem>>, vector<1x2x512xf32>
    %77 = vector.shape_cast %76 : vector<1x2x512xf32> to vector<2x512xf32>
    %cst_35 = arith.constant dense<0.000000e+00> : vector<2x512xf32>
    %78 = tpu.matmul %45, %9, %cst_35 {dimension_numbers = #tpu.dot_dimension_numbers<[1], [0], [0], [1], [0, 0, 1, 1], [], []>} : vector<2x64xf32>, vector<64x512xf32>, vector<2x512xf32> -> vector<2x512xf32>
    %79 = arith.addf %77, %78 : vector<2x512xf32>
    %80 = vector.extract_strided_slice %79 {offsets = [0, 0], sizes = [2, 64], strides = [1, 1]} : vector<2x512xf32> to vector<2x64xf32>
    %81 = arith.negf %80 : vector<2x64xf32>
    %82 = math.exp %81 : vector<2x64xf32>
    %cst_36 = arith.constant 1.000000e+00 : f32
    %83 = vector.broadcast %cst_36 : f32 to vector<2x64xf32>
    %84 = arith.addf %83, %82 : vector<2x64xf32>
    %85 = arith.divf %83, %84 : vector<2x64xf32>
    %86 = vector.extract_strided_slice %79 {offsets = [0, 128], sizes = [2, 64], strides = [1, 1]} : vector<2x512xf32> to vector<2x64xf32>
    %87 = arith.negf %86 : vector<2x64xf32>
    %88 = math.exp %87 : vector<2x64xf32>
    %cst_37 = arith.constant 1.000000e+00 : f32
    %89 = vector.broadcast %cst_37 : f32 to vector<2x64xf32>
    %90 = arith.addf %89, %88 : vector<2x64xf32>
    %91 = arith.divf %89, %90 : vector<2x64xf32>
    %92 = vector.extract_strided_slice %79 {offsets = [0, 256], sizes = [2, 64], strides = [1, 1]} : vector<2x512xf32> to vector<2x64xf32>
    %93 = math.tanh %92 : vector<2x64xf32>
    %94 = vector.extract_strided_slice %79 {offsets = [0, 384], sizes = [2, 64], strides = [1, 1]} : vector<2x512xf32> to vector<2x64xf32>
    %95 = arith.negf %94 : vector<2x64xf32>
    %96 = math.exp %95 : vector<2x64xf32>
    %cst_38 = arith.constant 1.000000e+00 : f32
    %97 = vector.broadcast %cst_38 : f32 to vector<2x64xf32>
    %98 = arith.addf %97, %96 : vector<2x64xf32>
    %99 = arith.divf %97, %98 : vector<2x64xf32>
    %100 = arith.mulf %91, %43 : vector<2x64xf32>
    %101 = arith.mulf %85, %93 : vector<2x64xf32>
    %102 = arith.addf %100, %101 : vector<2x64xf32>
    %103 = math.tanh %102 : vector<2x64xf32>
    %104 = arith.mulf %99, %103 : vector<2x64xf32>
    %cst_39 = arith.constant dense<0.000000e+00> : vector<2x512xf32>
    %105 = tpu.matmul %104, %10, %cst_39 {dimension_numbers = #tpu.dot_dimension_numbers<[1], [0], [0], [1], [0, 0, 1, 1], [], []>} : vector<2x64xf32>, vector<64x512xf32>, vector<2x512xf32> -> vector<2x512xf32>
    %106 = vector.broadcast %12 : vector<1x512xf32> to vector<2x512xf32>
    %107 = arith.addf %105, %106 : vector<2x512xf32>
    %cst_40 = arith.constant dense<0.000000e+00> : vector<2x512xf32>
    %108 = tpu.matmul %75, %11, %cst_40 {dimension_numbers = #tpu.dot_dimension_numbers<[1], [0], [0], [1], [0, 0, 1, 1], [], []>} : vector<2x32xf32>, vector<32x512xf32>, vector<2x512xf32> -> vector<2x512xf32>
    %109 = arith.addf %107, %108 : vector<2x512xf32>
    %110 = vector.extract_strided_slice %109 {offsets = [0, 0], sizes = [2, 32], strides = [1, 1]} : vector<2x512xf32> to vector<2x32xf32>
    %111 = arith.negf %110 : vector<2x32xf32>
    %112 = math.exp %111 : vector<2x32xf32>
    %cst_41 = arith.constant 1.000000e+00 : f32
    %113 = vector.broadcast %cst_41 : f32 to vector<2x32xf32>
    %114 = arith.addf %113, %112 : vector<2x32xf32>
    %115 = arith.divf %113, %114 : vector<2x32xf32>
    %116 = vector.extract_strided_slice %109 {offsets = [0, 128], sizes = [2, 32], strides = [1, 1]} : vector<2x512xf32> to vector<2x32xf32>
    %117 = arith.negf %116 : vector<2x32xf32>
    %118 = math.exp %117 : vector<2x32xf32>
    %cst_42 = arith.constant 1.000000e+00 : f32
    %119 = vector.broadcast %cst_42 : f32 to vector<2x32xf32>
    %120 = arith.addf %119, %118 : vector<2x32xf32>
    %121 = arith.divf %119, %120 : vector<2x32xf32>
    %122 = vector.extract_strided_slice %109 {offsets = [0, 256], sizes = [2, 32], strides = [1, 1]} : vector<2x512xf32> to vector<2x32xf32>
    %123 = math.tanh %122 : vector<2x32xf32>
    %124 = vector.extract_strided_slice %109 {offsets = [0, 384], sizes = [2, 32], strides = [1, 1]} : vector<2x512xf32> to vector<2x32xf32>
    %125 = arith.negf %124 : vector<2x32xf32>
    %126 = math.exp %125 : vector<2x32xf32>
    %cst_43 = arith.constant 1.000000e+00 : f32
    %127 = vector.broadcast %cst_43 : f32 to vector<2x32xf32>
    %128 = arith.addf %127, %126 : vector<2x32xf32>
    %129 = arith.divf %127, %128 : vector<2x32xf32>
    %130 = arith.mulf %121, %73 : vector<2x32xf32>
    %131 = arith.mulf %115, %123 : vector<2x32xf32>
    %132 = arith.addf %130, %131 : vector<2x32xf32>
    %133 = math.tanh %132 : vector<2x32xf32>
    %134 = arith.mulf %129, %133 : vector<2x32xf32>
    %c2 = arith.constant 2 : index
    %c0_44 = arith.constant 0 : index
    %c0_45 = arith.constant 0 : index
    %135 = vector.load %arg16[%c2, %c0_44, %c0_45] : memref<8x2x512xf32, #tpu.memory_space<vmem>>, vector<1x2x512xf32>
    %136 = vector.shape_cast %135 : vector<1x2x512xf32> to vector<2x512xf32>
    %cst_46 = arith.constant dense<0.000000e+00> : vector<2x512xf32>
    %137 = tpu.matmul %104, %9, %cst_46 {dimension_numbers = #tpu.dot_dimension_numbers<[1], [0], [0], [1], [0, 0, 1, 1], [], []>} : vector<2x64xf32>, vector<64x512xf32>, vector<2x512xf32> -> vector<2x512xf32>
    %138 = arith.addf %136, %137 : vector<2x512xf32>
    %139 = vector.extract_strided_slice %138 {offsets = [0, 0], sizes = [2, 64], strides = [1, 1]} : vector<2x512xf32> to vector<2x64xf32>
    %140 = arith.negf %139 : vector<2x64xf32>
    %141 = math.exp %140 : vector<2x64xf32>
    %cst_47 = arith.constant 1.000000e+00 : f32
    %142 = vector.broadcast %cst_47 : f32 to vector<2x64xf32>
    %143 = arith.addf %142, %141 : vector<2x64xf32>
    %144 = arith.divf %142, %143 : vector<2x64xf32>
    %145 = vector.extract_strided_slice %138 {offsets = [0, 128], sizes = [2, 64], strides = [1, 1]} : vector<2x512xf32> to vector<2x64xf32>
    %146 = arith.negf %145 : vector<2x64xf32>
    %147 = math.exp %146 : vector<2x64xf32>
    %cst_48 = arith.constant 1.000000e+00 : f32
    %148 = vector.broadcast %cst_48 : f32 to vector<2x64xf32>
    %149 = arith.addf %148, %147 : vector<2x64xf32>
    %150 = arith.divf %148, %149 : vector<2x64xf32>
    %151 = vector.extract_strided_slice %138 {offsets = [0, 256], sizes = [2, 64], strides = [1, 1]} : vector<2x512xf32> to vector<2x64xf32>
    %152 = math.tanh %151 : vector<2x64xf32>
    %153 = vector.extract_strided_slice %138 {offsets = [0, 384], sizes = [2, 64], strides = [1, 1]} : vector<2x512xf32> to vector<2x64xf32>
    %154 = arith.negf %153 : vector<2x64xf32>
    %155 = math.exp %154 : vector<2x64xf32>
    %cst_49 = arith.constant 1.000000e+00 : f32
    %156 = vector.broadcast %cst_49 : f32 to vector<2x64xf32>
    %157 = arith.addf %156, %155 : vector<2x64xf32>
    %158 = arith.divf %156, %157 : vector<2x64xf32>
    %159 = arith.mulf %150, %102 : vector<2x64xf32>
    %160 = arith.mulf %144, %152 : vector<2x64xf32>
    %161 = arith.addf %159, %160 : vector<2x64xf32>
    %162 = math.tanh %161 : vector<2x64xf32>
    %163 = arith.mulf %158, %162 : vector<2x64xf32>
    %cst_50 = arith.constant dense<0.000000e+00> : vector<2x512xf32>
    %164 = tpu.matmul %163, %10, %cst_50 {dimension_numbers = #tpu.dot_dimension_numbers<[1], [0], [0], [1], [0, 0, 1, 1], [], []>} : vector<2x64xf32>, vector<64x512xf32>, vector<2x512xf32> -> vector<2x512xf32>
    %165 = vector.broadcast %12 : vector<1x512xf32> to vector<2x512xf32>
    %166 = arith.addf %164, %165 : vector<2x512xf32>
    %cst_51 = arith.constant dense<0.000000e+00> : vector<2x512xf32>
    %167 = tpu.matmul %134, %11, %cst_51 {dimension_numbers = #tpu.dot_dimension_numbers<[1], [0], [0], [1], [0, 0, 1, 1], [], []>} : vector<2x32xf32>, vector<32x512xf32>, vector<2x512xf32> -> vector<2x512xf32>
    %168 = arith.addf %166, %167 : vector<2x512xf32>
    %169 = vector.extract_strided_slice %168 {offsets = [0, 0], sizes = [2, 32], strides = [1, 1]} : vector<2x512xf32> to vector<2x32xf32>
    %170 = arith.negf %169 : vector<2x32xf32>
    %171 = math.exp %170 : vector<2x32xf32>
    %cst_52 = arith.constant 1.000000e+00 : f32
    %172 = vector.broadcast %cst_52 : f32 to vector<2x32xf32>
    %173 = arith.addf %172, %171 : vector<2x32xf32>
    %174 = arith.divf %172, %173 : vector<2x32xf32>
    %175 = vector.extract_strided_slice %168 {offsets = [0, 128], sizes = [2, 32], strides = [1, 1]} : vector<2x512xf32> to vector<2x32xf32>
    %176 = arith.negf %175 : vector<2x32xf32>
    %177 = math.exp %176 : vector<2x32xf32>
    %cst_53 = arith.constant 1.000000e+00 : f32
    %178 = vector.broadcast %cst_53 : f32 to vector<2x32xf32>
    %179 = arith.addf %178, %177 : vector<2x32xf32>
    %180 = arith.divf %178, %179 : vector<2x32xf32>
    %181 = vector.extract_strided_slice %168 {offsets = [0, 256], sizes = [2, 32], strides = [1, 1]} : vector<2x512xf32> to vector<2x32xf32>
    %182 = math.tanh %181 : vector<2x32xf32>
    %183 = vector.extract_strided_slice %168 {offsets = [0, 384], sizes = [2, 32], strides = [1, 1]} : vector<2x512xf32> to vector<2x32xf32>
    %184 = arith.negf %183 : vector<2x32xf32>
    %185 = math.exp %184 : vector<2x32xf32>
    %cst_54 = arith.constant 1.000000e+00 : f32
    %186 = vector.broadcast %cst_54 : f32 to vector<2x32xf32>
    %187 = arith.addf %186, %185 : vector<2x32xf32>
    %188 = arith.divf %186, %187 : vector<2x32xf32>
    %189 = arith.mulf %180, %132 : vector<2x32xf32>
    %190 = arith.mulf %174, %182 : vector<2x32xf32>
    %191 = arith.addf %189, %190 : vector<2x32xf32>
    %192 = math.tanh %191 : vector<2x32xf32>
    %193 = arith.mulf %188, %192 : vector<2x32xf32>
    %c3 = arith.constant 3 : index
    %c0_55 = arith.constant 0 : index
    %c0_56 = arith.constant 0 : index
    %194 = vector.load %arg16[%c3, %c0_55, %c0_56] : memref<8x2x512xf32, #tpu.memory_space<vmem>>, vector<1x2x512xf32>
    %195 = vector.shape_cast %194 : vector<1x2x512xf32> to vector<2x512xf32>
    %cst_57 = arith.constant dense<0.000000e+00> : vector<2x512xf32>
    %196 = tpu.matmul %163, %9, %cst_57 {dimension_numbers = #tpu.dot_dimension_numbers<[1], [0], [0], [1], [0, 0, 1, 1], [], []>} : vector<2x64xf32>, vector<64x512xf32>, vector<2x512xf32> -> vector<2x512xf32>
    %197 = arith.addf %195, %196 : vector<2x512xf32>
    %198 = vector.extract_strided_slice %197 {offsets = [0, 0], sizes = [2, 64], strides = [1, 1]} : vector<2x512xf32> to vector<2x64xf32>
    %199 = arith.negf %198 : vector<2x64xf32>
    %200 = math.exp %199 : vector<2x64xf32>
    %cst_58 = arith.constant 1.000000e+00 : f32
    %201 = vector.broadcast %cst_58 : f32 to vector<2x64xf32>
    %202 = arith.addf %201, %200 : vector<2x64xf32>
    %203 = arith.divf %201, %202 : vector<2x64xf32>
    %204 = vector.extract_strided_slice %197 {offsets = [0, 128], sizes = [2, 64], strides = [1, 1]} : vector<2x512xf32> to vector<2x64xf32>
    %205 = arith.negf %204 : vector<2x64xf32>
    %206 = math.exp %205 : vector<2x64xf32>
    %cst_59 = arith.constant 1.000000e+00 : f32
    %207 = vector.broadcast %cst_59 : f32 to vector<2x64xf32>
    %208 = arith.addf %207, %206 : vector<2x64xf32>
    %209 = arith.divf %207, %208 : vector<2x64xf32>
    %210 = vector.extract_strided_slice %197 {offsets = [0, 256], sizes = [2, 64], strides = [1, 1]} : vector<2x512xf32> to vector<2x64xf32>
    %211 = math.tanh %210 : vector<2x64xf32>
    %212 = vector.extract_strided_slice %197 {offsets = [0, 384], sizes = [2, 64], strides = [1, 1]} : vector<2x512xf32> to vector<2x64xf32>
    %213 = arith.negf %212 : vector<2x64xf32>
    %214 = math.exp %213 : vector<2x64xf32>
    %cst_60 = arith.constant 1.000000e+00 : f32
    %215 = vector.broadcast %cst_60 : f32 to vector<2x64xf32>
    %216 = arith.addf %215, %214 : vector<2x64xf32>
    %217 = arith.divf %215, %216 : vector<2x64xf32>
    %218 = arith.mulf %209, %161 : vector<2x64xf32>
    %219 = arith.mulf %203, %211 : vector<2x64xf32>
    %220 = arith.addf %218, %219 : vector<2x64xf32>
    %221 = math.tanh %220 : vector<2x64xf32>
    %222 = arith.mulf %217, %221 : vector<2x64xf32>
    %cst_61 = arith.constant dense<0.000000e+00> : vector<2x512xf32>
    %223 = tpu.matmul %222, %10, %cst_61 {dimension_numbers = #tpu.dot_dimension_numbers<[1], [0], [0], [1], [0, 0, 1, 1], [], []>} : vector<2x64xf32>, vector<64x512xf32>, vector<2x512xf32> -> vector<2x512xf32>
    %224 = vector.broadcast %12 : vector<1x512xf32> to vector<2x512xf32>
    %225 = arith.addf %223, %224 : vector<2x512xf32>
    %cst_62 = arith.constant dense<0.000000e+00> : vector<2x512xf32>
    %226 = tpu.matmul %193, %11, %cst_62 {dimension_numbers = #tpu.dot_dimension_numbers<[1], [0], [0], [1], [0, 0, 1, 1], [], []>} : vector<2x32xf32>, vector<32x512xf32>, vector<2x512xf32> -> vector<2x512xf32>
    %227 = arith.addf %225, %226 : vector<2x512xf32>
    %228 = vector.extract_strided_slice %227 {offsets = [0, 0], sizes = [2, 32], strides = [1, 1]} : vector<2x512xf32> to vector<2x32xf32>
    %229 = arith.negf %228 : vector<2x32xf32>
    %230 = math.exp %229 : vector<2x32xf32>
    %cst_63 = arith.constant 1.000000e+00 : f32
    %231 = vector.broadcast %cst_63 : f32 to vector<2x32xf32>
    %232 = arith.addf %231, %230 : vector<2x32xf32>
    %233 = arith.divf %231, %232 : vector<2x32xf32>
    %234 = vector.extract_strided_slice %227 {offsets = [0, 128], sizes = [2, 32], strides = [1, 1]} : vector<2x512xf32> to vector<2x32xf32>
    %235 = arith.negf %234 : vector<2x32xf32>
    %236 = math.exp %235 : vector<2x32xf32>
    %cst_64 = arith.constant 1.000000e+00 : f32
    %237 = vector.broadcast %cst_64 : f32 to vector<2x32xf32>
    %238 = arith.addf %237, %236 : vector<2x32xf32>
    %239 = arith.divf %237, %238 : vector<2x32xf32>
    %240 = vector.extract_strided_slice %227 {offsets = [0, 256], sizes = [2, 32], strides = [1, 1]} : vector<2x512xf32> to vector<2x32xf32>
    %241 = math.tanh %240 : vector<2x32xf32>
    %242 = vector.extract_strided_slice %227 {offsets = [0, 384], sizes = [2, 32], strides = [1, 1]} : vector<2x512xf32> to vector<2x32xf32>
    %243 = arith.negf %242 : vector<2x32xf32>
    %244 = math.exp %243 : vector<2x32xf32>
    %cst_65 = arith.constant 1.000000e+00 : f32
    %245 = vector.broadcast %cst_65 : f32 to vector<2x32xf32>
    %246 = arith.addf %245, %244 : vector<2x32xf32>
    %247 = arith.divf %245, %246 : vector<2x32xf32>
    %248 = arith.mulf %239, %191 : vector<2x32xf32>
    %249 = arith.mulf %233, %241 : vector<2x32xf32>
    %250 = arith.addf %248, %249 : vector<2x32xf32>
    %251 = math.tanh %250 : vector<2x32xf32>
    %252 = arith.mulf %247, %251 : vector<2x32xf32>
    %c4 = arith.constant 4 : index
    %c0_66 = arith.constant 0 : index
    %c0_67 = arith.constant 0 : index
    %253 = vector.load %arg16[%c4, %c0_66, %c0_67] : memref<8x2x512xf32, #tpu.memory_space<vmem>>, vector<1x2x512xf32>
    %254 = vector.shape_cast %253 : vector<1x2x512xf32> to vector<2x512xf32>
    %cst_68 = arith.constant dense<0.000000e+00> : vector<2x512xf32>
    %255 = tpu.matmul %222, %9, %cst_68 {dimension_numbers = #tpu.dot_dimension_numbers<[1], [0], [0], [1], [0, 0, 1, 1], [], []>} : vector<2x64xf32>, vector<64x512xf32>, vector<2x512xf32> -> vector<2x512xf32>
    %256 = arith.addf %254, %255 : vector<2x512xf32>
    %257 = vector.extract_strided_slice %256 {offsets = [0, 0], sizes = [2, 64], strides = [1, 1]} : vector<2x512xf32> to vector<2x64xf32>
    %258 = arith.negf %257 : vector<2x64xf32>
    %259 = math.exp %258 : vector<2x64xf32>
    %cst_69 = arith.constant 1.000000e+00 : f32
    %260 = vector.broadcast %cst_69 : f32 to vector<2x64xf32>
    %261 = arith.addf %260, %259 : vector<2x64xf32>
    %262 = arith.divf %260, %261 : vector<2x64xf32>
    %263 = vector.extract_strided_slice %256 {offsets = [0, 128], sizes = [2, 64], strides = [1, 1]} : vector<2x512xf32> to vector<2x64xf32>
    %264 = arith.negf %263 : vector<2x64xf32>
    %265 = math.exp %264 : vector<2x64xf32>
    %cst_70 = arith.constant 1.000000e+00 : f32
    %266 = vector.broadcast %cst_70 : f32 to vector<2x64xf32>
    %267 = arith.addf %266, %265 : vector<2x64xf32>
    %268 = arith.divf %266, %267 : vector<2x64xf32>
    %269 = vector.extract_strided_slice %256 {offsets = [0, 256], sizes = [2, 64], strides = [1, 1]} : vector<2x512xf32> to vector<2x64xf32>
    %270 = math.tanh %269 : vector<2x64xf32>
    %271 = vector.extract_strided_slice %256 {offsets = [0, 384], sizes = [2, 64], strides = [1, 1]} : vector<2x512xf32> to vector<2x64xf32>
    %272 = arith.negf %271 : vector<2x64xf32>
    %273 = math.exp %272 : vector<2x64xf32>
    %cst_71 = arith.constant 1.000000e+00 : f32
    %274 = vector.broadcast %cst_71 : f32 to vector<2x64xf32>
    %275 = arith.addf %274, %273 : vector<2x64xf32>
    %276 = arith.divf %274, %275 : vector<2x64xf32>
    %277 = arith.mulf %268, %220 : vector<2x64xf32>
    %278 = arith.mulf %262, %270 : vector<2x64xf32>
    %279 = arith.addf %277, %278 : vector<2x64xf32>
    %280 = math.tanh %279 : vector<2x64xf32>
    %281 = arith.mulf %276, %280 : vector<2x64xf32>
    %cst_72 = arith.constant dense<0.000000e+00> : vector<2x512xf32>
    %282 = tpu.matmul %281, %10, %cst_72 {dimension_numbers = #tpu.dot_dimension_numbers<[1], [0], [0], [1], [0, 0, 1, 1], [], []>} : vector<2x64xf32>, vector<64x512xf32>, vector<2x512xf32> -> vector<2x512xf32>
    %283 = vector.broadcast %12 : vector<1x512xf32> to vector<2x512xf32>
    %284 = arith.addf %282, %283 : vector<2x512xf32>
    %cst_73 = arith.constant dense<0.000000e+00> : vector<2x512xf32>
    %285 = tpu.matmul %252, %11, %cst_73 {dimension_numbers = #tpu.dot_dimension_numbers<[1], [0], [0], [1], [0, 0, 1, 1], [], []>} : vector<2x32xf32>, vector<32x512xf32>, vector<2x512xf32> -> vector<2x512xf32>
    %286 = arith.addf %284, %285 : vector<2x512xf32>
    %287 = vector.extract_strided_slice %286 {offsets = [0, 0], sizes = [2, 32], strides = [1, 1]} : vector<2x512xf32> to vector<2x32xf32>
    %288 = arith.negf %287 : vector<2x32xf32>
    %289 = math.exp %288 : vector<2x32xf32>
    %cst_74 = arith.constant 1.000000e+00 : f32
    %290 = vector.broadcast %cst_74 : f32 to vector<2x32xf32>
    %291 = arith.addf %290, %289 : vector<2x32xf32>
    %292 = arith.divf %290, %291 : vector<2x32xf32>
    %293 = vector.extract_strided_slice %286 {offsets = [0, 128], sizes = [2, 32], strides = [1, 1]} : vector<2x512xf32> to vector<2x32xf32>
    %294 = arith.negf %293 : vector<2x32xf32>
    %295 = math.exp %294 : vector<2x32xf32>
    %cst_75 = arith.constant 1.000000e+00 : f32
    %296 = vector.broadcast %cst_75 : f32 to vector<2x32xf32>
    %297 = arith.addf %296, %295 : vector<2x32xf32>
    %298 = arith.divf %296, %297 : vector<2x32xf32>
    %299 = vector.extract_strided_slice %286 {offsets = [0, 256], sizes = [2, 32], strides = [1, 1]} : vector<2x512xf32> to vector<2x32xf32>
    %300 = math.tanh %299 : vector<2x32xf32>
    %301 = vector.extract_strided_slice %286 {offsets = [0, 384], sizes = [2, 32], strides = [1, 1]} : vector<2x512xf32> to vector<2x32xf32>
    %302 = arith.negf %301 : vector<2x32xf32>
    %303 = math.exp %302 : vector<2x32xf32>
    %cst_76 = arith.constant 1.000000e+00 : f32
    %304 = vector.broadcast %cst_76 : f32 to vector<2x32xf32>
    %305 = arith.addf %304, %303 : vector<2x32xf32>
    %306 = arith.divf %304, %305 : vector<2x32xf32>
    %307 = arith.mulf %298, %250 : vector<2x32xf32>
    %308 = arith.mulf %292, %300 : vector<2x32xf32>
    %309 = arith.addf %307, %308 : vector<2x32xf32>
    %310 = math.tanh %309 : vector<2x32xf32>
    %311 = arith.mulf %306, %310 : vector<2x32xf32>
    %c5 = arith.constant 5 : index
    %c0_77 = arith.constant 0 : index
    %c0_78 = arith.constant 0 : index
    %312 = vector.load %arg16[%c5, %c0_77, %c0_78] : memref<8x2x512xf32, #tpu.memory_space<vmem>>, vector<1x2x512xf32>
    %313 = vector.shape_cast %312 : vector<1x2x512xf32> to vector<2x512xf32>
    %cst_79 = arith.constant dense<0.000000e+00> : vector<2x512xf32>
    %314 = tpu.matmul %281, %9, %cst_79 {dimension_numbers = #tpu.dot_dimension_numbers<[1], [0], [0], [1], [0, 0, 1, 1], [], []>} : vector<2x64xf32>, vector<64x512xf32>, vector<2x512xf32> -> vector<2x512xf32>
    %315 = arith.addf %313, %314 : vector<2x512xf32>
    %316 = vector.extract_strided_slice %315 {offsets = [0, 0], sizes = [2, 64], strides = [1, 1]} : vector<2x512xf32> to vector<2x64xf32>
    %317 = arith.negf %316 : vector<2x64xf32>
    %318 = math.exp %317 : vector<2x64xf32>
    %cst_80 = arith.constant 1.000000e+00 : f32
    %319 = vector.broadcast %cst_80 : f32 to vector<2x64xf32>
    %320 = arith.addf %319, %318 : vector<2x64xf32>
    %321 = arith.divf %319, %320 : vector<2x64xf32>
    %322 = vector.extract_strided_slice %315 {offsets = [0, 128], sizes = [2, 64], strides = [1, 1]} : vector<2x512xf32> to vector<2x64xf32>
    %323 = arith.negf %322 : vector<2x64xf32>
    %324 = math.exp %323 : vector<2x64xf32>
    %cst_81 = arith.constant 1.000000e+00 : f32
    %325 = vector.broadcast %cst_81 : f32 to vector<2x64xf32>
    %326 = arith.addf %325, %324 : vector<2x64xf32>
    %327 = arith.divf %325, %326 : vector<2x64xf32>
    %328 = vector.extract_strided_slice %315 {offsets = [0, 256], sizes = [2, 64], strides = [1, 1]} : vector<2x512xf32> to vector<2x64xf32>
    %329 = math.tanh %328 : vector<2x64xf32>
    %330 = vector.extract_strided_slice %315 {offsets = [0, 384], sizes = [2, 64], strides = [1, 1]} : vector<2x512xf32> to vector<2x64xf32>
    %331 = arith.negf %330 : vector<2x64xf32>
    %332 = math.exp %331 : vector<2x64xf32>
    %cst_82 = arith.constant 1.000000e+00 : f32
    %333 = vector.broadcast %cst_82 : f32 to vector<2x64xf32>
    %334 = arith.addf %333, %332 : vector<2x64xf32>
    %335 = arith.divf %333, %334 : vector<2x64xf32>
    %336 = arith.mulf %327, %279 : vector<2x64xf32>
    %337 = arith.mulf %321, %329 : vector<2x64xf32>
    %338 = arith.addf %336, %337 : vector<2x64xf32>
    %339 = math.tanh %338 : vector<2x64xf32>
    %340 = arith.mulf %335, %339 : vector<2x64xf32>
    %cst_83 = arith.constant dense<0.000000e+00> : vector<2x512xf32>
    %341 = tpu.matmul %340, %10, %cst_83 {dimension_numbers = #tpu.dot_dimension_numbers<[1], [0], [0], [1], [0, 0, 1, 1], [], []>} : vector<2x64xf32>, vector<64x512xf32>, vector<2x512xf32> -> vector<2x512xf32>
    %342 = vector.broadcast %12 : vector<1x512xf32> to vector<2x512xf32>
    %343 = arith.addf %341, %342 : vector<2x512xf32>
    %cst_84 = arith.constant dense<0.000000e+00> : vector<2x512xf32>
    %344 = tpu.matmul %311, %11, %cst_84 {dimension_numbers = #tpu.dot_dimension_numbers<[1], [0], [0], [1], [0, 0, 1, 1], [], []>} : vector<2x32xf32>, vector<32x512xf32>, vector<2x512xf32> -> vector<2x512xf32>
    %345 = arith.addf %343, %344 : vector<2x512xf32>
    %346 = vector.extract_strided_slice %345 {offsets = [0, 0], sizes = [2, 32], strides = [1, 1]} : vector<2x512xf32> to vector<2x32xf32>
    %347 = arith.negf %346 : vector<2x32xf32>
    %348 = math.exp %347 : vector<2x32xf32>
    %cst_85 = arith.constant 1.000000e+00 : f32
    %349 = vector.broadcast %cst_85 : f32 to vector<2x32xf32>
    %350 = arith.addf %349, %348 : vector<2x32xf32>
    %351 = arith.divf %349, %350 : vector<2x32xf32>
    %352 = vector.extract_strided_slice %345 {offsets = [0, 128], sizes = [2, 32], strides = [1, 1]} : vector<2x512xf32> to vector<2x32xf32>
    %353 = arith.negf %352 : vector<2x32xf32>
    %354 = math.exp %353 : vector<2x32xf32>
    %cst_86 = arith.constant 1.000000e+00 : f32
    %355 = vector.broadcast %cst_86 : f32 to vector<2x32xf32>
    %356 = arith.addf %355, %354 : vector<2x32xf32>
    %357 = arith.divf %355, %356 : vector<2x32xf32>
    %358 = vector.extract_strided_slice %345 {offsets = [0, 256], sizes = [2, 32], strides = [1, 1]} : vector<2x512xf32> to vector<2x32xf32>
    %359 = math.tanh %358 : vector<2x32xf32>
    %360 = vector.extract_strided_slice %345 {offsets = [0, 384], sizes = [2, 32], strides = [1, 1]} : vector<2x512xf32> to vector<2x32xf32>
    %361 = arith.negf %360 : vector<2x32xf32>
    %362 = math.exp %361 : vector<2x32xf32>
    %cst_87 = arith.constant 1.000000e+00 : f32
    %363 = vector.broadcast %cst_87 : f32 to vector<2x32xf32>
    %364 = arith.addf %363, %362 : vector<2x32xf32>
    %365 = arith.divf %363, %364 : vector<2x32xf32>
    %366 = arith.mulf %357, %309 : vector<2x32xf32>
    %367 = arith.mulf %351, %359 : vector<2x32xf32>
    %368 = arith.addf %366, %367 : vector<2x32xf32>
    %369 = math.tanh %368 : vector<2x32xf32>
    %370 = arith.mulf %365, %369 : vector<2x32xf32>
    %c6 = arith.constant 6 : index
    %c0_88 = arith.constant 0 : index
    %c0_89 = arith.constant 0 : index
    %371 = vector.load %arg16[%c6, %c0_88, %c0_89] : memref<8x2x512xf32, #tpu.memory_space<vmem>>, vector<1x2x512xf32>
    %372 = vector.shape_cast %371 : vector<1x2x512xf32> to vector<2x512xf32>
    %cst_90 = arith.constant dense<0.000000e+00> : vector<2x512xf32>
    %373 = tpu.matmul %340, %9, %cst_90 {dimension_numbers = #tpu.dot_dimension_numbers<[1], [0], [0], [1], [0, 0, 1, 1], [], []>} : vector<2x64xf32>, vector<64x512xf32>, vector<2x512xf32> -> vector<2x512xf32>
    %374 = arith.addf %372, %373 : vector<2x512xf32>
    %375 = vector.extract_strided_slice %374 {offsets = [0, 0], sizes = [2, 64], strides = [1, 1]} : vector<2x512xf32> to vector<2x64xf32>
    %376 = arith.negf %375 : vector<2x64xf32>
    %377 = math.exp %376 : vector<2x64xf32>
    %cst_91 = arith.constant 1.000000e+00 : f32
    %378 = vector.broadcast %cst_91 : f32 to vector<2x64xf32>
    %379 = arith.addf %378, %377 : vector<2x64xf32>
    %380 = arith.divf %378, %379 : vector<2x64xf32>
    %381 = vector.extract_strided_slice %374 {offsets = [0, 128], sizes = [2, 64], strides = [1, 1]} : vector<2x512xf32> to vector<2x64xf32>
    %382 = arith.negf %381 : vector<2x64xf32>
    %383 = math.exp %382 : vector<2x64xf32>
    %cst_92 = arith.constant 1.000000e+00 : f32
    %384 = vector.broadcast %cst_92 : f32 to vector<2x64xf32>
    %385 = arith.addf %384, %383 : vector<2x64xf32>
    %386 = arith.divf %384, %385 : vector<2x64xf32>
    %387 = vector.extract_strided_slice %374 {offsets = [0, 256], sizes = [2, 64], strides = [1, 1]} : vector<2x512xf32> to vector<2x64xf32>
    %388 = math.tanh %387 : vector<2x64xf32>
    %389 = vector.extract_strided_slice %374 {offsets = [0, 384], sizes = [2, 64], strides = [1, 1]} : vector<2x512xf32> to vector<2x64xf32>
    %390 = arith.negf %389 : vector<2x64xf32>
    %391 = math.exp %390 : vector<2x64xf32>
    %cst_93 = arith.constant 1.000000e+00 : f32
    %392 = vector.broadcast %cst_93 : f32 to vector<2x64xf32>
    %393 = arith.addf %392, %391 : vector<2x64xf32>
    %394 = arith.divf %392, %393 : vector<2x64xf32>
    %395 = arith.mulf %386, %338 : vector<2x64xf32>
    %396 = arith.mulf %380, %388 : vector<2x64xf32>
    %397 = arith.addf %395, %396 : vector<2x64xf32>
    %398 = math.tanh %397 : vector<2x64xf32>
    %399 = arith.mulf %394, %398 : vector<2x64xf32>
    %cst_94 = arith.constant dense<0.000000e+00> : vector<2x512xf32>
    %400 = tpu.matmul %399, %10, %cst_94 {dimension_numbers = #tpu.dot_dimension_numbers<[1], [0], [0], [1], [0, 0, 1, 1], [], []>} : vector<2x64xf32>, vector<64x512xf32>, vector<2x512xf32> -> vector<2x512xf32>
    %401 = vector.broadcast %12 : vector<1x512xf32> to vector<2x512xf32>
    %402 = arith.addf %400, %401 : vector<2x512xf32>
    %cst_95 = arith.constant dense<0.000000e+00> : vector<2x512xf32>
    %403 = tpu.matmul %370, %11, %cst_95 {dimension_numbers = #tpu.dot_dimension_numbers<[1], [0], [0], [1], [0, 0, 1, 1], [], []>} : vector<2x32xf32>, vector<32x512xf32>, vector<2x512xf32> -> vector<2x512xf32>
    %404 = arith.addf %402, %403 : vector<2x512xf32>
    %405 = vector.extract_strided_slice %404 {offsets = [0, 0], sizes = [2, 32], strides = [1, 1]} : vector<2x512xf32> to vector<2x32xf32>
    %406 = arith.negf %405 : vector<2x32xf32>
    %407 = math.exp %406 : vector<2x32xf32>
    %cst_96 = arith.constant 1.000000e+00 : f32
    %408 = vector.broadcast %cst_96 : f32 to vector<2x32xf32>
    %409 = arith.addf %408, %407 : vector<2x32xf32>
    %410 = arith.divf %408, %409 : vector<2x32xf32>
    %411 = vector.extract_strided_slice %404 {offsets = [0, 128], sizes = [2, 32], strides = [1, 1]} : vector<2x512xf32> to vector<2x32xf32>
    %412 = arith.negf %411 : vector<2x32xf32>
    %413 = math.exp %412 : vector<2x32xf32>
    %cst_97 = arith.constant 1.000000e+00 : f32
    %414 = vector.broadcast %cst_97 : f32 to vector<2x32xf32>
    %415 = arith.addf %414, %413 : vector<2x32xf32>
    %416 = arith.divf %414, %415 : vector<2x32xf32>
    %417 = vector.extract_strided_slice %404 {offsets = [0, 256], sizes = [2, 32], strides = [1, 1]} : vector<2x512xf32> to vector<2x32xf32>
    %418 = math.tanh %417 : vector<2x32xf32>
    %419 = vector.extract_strided_slice %404 {offsets = [0, 384], sizes = [2, 32], strides = [1, 1]} : vector<2x512xf32> to vector<2x32xf32>
    %420 = arith.negf %419 : vector<2x32xf32>
    %421 = math.exp %420 : vector<2x32xf32>
    %cst_98 = arith.constant 1.000000e+00 : f32
    %422 = vector.broadcast %cst_98 : f32 to vector<2x32xf32>
    %423 = arith.addf %422, %421 : vector<2x32xf32>
    %424 = arith.divf %422, %423 : vector<2x32xf32>
    %425 = arith.mulf %416, %368 : vector<2x32xf32>
    %426 = arith.mulf %410, %418 : vector<2x32xf32>
    %427 = arith.addf %425, %426 : vector<2x32xf32>
    %428 = math.tanh %427 : vector<2x32xf32>
    %429 = arith.mulf %424, %428 : vector<2x32xf32>
    %c7 = arith.constant 7 : index
    %c0_99 = arith.constant 0 : index
    %c0_100 = arith.constant 0 : index
    %430 = vector.load %arg16[%c7, %c0_99, %c0_100] : memref<8x2x512xf32, #tpu.memory_space<vmem>>, vector<1x2x512xf32>
    %431 = vector.shape_cast %430 : vector<1x2x512xf32> to vector<2x512xf32>
    %cst_101 = arith.constant dense<0.000000e+00> : vector<2x512xf32>
    %432 = tpu.matmul %399, %9, %cst_101 {dimension_numbers = #tpu.dot_dimension_numbers<[1], [0], [0], [1], [0, 0, 1, 1], [], []>} : vector<2x64xf32>, vector<64x512xf32>, vector<2x512xf32> -> vector<2x512xf32>
    %433 = arith.addf %431, %432 : vector<2x512xf32>
    %434 = vector.extract_strided_slice %433 {offsets = [0, 0], sizes = [2, 64], strides = [1, 1]} : vector<2x512xf32> to vector<2x64xf32>
    %435 = arith.negf %434 : vector<2x64xf32>
    %436 = math.exp %435 : vector<2x64xf32>
    %cst_102 = arith.constant 1.000000e+00 : f32
    %437 = vector.broadcast %cst_102 : f32 to vector<2x64xf32>
    %438 = arith.addf %437, %436 : vector<2x64xf32>
    %439 = arith.divf %437, %438 : vector<2x64xf32>
    %440 = vector.extract_strided_slice %433 {offsets = [0, 128], sizes = [2, 64], strides = [1, 1]} : vector<2x512xf32> to vector<2x64xf32>
    %441 = arith.negf %440 : vector<2x64xf32>
    %442 = math.exp %441 : vector<2x64xf32>
    %cst_103 = arith.constant 1.000000e+00 : f32
    %443 = vector.broadcast %cst_103 : f32 to vector<2x64xf32>
    %444 = arith.addf %443, %442 : vector<2x64xf32>
    %445 = arith.divf %443, %444 : vector<2x64xf32>
    %446 = vector.extract_strided_slice %433 {offsets = [0, 256], sizes = [2, 64], strides = [1, 1]} : vector<2x512xf32> to vector<2x64xf32>
    %447 = math.tanh %446 : vector<2x64xf32>
    %448 = vector.extract_strided_slice %433 {offsets = [0, 384], sizes = [2, 64], strides = [1, 1]} : vector<2x512xf32> to vector<2x64xf32>
    %449 = arith.negf %448 : vector<2x64xf32>
    %450 = math.exp %449 : vector<2x64xf32>
    %cst_104 = arith.constant 1.000000e+00 : f32
    %451 = vector.broadcast %cst_104 : f32 to vector<2x64xf32>
    %452 = arith.addf %451, %450 : vector<2x64xf32>
    %453 = arith.divf %451, %452 : vector<2x64xf32>
    %454 = arith.mulf %445, %397 : vector<2x64xf32>
    %455 = arith.mulf %439, %447 : vector<2x64xf32>
    %456 = arith.addf %454, %455 : vector<2x64xf32>
    %457 = math.tanh %456 : vector<2x64xf32>
    %458 = arith.mulf %453, %457 : vector<2x64xf32>
    %cst_105 = arith.constant dense<0.000000e+00> : vector<2x512xf32>
    %459 = tpu.matmul %458, %10, %cst_105 {dimension_numbers = #tpu.dot_dimension_numbers<[1], [0], [0], [1], [0, 0, 1, 1], [], []>} : vector<2x64xf32>, vector<64x512xf32>, vector<2x512xf32> -> vector<2x512xf32>
    %460 = vector.broadcast %12 : vector<1x512xf32> to vector<2x512xf32>
    %461 = arith.addf %459, %460 : vector<2x512xf32>
    %cst_106 = arith.constant dense<0.000000e+00> : vector<2x512xf32>
    %462 = tpu.matmul %429, %11, %cst_106 {dimension_numbers = #tpu.dot_dimension_numbers<[1], [0], [0], [1], [0, 0, 1, 1], [], []>} : vector<2x32xf32>, vector<32x512xf32>, vector<2x512xf32> -> vector<2x512xf32>
    %463 = arith.addf %461, %462 : vector<2x512xf32>
    %464 = vector.extract_strided_slice %463 {offsets = [0, 0], sizes = [2, 32], strides = [1, 1]} : vector<2x512xf32> to vector<2x32xf32>
    %465 = arith.negf %464 : vector<2x32xf32>
    %466 = math.exp %465 : vector<2x32xf32>
    %cst_107 = arith.constant 1.000000e+00 : f32
    %467 = vector.broadcast %cst_107 : f32 to vector<2x32xf32>
    %468 = arith.addf %467, %466 : vector<2x32xf32>
    %469 = arith.divf %467, %468 : vector<2x32xf32>
    %470 = vector.extract_strided_slice %463 {offsets = [0, 128], sizes = [2, 32], strides = [1, 1]} : vector<2x512xf32> to vector<2x32xf32>
    %471 = arith.negf %470 : vector<2x32xf32>
    %472 = math.exp %471 : vector<2x32xf32>
    %cst_108 = arith.constant 1.000000e+00 : f32
    %473 = vector.broadcast %cst_108 : f32 to vector<2x32xf32>
    %474 = arith.addf %473, %472 : vector<2x32xf32>
    %475 = arith.divf %473, %474 : vector<2x32xf32>
    %476 = vector.extract_strided_slice %463 {offsets = [0, 256], sizes = [2, 32], strides = [1, 1]} : vector<2x512xf32> to vector<2x32xf32>
    %477 = math.tanh %476 : vector<2x32xf32>
    %478 = vector.extract_strided_slice %463 {offsets = [0, 384], sizes = [2, 32], strides = [1, 1]} : vector<2x512xf32> to vector<2x32xf32>
    %479 = arith.negf %478 : vector<2x32xf32>
    %480 = math.exp %479 : vector<2x32xf32>
    %cst_109 = arith.constant 1.000000e+00 : f32
    %481 = vector.broadcast %cst_109 : f32 to vector<2x32xf32>
    %482 = arith.addf %481, %480 : vector<2x32xf32>
    %483 = arith.divf %481, %482 : vector<2x32xf32>
    %484 = arith.mulf %475, %427 : vector<2x32xf32>
    %485 = arith.mulf %469, %477 : vector<2x32xf32>
    %486 = arith.addf %484, %485 : vector<2x32xf32>
    %487 = math.tanh %486 : vector<2x32xf32>
    %488 = arith.mulf %483, %487 : vector<2x32xf32>
    %c0_110 = arith.constant 0 : index
    %c0_111 = arith.constant 0 : index
    %489 = vector.load %arg7[%c0_110, %c0_111] : memref<32x512xf32, #tpu.memory_space<vmem>>, vector<32x512xf32>
    %cst_112 = arith.constant dense<0.000000e+00> : vector<2x512xf32>
    %490 = tpu.matmul %488, %489, %cst_112 {dimension_numbers = #tpu.dot_dimension_numbers<[1], [0], [0], [1], [0, 0, 1, 1], [], []>} : vector<2x32xf32>, vector<32x512xf32>, vector<2x512xf32> -> vector<2x512xf32>
    %c0_113 = arith.constant 0 : index
    %c0_114 = arith.constant 0 : index
    %491 = vector.load %arg9[%c0_113, %c0_114] : memref<1x512xf32, #tpu.memory_space<vmem>>, vector<1x512xf32>
    %492 = vector.broadcast %491 : vector<1x512xf32> to vector<2x512xf32>
    %493 = arith.addf %490, %492 : vector<2x512xf32>
    %c0_115 = arith.constant 0 : index
    %c0_116 = arith.constant 0 : index
    %494 = vector.load %arg8[%c0_115, %c0_116] : memref<32x512xf32, #tpu.memory_space<vmem>>, vector<32x512xf32>
    %c0_117 = arith.constant 0 : index
    %c0_118 = arith.constant 0 : index
    %495 = vector.load %arg10[%c0_117, %c0_118] : memref<32x512xf32, #tpu.memory_space<vmem>>, vector<32x512xf32>
    %c0_119 = arith.constant 0 : index
    %c0_120 = arith.constant 0 : index
    %496 = vector.load %arg11[%c0_119, %c0_120] : memref<64x512xf32, #tpu.memory_space<vmem>>, vector<64x512xf32>
    %c0_121 = arith.constant 0 : index
    %c0_122 = arith.constant 0 : index
    %497 = vector.load %arg12[%c0_121, %c0_122] : memref<1x512xf32, #tpu.memory_space<vmem>>, vector<1x512xf32>
    %cst_123 = arith.constant 0.000000e+00 : f32
    %498 = vector.broadcast %cst_123 : f32 to vector<2x32xf32>
    %cst_124 = arith.constant 0.000000e+00 : f32
    %499 = vector.broadcast %cst_124 : f32 to vector<2x32xf32>
    %cst_125 = arith.constant 0.000000e+00 : f32
    %500 = vector.broadcast %cst_125 : f32 to vector<2x64xf32>
    %cst_126 = arith.constant 0.000000e+00 : f32
    %501 = vector.broadcast %cst_126 : f32 to vector<2x64xf32>
    %cst_127 = arith.constant dense<0.000000e+00> : vector<2x512xf32>
    %502 = tpu.matmul %498, %494, %cst_127 {dimension_numbers = #tpu.dot_dimension_numbers<[1], [0], [0], [1], [0, 0, 1, 1], [], []>} : vector<2x32xf32>, vector<32x512xf32>, vector<2x512xf32> -> vector<2x512xf32>
    %503 = arith.addf %493, %502 : vector<2x512xf32>
    %504 = vector.extract_strided_slice %503 {offsets = [0, 0], sizes = [2, 32], strides = [1, 1]} : vector<2x512xf32> to vector<2x32xf32>
    %505 = arith.negf %504 : vector<2x32xf32>
    %506 = math.exp %505 : vector<2x32xf32>
    %cst_128 = arith.constant 1.000000e+00 : f32
    %507 = vector.broadcast %cst_128 : f32 to vector<2x32xf32>
    %508 = arith.addf %507, %506 : vector<2x32xf32>
    %509 = arith.divf %507, %508 : vector<2x32xf32>
    %510 = vector.extract_strided_slice %503 {offsets = [0, 128], sizes = [2, 32], strides = [1, 1]} : vector<2x512xf32> to vector<2x32xf32>
    %511 = arith.negf %510 : vector<2x32xf32>
    %512 = math.exp %511 : vector<2x32xf32>
    %cst_129 = arith.constant 1.000000e+00 : f32
    %513 = vector.broadcast %cst_129 : f32 to vector<2x32xf32>
    %514 = arith.addf %513, %512 : vector<2x32xf32>
    %515 = arith.divf %513, %514 : vector<2x32xf32>
    %516 = vector.extract_strided_slice %503 {offsets = [0, 256], sizes = [2, 32], strides = [1, 1]} : vector<2x512xf32> to vector<2x32xf32>
    %517 = math.tanh %516 : vector<2x32xf32>
    %518 = vector.extract_strided_slice %503 {offsets = [0, 384], sizes = [2, 32], strides = [1, 1]} : vector<2x512xf32> to vector<2x32xf32>
    %519 = arith.negf %518 : vector<2x32xf32>
    %520 = math.exp %519 : vector<2x32xf32>
    %cst_130 = arith.constant 1.000000e+00 : f32
    %521 = vector.broadcast %cst_130 : f32 to vector<2x32xf32>
    %522 = arith.addf %521, %520 : vector<2x32xf32>
    %523 = arith.divf %521, %522 : vector<2x32xf32>
    %524 = arith.mulf %515, %499 : vector<2x32xf32>
    %525 = arith.mulf %509, %517 : vector<2x32xf32>
    %526 = arith.addf %524, %525 : vector<2x32xf32>
    %527 = math.tanh %526 : vector<2x32xf32>
    %528 = arith.mulf %523, %527 : vector<2x32xf32>
    %cst_131 = arith.constant dense<0.000000e+00> : vector<2x512xf32>
    %529 = tpu.matmul %528, %495, %cst_131 {dimension_numbers = #tpu.dot_dimension_numbers<[1], [0], [0], [1], [0, 0, 1, 1], [], []>} : vector<2x32xf32>, vector<32x512xf32>, vector<2x512xf32> -> vector<2x512xf32>
    %530 = vector.broadcast %497 : vector<1x512xf32> to vector<2x512xf32>
    %531 = arith.addf %529, %530 : vector<2x512xf32>
    %cst_132 = arith.constant dense<0.000000e+00> : vector<2x512xf32>
    %532 = tpu.matmul %500, %496, %cst_132 {dimension_numbers = #tpu.dot_dimension_numbers<[1], [0], [0], [1], [0, 0, 1, 1], [], []>} : vector<2x64xf32>, vector<64x512xf32>, vector<2x512xf32> -> vector<2x512xf32>
    %533 = arith.addf %531, %532 : vector<2x512xf32>
    %534 = vector.extract_strided_slice %533 {offsets = [0, 0], sizes = [2, 64], strides = [1, 1]} : vector<2x512xf32> to vector<2x64xf32>
    %535 = arith.negf %534 : vector<2x64xf32>
    %536 = math.exp %535 : vector<2x64xf32>
    %cst_133 = arith.constant 1.000000e+00 : f32
    %537 = vector.broadcast %cst_133 : f32 to vector<2x64xf32>
    %538 = arith.addf %537, %536 : vector<2x64xf32>
    %539 = arith.divf %537, %538 : vector<2x64xf32>
    %540 = vector.extract_strided_slice %533 {offsets = [0, 128], sizes = [2, 64], strides = [1, 1]} : vector<2x512xf32> to vector<2x64xf32>
    %541 = arith.negf %540 : vector<2x64xf32>
    %542 = math.exp %541 : vector<2x64xf32>
    %cst_134 = arith.constant 1.000000e+00 : f32
    %543 = vector.broadcast %cst_134 : f32 to vector<2x64xf32>
    %544 = arith.addf %543, %542 : vector<2x64xf32>
    %545 = arith.divf %543, %544 : vector<2x64xf32>
    %546 = vector.extract_strided_slice %533 {offsets = [0, 256], sizes = [2, 64], strides = [1, 1]} : vector<2x512xf32> to vector<2x64xf32>
    %547 = math.tanh %546 : vector<2x64xf32>
    %548 = vector.extract_strided_slice %533 {offsets = [0, 384], sizes = [2, 64], strides = [1, 1]} : vector<2x512xf32> to vector<2x64xf32>
    %549 = arith.negf %548 : vector<2x64xf32>
    %550 = math.exp %549 : vector<2x64xf32>
    %cst_135 = arith.constant 1.000000e+00 : f32
    %551 = vector.broadcast %cst_135 : f32 to vector<2x64xf32>
    %552 = arith.addf %551, %550 : vector<2x64xf32>
    %553 = arith.divf %551, %552 : vector<2x64xf32>
    %554 = arith.mulf %545, %501 : vector<2x64xf32>
    %555 = arith.mulf %539, %547 : vector<2x64xf32>
    %556 = arith.addf %554, %555 : vector<2x64xf32>
    %557 = math.tanh %556 : vector<2x64xf32>
    %558 = arith.mulf %553, %557 : vector<2x64xf32>
    %c0_136 = arith.constant 0 : index
    %c0_137 = arith.constant 0 : index
    %c0_138 = arith.constant 0 : index
    %559 = vector.load %arg17[%c0_136, %c0_137, %c0_138] : memref<8x2x64xf32, #tpu.memory_space<vmem>>, vector<1x2x64xf32>
    %560 = vector.shape_cast %559 : vector<1x2x64xf32> to vector<2x64xf32>
    %561 = vector.shape_cast %558 : vector<2x64xf32> to vector<1x2x64xf32>
    tpu.vector_store %arg17[%c0_136, %c0_137, %c0_138], %561 {strides = array<i32>} : memref<8x2x64xf32, #tpu.memory_space<vmem>>, vector<1x2x64xf32>,
    %cst_139 = arith.constant dense<0.000000e+00> : vector<2x512xf32>
    %562 = tpu.matmul %528, %494, %cst_139 {dimension_numbers = #tpu.dot_dimension_numbers<[1], [0], [0], [1], [0, 0, 1, 1], [], []>} : vector<2x32xf32>, vector<32x512xf32>, vector<2x512xf32> -> vector<2x512xf32>
    %563 = arith.addf %493, %562 : vector<2x512xf32>
    %564 = vector.extract_strided_slice %563 {offsets = [0, 0], sizes = [2, 32], strides = [1, 1]} : vector<2x512xf32> to vector<2x32xf32>
    %565 = arith.negf %564 : vector<2x32xf32>
    %566 = math.exp %565 : vector<2x32xf32>
    %cst_140 = arith.constant 1.000000e+00 : f32
    %567 = vector.broadcast %cst_140 : f32 to vector<2x32xf32>
    %568 = arith.addf %567, %566 : vector<2x32xf32>
    %569 = arith.divf %567, %568 : vector<2x32xf32>
    %570 = vector.extract_strided_slice %563 {offsets = [0, 128], sizes = [2, 32], strides = [1, 1]} : vector<2x512xf32> to vector<2x32xf32>
    %571 = arith.negf %570 : vector<2x32xf32>
    %572 = math.exp %571 : vector<2x32xf32>
    %cst_141 = arith.constant 1.000000e+00 : f32
    %573 = vector.broadcast %cst_141 : f32 to vector<2x32xf32>
    %574 = arith.addf %573, %572 : vector<2x32xf32>
    %575 = arith.divf %573, %574 : vector<2x32xf32>
    %576 = vector.extract_strided_slice %563 {offsets = [0, 256], sizes = [2, 32], strides = [1, 1]} : vector<2x512xf32> to vector<2x32xf32>
    %577 = math.tanh %576 : vector<2x32xf32>
    %578 = vector.extract_strided_slice %563 {offsets = [0, 384], sizes = [2, 32], strides = [1, 1]} : vector<2x512xf32> to vector<2x32xf32>
    %579 = arith.negf %578 : vector<2x32xf32>
    %580 = math.exp %579 : vector<2x32xf32>
    %cst_142 = arith.constant 1.000000e+00 : f32
    %581 = vector.broadcast %cst_142 : f32 to vector<2x32xf32>
    %582 = arith.addf %581, %580 : vector<2x32xf32>
    %583 = arith.divf %581, %582 : vector<2x32xf32>
    %584 = arith.mulf %575, %526 : vector<2x32xf32>
    %585 = arith.mulf %569, %577 : vector<2x32xf32>
    %586 = arith.addf %584, %585 : vector<2x32xf32>
    %587 = math.tanh %586 : vector<2x32xf32>
    %588 = arith.mulf %583, %587 : vector<2x32xf32>
    %cst_143 = arith.constant dense<0.000000e+00> : vector<2x512xf32>
    %589 = tpu.matmul %588, %495, %cst_143 {dimension_numbers = #tpu.dot_dimension_numbers<[1], [0], [0], [1], [0, 0, 1, 1], [], []>} : vector<2x32xf32>, vector<32x512xf32>, vector<2x512xf32> -> vector<2x512xf32>
    %590 = vector.broadcast %497 : vector<1x512xf32> to vector<2x512xf32>
    %591 = arith.addf %589, %590 : vector<2x512xf32>
    %cst_144 = arith.constant dense<0.000000e+00> : vector<2x512xf32>
    %592 = tpu.matmul %558, %496, %cst_144 {dimension_numbers = #tpu.dot_dimension_numbers<[1], [0], [0], [1], [0, 0, 1, 1], [], []>} : vector<2x64xf32>, vector<64x512xf32>, vector<2x512xf32> -> vector<2x512xf32>
    %593 = arith.addf %591, %592 : vector<2x512xf32>
    %594 = vector.extract_strided_slice %593 {offsets = [0, 0], sizes = [2, 64], strides = [1, 1]} : vector<2x512xf32> to vector<2x64xf32>
    %595 = arith.negf %594 : vector<2x64xf32>
    %596 = math.exp %595 : vector<2x64xf32>
    %cst_145 = arith.constant 1.000000e+00 : f32
    %597 = vector.broadcast %cst_145 : f32 to vector<2x64xf32>
    %598 = arith.addf %597, %596 : vector<2x64xf32>
    %599 = arith.divf %597, %598 : vector<2x64xf32>
    %600 = vector.extract_strided_slice %593 {offsets = [0, 128], sizes = [2, 64], strides = [1, 1]} : vector<2x512xf32> to vector<2x64xf32>
    %601 = arith.negf %600 : vector<2x64xf32>
    %602 = math.exp %601 : vector<2x64xf32>
    %cst_146 = arith.constant 1.000000e+00 : f32
    %603 = vector.broadcast %cst_146 : f32 to vector<2x64xf32>
    %604 = arith.addf %603, %602 : vector<2x64xf32>
    %605 = arith.divf %603, %604 : vector<2x64xf32>
    %606 = vector.extract_strided_slice %593 {offsets = [0, 256], sizes = [2, 64], strides = [1, 1]} : vector<2x512xf32> to vector<2x64xf32>
    %607 = math.tanh %606 : vector<2x64xf32>
    %608 = vector.extract_strided_slice %593 {offsets = [0, 384], sizes = [2, 64], strides = [1, 1]} : vector<2x512xf32> to vector<2x64xf32>
    %609 = arith.negf %608 : vector<2x64xf32>
    %610 = math.exp %609 : vector<2x64xf32>
    %cst_147 = arith.constant 1.000000e+00 : f32
    %611 = vector.broadcast %cst_147 : f32 to vector<2x64xf32>
    %612 = arith.addf %611, %610 : vector<2x64xf32>
    %613 = arith.divf %611, %612 : vector<2x64xf32>
    %614 = arith.mulf %605, %556 : vector<2x64xf32>
    %615 = arith.mulf %599, %607 : vector<2x64xf32>
    %616 = arith.addf %614, %615 : vector<2x64xf32>
    %617 = math.tanh %616 : vector<2x64xf32>
    %618 = arith.mulf %613, %617 : vector<2x64xf32>
    %c1_148 = arith.constant 1 : index
    %c0_149 = arith.constant 0 : index
    %c0_150 = arith.constant 0 : index
    %619 = vector.load %arg17[%c1_148, %c0_149, %c0_150] : memref<8x2x64xf32, #tpu.memory_space<vmem>>, vector<1x2x64xf32>
    %620 = vector.shape_cast %619 : vector<1x2x64xf32> to vector<2x64xf32>
    %621 = vector.shape_cast %618 : vector<2x64xf32> to vector<1x2x64xf32>
    tpu.vector_store %arg17[%c1_148, %c0_149, %c0_150], %621 {strides = array<i32>} : memref<8x2x64xf32, #tpu.memory_space<vmem>>, vector<1x2x64xf32>,
    %cst_151 = arith.constant dense<0.000000e+00> : vector<2x512xf32>
    %622 = tpu.matmul %588, %494, %cst_151 {dimension_numbers = #tpu.dot_dimension_numbers<[1], [0], [0], [1], [0, 0, 1, 1], [], []>} : vector<2x32xf32>, vector<32x512xf32>, vector<2x512xf32> -> vector<2x512xf32>
    %623 = arith.addf %493, %622 : vector<2x512xf32>
    %624 = vector.extract_strided_slice %623 {offsets = [0, 0], sizes = [2, 32], strides = [1, 1]} : vector<2x512xf32> to vector<2x32xf32>
    %625 = arith.negf %624 : vector<2x32xf32>
    %626 = math.exp %625 : vector<2x32xf32>
    %cst_152 = arith.constant 1.000000e+00 : f32
    %627 = vector.broadcast %cst_152 : f32 to vector<2x32xf32>
    %628 = arith.addf %627, %626 : vector<2x32xf32>
    %629 = arith.divf %627, %628 : vector<2x32xf32>
    %630 = vector.extract_strided_slice %623 {offsets = [0, 128], sizes = [2, 32], strides = [1, 1]} : vector<2x512xf32> to vector<2x32xf32>
    %631 = arith.negf %630 : vector<2x32xf32>
    %632 = math.exp %631 : vector<2x32xf32>
    %cst_153 = arith.constant 1.000000e+00 : f32
    %633 = vector.broadcast %cst_153 : f32 to vector<2x32xf32>
    %634 = arith.addf %633, %632 : vector<2x32xf32>
    %635 = arith.divf %633, %634 : vector<2x32xf32>
    %636 = vector.extract_strided_slice %623 {offsets = [0, 256], sizes = [2, 32], strides = [1, 1]} : vector<2x512xf32> to vector<2x32xf32>
    %637 = math.tanh %636 : vector<2x32xf32>
    %638 = vector.extract_strided_slice %623 {offsets = [0, 384], sizes = [2, 32], strides = [1, 1]} : vector<2x512xf32> to vector<2x32xf32>
    %639 = arith.negf %638 : vector<2x32xf32>
    %640 = math.exp %639 : vector<2x32xf32>
    %cst_154 = arith.constant 1.000000e+00 : f32
    %641 = vector.broadcast %cst_154 : f32 to vector<2x32xf32>
    %642 = arith.addf %641, %640 : vector<2x32xf32>
    %643 = arith.divf %641, %642 : vector<2x32xf32>
    %644 = arith.mulf %635, %586 : vector<2x32xf32>
    %645 = arith.mulf %629, %637 : vector<2x32xf32>
    %646 = arith.addf %644, %645 : vector<2x32xf32>
    %647 = math.tanh %646 : vector<2x32xf32>
    %648 = arith.mulf %643, %647 : vector<2x32xf32>
    %cst_155 = arith.constant dense<0.000000e+00> : vector<2x512xf32>
    %649 = tpu.matmul %648, %495, %cst_155 {dimension_numbers = #tpu.dot_dimension_numbers<[1], [0], [0], [1], [0, 0, 1, 1], [], []>} : vector<2x32xf32>, vector<32x512xf32>, vector<2x512xf32> -> vector<2x512xf32>
    %650 = vector.broadcast %497 : vector<1x512xf32> to vector<2x512xf32>
    %651 = arith.addf %649, %650 : vector<2x512xf32>
    %cst_156 = arith.constant dense<0.000000e+00> : vector<2x512xf32>
    %652 = tpu.matmul %618, %496, %cst_156 {dimension_numbers = #tpu.dot_dimension_numbers<[1], [0], [0], [1], [0, 0, 1, 1], [], []>} : vector<2x64xf32>, vector<64x512xf32>, vector<2x512xf32> -> vector<2x512xf32>
    %653 = arith.addf %651, %652 : vector<2x512xf32>
    %654 = vector.extract_strided_slice %653 {offsets = [0, 0], sizes = [2, 64], strides = [1, 1]} : vector<2x512xf32> to vector<2x64xf32>
    %655 = arith.negf %654 : vector<2x64xf32>
    %656 = math.exp %655 : vector<2x64xf32>
    %cst_157 = arith.constant 1.000000e+00 : f32
    %657 = vector.broadcast %cst_157 : f32 to vector<2x64xf32>
    %658 = arith.addf %657, %656 : vector<2x64xf32>
    %659 = arith.divf %657, %658 : vector<2x64xf32>
    %660 = vector.extract_strided_slice %653 {offsets = [0, 128], sizes = [2, 64], strides = [1, 1]} : vector<2x512xf32> to vector<2x64xf32>
    %661 = arith.negf %660 : vector<2x64xf32>
    %662 = math.exp %661 : vector<2x64xf32>
    %cst_158 = arith.constant 1.000000e+00 : f32
    %663 = vector.broadcast %cst_158 : f32 to vector<2x64xf32>
    %664 = arith.addf %663, %662 : vector<2x64xf32>
    %665 = arith.divf %663, %664 : vector<2x64xf32>
    %666 = vector.extract_strided_slice %653 {offsets = [0, 256], sizes = [2, 64], strides = [1, 1]} : vector<2x512xf32> to vector<2x64xf32>
    %667 = math.tanh %666 : vector<2x64xf32>
    %668 = vector.extract_strided_slice %653 {offsets = [0, 384], sizes = [2, 64], strides = [1, 1]} : vector<2x512xf32> to vector<2x64xf32>
    %669 = arith.negf %668 : vector<2x64xf32>
    %670 = math.exp %669 : vector<2x64xf32>
    %cst_159 = arith.constant 1.000000e+00 : f32
    %671 = vector.broadcast %cst_159 : f32 to vector<2x64xf32>
    %672 = arith.addf %671, %670 : vector<2x64xf32>
    %673 = arith.divf %671, %672 : vector<2x64xf32>
    %674 = arith.mulf %665, %616 : vector<2x64xf32>
    %675 = arith.mulf %659, %667 : vector<2x64xf32>
    %676 = arith.addf %674, %675 : vector<2x64xf32>
    %677 = math.tanh %676 : vector<2x64xf32>
    %678 = arith.mulf %673, %677 : vector<2x64xf32>
    %c2_160 = arith.constant 2 : index
    %c0_161 = arith.constant 0 : index
    %c0_162 = arith.constant 0 : index
    %679 = vector.load %arg17[%c2_160, %c0_161, %c0_162] : memref<8x2x64xf32, #tpu.memory_space<vmem>>, vector<1x2x64xf32>
    %680 = vector.shape_cast %679 : vector<1x2x64xf32> to vector<2x64xf32>
    %681 = vector.shape_cast %678 : vector<2x64xf32> to vector<1x2x64xf32>
    tpu.vector_store %arg17[%c2_160, %c0_161, %c0_162], %681 {strides = array<i32>} : memref<8x2x64xf32, #tpu.memory_space<vmem>>, vector<1x2x64xf32>,
    %cst_163 = arith.constant dense<0.000000e+00> : vector<2x512xf32>
    %682 = tpu.matmul %648, %494, %cst_163 {dimension_numbers = #tpu.dot_dimension_numbers<[1], [0], [0], [1], [0, 0, 1, 1], [], []>} : vector<2x32xf32>, vector<32x512xf32>, vector<2x512xf32> -> vector<2x512xf32>
    %683 = arith.addf %493, %682 : vector<2x512xf32>
    %684 = vector.extract_strided_slice %683 {offsets = [0, 0], sizes = [2, 32], strides = [1, 1]} : vector<2x512xf32> to vector<2x32xf32>
    %685 = arith.negf %684 : vector<2x32xf32>
    %686 = math.exp %685 : vector<2x32xf32>
    %cst_164 = arith.constant 1.000000e+00 : f32
    %687 = vector.broadcast %cst_164 : f32 to vector<2x32xf32>
    %688 = arith.addf %687, %686 : vector<2x32xf32>
    %689 = arith.divf %687, %688 : vector<2x32xf32>
    %690 = vector.extract_strided_slice %683 {offsets = [0, 128], sizes = [2, 32], strides = [1, 1]} : vector<2x512xf32> to vector<2x32xf32>
    %691 = arith.negf %690 : vector<2x32xf32>
    %692 = math.exp %691 : vector<2x32xf32>
    %cst_165 = arith.constant 1.000000e+00 : f32
    %693 = vector.broadcast %cst_165 : f32 to vector<2x32xf32>
    %694 = arith.addf %693, %692 : vector<2x32xf32>
    %695 = arith.divf %693, %694 : vector<2x32xf32>
    %696 = vector.extract_strided_slice %683 {offsets = [0, 256], sizes = [2, 32], strides = [1, 1]} : vector<2x512xf32> to vector<2x32xf32>
    %697 = math.tanh %696 : vector<2x32xf32>
    %698 = vector.extract_strided_slice %683 {offsets = [0, 384], sizes = [2, 32], strides = [1, 1]} : vector<2x512xf32> to vector<2x32xf32>
    %699 = arith.negf %698 : vector<2x32xf32>
    %700 = math.exp %699 : vector<2x32xf32>
    %cst_166 = arith.constant 1.000000e+00 : f32
    %701 = vector.broadcast %cst_166 : f32 to vector<2x32xf32>
    %702 = arith.addf %701, %700 : vector<2x32xf32>
    %703 = arith.divf %701, %702 : vector<2x32xf32>
    %704 = arith.mulf %695, %646 : vector<2x32xf32>
    %705 = arith.mulf %689, %697 : vector<2x32xf32>
    %706 = arith.addf %704, %705 : vector<2x32xf32>
    %707 = math.tanh %706 : vector<2x32xf32>
    %708 = arith.mulf %703, %707 : vector<2x32xf32>
    %cst_167 = arith.constant dense<0.000000e+00> : vector<2x512xf32>
    %709 = tpu.matmul %708, %495, %cst_167 {dimension_numbers = #tpu.dot_dimension_numbers<[1], [0], [0], [1], [0, 0, 1, 1], [], []>} : vector<2x32xf32>, vector<32x512xf32>, vector<2x512xf32> -> vector<2x512xf32>
    %710 = vector.broadcast %497 : vector<1x512xf32> to vector<2x512xf32>
    %711 = arith.addf %709, %710 : vector<2x512xf32>
    %cst_168 = arith.constant dense<0.000000e+00> : vector<2x512xf32>
    %712 = tpu.matmul %678, %496, %cst_168 {dimension_numbers = #tpu.dot_dimension_numbers<[1], [0], [0], [1], [0, 0, 1, 1], [], []>} : vector<2x64xf32>, vector<64x512xf32>, vector<2x512xf32> -> vector<2x512xf32>
    %713 = arith.addf %711, %712 : vector<2x512xf32>
    %714 = vector.extract_strided_slice %713 {offsets = [0, 0], sizes = [2, 64], strides = [1, 1]} : vector<2x512xf32> to vector<2x64xf32>
    %715 = arith.negf %714 : vector<2x64xf32>
    %716 = math.exp %715 : vector<2x64xf32>
    %cst_169 = arith.constant 1.000000e+00 : f32
    %717 = vector.broadcast %cst_169 : f32 to vector<2x64xf32>
    %718 = arith.addf %717, %716 : vector<2x64xf32>
    %719 = arith.divf %717, %718 : vector<2x64xf32>
    %720 = vector.extract_strided_slice %713 {offsets = [0, 128], sizes = [2, 64], strides = [1, 1]} : vector<2x512xf32> to vector<2x64xf32>
    %721 = arith.negf %720 : vector<2x64xf32>
    %722 = math.exp %721 : vector<2x64xf32>
    %cst_170 = arith.constant 1.000000e+00 : f32
    %723 = vector.broadcast %cst_170 : f32 to vector<2x64xf32>
    %724 = arith.addf %723, %722 : vector<2x64xf32>
    %725 = arith.divf %723, %724 : vector<2x64xf32>
    %726 = vector.extract_strided_slice %713 {offsets = [0, 256], sizes = [2, 64], strides = [1, 1]} : vector<2x512xf32> to vector<2x64xf32>
    %727 = math.tanh %726 : vector<2x64xf32>
    %728 = vector.extract_strided_slice %713 {offsets = [0, 384], sizes = [2, 64], strides = [1, 1]} : vector<2x512xf32> to vector<2x64xf32>
    %729 = arith.negf %728 : vector<2x64xf32>
    %730 = math.exp %729 : vector<2x64xf32>
    %cst_171 = arith.constant 1.000000e+00 : f32
    %731 = vector.broadcast %cst_171 : f32 to vector<2x64xf32>
    %732 = arith.addf %731, %730 : vector<2x64xf32>
    %733 = arith.divf %731, %732 : vector<2x64xf32>
    %734 = arith.mulf %725, %676 : vector<2x64xf32>
    %735 = arith.mulf %719, %727 : vector<2x64xf32>
    %736 = arith.addf %734, %735 : vector<2x64xf32>
    %737 = math.tanh %736 : vector<2x64xf32>
    %738 = arith.mulf %733, %737 : vector<2x64xf32>
    %c3_172 = arith.constant 3 : index
    %c0_173 = arith.constant 0 : index
    %c0_174 = arith.constant 0 : index
    %739 = vector.load %arg17[%c3_172, %c0_173, %c0_174] : memref<8x2x64xf32, #tpu.memory_space<vmem>>, vector<1x2x64xf32>
    %740 = vector.shape_cast %739 : vector<1x2x64xf32> to vector<2x64xf32>
    %741 = vector.shape_cast %738 : vector<2x64xf32> to vector<1x2x64xf32>
    tpu.vector_store %arg17[%c3_172, %c0_173, %c0_174], %741 {strides = array<i32>} : memref<8x2x64xf32, #tpu.memory_space<vmem>>, vector<1x2x64xf32>,
    %cst_175 = arith.constant dense<0.000000e+00> : vector<2x512xf32>
    %742 = tpu.matmul %708, %494, %cst_175 {dimension_numbers = #tpu.dot_dimension_numbers<[1], [0], [0], [1], [0, 0, 1, 1], [], []>} : vector<2x32xf32>, vector<32x512xf32>, vector<2x512xf32> -> vector<2x512xf32>
    %743 = arith.addf %493, %742 : vector<2x512xf32>
    %744 = vector.extract_strided_slice %743 {offsets = [0, 0], sizes = [2, 32], strides = [1, 1]} : vector<2x512xf32> to vector<2x32xf32>
    %745 = arith.negf %744 : vector<2x32xf32>
    %746 = math.exp %745 : vector<2x32xf32>
    %cst_176 = arith.constant 1.000000e+00 : f32
    %747 = vector.broadcast %cst_176 : f32 to vector<2x32xf32>
    %748 = arith.addf %747, %746 : vector<2x32xf32>
    %749 = arith.divf %747, %748 : vector<2x32xf32>
    %750 = vector.extract_strided_slice %743 {offsets = [0, 128], sizes = [2, 32], strides = [1, 1]} : vector<2x512xf32> to vector<2x32xf32>
    %751 = arith.negf %750 : vector<2x32xf32>
    %752 = math.exp %751 : vector<2x32xf32>
    %cst_177 = arith.constant 1.000000e+00 : f32
    %753 = vector.broadcast %cst_177 : f32 to vector<2x32xf32>
    %754 = arith.addf %753, %752 : vector<2x32xf32>
    %755 = arith.divf %753, %754 : vector<2x32xf32>
    %756 = vector.extract_strided_slice %743 {offsets = [0, 256], sizes = [2, 32], strides = [1, 1]} : vector<2x512xf32> to vector<2x32xf32>
    %757 = math.tanh %756 : vector<2x32xf32>
    %758 = vector.extract_strided_slice %743 {offsets = [0, 384], sizes = [2, 32], strides = [1, 1]} : vector<2x512xf32> to vector<2x32xf32>
    %759 = arith.negf %758 : vector<2x32xf32>
    %760 = math.exp %759 : vector<2x32xf32>
    %cst_178 = arith.constant 1.000000e+00 : f32
    %761 = vector.broadcast %cst_178 : f32 to vector<2x32xf32>
    %762 = arith.addf %761, %760 : vector<2x32xf32>
    %763 = arith.divf %761, %762 : vector<2x32xf32>
    %764 = arith.mulf %755, %706 : vector<2x32xf32>
    %765 = arith.mulf %749, %757 : vector<2x32xf32>
    %766 = arith.addf %764, %765 : vector<2x32xf32>
    %767 = math.tanh %766 : vector<2x32xf32>
    %768 = arith.mulf %763, %767 : vector<2x32xf32>
    %cst_179 = arith.constant dense<0.000000e+00> : vector<2x512xf32>
    %769 = tpu.matmul %768, %495, %cst_179 {dimension_numbers = #tpu.dot_dimension_numbers<[1], [0], [0], [1], [0, 0, 1, 1], [], []>} : vector<2x32xf32>, vector<32x512xf32>, vector<2x512xf32> -> vector<2x512xf32>
    %770 = vector.broadcast %497 : vector<1x512xf32> to vector<2x512xf32>
    %771 = arith.addf %769, %770 : vector<2x512xf32>
    %cst_180 = arith.constant dense<0.000000e+00> : vector<2x512xf32>
    %772 = tpu.matmul %738, %496, %cst_180 {dimension_numbers = #tpu.dot_dimension_numbers<[1], [0], [0], [1], [0, 0, 1, 1], [], []>} : vector<2x64xf32>, vector<64x512xf32>, vector<2x512xf32> -> vector<2x512xf32>
    %773 = arith.addf %771, %772 : vector<2x512xf32>
    %774 = vector.extract_strided_slice %773 {offsets = [0, 0], sizes = [2, 64], strides = [1, 1]} : vector<2x512xf32> to vector<2x64xf32>
    %775 = arith.negf %774 : vector<2x64xf32>
    %776 = math.exp %775 : vector<2x64xf32>
    %cst_181 = arith.constant 1.000000e+00 : f32
    %777 = vector.broadcast %cst_181 : f32 to vector<2x64xf32>
    %778 = arith.addf %777, %776 : vector<2x64xf32>
    %779 = arith.divf %777, %778 : vector<2x64xf32>
    %780 = vector.extract_strided_slice %773 {offsets = [0, 128], sizes = [2, 64], strides = [1, 1]} : vector<2x512xf32> to vector<2x64xf32>
    %781 = arith.negf %780 : vector<2x64xf32>
    %782 = math.exp %781 : vector<2x64xf32>
    %cst_182 = arith.constant 1.000000e+00 : f32
    %783 = vector.broadcast %cst_182 : f32 to vector<2x64xf32>
    %784 = arith.addf %783, %782 : vector<2x64xf32>
    %785 = arith.divf %783, %784 : vector<2x64xf32>
    %786 = vector.extract_strided_slice %773 {offsets = [0, 256], sizes = [2, 64], strides = [1, 1]} : vector<2x512xf32> to vector<2x64xf32>
    %787 = math.tanh %786 : vector<2x64xf32>
    %788 = vector.extract_strided_slice %773 {offsets = [0, 384], sizes = [2, 64], strides = [1, 1]} : vector<2x512xf32> to vector<2x64xf32>
    %789 = arith.negf %788 : vector<2x64xf32>
    %790 = math.exp %789 : vector<2x64xf32>
    %cst_183 = arith.constant 1.000000e+00 : f32
    %791 = vector.broadcast %cst_183 : f32 to vector<2x64xf32>
    %792 = arith.addf %791, %790 : vector<2x64xf32>
    %793 = arith.divf %791, %792 : vector<2x64xf32>
    %794 = arith.mulf %785, %736 : vector<2x64xf32>
    %795 = arith.mulf %779, %787 : vector<2x64xf32>
    %796 = arith.addf %794, %795 : vector<2x64xf32>
    %797 = math.tanh %796 : vector<2x64xf32>
    %798 = arith.mulf %793, %797 : vector<2x64xf32>
    %c4_184 = arith.constant 4 : index
    %c0_185 = arith.constant 0 : index
    %c0_186 = arith.constant 0 : index
    %799 = vector.load %arg17[%c4_184, %c0_185, %c0_186] : memref<8x2x64xf32, #tpu.memory_space<vmem>>, vector<1x2x64xf32>
    %800 = vector.shape_cast %799 : vector<1x2x64xf32> to vector<2x64xf32>
    %801 = vector.shape_cast %798 : vector<2x64xf32> to vector<1x2x64xf32>
    tpu.vector_store %arg17[%c4_184, %c0_185, %c0_186], %801 {strides = array<i32>} : memref<8x2x64xf32, #tpu.memory_space<vmem>>, vector<1x2x64xf32>,
    %cst_187 = arith.constant dense<0.000000e+00> : vector<2x512xf32>
    %802 = tpu.matmul %768, %494, %cst_187 {dimension_numbers = #tpu.dot_dimension_numbers<[1], [0], [0], [1], [0, 0, 1, 1], [], []>} : vector<2x32xf32>, vector<32x512xf32>, vector<2x512xf32> -> vector<2x512xf32>
    %803 = arith.addf %493, %802 : vector<2x512xf32>
    %804 = vector.extract_strided_slice %803 {offsets = [0, 0], sizes = [2, 32], strides = [1, 1]} : vector<2x512xf32> to vector<2x32xf32>
    %805 = arith.negf %804 : vector<2x32xf32>
    %806 = math.exp %805 : vector<2x32xf32>
    %cst_188 = arith.constant 1.000000e+00 : f32
    %807 = vector.broadcast %cst_188 : f32 to vector<2x32xf32>
    %808 = arith.addf %807, %806 : vector<2x32xf32>
    %809 = arith.divf %807, %808 : vector<2x32xf32>
    %810 = vector.extract_strided_slice %803 {offsets = [0, 128], sizes = [2, 32], strides = [1, 1]} : vector<2x512xf32> to vector<2x32xf32>
    %811 = arith.negf %810 : vector<2x32xf32>
    %812 = math.exp %811 : vector<2x32xf32>
    %cst_189 = arith.constant 1.000000e+00 : f32
    %813 = vector.broadcast %cst_189 : f32 to vector<2x32xf32>
    %814 = arith.addf %813, %812 : vector<2x32xf32>
    %815 = arith.divf %813, %814 : vector<2x32xf32>
    %816 = vector.extract_strided_slice %803 {offsets = [0, 256], sizes = [2, 32], strides = [1, 1]} : vector<2x512xf32> to vector<2x32xf32>
    %817 = math.tanh %816 : vector<2x32xf32>
    %818 = vector.extract_strided_slice %803 {offsets = [0, 384], sizes = [2, 32], strides = [1, 1]} : vector<2x512xf32> to vector<2x32xf32>
    %819 = arith.negf %818 : vector<2x32xf32>
    %820 = math.exp %819 : vector<2x32xf32>
    %cst_190 = arith.constant 1.000000e+00 : f32
    %821 = vector.broadcast %cst_190 : f32 to vector<2x32xf32>
    %822 = arith.addf %821, %820 : vector<2x32xf32>
    %823 = arith.divf %821, %822 : vector<2x32xf32>
    %824 = arith.mulf %815, %766 : vector<2x32xf32>
    %825 = arith.mulf %809, %817 : vector<2x32xf32>
    %826 = arith.addf %824, %825 : vector<2x32xf32>
    %827 = math.tanh %826 : vector<2x32xf32>
    %828 = arith.mulf %823, %827 : vector<2x32xf32>
    %cst_191 = arith.constant dense<0.000000e+00> : vector<2x512xf32>
    %829 = tpu.matmul %828, %495, %cst_191 {dimension_numbers = #tpu.dot_dimension_numbers<[1], [0], [0], [1], [0, 0, 1, 1], [], []>} : vector<2x32xf32>, vector<32x512xf32>, vector<2x512xf32> -> vector<2x512xf32>
    %830 = vector.broadcast %497 : vector<1x512xf32> to vector<2x512xf32>
    %831 = arith.addf %829, %830 : vector<2x512xf32>
    %cst_192 = arith.constant dense<0.000000e+00> : vector<2x512xf32>
    %832 = tpu.matmul %798, %496, %cst_192 {dimension_numbers = #tpu.dot_dimension_numbers<[1], [0], [0], [1], [0, 0, 1, 1], [], []>} : vector<2x64xf32>, vector<64x512xf32>, vector<2x512xf32> -> vector<2x512xf32>
    %833 = arith.addf %831, %832 : vector<2x512xf32>
    %834 = vector.extract_strided_slice %833 {offsets = [0, 0], sizes = [2, 64], strides = [1, 1]} : vector<2x512xf32> to vector<2x64xf32>
    %835 = arith.negf %834 : vector<2x64xf32>
    %836 = math.exp %835 : vector<2x64xf32>
    %cst_193 = arith.constant 1.000000e+00 : f32
    %837 = vector.broadcast %cst_193 : f32 to vector<2x64xf32>
    %838 = arith.addf %837, %836 : vector<2x64xf32>
    %839 = arith.divf %837, %838 : vector<2x64xf32>
    %840 = vector.extract_strided_slice %833 {offsets = [0, 128], sizes = [2, 64], strides = [1, 1]} : vector<2x512xf32> to vector<2x64xf32>
    %841 = arith.negf %840 : vector<2x64xf32>
    %842 = math.exp %841 : vector<2x64xf32>
    %cst_194 = arith.constant 1.000000e+00 : f32
    %843 = vector.broadcast %cst_194 : f32 to vector<2x64xf32>
    %844 = arith.addf %843, %842 : vector<2x64xf32>
    %845 = arith.divf %843, %844 : vector<2x64xf32>
    %846 = vector.extract_strided_slice %833 {offsets = [0, 256], sizes = [2, 64], strides = [1, 1]} : vector<2x512xf32> to vector<2x64xf32>
    %847 = math.tanh %846 : vector<2x64xf32>
    %848 = vector.extract_strided_slice %833 {offsets = [0, 384], sizes = [2, 64], strides = [1, 1]} : vector<2x512xf32> to vector<2x64xf32>
    %849 = arith.negf %848 : vector<2x64xf32>
    %850 = math.exp %849 : vector<2x64xf32>
    %cst_195 = arith.constant 1.000000e+00 : f32
    %851 = vector.broadcast %cst_195 : f32 to vector<2x64xf32>
    %852 = arith.addf %851, %850 : vector<2x64xf32>
    %853 = arith.divf %851, %852 : vector<2x64xf32>
    %854 = arith.mulf %845, %796 : vector<2x64xf32>
    %855 = arith.mulf %839, %847 : vector<2x64xf32>
    %856 = arith.addf %854, %855 : vector<2x64xf32>
    %857 = math.tanh %856 : vector<2x64xf32>
    %858 = arith.mulf %853, %857 : vector<2x64xf32>
    %c5_196 = arith.constant 5 : index
    %c0_197 = arith.constant 0 : index
    %c0_198 = arith.constant 0 : index
    %859 = vector.load %arg17[%c5_196, %c0_197, %c0_198] : memref<8x2x64xf32, #tpu.memory_space<vmem>>, vector<1x2x64xf32>
    %860 = vector.shape_cast %859 : vector<1x2x64xf32> to vector<2x64xf32>
    %861 = vector.shape_cast %858 : vector<2x64xf32> to vector<1x2x64xf32>
    tpu.vector_store %arg17[%c5_196, %c0_197, %c0_198], %861 {strides = array<i32>} : memref<8x2x64xf32, #tpu.memory_space<vmem>>, vector<1x2x64xf32>,
    %cst_199 = arith.constant dense<0.000000e+00> : vector<2x512xf32>
    %862 = tpu.matmul %828, %494, %cst_199 {dimension_numbers = #tpu.dot_dimension_numbers<[1], [0], [0], [1], [0, 0, 1, 1], [], []>} : vector<2x32xf32>, vector<32x512xf32>, vector<2x512xf32> -> vector<2x512xf32>
    %863 = arith.addf %493, %862 : vector<2x512xf32>
    %864 = vector.extract_strided_slice %863 {offsets = [0, 0], sizes = [2, 32], strides = [1, 1]} : vector<2x512xf32> to vector<2x32xf32>
    %865 = arith.negf %864 : vector<2x32xf32>
    %866 = math.exp %865 : vector<2x32xf32>
    %cst_200 = arith.constant 1.000000e+00 : f32
    %867 = vector.broadcast %cst_200 : f32 to vector<2x32xf32>
    %868 = arith.addf %867, %866 : vector<2x32xf32>
    %869 = arith.divf %867, %868 : vector<2x32xf32>
    %870 = vector.extract_strided_slice %863 {offsets = [0, 128], sizes = [2, 32], strides = [1, 1]} : vector<2x512xf32> to vector<2x32xf32>
    %871 = arith.negf %870 : vector<2x32xf32>
    %872 = math.exp %871 : vector<2x32xf32>
    %cst_201 = arith.constant 1.000000e+00 : f32
    %873 = vector.broadcast %cst_201 : f32 to vector<2x32xf32>
    %874 = arith.addf %873, %872 : vector<2x32xf32>
    %875 = arith.divf %873, %874 : vector<2x32xf32>
    %876 = vector.extract_strided_slice %863 {offsets = [0, 256], sizes = [2, 32], strides = [1, 1]} : vector<2x512xf32> to vector<2x32xf32>
    %877 = math.tanh %876 : vector<2x32xf32>
    %878 = vector.extract_strided_slice %863 {offsets = [0, 384], sizes = [2, 32], strides = [1, 1]} : vector<2x512xf32> to vector<2x32xf32>
    %879 = arith.negf %878 : vector<2x32xf32>
    %880 = math.exp %879 : vector<2x32xf32>
    %cst_202 = arith.constant 1.000000e+00 : f32
    %881 = vector.broadcast %cst_202 : f32 to vector<2x32xf32>
    %882 = arith.addf %881, %880 : vector<2x32xf32>
    %883 = arith.divf %881, %882 : vector<2x32xf32>
    %884 = arith.mulf %875, %826 : vector<2x32xf32>
    %885 = arith.mulf %869, %877 : vector<2x32xf32>
    %886 = arith.addf %884, %885 : vector<2x32xf32>
    %887 = math.tanh %886 : vector<2x32xf32>
    %888 = arith.mulf %883, %887 : vector<2x32xf32>
    %cst_203 = arith.constant dense<0.000000e+00> : vector<2x512xf32>
    %889 = tpu.matmul %888, %495, %cst_203 {dimension_numbers = #tpu.dot_dimension_numbers<[1], [0], [0], [1], [0, 0, 1, 1], [], []>} : vector<2x32xf32>, vector<32x512xf32>, vector<2x512xf32> -> vector<2x512xf32>
    %890 = vector.broadcast %497 : vector<1x512xf32> to vector<2x512xf32>
    %891 = arith.addf %889, %890 : vector<2x512xf32>
    %cst_204 = arith.constant dense<0.000000e+00> : vector<2x512xf32>
    %892 = tpu.matmul %858, %496, %cst_204 {dimension_numbers = #tpu.dot_dimension_numbers<[1], [0], [0], [1], [0, 0, 1, 1], [], []>} : vector<2x64xf32>, vector<64x512xf32>, vector<2x512xf32> -> vector<2x512xf32>
    %893 = arith.addf %891, %892 : vector<2x512xf32>
    %894 = vector.extract_strided_slice %893 {offsets = [0, 0], sizes = [2, 64], strides = [1, 1]} : vector<2x512xf32> to vector<2x64xf32>
    %895 = arith.negf %894 : vector<2x64xf32>
    %896 = math.exp %895 : vector<2x64xf32>
    %cst_205 = arith.constant 1.000000e+00 : f32
    %897 = vector.broadcast %cst_205 : f32 to vector<2x64xf32>
    %898 = arith.addf %897, %896 : vector<2x64xf32>
    %899 = arith.divf %897, %898 : vector<2x64xf32>
    %900 = vector.extract_strided_slice %893 {offsets = [0, 128], sizes = [2, 64], strides = [1, 1]} : vector<2x512xf32> to vector<2x64xf32>
    %901 = arith.negf %900 : vector<2x64xf32>
    %902 = math.exp %901 : vector<2x64xf32>
    %cst_206 = arith.constant 1.000000e+00 : f32
    %903 = vector.broadcast %cst_206 : f32 to vector<2x64xf32>
    %904 = arith.addf %903, %902 : vector<2x64xf32>
    %905 = arith.divf %903, %904 : vector<2x64xf32>
    %906 = vector.extract_strided_slice %893 {offsets = [0, 256], sizes = [2, 64], strides = [1, 1]} : vector<2x512xf32> to vector<2x64xf32>
    %907 = math.tanh %906 : vector<2x64xf32>
    %908 = vector.extract_strided_slice %893 {offsets = [0, 384], sizes = [2, 64], strides = [1, 1]} : vector<2x512xf32> to vector<2x64xf32>
    %909 = arith.negf %908 : vector<2x64xf32>
    %910 = math.exp %909 : vector<2x64xf32>
    %cst_207 = arith.constant 1.000000e+00 : f32
    %911 = vector.broadcast %cst_207 : f32 to vector<2x64xf32>
    %912 = arith.addf %911, %910 : vector<2x64xf32>
    %913 = arith.divf %911, %912 : vector<2x64xf32>
    %914 = arith.mulf %905, %856 : vector<2x64xf32>
    %915 = arith.mulf %899, %907 : vector<2x64xf32>
    %916 = arith.addf %914, %915 : vector<2x64xf32>
    %917 = math.tanh %916 : vector<2x64xf32>
    %918 = arith.mulf %913, %917 : vector<2x64xf32>
    %c6_208 = arith.constant 6 : index
    %c0_209 = arith.constant 0 : index
    %c0_210 = arith.constant 0 : index
    %919 = vector.load %arg17[%c6_208, %c0_209, %c0_210] : memref<8x2x64xf32, #tpu.memory_space<vmem>>, vector<1x2x64xf32>
    %920 = vector.shape_cast %919 : vector<1x2x64xf32> to vector<2x64xf32>
    %921 = vector.shape_cast %918 : vector<2x64xf32> to vector<1x2x64xf32>
    tpu.vector_store %arg17[%c6_208, %c0_209, %c0_210], %921 {strides = array<i32>} : memref<8x2x64xf32, #tpu.memory_space<vmem>>, vector<1x2x64xf32>,
    %cst_211 = arith.constant dense<0.000000e+00> : vector<2x512xf32>
    %922 = tpu.matmul %888, %494, %cst_211 {dimension_numbers = #tpu.dot_dimension_numbers<[1], [0], [0], [1], [0, 0, 1, 1], [], []>} : vector<2x32xf32>, vector<32x512xf32>, vector<2x512xf32> -> vector<2x512xf32>
    %923 = arith.addf %493, %922 : vector<2x512xf32>
    %924 = vector.extract_strided_slice %923 {offsets = [0, 0], sizes = [2, 32], strides = [1, 1]} : vector<2x512xf32> to vector<2x32xf32>
    %925 = arith.negf %924 : vector<2x32xf32>
    %926 = math.exp %925 : vector<2x32xf32>
    %cst_212 = arith.constant 1.000000e+00 : f32
    %927 = vector.broadcast %cst_212 : f32 to vector<2x32xf32>
    %928 = arith.addf %927, %926 : vector<2x32xf32>
    %929 = arith.divf %927, %928 : vector<2x32xf32>
    %930 = vector.extract_strided_slice %923 {offsets = [0, 128], sizes = [2, 32], strides = [1, 1]} : vector<2x512xf32> to vector<2x32xf32>
    %931 = arith.negf %930 : vector<2x32xf32>
    %932 = math.exp %931 : vector<2x32xf32>
    %cst_213 = arith.constant 1.000000e+00 : f32
    %933 = vector.broadcast %cst_213 : f32 to vector<2x32xf32>
    %934 = arith.addf %933, %932 : vector<2x32xf32>
    %935 = arith.divf %933, %934 : vector<2x32xf32>
    %936 = vector.extract_strided_slice %923 {offsets = [0, 256], sizes = [2, 32], strides = [1, 1]} : vector<2x512xf32> to vector<2x32xf32>
    %937 = math.tanh %936 : vector<2x32xf32>
    %938 = vector.extract_strided_slice %923 {offsets = [0, 384], sizes = [2, 32], strides = [1, 1]} : vector<2x512xf32> to vector<2x32xf32>
    %939 = arith.negf %938 : vector<2x32xf32>
    %940 = math.exp %939 : vector<2x32xf32>
    %cst_214 = arith.constant 1.000000e+00 : f32
    %941 = vector.broadcast %cst_214 : f32 to vector<2x32xf32>
    %942 = arith.addf %941, %940 : vector<2x32xf32>
    %943 = arith.divf %941, %942 : vector<2x32xf32>
    %944 = arith.mulf %935, %886 : vector<2x32xf32>
    %945 = arith.mulf %929, %937 : vector<2x32xf32>
    %946 = arith.addf %944, %945 : vector<2x32xf32>
    %947 = math.tanh %946 : vector<2x32xf32>
    %948 = arith.mulf %943, %947 : vector<2x32xf32>
    %cst_215 = arith.constant dense<0.000000e+00> : vector<2x512xf32>
    %949 = tpu.matmul %948, %495, %cst_215 {dimension_numbers = #tpu.dot_dimension_numbers<[1], [0], [0], [1], [0, 0, 1, 1], [], []>} : vector<2x32xf32>, vector<32x512xf32>, vector<2x512xf32> -> vector<2x512xf32>
    %950 = vector.broadcast %497 : vector<1x512xf32> to vector<2x512xf32>
    %951 = arith.addf %949, %950 : vector<2x512xf32>
    %cst_216 = arith.constant dense<0.000000e+00> : vector<2x512xf32>
    %952 = tpu.matmul %918, %496, %cst_216 {dimension_numbers = #tpu.dot_dimension_numbers<[1], [0], [0], [1], [0, 0, 1, 1], [], []>} : vector<2x64xf32>, vector<64x512xf32>, vector<2x512xf32> -> vector<2x512xf32>
    %953 = arith.addf %951, %952 : vector<2x512xf32>
    %954 = vector.extract_strided_slice %953 {offsets = [0, 0], sizes = [2, 64], strides = [1, 1]} : vector<2x512xf32> to vector<2x64xf32>
    %955 = arith.negf %954 : vector<2x64xf32>
    %956 = math.exp %955 : vector<2x64xf32>
    %cst_217 = arith.constant 1.000000e+00 : f32
    %957 = vector.broadcast %cst_217 : f32 to vector<2x64xf32>
    %958 = arith.addf %957, %956 : vector<2x64xf32>
    %959 = arith.divf %957, %958 : vector<2x64xf32>
    %960 = vector.extract_strided_slice %953 {offsets = [0, 128], sizes = [2, 64], strides = [1, 1]} : vector<2x512xf32> to vector<2x64xf32>
    %961 = arith.negf %960 : vector<2x64xf32>
    %962 = math.exp %961 : vector<2x64xf32>
    %cst_218 = arith.constant 1.000000e+00 : f32
    %963 = vector.broadcast %cst_218 : f32 to vector<2x64xf32>
    %964 = arith.addf %963, %962 : vector<2x64xf32>
    %965 = arith.divf %963, %964 : vector<2x64xf32>
    %966 = vector.extract_strided_slice %953 {offsets = [0, 256], sizes = [2, 64], strides = [1, 1]} : vector<2x512xf32> to vector<2x64xf32>
    %967 = math.tanh %966 : vector<2x64xf32>
    %968 = vector.extract_strided_slice %953 {offsets = [0, 384], sizes = [2, 64], strides = [1, 1]} : vector<2x512xf32> to vector<2x64xf32>
    %969 = arith.negf %968 : vector<2x64xf32>
    %970 = math.exp %969 : vector<2x64xf32>
    %cst_219 = arith.constant 1.000000e+00 : f32
    %971 = vector.broadcast %cst_219 : f32 to vector<2x64xf32>
    %972 = arith.addf %971, %970 : vector<2x64xf32>
    %973 = arith.divf %971, %972 : vector<2x64xf32>
    %974 = arith.mulf %965, %916 : vector<2x64xf32>
    %975 = arith.mulf %959, %967 : vector<2x64xf32>
    %976 = arith.addf %974, %975 : vector<2x64xf32>
    %977 = math.tanh %976 : vector<2x64xf32>
    %978 = arith.mulf %973, %977 : vector<2x64xf32>
    %c7_220 = arith.constant 7 : index
    %c0_221 = arith.constant 0 : index
    %c0_222 = arith.constant 0 : index
    %979 = vector.load %arg17[%c7_220, %c0_221, %c0_222] : memref<8x2x64xf32, #tpu.memory_space<vmem>>, vector<1x2x64xf32>
    %980 = vector.shape_cast %979 : vector<1x2x64xf32> to vector<2x64xf32>
    %981 = vector.shape_cast %978 : vector<2x64xf32> to vector<1x2x64xf32>
    tpu.vector_store %arg17[%c7_220, %c0_221, %c0_222], %981 {strides = array<i32>} : memref<8x2x64xf32, #tpu.memory_space<vmem>>, vector<1x2x64xf32>,
    %c0_223 = arith.constant 0 : index
    %c0_224 = arith.constant 0 : index
    %c0_225 = arith.constant 0 : index
    %982 = vector.load %arg17[%c0_223, %c0_224, %c0_225] : memref<8x2x64xf32, #tpu.memory_space<vmem>>, vector<8x2x64xf32>
    %983 = vector.shape_cast %982 : vector<8x2x64xf32> to vector<16x64xf32>
    %c0_226 = arith.constant 0 : index
    %c0_227 = arith.constant 0 : index
    %984 = vector.load %arg13[%c0_226, %c0_227] : memref<64x4xf32, #tpu.memory_space<vmem>>, vector<64x4xf32>
    %cst_228 = arith.constant dense<0.000000e+00> : vector<16x4xf32>
    %985 = tpu.matmul %983, %984, %cst_228 {dimension_numbers = #tpu.dot_dimension_numbers<[1], [0], [0], [1], [0, 0, 1, 1], [], []>} : vector<16x64xf32>, vector<64x4xf32>, vector<16x4xf32> -> vector<16x4xf32>
    %c0_229 = arith.constant 0 : index
    %c0_230 = arith.constant 0 : index
    %986 = vector.load %arg14[%c0_229, %c0_230] : memref<1x4xf32, #tpu.memory_space<vmem>>, vector<1x4xf32>
    %987 = vector.broadcast %986 : vector<1x4xf32> to vector<16x4xf32>
    %988 = arith.addf %985, %987 : vector<16x4xf32>
    %989 = vector.shape_cast %988 : vector<16x4xf32> to vector<8x2x4xf32>
    %c0_231 = arith.constant 0 : index
    %c0_232 = arith.constant 0 : index
    %c0_233 = arith.constant 0 : index
    %990 = vector.load %arg15[%c0_231, %c0_232, %c0_233] : memref<8x2x4xf32, #tpu.memory_space<vmem>>, vector<8x2x4xf32>
    tpu.vector_store %arg15[%c0_231, %c0_232, %c0_233], %989 {strides = array<i32>} : memref<8x2x4xf32, #tpu.memory_space<vmem>>, vector<8x2x4xf32>,
    return
  }
}

</mosaic_0001>

<llo_original>
// kernel: lstm_autoencoder_forward.1
$region0: #{lstm_autoencoder_forward.1}
  #allocation0 [shape = 'u32[]', space=smem, size = 0x4, offset = 0x4, fixed_abs, tag = 'smem constant byte address 0x4 - core index']
  #allocation1 [shape = 'u32[144,128]{1,0:T(1,128)}', space=vmem, size = 0x12000, scoped, tag = 'internal scratch']
  #allocation2 [shape = 'f32[8,2,512]{2,1,0:T(2,128)}', space=vmem, size = 0x8000, scoped, tag = 'scratch operand']
  #allocation3 [shape = 'f32[8,2,64]{2,1,0:T(2,128)}', space=vmem, size = 0x2000, scoped, tag = 'scratch operand']
  %s0 = inlined_call_operand.vmem [shape: f32[8,2,4], index: 0, kind: input, shape index: {}]
  %s1 = inlined_call_operand.vmem [shape: f32[4,512], index: 1, kind: input, shape index: {}]
  %s2 = inlined_call_operand.hbm [shape: f32[64,512], index: 2, kind: input, shape index: {}]
  %s3 = inlined_call_operand.vmem [shape: f32[1,512], index: 3, kind: input, shape index: {}]
  %s4 = inlined_call_operand.hbm [shape: f32[64,512], index: 4, kind: input, shape index: {}]
  %s5 = inlined_call_operand.hbm [shape: f32[32,512], index: 5, kind: input, shape index: {}]
  %s6 = inlined_call_operand.vmem [shape: f32[1,512], index: 6, kind: input, shape index: {}]
  %s7 = inlined_call_operand.hbm [shape: f32[32,512], index: 7, kind: input, shape index: {}]
  %s8 = inlined_call_operand.hbm [shape: f32[32,512], index: 8, kind: input, shape index: {}]
  %s9 = inlined_call_operand.vmem [shape: f32[1,512], index: 9, kind: input, shape index: {}]
  %s10 = inlined_call_operand.hbm [shape: f32[32,512], index: 10, kind: input, shape index: {}]
  %s11 = inlined_call_operand.hbm [shape: f32[64,512], index: 11, kind: input, shape index: {}]
  %s12 = inlined_call_operand.vmem [shape: f32[1,512], index: 12, kind: input, shape index: {}]
  %s13 = inlined_call_operand.vmem [shape: f32[64,4], index: 13, kind: input, shape index: {}]
  %s14 = inlined_call_operand.vmem [shape: f32[1,4], index: 14, kind: input, shape index: {}]
  %s15 = inlined_call_operand.vmem [shape: f32[8,2,4], index: 15, kind: output, shape index: {}]
  %s16 = sld [smem:[#allocation0]]
  $region98: #{lstm_autoencoder_forward.1} parent=0
    _
  %s18 = ssub.s32 1, %s16
  %s19 = scalar_select 0, %s18, %s16
  $region1: #{lstm_autoencoder_forward.1} parent=0
    #allocation4 [shape = 'u8[131072]{0}', space=vmem, size = 0x20000, scoped, tag = 'input window, operand 2, single buffered']
    #allocation5 [shape = 's32[1]{0}', space=sflag, size = 0x4, scoped, tag = 'scoped memory for lstm_autoencoder_forward.1']
    #allocation6 [shape = 'u8[131072]{0}', space=vmem, size = 0x20000, scoped, tag = 'input window, operand 4, single buffered']
    #allocation7 [shape = 's32[1]{0}', space=sflag, size = 0x4, scoped, tag = 'scoped memory for lstm_autoencoder_forward.1']
    #allocation8 [shape = 'u8[65536]{0}', space=vmem, size = 0x10000, scoped, tag = 'input window, operand 5, single buffered']
    #allocation9 [shape = 'u8[65536]{0}', space=vmem, size = 0x10000, scoped, tag = 'input window, operand 7, single buffered']
    #allocation10 [shape = 's32[1]{0}', space=sflag, size = 0x4, scoped, tag = 'scoped memory for lstm_autoencoder_forward.1']
    #allocation11 [shape = 'u8[65536]{0}', space=vmem, size = 0x10000, scoped, tag = 'input window, operand 8, single buffered']
    #allocation12 [shape = 'u8[65536]{0}', space=vmem, size = 0x10000, scoped, tag = 'input window, operand 10, single buffered']
    #allocation13 [shape = 's32[1]{0}', space=sflag, size = 0x4, scoped, tag = 'scoped memory for lstm_autoencoder_forward.1']
    #allocation14 [shape = 'u8[131072]{0}', space=vmem, size = 0x20000, scoped, tag = 'input window, operand 11, single buffered']
    %20 = vsyncpa [#allocation5], 0
    %21 = vsyncpa [#allocation7], 0
    %22 = vsyncpa [#allocation10], 0
    %23 = vsyncpa [#allocation13], 0
    // Predicated region
    $region2: #{lstm_autoencoder_forward.1} parent=1 // pred_check
      _
    $region3: #{lstm_autoencoder_forward.1} parent=1 // pred_check_branch
      %25 = sbr.rel (0) target = $region5
    $region4: #{lstm_autoencoder_forward.1} parent=1 // pred_region
      _
    $region5: #{lstm_autoencoder_forward.1} parent=1 // pred_fallthru
      _
    // Predicated region
    $region6: #{lstm_autoencoder_forward.1} parent=1 // pred_check
      _
    $region7: #{lstm_autoencoder_forward.1} parent=1 // pred_check_branch
      %27 = sbr.rel (0) target = $region9
    $region8: #{lstm_autoencoder_forward.1} parent=1 // pred_region
      _
    $region9: #{lstm_autoencoder_forward.1} parent=1 // pred_fallthru
      _
    // Predicated region
    $region10: #{lstm_autoencoder_forward.1} parent=1 // pred_check
      _
    $region11: #{lstm_autoencoder_forward.1} parent=1 // pred_check_branch
      %29 = sbr.rel (0) target = $region13
    $region12: #{lstm_autoencoder_forward.1} parent=1 // pred_region
      %s31 = ssub.s32 4096, 4096
      %32 = vsyncadd [#allocation5], %s31
      %s33 = sshll.u32 [#allocation4], 4
      %s34 = int_to_ptr.vmem [resolvable:$true] %s33
      %39 = dma.hbm_to_vmem [thread:$0]  %s2, 4096, %s34, [#allocation5], 512, 512, 32
    $region13: #{lstm_autoencoder_forward.1} parent=1 // pred_fallthru
      _
    // Predicated region
    $region14: #{lstm_autoencoder_forward.1} parent=1 // pred_check
      _
    $region15: #{lstm_autoencoder_forward.1} parent=1 // pred_check_branch
      %41 = sbr.rel (0) target = $region17
    $region16: #{lstm_autoencoder_forward.1} parent=1 // pred_region
      _
    $region17: #{lstm_autoencoder_forward.1} parent=1 // pred_fallthru
      _
    // Predicated region
    $region18: #{lstm_autoencoder_forward.1} parent=1 // pred_check
      _
    $region19: #{lstm_autoencoder_forward.1} parent=1 // pred_check_branch
      %43 = sbr.rel (0) target = $region21
    $region20: #{lstm_autoencoder_forward.1} parent=1 // pred_region
      %s45 = ssub.s32 4096, 4096
      %46 = vsyncadd [#allocation7], %s45
      %s47 = sshll.u32 [#allocation6], 4
      %s48 = int_to_ptr.vmem [resolvable:$true] %s47
      %53 = dma.hbm_to_vmem [thread:$0]  %s4, 4096, %s48, [#allocation7], 512, 512, 32
    $region21: #{lstm_autoencoder_forward.1} parent=1 // pred_fallthru
      _
    // Predicated region
    $region22: #{lstm_autoencoder_forward.1} parent=1 // pred_check
      _
    $region23: #{lstm_autoencoder_forward.1} parent=1 // pred_check_branch
      %55 = sbr.rel (0) target = $region25
    $region24: #{lstm_autoencoder_forward.1} parent=1 // pred_region
      %s57 = ssub.s32 2048, 2048
      %58 = vsyncadd [#allocation7], %s57
      %s59 = sshll.u32 [#allocation8], 4
      %s60 = int_to_ptr.vmem [resolvable:$true] %s59
      %65 = dma.hbm_to_vmem [thread:$0]  %s5, 2048, %s60, [#allocation7], 512, 512, 32
    $region25: #{lstm_autoencoder_forward.1} parent=1 // pred_fallthru
      _
    // Predicated region
    $region26: #{lstm_autoencoder_forward.1} parent=1 // pred_check
      _
    $region27: #{lstm_autoencoder_forward.1} parent=1 // pred_check_branch
      %67 = sbr.rel (0) target = $region29
    $region28: #{lstm_autoencoder_forward.1} parent=1 // pred_region
      _
    $region29: #{lstm_autoencoder_forward.1} parent=1 // pred_fallthru
      _
    // Predicated region
    $region30: #{lstm_autoencoder_forward.1} parent=1 // pred_check
      _
    $region31: #{lstm_autoencoder_forward.1} parent=1 // pred_check_branch
      %69 = sbr.rel (0) target = $region33
    $region32: #{lstm_autoencoder_forward.1} parent=1 // pred_region
      %s71 = ssub.s32 2048, 2048
      %72 = vsyncadd [#allocation10], %s71
      %s73 = sshll.u32 [#allocation9], 4
      %s74 = int_to_ptr.vmem [resolvable:$true] %s73
      %79 = dma.hbm_to_vmem [thread:$0]  %s7, 2048, %s74, [#allocation10], 512, 512, 32
    $region33: #{lstm_autoencoder_forward.1} parent=1 // pred_fallthru
      _
    // Predicated region
    $region34: #{lstm_autoencoder_forward.1} parent=1 // pred_check
      _
    $region35: #{lstm_autoencoder_forward.1} parent=1 // pred_check_branch
      %81 = sbr.rel (0) target = $region37
    $region36: #{lstm_autoencoder_forward.1} parent=1 // pred_region
      %s83 = ssub.s32 2048, 2048
      %84 = vsyncadd [#allocation10], %s83
      %s85 = sshll.u32 [#allocation11], 4
      %s86 = int_to_ptr.vmem [resolvable:$true] %s85
      %91 = dma.hbm_to_vmem [thread:$0]  %s8, 2048, %s86, [#allocation10], 512, 512, 32
    $region37: #{lstm_autoencoder_forward.1} parent=1 // pred_fallthru
      _
    // Predicated region
    $region38: #{lstm_autoencoder_forward.1} parent=1 // pred_check
      _
    $region39: #{lstm_autoencoder_forward.1} parent=1 // pred_check_branch
      %93 = sbr.rel (0) target = $region41
    $region40: #{lstm_autoencoder_forward.1} parent=1 // pred_region
      _
    $region41: #{lstm_autoencoder_forward.1} parent=1 // pred_fallthru
      _
    // Predicated region
    $region42: #{lstm_autoencoder_forward.1} parent=1 // pred_check
      _
    $region43: #{lstm_autoencoder_forward.1} parent=1 // pred_check_branch
      %95 = sbr.rel (0) target = $region45
    $region44: #{lstm_autoencoder_forward.1} parent=1 // pred_region
      %s97 = ssub.s32 2048, 2048
      %98 = vsyncadd [#allocation13], %s97
      %s99 = sshll.u32 [#allocation12], 4
      %s100 = int_to_ptr.vmem [resolvable:$true] %s99
      %105 = dma.hbm_to_vmem [thread:$0]  %s10, 2048, %s100, [#allocation13], 512, 512, 32
    $region45: #{lstm_autoencoder_forward.1} parent=1 // pred_fallthru
      _
    // Predicated region
    $region46: #{lstm_autoencoder_forward.1} parent=1 // pred_check
      _
    $region47: #{lstm_autoencoder_forward.1} parent=1 // pred_check_branch
      %107 = sbr.rel (0) target = $region49
    $region48: #{lstm_autoencoder_forward.1} parent=1 // pred_region
      %s109 = ssub.s32 4096, 4096
      %110 = vsyncadd [#allocation13], %s109
      %s111 = sshll.u32 [#allocation14], 4
      %s112 = int_to_ptr.vmem [resolvable:$true] %s111
      %117 = dma.hbm_to_vmem [thread:$0]  %s11, 4096, %s112, [#allocation13], 512, 512, 32
    $region49: #{lstm_autoencoder_forward.1} parent=1 // pred_fallthru
      _
    // Predicated region
    $region50: #{lstm_autoencoder_forward.1} parent=1 // pred_check
      _
    $region51: #{lstm_autoencoder_forward.1} parent=1 // pred_check_branch
      %119 = sbr.rel (0) target = $region53
    $region52: #{lstm_autoencoder_forward.1} parent=1 // pred_region
      _
    $region53: #{lstm_autoencoder_forward.1} parent=1 // pred_fallthru
      _
    // Predicated region
    $region54: #{lstm_autoencoder_forward.1} parent=1 // pred_check
      _
    $region55: #{lstm_autoencoder_forward.1} parent=1 // pred_check_branch
      %121 = sbr.rel (0) target = $region57
    $region56: #{lstm_autoencoder_forward.1} parent=1 // pred_region
      _
    $region57: #{lstm_autoencoder_forward.1} parent=1 // pred_fallthru
      _
    // Predicated region
    $region58: #{lstm_autoencoder_forward.1} parent=1 // pred_check
      _
    $region59: #{lstm_autoencoder_forward.1} parent=1 // pred_check_branch
      %123 = sbr.rel (0) target = $region61
    $region60: #{lstm_autoencoder_forward.1} parent=1 // pred_region
      _
    $region61: #{lstm_autoencoder_forward.1} parent=1 // pred_fallthru
      _
    // Predicated region
    $region62: #{lstm_autoencoder_forward.1} parent=1 // pred_check
      _
    $region63: #{lstm_autoencoder_forward.1} parent=1 // pred_check_branch
      %125 = sbr.rel (0) target = $region65
    $region64: #{lstm_autoencoder_forward.1} parent=1 // pred_region
      %126 = dma.done [#allocation5], 4096
    $region65: #{lstm_autoencoder_forward.1} parent=1 // pred_fallthru
      _
    // Predicated region
    $region66: #{lstm_autoencoder_forward.1} parent=1 // pred_check
      _
    $region67: #{lstm_autoencoder_forward.1} parent=1 // pred_check_branch
      %128 = sbr.rel (0) target = $region69
    $region68: #{lstm_autoencoder_forward.1} parent=1 // pred_region
      %129 = dma.done [#allocation7], 4096
    $region69: #{lstm_autoencoder_forward.1} parent=1 // pred_fallthru
      _
    // Predicated region
    $region70: #{lstm_autoencoder_forward.1} parent=1 // pred_check
      _
    $region71: #{lstm_autoencoder_forward.1} parent=1 // pred_check_branch
      %131 = sbr.rel (0) target = $region73
    $region72: #{lstm_autoencoder_forward.1} parent=1 // pred_region
      %132 = dma.done [#allocation7], 2048
    $region73: #{lstm_autoencoder_forward.1} parent=1 // pred_fallthru
      _
    // Predicated region
    $region74: #{lstm_autoencoder_forward.1} parent=1 // pred_check
      _
    $region75: #{lstm_autoencoder_forward.1} parent=1 // pred_check_branch
      %134 = sbr.rel (0) target = $region77
    $region76: #{lstm_autoencoder_forward.1} parent=1 // pred_region
      %135 = dma.done [#allocation10], 2048
    $region77: #{lstm_autoencoder_forward.1} parent=1 // pred_fallthru
      _
    // Predicated region
    $region78: #{lstm_autoencoder_forward.1} parent=1 // pred_check
      _
    $region79: #{lstm_autoencoder_forward.1} parent=1 // pred_check_branch
      %137 = sbr.rel (0) target = $region81
    $region80: #{lstm_autoencoder_forward.1} parent=1 // pred_region
      %138 = dma.done [#allocation10], 2048
    $region81: #{lstm_autoencoder_forward.1} parent=1 // pred_fallthru
      _
    // Predicated region
    $region82: #{lstm_autoencoder_forward.1} parent=1 // pred_check
      _
    $region83: #{lstm_autoencoder_forward.1} parent=1 // pred_check_branch
      %140 = sbr.rel (0) target = $region85
    $region84: #{lstm_autoencoder_forward.1} parent=1 // pred_region
      %141 = dma.done [#allocation13], 2048
    $region85: #{lstm_autoencoder_forward.1} parent=1 // pred_fallthru
      _
    // Predicated region
    $region86: #{lstm_autoencoder_forward.1} parent=1 // pred_check
      _
    $region87: #{lstm_autoencoder_forward.1} parent=1 // pred_check_branch
      %143 = sbr.rel (0) target = $region89
    $region88: #{lstm_autoencoder_forward.1} parent=1 // pred_region
      %144 = dma.done [#allocation13], 4096
    $region89: #{lstm_autoencoder_forward.1} parent=1 // pred_fallthru
      _
    %v145 = vld [vmem:[%s0] sm:$0x3]
    %v146 = vld [vmem:[%s0 + $0x2] sm:$0x3]
    %v147 = vld [vmem:[%s0 + $0x4] sm:$0x3]
    %v148 = vld [vmem:[%s0 + $0x6] sm:$0x3]
    %v149 = vld [vmem:[%s0 + $0x8] sm:$0x3]
    %v150 = vld [vmem:[%s0 + $0xa] sm:$0x3]
    %v151 = vld [vmem:[%s0 + $0xc] sm:$0x3]
    %v152 = vld [vmem:[%s0 + $0xe] sm:$0x3]
    %v153 = vld [vmem:[%s1] sm:$0xff]
    %v154 = vld [vmem:[%s1 + $0x8] sm:$0xff]
    %v155 = vld [vmem:[%s3] sm:$0xf]
    %v157 = vlaneseq
    %v158 = vshrl.u32 %v157, 7
    %v159 = vsub.s32 0, %v158
    %v160 = vrot.slane %v155, %v159
    %v161 = vlaneseq
    %v162 = vshrl.u32 %v161, 7
    %v163 = vsub.s32 1, %v162
    %v164 = vrot.slane %v155, %v163
    %v165 = vlaneseq
    %v166 = vshrl.u32 %v165, 7
    %v167 = vsub.s32 2, %v166
    %v168 = vrot.slane %v155, %v167
    %v169 = vlaneseq
    %v170 = vshrl.u32 %v169, 7
    %v171 = vsub.s32 3, %v170
    %v172 = vrot.slane %v155, %v171
    %v185 = vcombine.low %v145, %v146
    %v186 = vcombine.low %v147, %v148
    %v188 = vunpack.c.l.s4 1983009808
    %v189 = vunpack.c.0.s8 %v188
    %v190 = vlaneseq
    %v191 = vshrl.u32 %v190, 7
    %v192 = vsub.s32 %v189, %v191
    %v193 = vrot.slane %v185, %v192
    %v195 = vunpack.c.l.s4 1983009808
    %v196 = vunpack.c.0.s8 %v195
    %v197 = vlaneseq
    %v198 = vshrl.u32 %v197, 7
    %v199 = vsub.s32 %v196, %v198
    %v200 = vrot.slane %v186, %v199
    %v201 = vcombine.low %v193, %v200
    %v202 = vcombine.low %v149, %v150
    %v203 = vcombine.low %v151, %v152
    %v205 = vunpack.c.l.s4 1983009808
    %v206 = vunpack.c.0.s8 %v205
    %v207 = vlaneseq
    %v208 = vshrl.u32 %v207, 7
    %v209 = vsub.s32 %v206, %v208
    %v210 = vrot.slane %v202, %v209
    %v212 = vunpack.c.l.s4 1983009808
    %v213 = vunpack.c.0.s8 %v212
    %v214 = vlaneseq
    %v215 = vshrl.u32 %v214, 7
    %v216 = vsub.s32 %v213, %v215
    %v217 = vrot.slane %v203, %v216
    %v218 = vcombine.low %v210, %v217
    %v221 = vcombine.high %v153, %v153
    %v222 = vcombine.high %v154, %v154
    %vm223 = vcmask 31744
    %v224 = vsel %vm223, %v201, 0
    %v226 = vsel %vm223, %v218, 0
    %vm228 = vcmask 1043456
    %v229 = vsel %vm228, %v153, 0
    %v231 = vsel %vm228, %v221, 0
    %v233 = vsel %vm228, %v154, 0
    %v235 = vsel %vm228, %v222, 0
    %237 = vmatprep.subr.mxu0 0.0
    %238 = vmatpush1.msra.mxu0 0.0
    %239 = vmatprep.subr.mxu0 0.0
    %240 = vmatpush1.msra.mxu0 0.0
    %241 = vmatprep.subr.mxu0 0.0
    %242 = vmatpush1.msra.mxu0 0.0
    %243 = vmatprep.subr.mxu0 0.0
    %244 = vmatpush1.msra.mxu0 0.0
    %245 = vmatprep.subr.mxu0 0.0
    %246 = vmatpush1.msra.mxu0 0.0
    %247 = vmatprep.subr.mxu0 0.0
    %248 = vmatpush1.msra.mxu0 0.0
    %249 = vmatprep.subr.mxu0 0.0
    %250 = vmatpush1.msra.mxu0 0.0
    %251 = vmatprep.subr.mxu0 0.0
    %252 = vmatpush1.msra.mxu0 0.0
    %253 = vmatprep.subr.mxu0 0.0
    %254 = vmatpush1.msra.mxu0 0.0
    %255 = vmatprep.subr.mxu0 0.0
    %256 = vmatpush1.msra.mxu0 0.0
    %257 = vmatprep.subr.mxu0 0.0
    %258 = vmatpush1.msra.mxu0 0.0
    %259 = vmatprep.subr.mxu0 0.0
    %260 = vmatpush1.msra.mxu0 0.0
    %261 = vmatprep.subr.mxu0 0.0
    %262 = vmatpush1.msra.mxu0 0.0
    %263 = vmatprep.subr.mxu0 0.0
    %264 = vmatpush1.msra.mxu0 0.0
    %265 = vmatprep.subr.mxu0 0.0
    %266 = vmatpush1.msra.mxu0 0.0
    %267 = vmatprep.subr.mxu0 %v231
    %268 = vmatpush1.msra.mxu0 %v229
    %269 = vmatprep.subr.mxu0 0.0
    %270 = vmatpush2.msra.mxu0 0.0
    %271 = vmatprep.subr.mxu0 0.0
    %272 = vmatpush2.msra.mxu0 0.0
    %273 = vmatprep.subr.mxu0 0.0
    %274 = vmatpush2.msra.mxu0 0.0
    %275 = vmatprep.subr.mxu0 0.0
    %276 = vmatpush2.msra.mxu0 0.0
    %277 = vmatprep.subr.mxu0 0.0
    %278 = vmatpush2.msra.mxu0 0.0
    %279 = vmatprep.subr.mxu0 0.0
    %280 = vmatpush2.msra.mxu0 0.0
    %281 = vmatprep.subr.mxu0 0.0
    %282 = vmatpush2.msra.mxu0 0.0
    %283 = vmatprep.subr.mxu0 0.0
    %284 = vmatpush2.msra.mxu0 0.0
    %285 = vmatprep.subr.mxu0 0.0
    %286 = vmatpush2.msra.mxu0 0.0
    %287 = vmatprep.subr.mxu0 0.0
    %288 = vmatpush2.msra.mxu0 0.0
    %289 = vmatprep.subr.mxu0 0.0
    %290 = vmatpush2.msra.mxu0 0.0
    %291 = vmatprep.subr.mxu0 0.0
    %292 = vmatpush2.msra.mxu0 0.0
    %293 = vmatprep.subr.mxu0 0.0
    %294 = vmatpush2.msra.mxu0 0.0
    %295 = vmatprep.subr.mxu0 0.0
    %296 = vmatpush2.msra.mxu0 0.0
    %297 = vmatprep.subr.mxu0 0.0
    %298 = vmatpush2.msra.mxu0 0.0
    %299 = vmatprep.subr.mxu0 0.0
    %300 = vmatpush2.msra.mxu0 0.0
    %301 = vmatprep.mubr.f32.mxu0 0.0
    %302 = vmatmul.mubr.f32.gmra.mxu0 %v224
    %v303 = vpop.f32.mrf.mxu0
    %v304 = vadd.f32 %v160, %v303
    %v305 = vpop.f32.mrf.mxu0
    %v306 = vadd.f32 %v164, %v305
    %307 = vmatprep.mubr.f32.mxu0 0.0
    %308 = vmatmul.mubr.f32.gmra.mxu0 %v226
    %v309 = vpop.f32.mrf.mxu0
    %v310 = vadd.f32 %v160, %v309
    %v311 = vpop.f32.mrf.mxu0
    %v312 = vadd.f32 %v164, %v311
    %313 = vdwg.mxu0
    %314 = vmatprep.subr.mxu0 0.0
    %315 = vmatpush1.msra.mxu0 0.0
    %316 = vmatprep.subr.mxu0 0.0
    %317 = vmatpush1.msra.mxu0 0.0
    %318 = vmatprep.subr.mxu0 0.0
    %319 = vmatpush1.msra.mxu0 0.0
    %320 = vmatprep.subr.mxu0 0.0
    %321 = vmatpush1.msra.mxu0 0.0
    %322 = vmatprep.subr.mxu0 0.0
    %323 = vmatpush1.msra.mxu0 0.0
    %324 = vmatprep.subr.mxu0 0.0
    %325 = vmatpush1.msra.mxu0 0.0
    %326 = vmatprep.subr.mxu0 0.0
    %327 = vmatpush1.msra.mxu0 0.0
    %328 = vmatprep.subr.mxu0 0.0
    %329 = vmatpush1.msra.mxu0 0.0
    %330 = vmatprep.subr.mxu0 0.0
    %331 = vmatpush1.msra.mxu0 0.0
    %332 = vmatprep.subr.mxu0 0.0
    %333 = vmatpush1.msra.mxu0 0.0
    %334 = vmatprep.subr.mxu0 0.0
    %335 = vmatpush1.msra.mxu0 0.0
    %336 = vmatprep.subr.mxu0 0.0
    %337 = vmatpush1.msra.mxu0 0.0
    %338 = vmatprep.subr.mxu0 0.0
    %339 = vmatpush1.msra.mxu0 0.0
    %340 = vmatprep.subr.mxu0 0.0
    %341 = vmatpush1.msra.mxu0 0.0
    %342 = vmatprep.subr.mxu0 0.0
    %343 = vmatpush1.msra.mxu0 0.0
    %344 = vmatprep.subr.mxu0 %v235
    %345 = vmatpush1.msra.mxu0 %v233
    %346 = vmatprep.subr.mxu0 0.0
    %347 = vmatpush2.msra.mxu0 0.0
    %348 = vmatprep.subr.mxu0 0.0
    %349 = vmatpush2.msra.mxu0 0.0
    %350 = vmatprep.subr.mxu0 0.0
    %351 = vmatpush2.msra.mxu0 0.0
    %352 = vmatprep.subr.mxu0 0.0
    %353 = vmatpush2.msra.mxu0 0.0
    %354 = vmatprep.subr.mxu0 0.0
    %355 = vmatpush2.msra.mxu0 0.0
    %356 = vmatprep.subr.mxu0 0.0
    %357 = vmatpush2.msra.mxu0 0.0
    %358 = vmatprep.subr.mxu0 0.0
    %359 = vmatpush2.msra.mxu0 0.0
    %360 = vmatprep.subr.mxu0 0.0
    %361 = vmatpush2.msra.mxu0 0.0
    %362 = vmatprep.subr.mxu0 0.0
    %363 = vmatpush2.msra.mxu0 0.0
    %364 = vmatprep.subr.mxu0 0.0
    %365 = vmatpush2.msra.mxu0 0.0
    %366 = vmatprep.subr.mxu0 0.0
    %367 = vmatpush2.msra.mxu0 0.0
    %368 = vmatprep.subr.mxu0 0.0
    %369 = vmatpush2.msra.mxu0 0.0
    %370 = vmatprep.subr.mxu0 0.0
    %371 = vmatpush2.msra.mxu0 0.0
    %372 = vmatprep.subr.mxu0 0.0
    %373 = vmatpush2.msra.mxu0 0.0
    %374 = vmatprep.subr.mxu0 0.0
    %375 = vmatpush2.msra.mxu0 0.0
    %376 = vmatprep.subr.mxu0 0.0
    %377 = vmatpush2.msra.mxu0 0.0
    %378 = vmatprep.mubr.f32.mxu0 0.0
    %379 = vmatmul.mubr.f32.gmra.mxu0 %v224
    %v380 = vpop.f32.mrf.mxu0
    %v381 = vadd.f32 %v168, %v380
    %v382 = vpop.f32.mrf.mxu0
    %v383 = vadd.f32 %v172, %v382
    %384 = vmatprep.mubr.f32.mxu0 0.0
    %385 = vmatmul.mubr.f32.gmra.mxu0 %v226
    %v386 = vpop.f32.mrf.mxu0
    %v387 = vadd.f32 %v168, %v386
    %v388 = vpop.f32.mrf.mxu0
    %v389 = vadd.f32 %v172, %v388
    %390 = vdwg.mxu0
    %v399 = vcombine.low %v304, %v306
    %v400 = vcombine.high %v304, %v306
    %v401 = vcombine.low %v381, %v383
    %v402 = vcombine.high %v381, %v383
    %v404 = vunpack.c.l.s4 1983009808
    %v405 = vunpack.c.0.s8 %v404
    %v406 = vlaneseq
    %v407 = vshrl.u32 %v406, 7
    %v408 = vsub.s32 %v405, %v407
    %v409 = vrot.slane %v399, %v408
    %v411 = vunpack.c.l.s4 1983009808
    %v412 = vunpack.c.0.s8 %v411
    %v413 = vlaneseq
    %v414 = vshrl.u32 %v413, 7
    %v415 = vsub.s32 %v412, %v414
    %v416 = vrot.slane %v400, %v415
    %v418 = vunpack.c.l.s4 1983009808
    %v419 = vunpack.c.0.s8 %v418
    %v420 = vlaneseq
    %v421 = vshrl.u32 %v420, 7
    %v422 = vsub.s32 %v419, %v421
    %v423 = vrot.slane %v401, %v422
    %v425 = vunpack.c.l.s4 1983009808
    %v426 = vunpack.c.0.s8 %v425
    %v427 = vlaneseq
    %v428 = vshrl.u32 %v427, 7
    %v429 = vsub.s32 %v426, %v428
    %v430 = vrot.slane %v402, %v429
    %v431 = vcombine.low %v409, %v423
    %v432 = vcombine.high %v409, %v423
    %v433 = vcombine.low %v416, %v430
    %v434 = vcombine.high %v416, %v430
    %v435 = vcombine.low %v310, %v312
    %v436 = vcombine.high %v310, %v312
    %v437 = vcombine.low %v387, %v389
    %v438 = vcombine.high %v387, %v389
    %v440 = vunpack.c.l.s4 1983009808
    %v441 = vunpack.c.0.s8 %v440
    %v442 = vlaneseq
    %v443 = vshrl.u32 %v442, 7
    %v444 = vsub.s32 %v441, %v443
    %v445 = vrot.slane %v435, %v444
    %v447 = vunpack.c.l.s4 1983009808
    %v448 = vunpack.c.0.s8 %v447
    %v449 = vlaneseq
    %v450 = vshrl.u32 %v449, 7
    %v451 = vsub.s32 %v448, %v450
    %v452 = vrot.slane %v436, %v451
    %v454 = vunpack.c.l.s4 1983009808
    %v455 = vunpack.c.0.s8 %v454
    %v456 = vlaneseq
    %v457 = vshrl.u32 %v456, 7
    %v458 = vsub.s32 %v455, %v457
    %v459 = vrot.slane %v437, %v458
    %v461 = vunpack.c.l.s4 1983009808
    %v462 = vunpack.c.0.s8 %v461
    %v463 = vlaneseq
    %v464 = vshrl.u32 %v463, 7
    %v465 = vsub.s32 %v462, %v464
    %v466 = vrot.slane %v438, %v465
    %v467 = vcombine.low %v445, %v459
    %v468 = vcombine.high %v445, %v459
    %v469 = vcombine.low %v452, %v466
    %v470 = vcombine.high %v452, %v466
    %479 = vst [vmem:[#allocation2] sm:$0xff] %v431
    %480 = vst [vmem:[#allocation2 + $0x8] sm:$0xff] %v432
    %481 = vst [vmem:[#allocation2 + $0x10] sm:$0xff] %v433
    %482 = vst [vmem:[#allocation2 + $0x18] sm:$0xff] %v434
    %483 = vst [vmem:[#allocation2 + $0x20] sm:$0xff] %v467
    %484 = vst [vmem:[#allocation2 + $0x28] sm:$0xff] %v468
    %485 = vst [vmem:[#allocation2 + $0x30] sm:$0xff] %v469
    %486 = vst [vmem:[#allocation2 + $0x38] sm:$0xff] %v470
    %v487 = vld [vmem:[#allocation4] sm:$0xff]
    %v488 = vld [vmem:[#allocation4 + $0x8] sm:$0xff]
    %v489 = vld [vmem:[#allocation4 + $0x10] sm:$0xff]
    %v490 = vld [vmem:[#allocation4 + $0x18] sm:$0xff]
    %v491 = vld [vmem:[#allocation4 + $0x20] sm:$0xff]
    %v492 = vld [vmem:[#allocation4 + $0x28] sm:$0xff]
    %v493 = vld [vmem:[#allocation4 + $0x30] sm:$0xff]
    %v494 = vld [vmem:[#allocation4 + $0x38] sm:$0xff]
    %v495 = vld [vmem:[#allocation4 + $0x40] sm:$0xff]
    %v496 = vld [vmem:[#allocation4 + $0x48] sm:$0xff]
    %v497 = vld [vmem:[#allocation4 + $0x50] sm:$0xff]
    %v498 = vld [vmem:[#allocation4 + $0x58] sm:$0xff]
    %v499 = vld [vmem:[#allocation4 + $0x60] sm:$0xff]
    %v500 = vld [vmem:[#allocation4 + $0x68] sm:$0xff]
    %v501 = vld [vmem:[#allocation4 + $0x70] sm:$0xff]
    %v502 = vld [vmem:[#allocation4 + $0x78] sm:$0xff]
    %v503 = vld [vmem:[#allocation4 + $0x80] sm:$0xff]
    %v504 = vld [vmem:[#allocation4 + $0x88] sm:$0xff]
    %v505 = vld [vmem:[#allocation4 + $0x90] sm:$0xff]
    %v506 = vld [vmem:[#allocation4 + $0x98] sm:$0xff]
    %v507 = vld [vmem:[#allocation4 + $0xa0] sm:$0xff]
    %v508 = vld [vmem:[#allocation4 + $0xa8] sm:$0xff]
    %v509 = vld [vmem:[#allocation4 + $0xb0] sm:$0xff]
    %v510 = vld [vmem:[#allocation4 + $0xb8] sm:$0xff]
    %v511 = vld [vmem:[#allocation4 + $0xc0] sm:$0xff]
    %v512 = vld [vmem:[#allocation4 + $0xc8] sm:$0xff]
    %v513 = vld [vmem:[#allocation4 + $0xd0] sm:$0xff]
    %v514 = vld [vmem:[#allocation4 + $0xd8] sm:$0xff]
    %v515 = vld [vmem:[#allocation4 + $0xe0] sm:$0xff]
    %v516 = vld [vmem:[#allocation4 + $0xe8] sm:$0xff]
    %v517 = vld [vmem:[#allocation4 + $0xf0] sm:$0xff]
    %v518 = vld [vmem:[#allocation4 + $0xf8] sm:$0xff]
    %v519 = vld [vmem:[#allocation6] sm:$0xff]
    %v520 = vld [vmem:[#allocation6 + $0x8] sm:$0xff]
    %v521 = vld [vmem:[#allocation6 + $0x10] sm:$0xff]
    %v522 = vld [vmem:[#allocation6 + $0x18] sm:$0xff]
    %v523 = vld [vmem:[#allocation6 + $0x20] sm:$0xff]
    %v524 = vld [vmem:[#allocation6 + $0x28] sm:$0xff]
    %v525 = vld [vmem:[#allocation6 + $0x30] sm:$0xff]
    %v526 = vld [vmem:[#allocation6 + $0x38] sm:$0xff]
    %v527 = vld [vmem:[#allocation6 + $0x40] sm:$0xff]
    %v528 = vld [vmem:[#allocation6 + $0x48] sm:$0xff]
    %v529 = vld [vmem:[#allocation6 + $0x50] sm:$0xff]
    %v530 = vld [vmem:[#allocation6 + $0x58] sm:$0xff]
    %v531 = vld [vmem:[#allocation6 + $0x60] sm:$0xff]
    %v532 = vld [vmem:[#allocation6 + $0x68] sm:$0xff]
    %v533 = vld [vmem:[#allocation6 + $0x70] sm:$0xff]
    %v534 = vld [vmem:[#allocation6 + $0x78] sm:$0xff]
    %v535 = vld [vmem:[#allocation6 + $0x80] sm:$0xff]
    %v536 = vld [vmem:[#allocation6 + $0x88] sm:$0xff]
    %v537 = vld [vmem:[#allocation6 + $0x90] sm:$0xff]
    %v538 = vld [vmem:[#allocation6 + $0x98] sm:$0xff]
    %v539 = vld [vmem:[#allocation6 + $0xa0] sm:$0xff]
    %v540 = vld [vmem:[#allocation6 + $0xa8] sm:$0xff]
    %v541 = vld [vmem:[#allocation6 + $0xb0] sm:$0xff]
    %v542 = vld [vmem:[#allocation6 + $0xb8] sm:$0xff]
    %v543 = vld [vmem:[#allocation6 + $0xc0] sm:$0xff]
    %v544 = vld [vmem:[#allocation6 + $0xc8] sm:$0xff]
    %v545 = vld [vmem:[#allocation6 + $0xd0] sm:$0xff]
    %v546 = vld [vmem:[#allocation6 + $0xd8] sm:$0xff]
    %v547 = vld [vmem:[#allocation6 + $0xe0] sm:$0xff]
    %v548 = vld [vmem:[#allocation6 + $0xe8] sm:$0xff]
    %v549 = vld [vmem:[#allocation6 + $0xf0] sm:$0xff]
    %v550 = vld [vmem:[#allocation6 + $0xf8] sm:$0xff]
    %v551 = vld [vmem:[#allocation8] sm:$0xff]
    %v552 = vld [vmem:[#allocation8 + $0x8] sm:$0xff]
    %v553 = vld [vmem:[#allocation8 + $0x10] sm:$0xff]
    %v554 = vld [vmem:[#allocation8 + $0x18] sm:$0xff]
    %v555 = vld [vmem:[#allocation8 + $0x20] sm:$0xff]
    %v556 = vld [vmem:[#allocation8 + $0x28] sm:$0xff]
    %v557 = vld [vmem:[#allocation8 + $0x30] sm:$0xff]
    %v558 = vld [vmem:[#allocation8 + $0x38] sm:$0xff]
    %v559 = vld [vmem:[#allocation8 + $0x40] sm:$0xff]
    %v560 = vld [vmem:[#allocation8 + $0x48] sm:$0xff]
    %v561 = vld [vmem:[#allocation8 + $0x50] sm:$0xff]
    %v562 = vld [vmem:[#allocation8 + $0x58] sm:$0xff]
    %v563 = vld [vmem:[#allocation8 + $0x60] sm:$0xff]
    %v564 = vld [vmem:[#allocation8 + $0x68] sm:$0xff]
    %v565 = vld [vmem:[#allocation8 + $0x70] sm:$0xff]
    %v566 = vld [vmem:[#allocation8 + $0x78] sm:$0xff]
    %v567 = vld [vmem:[%s6] sm:$0xf]
    %v568 = vld [vmem:[#allocation2] sm:$0xff]
    %vm569 = vcmask 523264
    %v571 = vsel %vm569, 0.0, 0
    %573 = vmatprep.subr.mxu0 0.0
    %574 = vmatpush1.msra.mxu0 0.0
    %575 = vmatprep.subr.mxu0 0.0
    %576 = vmatpush1.msra.mxu0 0.0
    %577 = vmatprep.subr.mxu0 0.0
    %578 = vmatpush1.msra.mxu0 0.0
    %579 = vmatprep.subr.mxu0 0.0
    %580 = vmatpush1.msra.mxu0 0.0
    %581 = vmatprep.subr.mxu0 0.0
    %582 = vmatpush1.msra.mxu0 0.0
    %583 = vmatprep.subr.mxu0 0.0
    %584 = vmatpush1.msra.mxu0 0.0
    %585 = vmatprep.subr.mxu0 0.0
    %586 = vmatpush1.msra.mxu0 0.0
    %587 = vmatprep.subr.mxu0 0.0
    %588 = vmatpush1.msra.mxu0 0.0
    %589 = vmatprep.subr.mxu0 %v516
    %590 = vmatpush1.msra.mxu0 %v515
    %591 = vmatprep.subr.mxu0 %v512
    %592 = vmatpush1.msra.mxu0 %v511
    %593 = vmatprep.subr.mxu0 %v508
    %594 = vmatpush1.msra.mxu0 %v507
    %595 = vmatprep.subr.mxu0 %v504
    %596 = vmatpush1.msra.mxu0 %v503
    %597 = vmatprep.subr.mxu0 %v500
    %598 = vmatpush1.msra.mxu0 %v499
    %599 = vmatprep.subr.mxu0 %v496
    %600 = vmatpush1.msra.mxu0 %v495
    %601 = vmatprep.subr.mxu0 %v492
    %602 = vmatpush1.msra.mxu0 %v491
    %603 = vmatprep.subr.mxu0 %v488
    %604 = vmatpush1.msra.mxu0 %v487
    %605 = vmatprep.subr.mxu0 0.0
    %606 = vmatpush2.msra.mxu0 0.0
    %607 = vmatprep.subr.mxu0 0.0
    %608 = vmatpush2.msra.mxu0 0.0
    %609 = vmatprep.subr.mxu0 0.0
    %610 = vmatpush2.msra.mxu0 0.0
    %611 = vmatprep.subr.mxu0 0.0
    %612 = vmatpush2.msra.mxu0 0.0
    %613 = vmatprep.subr.mxu0 0.0
    %614 = vmatpush2.msra.mxu0 0.0
    %615 = vmatprep.subr.mxu0 0.0
    %616 = vmatpush2.msra.mxu0 0.0
    %617 = vmatprep.subr.mxu0 0.0
    %618 = vmatpush2.msra.mxu0 0.0
    %619 = vmatprep.subr.mxu0 0.0
    %620 = vmatpush2.msra.mxu0 0.0
    %621 = vmatprep.subr.mxu0 0.0
    %622 = vmatpush2.msra.mxu0 0.0
    %623 = vmatprep.subr.mxu0 0.0
    %624 = vmatpush2.msra.mxu0 0.0
    %625 = vmatprep.subr.mxu0 0.0
    %626 = vmatpush2.msra.mxu0 0.0
    %627 = vmatprep.subr.mxu0 0.0
    %628 = vmatpush2.msra.mxu0 0.0
    %629 = vmatprep.subr.mxu0 0.0
    %630 = vmatpush2.msra.mxu0 0.0
    %631 = vmatprep.subr.mxu0 0.0
    %632 = vmatpush2.msra.mxu0 0.0
    %633 = vmatprep.subr.mxu0 0.0
    %634 = vmatpush2.msra.mxu0 0.0
    %635 = vmatprep.subr.mxu0 0.0
    %636 = vmatpush2.msra.mxu0 0.0
    %637 = vmatprep.mubr.f32.mxu0 0.0
    %638 = vmatmul.mubr.f32.gmra.mxu0 %v571
    %v639 = vpop.f32.mrf.mxu0
    %v640 = vadd.f32 0.0, %v639
    %v641 = vpop.f32.mrf.mxu0
    %v642 = vadd.f32 0.0, %v641
    %643 = vdwg.mxu0
    %644 = vmatprep.subr.mxu0 0.0
    %645 = vmatpush1.msra.mxu0 0.0
    %646 = vmatprep.subr.mxu0 0.0
    %647 = vmatpush1.msra.mxu0 0.0
    %648 = vmatprep.subr.mxu0 0.0
    %649 = vmatpush1.msra.mxu0 0.0
    %650 = vmatprep.subr.mxu0 0.0
    %651 = vmatpush1.msra.mxu0 0.0
    %652 = vmatprep.subr.mxu0 0.0
    %653 = vmatpush1.msra.mxu0 0.0
    %654 = vmatprep.subr.mxu0 0.0
    %655 = vmatpush1.msra.mxu0 0.0
    %656 = vmatprep.subr.mxu0 0.0
    %657 = vmatpush1.msra.mxu0 0.0
    %658 = vmatprep.subr.mxu0 0.0
    %659 = vmatpush1.msra.mxu0 0.0
    %660 = vmatprep.subr.mxu0 %v518
    %661 = vmatpush1.msra.mxu0 %v517
    %662 = vmatprep.subr.mxu0 %v514
    %663 = vmatpush1.msra.mxu0 %v513
    %664 = vmatprep.subr.mxu0 %v510
    %665 = vmatpush1.msra.mxu0 %v509
    %666 = vmatprep.subr.mxu0 %v506
    %667 = vmatpush1.msra.mxu0 %v505
    %668 = vmatprep.subr.mxu0 %v502
    %669 = vmatpush1.msra.mxu0 %v501
    %670 = vmatprep.subr.mxu0 %v498
    %671 = vmatpush1.msra.mxu0 %v497
    %672 = vmatprep.subr.mxu0 %v494
    %673 = vmatpush1.msra.mxu0 %v493
    %674 = vmatprep.subr.mxu0 %v490
    %675 = vmatpush1.msra.mxu0 %v489
    %676 = vmatprep.subr.mxu0 0.0
    %677 = vmatpush2.msra.mxu0 0.0
    %678 = vmatprep.subr.mxu0 0.0
    %679 = vmatpush2.msra.mxu0 0.0
    %680 = vmatprep.subr.mxu0 0.0
    %681 = vmatpush2.msra.mxu0 0.0
    %682 = vmatprep.subr.mxu0 0.0
    %683 = vmatpush2.msra.mxu0 0.0
    %684 = vmatprep.subr.mxu0 0.0
    %685 = vmatpush2.msra.mxu0 0.0
    %686 = vmatprep.subr.mxu0 0.0
    %687 = vmatpush2.msra.mxu0 0.0
    %688 = vmatprep.subr.mxu0 0.0
    %689 = vmatpush2.msra.mxu0 0.0
    %690 = vmatprep.subr.mxu0 0.0
    %691 = vmatpush2.msra.mxu0 0.0
    %692 = vmatprep.subr.mxu0 0.0
    %693 = vmatpush2.msra.mxu0 0.0
    %694 = vmatprep.subr.mxu0 0.0
    %695 = vmatpush2.msra.mxu0 0.0
    %696 = vmatprep.subr.mxu0 0.0
    %697 = vmatpush2.msra.mxu0 0.0
    %698 = vmatprep.subr.mxu0 0.0
    %699 = vmatpush2.msra.mxu0 0.0
    %700 = vmatprep.subr.mxu0 0.0
    %701 = vmatpush2.msra.mxu0 0.0
    %702 = vmatprep.subr.mxu0 0.0
    %703 = vmatpush2.msra.mxu0 0.0
    %704 = vmatprep.subr.mxu0 0.0
    %705 = vmatpush2.msra.mxu0 0.0
    %706 = vmatprep.subr.mxu0 0.0
    %707 = vmatpush2.msra.mxu0 0.0
    %708 = vmatprep.mubr.f32.mxu0 0.0
    %709 = vmatmul.mubr.f32.gmra.mxu0 %v571
    %v710 = vpop.f32.mrf.mxu0
    %v711 = vadd.f32 0.0, %v710
    %v712 = vpop.f32.mrf.mxu0
    %v713 = vadd.f32 0.0, %v712
    %714 = vdwg.mxu0
    %v719 = vcombine.low %v640, %v642
    %v720 = vcombine.low %v711, %v713
    %v722 = vunpack.c.l.s4 1983009808
    %v723 = vunpack.c.0.s8 %v722
    %v724 = vlaneseq
    %v725 = vshrl.u32 %v724, 7
    %v726 = vsub.s32 %v723, %v725
    %v727 = vrot.slane %v719, %v726
    %v729 = vunpack.c.l.s4 1983009808
    %v730 = vunpack.c.0.s8 %v729
    %v731 = vlaneseq
    %v732 = vshrl.u32 %v731, 7
    %v733 = vsub.s32 %v730, %v732
    %v734 = vrot.slane %v720, %v733
    %v735 = vcombine.low %v727, %v734
    %v737 = vadd.f32 %v568, %v735
    %v738 = vxor.u32 %v737, 2147483648
    %v739 = vmul.f32 %v738, 1.442695
    %v740 = vpow.pop %v739
    %v741 = vadd.f32 %v740, 1.0
    %v742 = vrcp.pop %v741
    %v743 = vmul.f32 1.0, %v742
    %v745 = vrot.slane %v737, 2
    %v747 = vxor.u32 %v745, 2147483648
    %v748 = vmul.f32 %v747, 1.442695
    %v749 = vpow.pop %v748
    %v750 = vadd.f32 %v749, 1.0
    %v751 = vrcp.pop %v750
    %v752 = vmul.f32 1.0, %v751
    %v753 = vrot.slane %v737, 4
    %v755 = vtanh.pop %v753
    %v756 = vrot.slane %v737, 6
    %v758 = vxor.u32 %v756, 2147483648
    %v759 = vmul.f32 %v758, 1.442695
    %v760 = vpow.pop %v759
    %v761 = vadd.f32 %v760, 1.0
    %v762 = vrcp.pop %v761
    %v763 = vmul.f32 1.0, %v762
    %v764 = vmul.f32 %v752, 0.0
    %v765 = vmul.f32 %v743, %v755
    %v766 = vadd.f32 %v764, %v765
    %v767 = vtanh.pop %v766
    %v768 = vmul.f32 %v763, %v767
    %v770 = vlaneseq
    %v771 = vshrl.u32 %v770, 7
    %v772 = vsub.s32 0, %v771
    %v773 = vrot.slane %v567, %v772
    %v774 = vlaneseq
    %v775 = vshrl.u32 %v774, 7
    %v776 = vsub.s32 1, %v775
    %v777 = vrot.slane %v567, %v776
    %v778 = vlaneseq
    %v779 = vshrl.u32 %v778, 7
    %v780 = vsub.s32 2, %v779
    %v781 = vrot.slane %v567, %v780
    %v782 = vlaneseq
    %v783 = vshrl.u32 %v782, 7
    %v784 = vsub.s32 3, %v783
    %v785 = vrot.slane %v567, %v784
    %v791 = vsel %vm569, %v768, 0
    %793 = vmatprep.subr.mxu0 0.0
    %794 = vmatpush1.msra.mxu0 0.0
    %795 = vmatprep.subr.mxu0 0.0
    %796 = vmatpush1.msra.mxu0 0.0
    %797 = vmatprep.subr.mxu0 0.0
    %798 = vmatpush1.msra.mxu0 0.0
    %799 = vmatprep.subr.mxu0 0.0
    %800 = vmatpush1.msra.mxu0 0.0
    %801 = vmatprep.subr.mxu0 0.0
    %802 = vmatpush1.msra.mxu0 0.0
    %803 = vmatprep.subr.mxu0 0.0
    %804 = vmatpush1.msra.mxu0 0.0
    %805 = vmatprep.subr.mxu0 0.0
    %806 = vmatpush1.msra.mxu0 0.0
    %807 = vmatprep.subr.mxu0 0.0
    %808 = vmatpush1.msra.mxu0 0.0
    %809 = vmatprep.subr.mxu0 %v548
    %810 = vmatpush1.msra.mxu0 %v547
    %811 = vmatprep.subr.mxu0 %v544
    %812 = vmatpush1.msra.mxu0 %v543
    %813 = vmatprep.subr.mxu0 %v540
    %814 = vmatpush1.msra.mxu0 %v539
    %815 = vmatprep.subr.mxu0 %v536
    %816 = vmatpush1.msra.mxu0 %v535
    %817 = vmatprep.subr.mxu0 %v532
    %818 = vmatpush1.msra.mxu0 %v531
    %819 = vmatprep.subr.mxu0 %v528
    %820 = vmatpush1.msra.mxu0 %v527
    %821 = vmatprep.subr.mxu0 %v524
    %822 = vmatpush1.msra.mxu0 %v523
    %823 = vmatprep.subr.mxu0 %v520
    %824 = vmatpush1.msra.mxu0 %v519
    %825 = vmatprep.subr.mxu0 0.0
    %826 = vmatpush2.msra.mxu0 0.0
    %827 = vmatprep.subr.mxu0 0.0
    %828 = vmatpush2.msra.mxu0 0.0
    %829 = vmatprep.subr.mxu0 0.0
    %830 = vmatpush2.msra.mxu0 0.0
    %831 = vmatprep.subr.mxu0 0.0
    %832 = vmatpush2.msra.mxu0 0.0
    %833 = vmatprep.subr.mxu0 0.0
    %834 = vmatpush2.msra.mxu0 0.0
    %835 = vmatprep.subr.mxu0 0.0
    %836 = vmatpush2.msra.mxu0 0.0
    %837 = vmatprep.subr.mxu0 0.0
    %838 = vmatpush2.msra.mxu0 0.0
    %839 = vmatprep.subr.mxu0 0.0
    %840 = vmatpush2.msra.mxu0 0.0
    %841 = vmatprep.subr.mxu0 0.0
    %842 = vmatpush2.msra.mxu0 0.0
    %843 = vmatprep.subr.mxu0 0.0
    %844 = vmatpush2.msra.mxu0 0.0
    %845 = vmatprep.subr.mxu0 0.0
    %846 = vmatpush2.msra.mxu0 0.0
    %847 = vmatprep.subr.mxu0 0.0
    %848 = vmatpush2.msra.mxu0 0.0
    %849 = vmatprep.subr.mxu0 0.0
    %850 = vmatpush2.msra.mxu0 0.0
    %851 = vmatprep.subr.mxu0 0.0
    %852 = vmatpush2.msra.mxu0 0.0
    %853 = vmatprep.subr.mxu0 0.0
    %854 = vmatpush2.msra.mxu0 0.0
    %855 = vmatprep.subr.mxu0 0.0
    %856 = vmatpush2.msra.mxu0 0.0
    %857 = vmatprep.mubr.f32.mxu0 0.0
    %858 = vmatmul.mubr.f32.gmra.mxu0 %v791
    %v859 = vpop.f32.mrf.mxu0
    %v860 = vadd.f32 %v773, %v859
    %v861 = vpop.f32.mrf.mxu0
    %v862 = vadd.f32 %v777, %v861
    %863 = vdwg.mxu0
    %864 = vmatprep.subr.mxu0 0.0
    %865 = vmatpush1.msra.mxu0 0.0
    %866 = vmatprep.subr.mxu0 0.0
    %867 = vmatpush1.msra.mxu0 0.0
    %868 = vmatprep.subr.mxu0 0.0
    %869 = vmatpush1.msra.mxu0 0.0
    %870 = vmatprep.subr.mxu0 0.0
    %871 = vmatpush1.msra.mxu0 0.0
    %872 = vmatprep.subr.mxu0 0.0
    %873 = vmatpush1.msra.mxu0 0.0
    %874 = vmatprep.subr.mxu0 0.0
    %875 = vmatpush1.msra.mxu0 0.0
    %876 = vmatprep.subr.mxu0 0.0
    %877 = vmatpush1.msra.mxu0 0.0
    %878 = vmatprep.subr.mxu0 0.0
    %879 = vmatpush1.msra.mxu0 0.0
    %880 = vmatprep.subr.mxu0 %v550
    %881 = vmatpush1.msra.mxu0 %v549
    %882 = vmatprep.subr.mxu0 %v546
    %883 = vmatpush1.msra.mxu0 %v545
    %884 = vmatprep.subr.mxu0 %v542
    %885 = vmatpush1.msra.mxu0 %v541
    %886 = vmatprep.subr.mxu0 %v538
    %887 = vmatpush1.msra.mxu0 %v537
    %888 = vmatprep.subr.mxu0 %v534
    %889 = vmatpush1.msra.mxu0 %v533
    %890 = vmatprep.subr.mxu0 %v530
    %891 = vmatpush1.msra.mxu0 %v529
    %892 = vmatprep.subr.mxu0 %v526
    %893 = vmatpush1.msra.mxu0 %v525
    %894 = vmatprep.subr.mxu0 %v522
    %895 = vmatpush1.msra.mxu0 %v521
    %896 = vmatprep.subr.mxu0 0.0
    %897 = vmatpush2.msra.mxu0 0.0
    %898 = vmatprep.subr.mxu0 0.0
    %899 = vmatpush2.msra.mxu0 0.0
    %900 = vmatprep.subr.mxu0 0.0
    %901 = vmatpush2.msra.mxu0 0.0
    %902 = vmatprep.subr.mxu0 0.0
    %903 = vmatpush2.msra.mxu0 0.0
    %904 = vmatprep.subr.mxu0 0.0
    %905 = vmatpush2.msra.mxu0 0.0
    %906 = vmatprep.subr.mxu0 0.0
    %907 = vmatpush2.msra.mxu0 0.0
    %908 = vmatprep.subr.mxu0 0.0
    %909 = vmatpush2.msra.mxu0 0.0
    %910 = vmatprep.subr.mxu0 0.0
    %911 = vmatpush2.msra.mxu0 0.0
    %912 = vmatprep.subr.mxu0 0.0
    %913 = vmatpush2.msra.mxu0 0.0
    %914 = vmatprep.subr.mxu0 0.0
    %915 = vmatpush2.msra.mxu0 0.0
    %916 = vmatprep.subr.mxu0 0.0
    %917 = vmatpush2.msra.mxu0 0.0
    %918 = vmatprep.subr.mxu0 0.0
    %919 = vmatpush2.msra.mxu0 0.0
    %920 = vmatprep.subr.mxu0 0.0
    %921 = vmatpush2.msra.mxu0 0.0
    %922 = vmatprep.subr.mxu0 0.0
    %923 = vmatpush2.msra.mxu0 0.0
    %924 = vmatprep.subr.mxu0 0.0
    %925 = vmatpush2.msra.mxu0 0.0
    %926 = vmatprep.subr.mxu0 0.0
    %927 = vmatpush2.msra.mxu0 0.0
    %928 = vmatprep.mubr.f32.mxu0 0.0
    %929 = vmatmul.mubr.f32.gmra.mxu0 %v791
    %v930 = vpop.f32.mrf.mxu0
    %v931 = vadd.f32 %v781, %v930
    %v932 = vpop.f32.mrf.mxu0
    %v933 = vadd.f32 %v785, %v932
    %934 = vdwg.mxu0
    %vm935 = vcmask 261120
    %v936 = vsel %vm935, 0.0, 0
    %938 = vmatprep.subr.mxu0 0.0
    %939 = vmatpush1.msra.mxu0 0.0
    %940 = vmatprep.subr.mxu0 0.0
    %941 = vmatpush1.msra.mxu0 0.0
    %942 = vmatprep.subr.mxu0 0.0
    %943 = vmatpush1.msra.mxu0 0.0
    %944 = vmatprep.subr.mxu0 0.0
    %945 = vmatpush1.msra.mxu0 0.0
    %946 = vmatprep.subr.mxu0 0.0
    %947 = vmatpush1.msra.mxu0 0.0
    %948 = vmatprep.subr.mxu0 0.0
    %949 = vmatpush1.msra.mxu0 0.0
    %950 = vmatprep.subr.mxu0 0.0
    %951 = vmatpush1.msra.mxu0 0.0
    %952 = vmatprep.subr.mxu0 0.0
    %953 = vmatpush1.msra.mxu0 0.0
    %954 = vmatprep.subr.mxu0 0.0
    %955 = vmatpush1.msra.mxu0 0.0
    %956 = vmatprep.subr.mxu0 0.0
    %957 = vmatpush1.msra.mxu0 0.0
    %958 = vmatprep.subr.mxu0 0.0
    %959 = vmatpush1.msra.mxu0 0.0
    %960 = vmatprep.subr.mxu0 0.0
    %961 = vmatpush1.msra.mxu0 0.0
    %962 = vmatprep.subr.mxu0 %v564
    %963 = vmatpush1.msra.mxu0 %v563
    %964 = vmatprep.subr.mxu0 %v560
    %965 = vmatpush1.msra.mxu0 %v559
    %966 = vmatprep.subr.mxu0 %v556
    %967 = vmatpush1.msra.mxu0 %v555
    %968 = vmatprep.subr.mxu0 %v552
    %969 = vmatpush1.msra.mxu0 %v551
    %970 = vmatprep.subr.mxu0 0.0
    %971 = vmatpush2.msra.mxu0 0.0
    %972 = vmatprep.subr.mxu0 0.0
    %973 = vmatpush2.msra.mxu0 0.0
    %974 = vmatprep.subr.mxu0 0.0
    %975 = vmatpush2.msra.mxu0 0.0
    %976 = vmatprep.subr.mxu0 0.0
    %977 = vmatpush2.msra.mxu0 0.0
    %978 = vmatprep.subr.mxu0 0.0
    %979 = vmatpush2.msra.mxu0 0.0
    %980 = vmatprep.subr.mxu0 0.0
    %981 = vmatpush2.msra.mxu0 0.0
    %982 = vmatprep.subr.mxu0 0.0
    %983 = vmatpush2.msra.mxu0 0.0
    %984 = vmatprep.subr.mxu0 0.0
    %985 = vmatpush2.msra.mxu0 0.0
    %986 = vmatprep.subr.mxu0 0.0
    %987 = vmatpush2.msra.mxu0 0.0
    %988 = vmatprep.subr.mxu0 0.0
    %989 = vmatpush2.msra.mxu0 0.0
    %990 = vmatprep.subr.mxu0 0.0
    %991 = vmatpush2.msra.mxu0 0.0
    %992 = vmatprep.subr.mxu0 0.0
    %993 = vmatpush2.msra.mxu0 0.0
    %994 = vmatprep.subr.mxu0 0.0
    %995 = vmatpush2.msra.mxu0 0.0
    %996 = vmatprep.subr.mxu0 0.0
    %997 = vmatpush2.msra.mxu0 0.0
    %998 = vmatprep.subr.mxu0 0.0
    %999 = vmatpush2.msra.mxu0 0.0
    %1000 = vmatprep.subr.mxu0 0.0
    %1001 = vmatpush2.msra.mxu0 0.0
    %1002 = vmatprep.mubr.f32.mxu0 0.0
    %1003 = vmatmul.mubr.f32.gmra.mxu0 %v936
    %v1004 = vpop.f32.mrf.mxu0
    %v1005 = vadd.f32 0.0, %v1004
    %v1006 = vpop.f32.mrf.mxu0
    %v1007 = vadd.f32 0.0, %v1006
    %1008 = vdwg.mxu0
    %1009 = vmatprep.subr.mxu0 0.0
    %1010 = vmatpush1.msra.mxu0 0.0
    %1011 = vmatprep.subr.mxu0 0.0
    %1012 = vmatpush1.msra.mxu0 0.0
    %1013 = vmatprep.subr.mxu0 0.0
    %1014 = vmatpush1.msra.mxu0 0.0
    %1015 = vmatprep.subr.mxu0 0.0
    %1016 = vmatpush1.msra.mxu0 0.0
    %1017 = vmatprep.subr.mxu0 0.0
    %1018 = vmatpush1.msra.mxu0 0.0
    %1019 = vmatprep.subr.mxu0 0.0
    %1020 = vmatpush1.msra.mxu0 0.0
    %1021 = vmatprep.subr.mxu0 0.0
    %1022 = vmatpush1.msra.mxu0 0.0
    %1023 = vmatprep.subr.mxu0 0.0
    %1024 = vmatpush1.msra.mxu0 0.0
    %1025 = vmatprep.subr.mxu0 0.0
    %1026 = vmatpush1.msra.mxu0 0.0
    %1027 = vmatprep.subr.mxu0 0.0
    %1028 = vmatpush1.msra.mxu0 0.0
    %1029 = vmatprep.subr.mxu0 0.0
    %1030 = vmatpush1.msra.mxu0 0.0
    %1031 = vmatprep.subr.mxu0 0.0
    %1032 = vmatpush1.msra.mxu0 0.0
    %1033 = vmatprep.subr.mxu0 %v566
    %1034 = vmatpush1.msra.mxu0 %v565
    %1035 = vmatprep.subr.mxu0 %v562
    %1036 = vmatpush1.msra.mxu0 %v561
    %1037 = vmatprep.subr.mxu0 %v558
    %1038 = vmatpush1.msra.mxu0 %v557
    %1039 = vmatprep.subr.mxu0 %v554
    %1040 = vmatpush1.msra.mxu0 %v553
    %1041 = vmatprep.subr.mxu0 0.0
    %1042 = vmatpush2.msra.mxu0 0.0
    %1043 = vmatprep.subr.mxu0 0.0
    %1044 = vmatpush2.msra.mxu0 0.0
    %1045 = vmatprep.subr.mxu0 0.0
    %1046 = vmatpush2.msra.mxu0 0.0
    %1047 = vmatprep.subr.mxu0 0.0
    %1048 = vmatpush2.msra.mxu0 0.0
    %1049 = vmatprep.subr.mxu0 0.0
    %1050 = vmatpush2.msra.mxu0 0.0
    %1051 = vmatprep.subr.mxu0 0.0
    %1052 = vmatpush2.msra.mxu0 0.0
    %1053 = vmatprep.subr.mxu0 0.0
    %1054 = vmatpush2.msra.mxu0 0.0
    %1055 = vmatprep.subr.mxu0 0.0
    %1056 = vmatpush2.msra.mxu0 0.0
    %1057 = vmatprep.subr.mxu0 0.0
    %1058 = vmatpush2.msra.mxu0 0.0
    %1059 = vmatprep.subr.mxu0 0.0
    %1060 = vmatpush2.msra.mxu0 0.0
    %1061 = vmatprep.subr.mxu0 0.0
    %1062 = vmatpush2.msra.mxu0 0.0
    %1063 = vmatprep.subr.mxu0 0.0
    %1064 = vmatpush2.msra.mxu0 0.0
    %1065 = vmatprep.subr.mxu0 0.0
    %1066 = vmatpush2.msra.mxu0 0.0
    %1067 = vmatprep.subr.mxu0 0.0
    %1068 = vmatpush2.msra.mxu0 0.0
    %1069 = vmatprep.subr.mxu0 0.0
    %1070 = vmatpush2.msra.mxu0 0.0
    %1071 = vmatprep.subr.mxu0 0.0
    %1072 = vmatpush2.msra.mxu0 0.0
    %1073 = vmatprep.mubr.f32.mxu0 0.0
    %1074 = vmatmul.mubr.f32.gmra.mxu0 %v936
    %v1075 = vpop.f32.mrf.mxu0
    %v1076 = vadd.f32 0.0, %v1075
    %v1077 = vpop.f32.mrf.mxu0
    %v1078 = vadd.f32 0.0, %v1077
    %1079 = vdwg.mxu0
    %v1080 = vadd.f32 %v860, %v1005
    %v1081 = vadd.f32 %v862, %v1007
    %v1082 = vadd.f32 %v931, %v1076
    %v1083 = vadd.f32 %v933, %v1078
    %v1084 = vxor.u32 %v1080, 2147483648
    %v1085 = vmul.f32 %v1084, 1.442695
    %v1086 = vpow.pop %v1085
    %v1087 = vadd.f32 %v1086, 1.0
    %v1088 = vrcp.pop %v1087
    %v1089 = vmul.f32 1.0, %v1088
    %v1090 = vxor.u32 %v1081, 2147483648
    %v1091 = vmul.f32 %v1090, 1.442695
    %v1092 = vpow.pop %v1091
    %v1093 = vadd.f32 %v1092, 1.0
    %v1094 = vrcp.pop %v1093
    %v1095 = vmul.f32 1.0, %v1094
    %v1096 = vtanh.pop %v1082
    %v1097 = vxor.u32 %v1083, 2147483648
    %v1098 = vmul.f32 %v1097, 1.442695
    %v1099 = vpow.pop %v1098
    %v1100 = vadd.f32 %v1099, 1.0
    %v1101 = vrcp.pop %v1100
    %v1102 = vmul.f32 1.0, %v1101
    %v1103 = vmul.f32 %v1095, 0.0
    %v1104 = vmul.f32 %v1089, %v1096
    %v1105 = vadd.f32 %v1103, %v1104
    %v1106 = vtanh.pop %v1105
    %v1107 = vmul.f32 %v1102, %v1106
    %s1108 = scalar_lea.vmem [#allocation2], 8
    %v1109 = vld [vmem:[%s1108] sm:$0xff]
    %1110 = vmatprep.subr.mxu0 0.0
    %1111 = vmatpush1.msra.mxu0 0.0
    %1112 = vmatprep.subr.mxu0 0.0
    %1113 = vmatpush1.msra.mxu0 0.0
    %1114 = vmatprep.subr.mxu0 0.0
    %1115 = vmatpush1.msra.mxu0 0.0
    %1116 = vmatprep.subr.mxu0 0.0
    %1117 = vmatpush1.msra.mxu0 0.0
    %1118 = vmatprep.subr.mxu0 0.0
    %1119 = vmatpush1.msra.mxu0 0.0
    %1120 = vmatprep.subr.mxu0 0.0
    %1121 = vmatpush1.msra.mxu0 0.0
    %1122 = vmatprep.subr.mxu0 0.0
    %1123 = vmatpush1.msra.mxu0 0.0
    %1124 = vmatprep.subr.mxu0 0.0
    %1125 = vmatpush1.msra.mxu0 0.0
    %1126 = vmatprep.subr.mxu0 %v516
    %1127 = vmatpush1.msra.mxu0 %v515
    %1128 = vmatprep.subr.mxu0 %v512
    %1129 = vmatpush1.msra.mxu0 %v511
    %1130 = vmatprep.subr.mxu0 %v508
    %1131 = vmatpush1.msra.mxu0 %v507
    %1132 = vmatprep.subr.mxu0 %v504
    %1133 = vmatpush1.msra.mxu0 %v503
    %1134 = vmatprep.subr.mxu0 %v500
    %1135 = vmatpush1.msra.mxu0 %v499
    %1136 = vmatprep.subr.mxu0 %v496
    %1137 = vmatpush1.msra.mxu0 %v495
    %1138 = vmatprep.subr.mxu0 %v492
    %1139 = vmatpush1.msra.mxu0 %v491
    %1140 = vmatprep.subr.mxu0 %v488
    %1141 = vmatpush1.msra.mxu0 %v487
    %1142 = vmatprep.subr.mxu0 0.0
    %1143 = vmatpush2.msra.mxu0 0.0
    %1144 = vmatprep.subr.mxu0 0.0
    %1145 = vmatpush2.msra.mxu0 0.0
    %1146 = vmatprep.subr.mxu0 0.0
    %1147 = vmatpush2.msra.mxu0 0.0
    %1148 = vmatprep.subr.mxu0 0.0
    %1149 = vmatpush2.msra.mxu0 0.0
    %1150 = vmatprep.subr.mxu0 0.0
    %1151 = vmatpush2.msra.mxu0 0.0
    %1152 = vmatprep.subr.mxu0 0.0
    %1153 = vmatpush2.msra.mxu0 0.0
    %1154 = vmatprep.subr.mxu0 0.0
    %1155 = vmatpush2.msra.mxu0 0.0
    %1156 = vmatprep.subr.mxu0 0.0
    %1157 = vmatpush2.msra.mxu0 0.0
    %1158 = vmatprep.subr.mxu0 0.0
    %1159 = vmatpush2.msra.mxu0 0.0
    %1160 = vmatprep.subr.mxu0 0.0
    %1161 = vmatpush2.msra.mxu0 0.0
    %1162 = vmatprep.subr.mxu0 0.0
    %1163 = vmatpush2.msra.mxu0 0.0
    %1164 = vmatprep.subr.mxu0 0.0
    %1165 = vmatpush2.msra.mxu0 0.0
    %1166 = vmatprep.subr.mxu0 0.0
    %1167 = vmatpush2.msra.mxu0 0.0
    %1168 = vmatprep.subr.mxu0 0.0
    %1169 = vmatpush2.msra.mxu0 0.0
    %1170 = vmatprep.subr.mxu0 0.0
    %1171 = vmatpush2.msra.mxu0 0.0
    %1172 = vmatprep.subr.mxu0 0.0
    %1173 = vmatpush2.msra.mxu0 0.0
    %1174 = vmatprep.mubr.f32.mxu0 0.0
    %1175 = vmatmul.mubr.f32.gmra.mxu0 %v791
    %v1176 = vpop.f32.mrf.mxu0
    %v1177 = vadd.f32 0.0, %v1176
    %v1178 = vpop.f32.mrf.mxu0
    %v1179 = vadd.f32 0.0, %v1178
    %1180 = vdwg.mxu0
    %1181 = vmatprep.subr.mxu0 0.0
    %1182 = vmatpush1.msra.mxu0 0.0
    %1183 = vmatprep.subr.mxu0 0.0
    %1184 = vmatpush1.msra.mxu0 0.0
    %1185 = vmatprep.subr.mxu0 0.0
    %1186 = vmatpush1.msra.mxu0 0.0
    %1187 = vmatprep.subr.mxu0 0.0
    %1188 = vmatpush1.msra.mxu0 0.0
    %1189 = vmatprep.subr.mxu0 0.0
    %1190 = vmatpush1.msra.mxu0 0.0
    %1191 = vmatprep.subr.mxu0 0.0
    %1192 = vmatpush1.msra.mxu0 0.0
    %1193 = vmatprep.subr.mxu0 0.0
    %1194 = vmatpush1.msra.mxu0 0.0
    %1195 = vmatprep.subr.mxu0 0.0
    %1196 = vmatpush1.msra.mxu0 0.0
    %1197 = vmatprep.subr.mxu0 %v518
    %1198 = vmatpush1.msra.mxu0 %v517
    %1199 = vmatprep.subr.mxu0 %v514
    %1200 = vmatpush1.msra.mxu0 %v513
    %1201 = vmatprep.subr.mxu0 %v510
    %1202 = vmatpush1.msra.mxu0 %v509
    %1203 = vmatprep.subr.mxu0 %v506
    %1204 = vmatpush1.msra.mxu0 %v505
    %1205 = vmatprep.subr.mxu0 %v502
    %1206 = vmatpush1.msra.mxu0 %v501
    %1207 = vmatprep.subr.mxu0 %v498
    %1208 = vmatpush1.msra.mxu0 %v497
    %1209 = vmatprep.subr.mxu0 %v494
    %1210 = vmatpush1.msra.mxu0 %v493
    %1211 = vmatprep.subr.mxu0 %v490
    %1212 = vmatpush1.msra.mxu0 %v489
    %1213 = vmatprep.subr.mxu0 0.0
    %1214 = vmatpush2.msra.mxu0 0.0
    %1215 = vmatprep.subr.mxu0 0.0
    %1216 = vmatpush2.msra.mxu0 0.0
    %1217 = vmatprep.subr.mxu0 0.0
    %1218 = vmatpush2.msra.mxu0 0.0
    %1219 = vmatprep.subr.mxu0 0.0
    %1220 = vmatpush2.msra.mxu0 0.0
    %1221 = vmatprep.subr.mxu0 0.0
    %1222 = vmatpush2.msra.mxu0 0.0
    %1223 = vmatprep.subr.mxu0 0.0
    %1224 = vmatpush2.msra.mxu0 0.0
    %1225 = vmatprep.subr.mxu0 0.0
    %1226 = vmatpush2.msra.mxu0 0.0
    %1227 = vmatprep.subr.mxu0 0.0
    %1228 = vmatpush2.msra.mxu0 0.0
    %1229 = vmatprep.subr.mxu0 0.0
    %1230 = vmatpush2.msra.mxu0 0.0
    %1231 = vmatprep.subr.mxu0 0.0
    %1232 = vmatpush2.msra.mxu0 0.0
    %1233 = vmatprep.subr.mxu0 0.0
    %1234 = vmatpush2.msra.mxu0 0.0
    %1235 = vmatprep.subr.mxu0 0.0
    %1236 = vmatpush2.msra.mxu0 0.0
    %1237 = vmatprep.subr.mxu0 0.0
    %1238 = vmatpush2.msra.mxu0 0.0
    %1239 = vmatprep.subr.mxu0 0.0
    %1240 = vmatpush2.msra.mxu0 0.0
    %1241 = vmatprep.subr.mxu0 0.0
    %1242 = vmatpush2.msra.mxu0 0.0
    %1243 = vmatprep.subr.mxu0 0.0
    %1244 = vmatpush2.msra.mxu0 0.0
    %1245 = vmatprep.mubr.f32.mxu0 0.0
    %1246 = vmatmul.mubr.f32.gmra.mxu0 %v791
    %v1247 = vpop.f32.mrf.mxu0
    %v1248 = vadd.f32 0.0, %v1247
    %v1249 = vpop.f32.mrf.mxu0
    %v1250 = vadd.f32 0.0, %v1249
    %1251 = vdwg.mxu0
    %v1256 = vcombine.low %v1177, %v1179
    %v1257 = vcombine.low %v1248, %v1250
    %v1259 = vunpack.c.l.s4 1983009808
    %v1260 = vunpack.c.0.s8 %v1259
    %v1261 = vlaneseq
    %v1262 = vshrl.u32 %v1261, 7
    %v1263 = vsub.s32 %v1260, %v1262
    %v1264 = vrot.slane %v1256, %v1263
    %v1266 = vunpack.c.l.s4 1983009808
    %v1267 = vunpack.c.0.s8 %v1266
    %v1268 = vlaneseq
    %v1269 = vshrl.u32 %v1268, 7
    %v1270 = vsub.s32 %v1267, %v1269
    %v1271 = vrot.slane %v1257, %v1270
    %v1272 = vcombine.low %v1264, %v1271
    %v1274 = vadd.f32 %v1109, %v1272
    %v1275 = vxor.u32 %v1274, 2147483648
    %v1276 = vmul.f32 %v1275, 1.442695
    %v1277 = vpow.pop %v1276
    %v1278 = vadd.f32 %v1277, 1.0
    %v1279 = vrcp.pop %v1278
    %v1280 = vmul.f32 1.0, %v1279
    %v1282 = vrot.slane %v1274, 2
    %v1284 = vxor.u32 %v1282, 2147483648
    %v1285 = vmul.f32 %v1284, 1.442695
    %v1286 = vpow.pop %v1285
    %v1287 = vadd.f32 %v1286, 1.0
    %v1288 = vrcp.pop %v1287
    %v1289 = vmul.f32 1.0, %v1288
    %v1290 = vrot.slane %v1274, 4
    %v1292 = vtanh.pop %v1290
    %v1293 = vrot.slane %v1274, 6
    %v1295 = vxor.u32 %v1293, 2147483648
    %v1296 = vmul.f32 %v1295, 1.442695
    %v1297 = vpow.pop %v1296
    %v1298 = vadd.f32 %v1297, 1.0
    %v1299 = vrcp.pop %v1298
    %v1300 = vmul.f32 1.0, %v1299
    %v1301 = vmul.f32 %v1289, %v766
    %v1302 = vmul.f32 %v1280, %v1292
    %v1303 = vadd.f32 %v1301, %v1302
    %v1304 = vtanh.pop %v1303
    %v1305 = vmul.f32 %v1300, %v1304
    %v1307 = vsel %vm569, %v1305, 0
    %1309 = vmatprep.subr.mxu0 0.0
    %1310 = vmatpush1.msra.mxu0 0.0
    %1311 = vmatprep.subr.mxu0 0.0
    %1312 = vmatpush1.msra.mxu0 0.0
    %1313 = vmatprep.subr.mxu0 0.0
    %1314 = vmatpush1.msra.mxu0 0.0
    %1315 = vmatprep.subr.mxu0 0.0
    %1316 = vmatpush1.msra.mxu0 0.0
    %1317 = vmatprep.subr.mxu0 0.0
    %1318 = vmatpush1.msra.mxu0 0.0
    %1319 = vmatprep.subr.mxu0 0.0
    %1320 = vmatpush1.msra.mxu0 0.0
    %1321 = vmatprep.subr.mxu0 0.0
    %1322 = vmatpush1.msra.mxu0 0.0
    %1323 = vmatprep.subr.mxu0 0.0
    %1324 = vmatpush1.msra.mxu0 0.0
    %1325 = vmatprep.subr.mxu0 %v548
    %1326 = vmatpush1.msra.mxu0 %v547
    %1327 = vmatprep.subr.mxu0 %v544
    %1328 = vmatpush1.msra.mxu0 %v543
    %1329 = vmatprep.subr.mxu0 %v540
    %1330 = vmatpush1.msra.mxu0 %v539
    %1331 = vmatprep.subr.mxu0 %v536
    %1332 = vmatpush1.msra.mxu0 %v535
    %1333 = vmatprep.subr.mxu0 %v532
    %1334 = vmatpush1.msra.mxu0 %v531
    %1335 = vmatprep.subr.mxu0 %v528
    %1336 = vmatpush1.msra.mxu0 %v527
    %1337 = vmatprep.subr.mxu0 %v524
    %1338 = vmatpush1.msra.mxu0 %v523
    %1339 = vmatprep.subr.mxu0 %v520
    %1340 = vmatpush1.msra.mxu0 %v519
    %1341 = vmatprep.subr.mxu0 0.0
    %1342 = vmatpush2.msra.mxu0 0.0
    %1343 = vmatprep.subr.mxu0 0.0
    %1344 = vmatpush2.msra.mxu0 0.0
    %1345 = vmatprep.subr.mxu0 0.0
    %1346 = vmatpush2.msra.mxu0 0.0
    %1347 = vmatprep.subr.mxu0 0.0
    %1348 = vmatpush2.msra.mxu0 0.0
    %1349 = vmatprep.subr.mxu0 0.0
    %1350 = vmatpush2.msra.mxu0 0.0
    %1351 = vmatprep.subr.mxu0 0.0
    %1352 = vmatpush2.msra.mxu0 0.0
    %1353 = vmatprep.subr.mxu0 0.0
    %1354 = vmatpush2.msra.mxu0 0.0
    %1355 = vmatprep.subr.mxu0 0.0
    %1356 = vmatpush2.msra.mxu0 0.0
    %1357 = vmatprep.subr.mxu0 0.0
    %1358 = vmatpush2.msra.mxu0 0.0
    %1359 = vmatprep.subr.mxu0 0.0
    %1360 = vmatpush2.msra.mxu0 0.0
    %1361 = vmatprep.subr.mxu0 0.0
    %1362 = vmatpush2.msra.mxu0 0.0
    %1363 = vmatprep.subr.mxu0 0.0
    %1364 = vmatpush2.msra.mxu0 0.0
    %1365 = vmatprep.subr.mxu0 0.0
    %1366 = vmatpush2.msra.mxu0 0.0
    %1367 = vmatprep.subr.mxu0 0.0
    %1368 = vmatpush2.msra.mxu0 0.0
    %1369 = vmatprep.subr.mxu0 0.0
    %1370 = vmatpush2.msra.mxu0 0.0
    %1371 = vmatprep.subr.mxu0 0.0
    %1372 = vmatpush2.msra.mxu0 0.0
    %1373 = vmatprep.mubr.f32.mxu0 0.0
    %1374 = vmatmul.mubr.f32.gmra.mxu0 %v1307
    %v1375 = vpop.f32.mrf.mxu0
    %v1376 = vadd.f32 %v773, %v1375
    %v1377 = vpop.f32.mrf.mxu0
    %v1378 = vadd.f32 %v777, %v1377
    %1379 = vdwg.mxu0
    %1380 = vmatprep.subr.mxu0 0.0
    %1381 = vmatpush1.msra.mxu0 0.0
    %1382 = vmatprep.subr.mxu0 0.0
    %1383 = vmatpush1.msra.mxu0 0.0
    %1384 = vmatprep.subr.mxu0 0.0
    %1385 = vmatpush1.msra.mxu0 0.0
    %1386 = vmatprep.subr.mxu0 0.0
    %1387 = vmatpush1.msra.mxu0 0.0
    %1388 = vmatprep.subr.mxu0 0.0
    %1389 = vmatpush1.msra.mxu0 0.0
    %1390 = vmatprep.subr.mxu0 0.0
    %1391 = vmatpush1.msra.mxu0 0.0
    %1392 = vmatprep.subr.mxu0 0.0
    %1393 = vmatpush1.msra.mxu0 0.0
    %1394 = vmatprep.subr.mxu0 0.0
    %1395 = vmatpush1.msra.mxu0 0.0
    %1396 = vmatprep.subr.mxu0 %v550
    %1397 = vmatpush1.msra.mxu0 %v549
    %1398 = vmatprep.subr.mxu0 %v546
    %1399 = vmatpush1.msra.mxu0 %v545
    %1400 = vmatprep.subr.mxu0 %v542
    %1401 = vmatpush1.msra.mxu0 %v541
    %1402 = vmatprep.subr.mxu0 %v538
    %1403 = vmatpush1.msra.mxu0 %v537
    %1404 = vmatprep.subr.mxu0 %v534
    %1405 = vmatpush1.msra.mxu0 %v533
    %1406 = vmatprep.subr.mxu0 %v530
    %1407 = vmatpush1.msra.mxu0 %v529
    %1408 = vmatprep.subr.mxu0 %v526
    %1409 = vmatpush1.msra.mxu0 %v525
    %1410 = vmatprep.subr.mxu0 %v522
    %1411 = vmatpush1.msra.mxu0 %v521
    %1412 = vmatprep.subr.mxu0 0.0
    %1413 = vmatpush2.msra.mxu0 0.0
    %1414 = vmatprep.subr.mxu0 0.0
    %1415 = vmatpush2.msra.mxu0 0.0
    %1416 = vmatprep.subr.mxu0 0.0
    %1417 = vmatpush2.msra.mxu0 0.0
    %1418 = vmatprep.subr.mxu0 0.0
    %1419 = vmatpush2.msra.mxu0 0.0
    %1420 = vmatprep.subr.mxu0 0.0
    %1421 = vmatpush2.msra.mxu0 0.0
    %1422 = vmatprep.subr.mxu0 0.0
    %1423 = vmatpush2.msra.mxu0 0.0
    %1424 = vmatprep.subr.mxu0 0.0
    %1425 = vmatpush2.msra.mxu0 0.0
    %1426 = vmatprep.subr.mxu0 0.0
    %1427 = vmatpush2.msra.mxu0 0.0
    %1428 = vmatprep.subr.mxu0 0.0
    %1429 = vmatpush2.msra.mxu0 0.0
    %1430 = vmatprep.subr.mxu0 0.0
    %1431 = vmatpush2.msra.mxu0 0.0
    %1432 = vmatprep.subr.mxu0 0.0
    %1433 = vmatpush2.msra.mxu0 0.0
    %1434 = vmatprep.subr.mxu0 0.0
    %1435 = vmatpush2.msra.mxu0 0.0
    %1436 = vmatprep.subr.mxu0 0.0
    %1437 = vmatpush2.msra.mxu0 0.0
    %1438 = vmatprep.subr.mxu0 0.0
    %1439 = vmatpush2.msra.mxu0 0.0
    %1440 = vmatprep.subr.mxu0 0.0
    %1441 = vmatpush2.msra.mxu0 0.0
    %1442 = vmatprep.subr.mxu0 0.0
    %1443 = vmatpush2.msra.mxu0 0.0
    %1444 = vmatprep.mubr.f32.mxu0 0.0
    %1445 = vmatmul.mubr.f32.gmra.mxu0 %v1307
    %v1446 = vpop.f32.mrf.mxu0
    %v1447 = vadd.f32 %v781, %v1446
    %v1448 = vpop.f32.mrf.mxu0
    %v1449 = vadd.f32 %v785, %v1448
    %1450 = vdwg.mxu0
    %v1452 = vsel %vm935, %v1107, 0
    %1454 = vmatprep.subr.mxu0 0.0
    %1455 = vmatpush1.msra.mxu0 0.0
    %1456 = vmatprep.subr.mxu0 0.0
    %1457 = vmatpush1.msra.mxu0 0.0
    %1458 = vmatprep.subr.mxu0 0.0
    %1459 = vmatpush1.msra.mxu0 0.0
    %1460 = vmatprep.subr.mxu0 0.0
    %1461 = vmatpush1.msra.mxu0 0.0
    %1462 = vmatprep.subr.mxu0 0.0
    %1463 = vmatpush1.msra.mxu0 0.0
    %1464 = vmatprep.subr.mxu0 0.0
    %1465 = vmatpush1.msra.mxu0 0.0
    %1466 = vmatprep.subr.mxu0 0.0
    %1467 = vmatpush1.msra.mxu0 0.0
    %1468 = vmatprep.subr.mxu0 0.0
    %1469 = vmatpush1.msra.mxu0 0.0
    %1470 = vmatprep.subr.mxu0 0.0
    %1471 = vmatpush1.msra.mxu0 0.0
    %1472 = vmatprep.subr.mxu0 0.0
    %1473 = vmatpush1.msra.mxu0 0.0
    %1474 = vmatprep.subr.mxu0 0.0
    %1475 = vmatpush1.msra.mxu0 0.0
    %1476 = vmatprep.subr.mxu0 0.0
    %1477 = vmatpush1.msra.mxu0 0.0
    %1478 = vmatprep.subr.mxu0 %v564
    %1479 = vmatpush1.msra.mxu0 %v563
    %1480 = vmatprep.subr.mxu0 %v560
    %1481 = vmatpush1.msra.mxu0 %v559
    %1482 = vmatprep.subr.mxu0 %v556
    %1483 = vmatpush1.msra.mxu0 %v555
    %1484 = vmatprep.subr.mxu0 %v552
    %1485 = vmatpush1.msra.mxu0 %v551
    %1486 = vmatprep.subr.mxu0 0.0
    %1487 = vmatpush2.msra.mxu0 0.0
    %1488 = vmatprep.subr.mxu0 0.0
    %1489 = vmatpush2.msra.mxu0 0.0
    %1490 = vmatprep.subr.mxu0 0.0
    %1491 = vmatpush2.msra.mxu0 0.0
    %1492 = vmatprep.subr.mxu0 0.0
    %1493 = vmatpush2.msra.mxu0 0.0
    %1494 = vmatprep.subr.mxu0 0.0
    %1495 = vmatpush2.msra.mxu0 0.0
    %1496 = vmatprep.subr.mxu0 0.0
    %1497 = vmatpush2.msra.mxu0 0.0
    %1498 = vmatprep.subr.mxu0 0.0
    %1499 = vmatpush2.msra.mxu0 0.0
    %1500 = vmatprep.subr.mxu0 0.0
    %1501 = vmatpush2.msra.mxu0 0.0
    %1502 = vmatprep.subr.mxu0 0.0
    %1503 = vmatpush2.msra.mxu0 0.0
    %1504 = vmatprep.subr.mxu0 0.0
    %1505 = vmatpush2.msra.mxu0 0.0
    %1506 = vmatprep.subr.mxu0 0.0
    %1507 = vmatpush2.msra.mxu0 0.0
    %1508 = vmatprep.subr.mxu0 0.0
    %1509 = vmatpush2.msra.mxu0 0.0
    %1510 = vmatprep.subr.mxu0 0.0
    %1511 = vmatpush2.msra.mxu0 0.0
    %1512 = vmatprep.subr.mxu0 0.0
    %1513 = vmatpush2.msra.mxu0 0.0
    %1514 = vmatprep.subr.mxu0 0.0
    %1515 = vmatpush2.msra.mxu0 0.0
    %1516 = vmatprep.subr.mxu0 0.0
    %1517 = vmatpush2.msra.mxu0 0.0
    %1518 = vmatprep.mubr.f32.mxu0 0.0
    %1519 = vmatmul.mubr.f32.gmra.mxu0 %v1452
    %v1520 = vpop.f32.mrf.mxu0
    %v1521 = vadd.f32 0.0, %v1520
    %v1522 = vpop.f32.mrf.mxu0
    %v1523 = vadd.f32 0.0, %v1522
    %1524 = vdwg.mxu0
    %1525 = vmatprep.subr.mxu0 0.0
    %1526 = vmatpush1.msra.mxu0 0.0
    %1527 = vmatprep.subr.mxu0 0.0
    %1528 = vmatpush1.msra.mxu0 0.0
    %1529 = vmatprep.subr.mxu0 0.0
    %1530 = vmatpush1.msra.mxu0 0.0
    %1531 = vmatprep.subr.mxu0 0.0
    %1532 = vmatpush1.msra.mxu0 0.0
    %1533 = vmatprep.subr.mxu0 0.0
    %1534 = vmatpush1.msra.mxu0 0.0
    %1535 = vmatprep.subr.mxu0 0.0
    %1536 = vmatpush1.msra.mxu0 0.0
    %1537 = vmatprep.subr.mxu0 0.0
    %1538 = vmatpush1.msra.mxu0 0.0
    %1539 = vmatprep.subr.mxu0 0.0
    %1540 = vmatpush1.msra.mxu0 0.0
    %1541 = vmatprep.subr.mxu0 0.0
    %1542 = vmatpush1.msra.mxu0 0.0
    %1543 = vmatprep.subr.mxu0 0.0
    %1544 = vmatpush1.msra.mxu0 0.0
    %1545 = vmatprep.subr.mxu0 0.0
    %1546 = vmatpush1.msra.mxu0 0.0
    %1547 = vmatprep.subr.mxu0 0.0
    %1548 = vmatpush1.msra.mxu0 0.0
    %1549 = vmatprep.subr.mxu0 %v566
    %1550 = vmatpush1.msra.mxu0 %v565
    %1551 = vmatprep.subr.mxu0 %v562
    %1552 = vmatpush1.msra.mxu0 %v561
    %1553 = vmatprep.subr.mxu0 %v558
    %1554 = vmatpush1.msra.mxu0 %v557
    %1555 = vmatprep.subr.mxu0 %v554
    %1556 = vmatpush1.msra.mxu0 %v553
    %1557 = vmatprep.subr.mxu0 0.0
    %1558 = vmatpush2.msra.mxu0 0.0
    %1559 = vmatprep.subr.mxu0 0.0
    %1560 = vmatpush2.msra.mxu0 0.0
    %1561 = vmatprep.subr.mxu0 0.0
    %1562 = vmatpush2.msra.mxu0 0.0
    %1563 = vmatprep.subr.mxu0 0.0
    %1564 = vmatpush2.msra.mxu0 0.0
    %1565 = vmatprep.subr.mxu0 0.0
    %1566 = vmatpush2.msra.mxu0 0.0
    %1567 = vmatprep.subr.mxu0 0.0
    %1568 = vmatpush2.msra.mxu0 0.0
    %1569 = vmatprep.subr.mxu0 0.0
    %1570 = vmatpush2.msra.mxu0 0.0
    %1571 = vmatprep.subr.mxu0 0.0
    %1572 = vmatpush2.msra.mxu0 0.0
    %1573 = vmatprep.subr.mxu0 0.0
    %1574 = vmatpush2.msra.mxu0 0.0
    %1575 = vmatprep.subr.mxu0 0.0
    %1576 = vmatpush2.msra.mxu0 0.0
    %1577 = vmatprep.subr.mxu0 0.0
    %1578 = vmatpush2.msra.mxu0 0.0
    %1579 = vmatprep.subr.mxu0 0.0
    %1580 = vmatpush2.msra.mxu0 0.0
    %1581 = vmatprep.subr.mxu0 0.0
    %1582 = vmatpush2.msra.mxu0 0.0
    %1583 = vmatprep.subr.mxu0 0.0
    %1584 = vmatpush2.msra.mxu0 0.0
    %1585 = vmatprep.subr.mxu0 0.0
    %1586 = vmatpush2.msra.mxu0 0.0
    %1587 = vmatprep.subr.mxu0 0.0
    %1588 = vmatpush2.msra.mxu0 0.0
    %1589 = vmatprep.mubr.f32.mxu0 0.0
    %1590 = vmatmul.mubr.f32.gmra.mxu0 %v1452
    %v1591 = vpop.f32.mrf.mxu0
    %v1592 = vadd.f32 0.0, %v1591
    %v1593 = vpop.f32.mrf.mxu0
    %v1594 = vadd.f32 0.0, %v1593
    %1595 = vdwg.mxu0
    %v1596 = vadd.f32 %v1376, %v1521
    %v1597 = vadd.f32 %v1378, %v1523
    %v1598 = vadd.f32 %v1447, %v1592
    %v1599 = vadd.f32 %v1449, %v1594
    %v1600 = vxor.u32 %v1596, 2147483648
    %v1601 = vmul.f32 %v1600, 1.442695
    %v1602 = vpow.pop %v1601
    %v1603 = vadd.f32 %v1602, 1.0
    %v1604 = vrcp.pop %v1603
    %v1605 = vmul.f32 1.0, %v1604
    %v1606 = vxor.u32 %v1597, 2147483648
    %v1607 = vmul.f32 %v1606, 1.442695
    %v1608 = vpow.pop %v1607
    %v1609 = vadd.f32 %v1608, 1.0
    %v1610 = vrcp.pop %v1609
    %v1611 = vmul.f32 1.0, %v1610
    %v1612 = vtanh.pop %v1598
    %v1613 = vxor.u32 %v1599, 2147483648
    %v1614 = vmul.f32 %v1613, 1.442695
    %v1615 = vpow.pop %v1614
    %v1616 = vadd.f32 %v1615, 1.0
    %v1617 = vrcp.pop %v1616
    %v1618 = vmul.f32 1.0, %v1617
    %v1619 = vmul.f32 %v1611, %v1105
    %v1620 = vmul.f32 %v1605, %v1612
    %v1621 = vadd.f32 %v1619, %v1620
    %v1622 = vtanh.pop %v1621
    %v1623 = vmul.f32 %v1618, %v1622
    %s1624 = scalar_lea.vmem [#allocation2], 16
    %v1625 = vld [vmem:[%s1624] sm:$0xff]
    %1626 = vmatprep.subr.mxu0 0.0
    %1627 = vmatpush1.msra.mxu0 0.0
    %1628 = vmatprep.subr.mxu0 0.0
    %1629 = vmatpush1.msra.mxu0 0.0
    %1630 = vmatprep.subr.mxu0 0.0
    %1631 = vmatpush1.msra.mxu0 0.0
    %1632 = vmatprep.subr.mxu0 0.0
    %1633 = vmatpush1.msra.mxu0 0.0
    %1634 = vmatprep.subr.mxu0 0.0
    %1635 = vmatpush1.msra.mxu0 0.0
    %1636 = vmatprep.subr.mxu0 0.0
    %1637 = vmatpush1.msra.mxu0 0.0
    %1638 = vmatprep.subr.mxu0 0.0
    %1639 = vmatpush1.msra.mxu0 0.0
    %1640 = vmatprep.subr.mxu0 0.0
    %1641 = vmatpush1.msra.mxu0 0.0
    %1642 = vmatprep.subr.mxu0 %v516
    %1643 = vmatpush1.msra.mxu0 %v515
    %1644 = vmatprep.subr.mxu0 %v512
    %1645 = vmatpush1.msra.mxu0 %v511
    %1646 = vmatprep.subr.mxu0 %v508
    %1647 = vmatpush1.msra.mxu0 %v507
    %1648 = vmatprep.subr.mxu0 %v504
    %1649 = vmatpush1.msra.mxu0 %v503
    %1650 = vmatprep.subr.mxu0 %v500
    %1651 = vmatpush1.msra.mxu0 %v499
    %1652 = vmatprep.subr.mxu0 %v496
    %1653 = vmatpush1.msra.mxu0 %v495
    %1654 = vmatprep.subr.mxu0 %v492
    %1655 = vmatpush1.msra.mxu0 %v491
    %1656 = vmatprep.subr.mxu0 %v488
    %1657 = vmatpush1.msra.mxu0 %v487
    %1658 = vmatprep.subr.mxu0 0.0
    %1659 = vmatpush2.msra.mxu0 0.0
    %1660 = vmatprep.subr.mxu0 0.0
    %1661 = vmatpush2.msra.mxu0 0.0
    %1662 = vmatprep.subr.mxu0 0.0
    %1663 = vmatpush2.msra.mxu0 0.0
    %1664 = vmatprep.subr.mxu0 0.0
    %1665 = vmatpush2.msra.mxu0 0.0
    %1666 = vmatprep.subr.mxu0 0.0
    %1667 = vmatpush2.msra.mxu0 0.0
    %1668 = vmatprep.subr.mxu0 0.0
    %1669 = vmatpush2.msra.mxu0 0.0
    %1670 = vmatprep.subr.mxu0 0.0
    %1671 = vmatpush2.msra.mxu0 0.0
    %1672 = vmatprep.subr.mxu0 0.0
    %1673 = vmatpush2.msra.mxu0 0.0
    %1674 = vmatprep.subr.mxu0 0.0
    %1675 = vmatpush2.msra.mxu0 0.0
    %1676 = vmatprep.subr.mxu0 0.0
    %1677 = vmatpush2.msra.mxu0 0.0
    %1678 = vmatprep.subr.mxu0 0.0
    %1679 = vmatpush2.msra.mxu0 0.0
    %1680 = vmatprep.subr.mxu0 0.0
    %1681 = vmatpush2.msra.mxu0 0.0
    %1682 = vmatprep.subr.mxu0 0.0
    %1683 = vmatpush2.msra.mxu0 0.0
    %1684 = vmatprep.subr.mxu0 0.0
    %1685 = vmatpush2.msra.mxu0 0.0
    %1686 = vmatprep.subr.mxu0 0.0
    %1687 = vmatpush2.msra.mxu0 0.0
    %1688 = vmatprep.subr.mxu0 0.0
    %1689 = vmatpush2.msra.mxu0 0.0
    %1690 = vmatprep.mubr.f32.mxu0 0.0
    %1691 = vmatmul.mubr.f32.gmra.mxu0 %v1307
    %v1692 = vpop.f32.mrf.mxu0
    %v1693 = vadd.f32 0.0, %v1692
    %v1694 = vpop.f32.mrf.mxu0
    %v1695 = vadd.f32 0.0, %v1694
    %1696 = vdwg.mxu0
    %1697 = vmatprep.subr.mxu0 0.0
    %1698 = vmatpush1.msra.mxu0 0.0
    %1699 = vmatprep.subr.mxu0 0.0
    %1700 = vmatpush1.msra.mxu0 0.0
    %1701 = vmatprep.subr.mxu0 0.0
    %1702 = vmatpush1.msra.mxu0 0.0
    %1703 = vmatprep.subr.mxu0 0.0
    %1704 = vmatpush1.msra.mxu0 0.0
    %1705 = vmatprep.subr.mxu0 0.0
    %1706 = vmatpush1.msra.mxu0 0.0
    %1707 = vmatprep.subr.mxu0 0.0
    %1708 = vmatpush1.msra.mxu0 0.0
    %1709 = vmatprep.subr.mxu0 0.0
    %1710 = vmatpush1.msra.mxu0 0.0
    %1711 = vmatprep.subr.mxu0 0.0
    %1712 = vmatpush1.msra.mxu0 0.0
    %1713 = vmatprep.subr.mxu0 %v518
    %1714 = vmatpush1.msra.mxu0 %v517
    %1715 = vmatprep.subr.mxu0 %v514
    %1716 = vmatpush1.msra.mxu0 %v513
    %1717 = vmatprep.subr.mxu0 %v510
    %1718 = vmatpush1.msra.mxu0 %v509
    %1719 = vmatprep.subr.mxu0 %v506
    %1720 = vmatpush1.msra.mxu0 %v505
    %1721 = vmatprep.subr.mxu0 %v502
    %1722 = vmatpush1.msra.mxu0 %v501
    %1723 = vmatprep.subr.mxu0 %v498
    %1724 = vmatpush1.msra.mxu0 %v497
    %1725 = vmatprep.subr.mxu0 %v494
    %1726 = vmatpush1.msra.mxu0 %v493
    %1727 = vmatprep.subr.mxu0 %v490
    %1728 = vmatpush1.msra.mxu0 %v489
    %1729 = vmatprep.subr.mxu0 0.0
    %1730 = vmatpush2.msra.mxu0 0.0
    %1731 = vmatprep.subr.mxu0 0.0
    %1732 = vmatpush2.msra.mxu0 0.0
    %1733 = vmatprep.subr.mxu0 0.0
    %1734 = vmatpush2.msra.mxu0 0.0
    %1735 = vmatprep.subr.mxu0 0.0
    %1736 = vmatpush2.msra.mxu0 0.0
    %1737 = vmatprep.subr.mxu0 0.0
    %1738 = vmatpush2.msra.mxu0 0.0
    %1739 = vmatprep.subr.mxu0 0.0
    %1740 = vmatpush2.msra.mxu0 0.0
    %1741 = vmatprep.subr.mxu0 0.0
    %1742 = vmatpush2.msra.mxu0 0.0
    %1743 = vmatprep.subr.mxu0 0.0
    %1744 = vmatpush2.msra.mxu0 0.0
    %1745 = vmatprep.subr.mxu0 0.0
    %1746 = vmatpush2.msra.mxu0 0.0
    %1747 = vmatprep.subr.mxu0 0.0
    %1748 = vmatpush2.msra.mxu0 0.0
    %1749 = vmatprep.subr.mxu0 0.0
    %1750 = vmatpush2.msra.mxu0 0.0
    %1751 = vmatprep.subr.mxu0 0.0
    %1752 = vmatpush2.msra.mxu0 0.0
    %1753 = vmatprep.subr.mxu0 0.0
    %1754 = vmatpush2.msra.mxu0 0.0
    %1755 = vmatprep.subr.mxu0 0.0
    %1756 = vmatpush2.msra.mxu0 0.0
    %1757 = vmatprep.subr.mxu0 0.0
    %1758 = vmatpush2.msra.mxu0 0.0
    %1759 = vmatprep.subr.mxu0 0.0
    %1760 = vmatpush2.msra.mxu0 0.0
    %1761 = vmatprep.mubr.f32.mxu0 0.0
    %1762 = vmatmul.mubr.f32.gmra.mxu0 %v1307
    %v1763 = vpop.f32.mrf.mxu0
    %v1764 = vadd.f32 0.0, %v1763
    %v1765 = vpop.f32.mrf.mxu0
    %v1766 = vadd.f32 0.0, %v1765
    %1767 = vdwg.mxu0
    %v1772 = vcombine.low %v1693, %v1695
    %v1773 = vcombine.low %v1764, %v1766
    %v1775 = vunpack.c.l.s4 1983009808
    %v1776 = vunpack.c.0.s8 %v1775
    %v1777 = vlaneseq
    %v1778 = vshrl.u32 %v1777, 7
    %v1779 = vsub.s32 %v1776, %v1778
    %v1780 = vrot.slane %v1772, %v1779
    %v1782 = vunpack.c.l.s4 1983009808
    %v1783 = vunpack.c.0.s8 %v1782
    %v1784 = vlaneseq
    %v1785 = vshrl.u32 %v1784, 7
    %v1786 = vsub.s32 %v1783, %v1785
    %v1787 = vrot.slane %v1773, %v1786
    %v1788 = vcombine.low %v1780, %v1787
    %v1790 = vadd.f32 %v1625, %v1788
    %v1791 = vxor.u32 %v1790, 2147483648
    %v1792 = vmul.f32 %v1791, 1.442695
    %v1793 = vpow.pop %v1792
    %v1794 = vadd.f32 %v1793, 1.0
    %v1795 = vrcp.pop %v1794
    %v1796 = vmul.f32 1.0, %v1795
    %v1798 = vrot.slane %v1790, 2
    %v1800 = vxor.u32 %v1798, 2147483648
    %v1801 = vmul.f32 %v1800, 1.442695
    %v1802 = vpow.pop %v1801
    %v1803 = vadd.f32 %v1802, 1.0
    %v1804 = vrcp.pop %v1803
    %v1805 = vmul.f32 1.0, %v1804
    %v1806 = vrot.slane %v1790, 4
    %v1808 = vtanh.pop %v1806
    %v1809 = vrot.slane %v1790, 6
    %v1811 = vxor.u32 %v1809, 2147483648
    %v1812 = vmul.f32 %v1811, 1.442695
    %v1813 = vpow.pop %v1812
    %v1814 = vadd.f32 %v1813, 1.0
    %v1815 = vrcp.pop %v1814
    %v1816 = vmul.f32 1.0, %v1815
    %v1817 = vmul.f32 %v1805, %v1303
    %v1818 = vmul.f32 %v1796, %v1808
    %v1819 = vadd.f32 %v1817, %v1818
    %v1820 = vtanh.pop %v1819
    %v1821 = vmul.f32 %v1816, %v1820
    %v1823 = vsel %vm569, %v1821, 0
    %1825 = vmatprep.subr.mxu0 0.0
    %1826 = vmatpush1.msra.mxu0 0.0
    %1827 = vmatprep.subr.mxu0 0.0
    %1828 = vmatpush1.msra.mxu0 0.0
    %1829 = vmatprep.subr.mxu0 0.0
    %1830 = vmatpush1.msra.mxu0 0.0
    %1831 = vmatprep.subr.mxu0 0.0
    %1832 = vmatpush1.msra.mxu0 0.0
    %1833 = vmatprep.subr.mxu0 0.0
    %1834 = vmatpush1.msra.mxu0 0.0
    %1835 = vmatprep.subr.mxu0 0.0
    %1836 = vmatpush1.msra.mxu0 0.0
    %1837 = vmatprep.subr.mxu0 0.0
    %1838 = vmatpush1.msra.mxu0 0.0
    %1839 = vmatprep.subr.mxu0 0.0
    %1840 = vmatpush1.msra.mxu0 0.0
    %1841 = vmatprep.subr.mxu0 %v548
    %1842 = vmatpush1.msra.mxu0 %v547
    %1843 = vmatprep.subr.mxu0 %v544
    %1844 = vmatpush1.msra.mxu0 %v543
    %1845 = vmatprep.subr.mxu0 %v540
    %1846 = vmatpush1.msra.mxu0 %v539
    %1847 = vmatprep.subr.mxu0 %v536
    %1848 = vmatpush1.msra.mxu0 %v535
    %1849 = vmatprep.subr.mxu0 %v532
    %1850 = vmatpush1.msra.mxu0 %v531
    %1851 = vmatprep.subr.mxu0 %v528
    %1852 = vmatpush1.msra.mxu0 %v527
    %1853 = vmatprep.subr.mxu0 %v524
    %1854 = vmatpush1.msra.mxu0 %v523
    %1855 = vmatprep.subr.mxu0 %v520
    %1856 = vmatpush1.msra.mxu0 %v519
    %1857 = vmatprep.subr.mxu0 0.0
    %1858 = vmatpush2.msra.mxu0 0.0
    %1859 = vmatprep.subr.mxu0 0.0
    %1860 = vmatpush2.msra.mxu0 0.0
    %1861 = vmatprep.subr.mxu0 0.0
    %1862 = vmatpush2.msra.mxu0 0.0
    %1863 = vmatprep.subr.mxu0 0.0
    %1864 = vmatpush2.msra.mxu0 0.0
    %1865 = vmatprep.subr.mxu0 0.0
    %1866 = vmatpush2.msra.mxu0 0.0
    %1867 = vmatprep.subr.mxu0 0.0
    %1868 = vmatpush2.msra.mxu0 0.0
    %1869 = vmatprep.subr.mxu0 0.0
    %1870 = vmatpush2.msra.mxu0 0.0
    %1871 = vmatprep.subr.mxu0 0.0
    %1872 = vmatpush2.msra.mxu0 0.0
    %1873 = vmatprep.subr.mxu0 0.0
    %1874 = vmatpush2.msra.mxu0 0.0
    %1875 = vmatprep.subr.mxu0 0.0
    %1876 = vmatpush2.msra.mxu0 0.0
    %1877 = vmatprep.subr.mxu0 0.0
    %1878 = vmatpush2.msra.mxu0 0.0
    %1879 = vmatprep.subr.mxu0 0.0
    %1880 = vmatpush2.msra.mxu0 0.0
    %1881 = vmatprep.subr.mxu0 0.0
    %1882 = vmatpush2.msra.mxu0 0.0
    %1883 = vmatprep.subr.mxu0 0.0
    %1884 = vmatpush2.msra.mxu0 0.0
    %1885 = vmatprep.subr.mxu0 0.0
    %1886 = vmatpush2.msra.mxu0 0.0
    %1887 = vmatprep.subr.mxu0 0.0
    %1888 = vmatpush2.msra.mxu0 0.0
    %1889 = vmatprep.mubr.f32.mxu0 0.0
    %1890 = vmatmul.mubr.f32.gmra.mxu0 %v1823
    %v1891 = vpop.f32.mrf.mxu0
    %v1892 = vadd.f32 %v773, %v1891
    %v1893 = vpop.f32.mrf.mxu0
    %v1894 = vadd.f32 %v777, %v1893
    %1895 = vdwg.mxu0
    %1896 = vmatprep.subr.mxu0 0.0
    %1897 = vmatpush1.msra.mxu0 0.0
    %1898 = vmatprep.subr.mxu0 0.0
    %1899 = vmatpush1.msra.mxu0 0.0
    %1900 = vmatprep.subr.mxu0 0.0
    %1901 = vmatpush1.msra.mxu0 0.0
    %1902 = vmatprep.subr.mxu0 0.0
    %1903 = vmatpush1.msra.mxu0 0.0
    %1904 = vmatprep.subr.mxu0 0.0
    %1905 = vmatpush1.msra.mxu0 0.0
    %1906 = vmatprep.subr.mxu0 0.0
    %1907 = vmatpush1.msra.mxu0 0.0
    %1908 = vmatprep.subr.mxu0 0.0
    %1909 = vmatpush1.msra.mxu0 0.0
    %1910 = vmatprep.subr.mxu0 0.0
    %1911 = vmatpush1.msra.mxu0 0.0
    %1912 = vmatprep.subr.mxu0 %v550
    %1913 = vmatpush1.msra.mxu0 %v549
    %1914 = vmatprep.subr.mxu0 %v546
    %1915 = vmatpush1.msra.mxu0 %v545
    %1916 = vmatprep.subr.mxu0 %v542
    %1917 = vmatpush1.msra.mxu0 %v541
    %1918 = vmatprep.subr.mxu0 %v538
    %1919 = vmatpush1.msra.mxu0 %v537
    %1920 = vmatprep.subr.mxu0 %v534
    %1921 = vmatpush1.msra.mxu0 %v533
    %1922 = vmatprep.subr.mxu0 %v530
    %1923 = vmatpush1.msra.mxu0 %v529
    %1924 = vmatprep.subr.mxu0 %v526
    %1925 = vmatpush1.msra.mxu0 %v525
    %1926 = vmatprep.subr.mxu0 %v522
    %1927 = vmatpush1.msra.mxu0 %v521
    %1928 = vmatprep.subr.mxu0 0.0
    %1929 = vmatpush2.msra.mxu0 0.0
    %1930 = vmatprep.subr.mxu0 0.0
    %1931 = vmatpush2.msra.mxu0 0.0
    %1932 = vmatprep.subr.mxu0 0.0
    %1933 = vmatpush2.msra.mxu0 0.0
    %1934 = vmatprep.subr.mxu0 0.0
    %1935 = vmatpush2.msra.mxu0 0.0
    %1936 = vmatprep.subr.mxu0 0.0
    %1937 = vmatpush2.msra.mxu0 0.0
    %1938 = vmatprep.subr.mxu0 0.0
    %1939 = vmatpush2.msra.mxu0 0.0
    %1940 = vmatprep.subr.mxu0 0.0
    %1941 = vmatpush2.msra.mxu0 0.0
    %1942 = vmatprep.subr.mxu0 0.0
    %1943 = vmatpush2.msra.mxu0 0.0
    %1944 = vmatprep.subr.mxu0 0.0
    %1945 = vmatpush2.msra.mxu0 0.0
    %1946 = vmatprep.subr.mxu0 0.0
    %1947 = vmatpush2.msra.mxu0 0.0
    %1948 = vmatprep.subr.mxu0 0.0
    %1949 = vmatpush2.msra.mxu0 0.0
    %1950 = vmatprep.subr.mxu0 0.0
    %1951 = vmatpush2.msra.mxu0 0.0
    %1952 = vmatprep.subr.mxu0 0.0
    %1953 = vmatpush2.msra.mxu0 0.0
    %1954 = vmatprep.subr.mxu0 0.0
    %1955 = vmatpush2.msra.mxu0 0.0
    %1956 = vmatprep.subr.mxu0 0.0
    %1957 = vmatpush2.msra.mxu0 0.0
    %1958 = vmatprep.subr.mxu0 0.0
    %1959 = vmatpush2.msra.mxu0 0.0
    %1960 = vmatprep.mubr.f32.mxu0 0.0
    %1961 = vmatmul.mubr.f32.gmra.mxu0 %v1823
    %v1962 = vpop.f32.mrf.mxu0
    %v1963 = vadd.f32 %v781, %v1962
    %v1964 = vpop.f32.mrf.mxu0
    %v1965 = vadd.f32 %v785, %v1964
    %1966 = vdwg.mxu0
    %v1968 = vsel %vm935, %v1623, 0
    %1970 = vmatprep.subr.mxu0 0.0
    %1971 = vmatpush1.msra.mxu0 0.0
    %1972 = vmatprep.subr.mxu0 0.0
    %1973 = vmatpush1.msra.mxu0 0.0
    %1974 = vmatprep.subr.mxu0 0.0
    %1975 = vmatpush1.msra.mxu0 0.0
    %1976 = vmatprep.subr.mxu0 0.0
    %1977 = vmatpush1.msra.mxu0 0.0
    %1978 = vmatprep.subr.mxu0 0.0
    %1979 = vmatpush1.msra.mxu0 0.0
    %1980 = vmatprep.subr.mxu0 0.0
    %1981 = vmatpush1.msra.mxu0 0.0
    %1982 = vmatprep.subr.mxu0 0.0
    %1983 = vmatpush1.msra.mxu0 0.0
    %1984 = vmatprep.subr.mxu0 0.0
    %1985 = vmatpush1.msra.mxu0 0.0
    %1986 = vmatprep.subr.mxu0 0.0
    %1987 = vmatpush1.msra.mxu0 0.0
    %1988 = vmatprep.subr.mxu0 0.0
    %1989 = vmatpush1.msra.mxu0 0.0
    %1990 = vmatprep.subr.mxu0 0.0
    %1991 = vmatpush1.msra.mxu0 0.0
    %1992 = vmatprep.subr.mxu0 0.0
    %1993 = vmatpush1.msra.mxu0 0.0
    %1994 = vmatprep.subr.mxu0 %v564
    %1995 = vmatpush1.msra.mxu0 %v563
    %1996 = vmatprep.subr.mxu0 %v560
    %1997 = vmatpush1.msra.mxu0 %v559
    %1998 = vmatprep.subr.mxu0 %v556
    %1999 = vmatpush1.msra.mxu0 %v555
    %2000 = vmatprep.subr.mxu0 %v552
    %2001 = vmatpush1.msra.mxu0 %v551
    %2002 = vmatprep.subr.mxu0 0.0
    %2003 = vmatpush2.msra.mxu0 0.0
    %2004 = vmatprep.subr.mxu0 0.0
    %2005 = vmatpush2.msra.mxu0 0.0
    %2006 = vmatprep.subr.mxu0 0.0
    %2007 = vmatpush2.msra.mxu0 0.0
    %2008 = vmatprep.subr.mxu0 0.0
    %2009 = vmatpush2.msra.mxu0 0.0
    %2010 = vmatprep.subr.mxu0 0.0
    %2011 = vmatpush2.msra.mxu0 0.0
    %2012 = vmatprep.subr.mxu0 0.0
    %2013 = vmatpush2.msra.mxu0 0.0
    %2014 = vmatprep.subr.mxu0 0.0
    %2015 = vmatpush2.msra.mxu0 0.0
    %2016 = vmatprep.subr.mxu0 0.0
    %2017 = vmatpush2.msra.mxu0 0.0
    %2018 = vmatprep.subr.mxu0 0.0
    %2019 = vmatpush2.msra.mxu0 0.0
    %2020 = vmatprep.subr.mxu0 0.0
    %2021 = vmatpush2.msra.mxu0 0.0
    %2022 = vmatprep.subr.mxu0 0.0
    %2023 = vmatpush2.msra.mxu0 0.0
    %2024 = vmatprep.subr.mxu0 0.0
    %2025 = vmatpush2.msra.mxu0 0.0
    %2026 = vmatprep.subr.mxu0 0.0
    %2027 = vmatpush2.msra.mxu0 0.0
    %2028 = vmatprep.subr.mxu0 0.0
    %2029 = vmatpush2.msra.mxu0 0.0
    %2030 = vmatprep.subr.mxu0 0.0
    %2031 = vmatpush2.msra.mxu0 0.0
    %2032 = vmatprep.subr.mxu0 0.0
    %2033 = vmatpush2.msra.mxu0 0.0
    %2034 = vmatprep.mubr.f32.mxu0 0.0
    %2035 = vmatmul.mubr.f32.gmra.mxu0 %v1968
    %v2036 = vpop.f32.mrf.mxu0
    %v2037 = vadd.f32 0.0, %v2036
    %v2038 = vpop.f32.mrf.mxu0
    %v2039 = vadd.f32 0.0, %v2038
    %2040 = vdwg.mxu0
    %2041 = vmatprep.subr.mxu0 0.0
    %2042 = vmatpush1.msra.mxu0 0.0
    %2043 = vmatprep.subr.mxu0 0.0
    %2044 = vmatpush1.msra.mxu0 0.0
    %2045 = vmatprep.subr.mxu0 0.0
    %2046 = vmatpush1.msra.mxu0 0.0
    %2047 = vmatprep.subr.mxu0 0.0
    %2048 = vmatpush1.msra.mxu0 0.0
    %2049 = vmatprep.subr.mxu0 0.0
    %2050 = vmatpush1.msra.mxu0 0.0
    %2051 = vmatprep.subr.mxu0 0.0
    %2052 = vmatpush1.msra.mxu0 0.0
    %2053 = vmatprep.subr.mxu0 0.0
    %2054 = vmatpush1.msra.mxu0 0.0
    %2055 = vmatprep.subr.mxu0 0.0
    %2056 = vmatpush1.msra.mxu0 0.0
    %2057 = vmatprep.subr.mxu0 0.0
    %2058 = vmatpush1.msra.mxu0 0.0
    %2059 = vmatprep.subr.mxu0 0.0
    %2060 = vmatpush1.msra.mxu0 0.0
    %2061 = vmatprep.subr.mxu0 0.0
    %2062 = vmatpush1.msra.mxu0 0.0
    %2063 = vmatprep.subr.mxu0 0.0
    %2064 = vmatpush1.msra.mxu0 0.0
    %2065 = vmatprep.subr.mxu0 %v566
    %2066 = vmatpush1.msra.mxu0 %v565
    %2067 = vmatprep.subr.mxu0 %v562
    %2068 = vmatpush1.msra.mxu0 %v561
    %2069 = vmatprep.subr.mxu0 %v558
    %2070 = vmatpush1.msra.mxu0 %v557
    %2071 = vmatprep.subr.mxu0 %v554
    %2072 = vmatpush1.msra.mxu0 %v553
    %2073 = vmatprep.subr.mxu0 0.0
    %2074 = vmatpush2.msra.mxu0 0.0
    %2075 = vmatprep.subr.mxu0 0.0
    %2076 = vmatpush2.msra.mxu0 0.0
    %2077 = vmatprep.subr.mxu0 0.0
    %2078 = vmatpush2.msra.mxu0 0.0
    %2079 = vmatprep.subr.mxu0 0.0
    %2080 = vmatpush2.msra.mxu0 0.0
    %2081 = vmatprep.subr.mxu0 0.0
    %2082 = vmatpush2.msra.mxu0 0.0
    %2083 = vmatprep.subr.mxu0 0.0
    %2084 = vmatpush2.msra.mxu0 0.0
    %2085 = vmatprep.subr.mxu0 0.0
    %2086 = vmatpush2.msra.mxu0 0.0
    %2087 = vmatprep.subr.mxu0 0.0
    %2088 = vmatpush2.msra.mxu0 0.0
    %2089 = vmatprep.subr.mxu0 0.0
    %2090 = vmatpush2.msra.mxu0 0.0
    %2091 = vmatprep.subr.mxu0 0.0
    %2092 = vmatpush2.msra.mxu0 0.0
    %2093 = vmatprep.subr.mxu0 0.0
    %2094 = vmatpush2.msra.mxu0 0.0
    %2095 = vmatprep.subr.mxu0 0.0
    %2096 = vmatpush2.msra.mxu0 0.0
    %2097 = vmatprep.subr.mxu0 0.0
    %2098 = vmatpush2.msra.mxu0 0.0
    %2099 = vmatprep.subr.mxu0 0.0
    %2100 = vmatpush2.msra.mxu0 0.0
    %2101 = vmatprep.subr.mxu0 0.0
    %2102 = vmatpush2.msra.mxu0 0.0
    %2103 = vmatprep.subr.mxu0 0.0
    %2104 = vmatpush2.msra.mxu0 0.0
    %2105 = vmatprep.mubr.f32.mxu0 0.0
    %2106 = vmatmul.mubr.f32.gmra.mxu0 %v1968
    %v2107 = vpop.f32.mrf.mxu0
    %v2108 = vadd.f32 0.0, %v2107
    %v2109 = vpop.f32.mrf.mxu0
    %v2110 = vadd.f32 0.0, %v2109
    %2111 = vdwg.mxu0
    %v2112 = vadd.f32 %v1892, %v2037
    %v2113 = vadd.f32 %v1894, %v2039
    %v2114 = vadd.f32 %v1963, %v2108
    %v2115 = vadd.f32 %v1965, %v2110
    %v2116 = vxor.u32 %v2112, 2147483648
    %v2117 = vmul.f32 %v2116, 1.442695
    %v2118 = vpow.pop %v2117
    %v2119 = vadd.f32 %v2118, 1.0
    %v2120 = vrcp.pop %v2119
    %v2121 = vmul.f32 1.0, %v2120
    %v2122 = vxor.u32 %v2113, 2147483648
    %v2123 = vmul.f32 %v2122, 1.442695
    %v2124 = vpow.pop %v2123
    %v2125 = vadd.f32 %v2124, 1.0
    %v2126 = vrcp.pop %v2125
    %v2127 = vmul.f32 1.0, %v2126
    %v2128 = vtanh.pop %v2114
    %v2129 = vxor.u32 %v2115, 2147483648
    %v2130 = vmul.f32 %v2129, 1.442695
    %v2131 = vpow.pop %v2130
    %v2132 = vadd.f32 %v2131, 1.0
    %v2133 = vrcp.pop %v2132
    %v2134 = vmul.f32 1.0, %v2133
    %v2135 = vmul.f32 %v2127, %v1621
    %v2136 = vmul.f32 %v2121, %v2128
    %v2137 = vadd.f32 %v2135, %v2136
    %v2138 = vtanh.pop %v2137
    %v2139 = vmul.f32 %v2134, %v2138
    %s2140 = scalar_lea.vmem [#allocation2], 24
    %v2141 = vld [vmem:[%s2140] sm:$0xff]
    %2142 = vmatprep.subr.mxu0 0.0
    %2143 = vmatpush1.msra.mxu0 0.0
    %2144 = vmatprep.subr.mxu0 0.0
    %2145 = vmatpush1.msra.mxu0 0.0
    %2146 = vmatprep.subr.mxu0 0.0
    %2147 = vmatpush1.msra.mxu0 0.0
    %2148 = vmatprep.subr.mxu0 0.0
    %2149 = vmatpush1.msra.mxu0 0.0
    %2150 = vmatprep.subr.mxu0 0.0
    %2151 = vmatpush1.msra.mxu0 0.0
    %2152 = vmatprep.subr.mxu0 0.0
    %2153 = vmatpush1.msra.mxu0 0.0
    %2154 = vmatprep.subr.mxu0 0.0
    %2155 = vmatpush1.msra.mxu0 0.0
    %2156 = vmatprep.subr.mxu0 0.0
    %2157 = vmatpush1.msra.mxu0 0.0
    %2158 = vmatprep.subr.mxu0 %v516
    %2159 = vmatpush1.msra.mxu0 %v515
    %2160 = vmatprep.subr.mxu0 %v512
    %2161 = vmatpush1.msra.mxu0 %v511
    %2162 = vmatprep.subr.mxu0 %v508
    %2163 = vmatpush1.msra.mxu0 %v507
    %2164 = vmatprep.subr.mxu0 %v504
    %2165 = vmatpush1.msra.mxu0 %v503
    %2166 = vmatprep.subr.mxu0 %v500
    %2167 = vmatpush1.msra.mxu0 %v499
    %2168 = vmatprep.subr.mxu0 %v496
    %2169 = vmatpush1.msra.mxu0 %v495
    %2170 = vmatprep.subr.mxu0 %v492
    %2171 = vmatpush1.msra.mxu0 %v491
    %2172 = vmatprep.subr.mxu0 %v488
    %2173 = vmatpush1.msra.mxu0 %v487
    %2174 = vmatprep.subr.mxu0 0.0
    %2175 = vmatpush2.msra.mxu0 0.0
    %2176 = vmatprep.subr.mxu0 0.0
    %2177 = vmatpush2.msra.mxu0 0.0
    %2178 = vmatprep.subr.mxu0 0.0
    %2179 = vmatpush2.msra.mxu0 0.0
    %2180 = vmatprep.subr.mxu0 0.0
    %2181 = vmatpush2.msra.mxu0 0.0
    %2182 = vmatprep.subr.mxu0 0.0
    %2183 = vmatpush2.msra.mxu0 0.0
    %2184 = vmatprep.subr.mxu0 0.0
    %2185 = vmatpush2.msra.mxu0 0.0
    %2186 = vmatprep.subr.mxu0 0.0
    %2187 = vmatpush2.msra.mxu0 0.0
    %2188 = vmatprep.subr.mxu0 0.0
    %2189 = vmatpush2.msra.mxu0 0.0
    %2190 = vmatprep.subr.mxu0 0.0
    %2191 = vmatpush2.msra.mxu0 0.0
    %2192 = vmatprep.subr.mxu0 0.0
    %2193 = vmatpush2.msra.mxu0 0.0
    %2194 = vmatprep.subr.mxu0 0.0
    %2195 = vmatpush2.msra.mxu0 0.0
    %2196 = vmatprep.subr.mxu0 0.0
    %2197 = vmatpush2.msra.mxu0 0.0
    %2198 = vmatprep.subr.mxu0 0.0
    %2199 = vmatpush2.msra.mxu0 0.0
    %2200 = vmatprep.subr.mxu0 0.0
    %2201 = vmatpush2.msra.mxu0 0.0
    %2202 = vmatprep.subr.mxu0 0.0
    %2203 = vmatpush2.msra.mxu0 0.0
    %2204 = vmatprep.subr.mxu0 0.0
    %2205 = vmatpush2.msra.mxu0 0.0
    %2206 = vmatprep.mubr.f32.mxu0 0.0
    %2207 = vmatmul.mubr.f32.gmra.mxu0 %v1823
    %v2208 = vpop.f32.mrf.mxu0
    %v2209 = vadd.f32 0.0, %v2208
    %v2210 = vpop.f32.mrf.mxu0
    %v2211 = vadd.f32 0.0, %v2210
    %2212 = vdwg.mxu0
    %2213 = vmatprep.subr.mxu0 0.0
    %2214 = vmatpush1.msra.mxu0 0.0
    %2215 = vmatprep.subr.mxu0 0.0
    %2216 = vmatpush1.msra.mxu0 0.0
    %2217 = vmatprep.subr.mxu0 0.0
    %2218 = vmatpush1.msra.mxu0 0.0
    %2219 = vmatprep.subr.mxu0 0.0
    %2220 = vmatpush1.msra.mxu0 0.0
    %2221 = vmatprep.subr.mxu0 0.0
    %2222 = vmatpush1.msra.mxu0 0.0
    %2223 = vmatprep.subr.mxu0 0.0
    %2224 = vmatpush1.msra.mxu0 0.0
    %2225 = vmatprep.subr.mxu0 0.0
    %2226 = vmatpush1.msra.mxu0 0.0
    %2227 = vmatprep.subr.mxu0 0.0
    %2228 = vmatpush1.msra.mxu0 0.0
    %2229 = vmatprep.subr.mxu0 %v518
    %2230 = vmatpush1.msra.mxu0 %v517
    %2231 = vmatprep.subr.mxu0 %v514
    %2232 = vmatpush1.msra.mxu0 %v513
    %2233 = vmatprep.subr.mxu0 %v510
    %2234 = vmatpush1.msra.mxu0 %v509
    %2235 = vmatprep.subr.mxu0 %v506
    %2236 = vmatpush1.msra.mxu0 %v505
    %2237 = vmatprep.subr.mxu0 %v502
    %2238 = vmatpush1.msra.mxu0 %v501
    %2239 = vmatprep.subr.mxu0 %v498
    %2240 = vmatpush1.msra.mxu0 %v497
    %2241 = vmatprep.subr.mxu0 %v494
    %2242 = vmatpush1.msra.mxu0 %v493
    %2243 = vmatprep.subr.mxu0 %v490
    %2244 = vmatpush1.msra.mxu0 %v489
    %2245 = vmatprep.subr.mxu0 0.0
    %2246 = vmatpush2.msra.mxu0 0.0
    %2247 = vmatprep.subr.mxu0 0.0
    %2248 = vmatpush2.msra.mxu0 0.0
    %2249 = vmatprep.subr.mxu0 0.0
    %2250 = vmatpush2.msra.mxu0 0.0
    %2251 = vmatprep.subr.mxu0 0.0
    %2252 = vmatpush2.msra.mxu0 0.0
    %2253 = vmatprep.subr.mxu0 0.0
    %2254 = vmatpush2.msra.mxu0 0.0
    %2255 = vmatprep.subr.mxu0 0.0
    %2256 = vmatpush2.msra.mxu0 0.0
    %2257 = vmatprep.subr.mxu0 0.0
    %2258 = vmatpush2.msra.mxu0 0.0
    %2259 = vmatprep.subr.mxu0 0.0
    %2260 = vmatpush2.msra.mxu0 0.0
    %2261 = vmatprep.subr.mxu0 0.0
    %2262 = vmatpush2.msra.mxu0 0.0
    %2263 = vmatprep.subr.mxu0 0.0
    %2264 = vmatpush2.msra.mxu0 0.0
    %2265 = vmatprep.subr.mxu0 0.0
    %2266 = vmatpush2.msra.mxu0 0.0
    %2267 = vmatprep.subr.mxu0 0.0
    %2268 = vmatpush2.msra.mxu0 0.0
    %2269 = vmatprep.subr.mxu0 0.0
    %2270 = vmatpush2.msra.mxu0 0.0
    %2271 = vmatprep.subr.mxu0 0.0
    %2272 = vmatpush2.msra.mxu0 0.0
    %2273 = vmatprep.subr.mxu0 0.0
    %2274 = vmatpush2.msra.mxu0 0.0
    %2275 = vmatprep.subr.mxu0 0.0
    %2276 = vmatpush2.msra.mxu0 0.0
    %2277 = vmatprep.mubr.f32.mxu0 0.0
    %2278 = vmatmul.mubr.f32.gmra.mxu0 %v1823
    %v2279 = vpop.f32.mrf.mxu0
    %v2280 = vadd.f32 0.0, %v2279
    %v2281 = vpop.f32.mrf.mxu0
    %v2282 = vadd.f32 0.0, %v2281
    %2283 = vdwg.mxu0
    %v2288 = vcombine.low %v2209, %v2211
    %v2289 = vcombine.low %v2280, %v2282
    %v2291 = vunpack.c.l.s4 1983009808
    %v2292 = vunpack.c.0.s8 %v2291
    %v2293 = vlaneseq
    %v2294 = vshrl.u32 %v2293, 7
    %v2295 = vsub.s32 %v2292, %v2294
    %v2296 = vrot.slane %v2288, %v2295
    %v2298 = vunpack.c.l.s4 1983009808
    %v2299 = vunpack.c.0.s8 %v2298
    %v2300 = vlaneseq
    %v2301 = vshrl.u32 %v2300, 7
    %v2302 = vsub.s32 %v2299, %v2301
    %v2303 = vrot.slane %v2289, %v2302
    %v2304 = vcombine.low %v2296, %v2303
    %v2306 = vadd.f32 %v2141, %v2304
    %v2307 = vxor.u32 %v2306, 2147483648
    %v2308 = vmul.f32 %v2307, 1.442695
    %v2309 = vpow.pop %v2308
    %v2310 = vadd.f32 %v2309, 1.0
    %v2311 = vrcp.pop %v2310
    %v2312 = vmul.f32 1.0, %v2311
    %v2314 = vrot.slane %v2306, 2
    %v2316 = vxor.u32 %v2314, 2147483648
    %v2317 = vmul.f32 %v2316, 1.442695
    %v2318 = vpow.pop %v2317
    %v2319 = vadd.f32 %v2318, 1.0
    %v2320 = vrcp.pop %v2319
    %v2321 = vmul.f32 1.0, %v2320
    %v2322 = vrot.slane %v2306, 4
    %v2324 = vtanh.pop %v2322
    %v2325 = vrot.slane %v2306, 6
    %v2327 = vxor.u32 %v2325, 2147483648
    %v2328 = vmul.f32 %v2327, 1.442695
    %v2329 = vpow.pop %v2328
    %v2330 = vadd.f32 %v2329, 1.0
    %v2331 = vrcp.pop %v2330
    %v2332 = vmul.f32 1.0, %v2331
    %v2333 = vmul.f32 %v2321, %v1819
    %v2334 = vmul.f32 %v2312, %v2324
    %v2335 = vadd.f32 %v2333, %v2334
    %v2336 = vtanh.pop %v2335
    %v2337 = vmul.f32 %v2332, %v2336
    %v2339 = vsel %vm569, %v2337, 0
    %2341 = vmatprep.subr.mxu0 0.0
    %2342 = vmatpush1.msra.mxu0 0.0
    %2343 = vmatprep.subr.mxu0 0.0
    %2344 = vmatpush1.msra.mxu0 0.0
    %2345 = vmatprep.subr.mxu0 0.0
    %2346 = vmatpush1.msra.mxu0 0.0
    %2347 = vmatprep.subr.mxu0 0.0
    %2348 = vmatpush1.msra.mxu0 0.0
    %2349 = vmatprep.subr.mxu0 0.0
    %2350 = vmatpush1.msra.mxu0 0.0
    %2351 = vmatprep.subr.mxu0 0.0
    %2352 = vmatpush1.msra.mxu0 0.0
    %2353 = vmatprep.subr.mxu0 0.0
    %2354 = vmatpush1.msra.mxu0 0.0
    %2355 = vmatprep.subr.mxu0 0.0
    %2356 = vmatpush1.msra.mxu0 0.0
    %2357 = vmatprep.subr.mxu0 %v548
    %2358 = vmatpush1.msra.mxu0 %v547
    %2359 = vmatprep.subr.mxu0 %v544
    %2360 = vmatpush1.msra.mxu0 %v543
    %2361 = vmatprep.subr.mxu0 %v540
    %2362 = vmatpush1.msra.mxu0 %v539
    %2363 = vmatprep.subr.mxu0 %v536
    %2364 = vmatpush1.msra.mxu0 %v535
    %2365 = vmatprep.subr.mxu0 %v532
    %2366 = vmatpush1.msra.mxu0 %v531
    %2367 = vmatprep.subr.mxu0 %v528
    %2368 = vmatpush1.msra.mxu0 %v527
    %2369 = vmatprep.subr.mxu0 %v524
    %2370 = vmatpush1.msra.mxu0 %v523
    %2371 = vmatprep.subr.mxu0 %v520
    %2372 = vmatpush1.msra.mxu0 %v519
    %2373 = vmatprep.subr.mxu0 0.0
    %2374 = vmatpush2.msra.mxu0 0.0
    %2375 = vmatprep.subr.mxu0 0.0
    %2376 = vmatpush2.msra.mxu0 0.0
    %2377 = vmatprep.subr.mxu0 0.0
    %2378 = vmatpush2.msra.mxu0 0.0
    %2379 = vmatprep.subr.mxu0 0.0
    %2380 = vmatpush2.msra.mxu0 0.0
    %2381 = vmatprep.subr.mxu0 0.0
    %2382 = vmatpush2.msra.mxu0 0.0
    %2383 = vmatprep.subr.mxu0 0.0
    %2384 = vmatpush2.msra.mxu0 0.0
    %2385 = vmatprep.subr.mxu0 0.0
    %2386 = vmatpush2.msra.mxu0 0.0
    %2387 = vmatprep.subr.mxu0 0.0
    %2388 = vmatpush2.msra.mxu0 0.0
    %2389 = vmatprep.subr.mxu0 0.0
    %2390 = vmatpush2.msra.mxu0 0.0
    %2391 = vmatprep.subr.mxu0 0.0
    %2392 = vmatpush2.msra.mxu0 0.0
    %2393 = vmatprep.subr.mxu0 0.0
    %2394 = vmatpush2.msra.mxu0 0.0
    %2395 = vmatprep.subr.mxu0 0.0
    %2396 = vmatpush2.msra.mxu0 0.0
    %2397 = vmatprep.subr.mxu0 0.0
    %2398 = vmatpush2.msra.mxu0 0.0
    %2399 = vmatprep.subr.mxu0 0.0
    %2400 = vmatpush2.msra.mxu0 0.0
    %2401 = vmatprep.subr.mxu0 0.0
    %2402 = vmatpush2.msra.mxu0 0.0
    %2403 = vmatprep.subr.mxu0 0.0
    %2404 = vmatpush2.msra.mxu0 0.0
    %2405 = vmatprep.mubr.f32.mxu0 0.0
    %2406 = vmatmul.mubr.f32.gmra.mxu0 %v2339
    %v2407 = vpop.f32.mrf.mxu0
    %v2408 = vadd.f32 %v773, %v2407
    %v2409 = vpop.f32.mrf.mxu0
    %v2410 = vadd.f32 %v777, %v2409
    %2411 = vdwg.mxu0
    %2412 = vmatprep.subr.mxu0 0.0
    %2413 = vmatpush1.msra.mxu0 0.0
    %2414 = vmatprep.subr.mxu0 0.0
    %2415 = vmatpush1.msra.mxu0 0.0
    %2416 = vmatprep.subr.mxu0 0.0
    %2417 = vmatpush1.msra.mxu0 0.0
    %2418 = vmatprep.subr.mxu0 0.0
    %2419 = vmatpush1.msra.mxu0 0.0
    %2420 = vmatprep.subr.mxu0 0.0
    %2421 = vmatpush1.msra.mxu0 0.0
    %2422 = vmatprep.subr.mxu0 0.0
    %2423 = vmatpush1.msra.mxu0 0.0
    %2424 = vmatprep.subr.mxu0 0.0
    %2425 = vmatpush1.msra.mxu0 0.0
    %2426 = vmatprep.subr.mxu0 0.0
    %2427 = vmatpush1.msra.mxu0 0.0
    %2428 = vmatprep.subr.mxu0 %v550
    %2429 = vmatpush1.msra.mxu0 %v549
    %2430 = vmatprep.subr.mxu0 %v546
    %2431 = vmatpush1.msra.mxu0 %v545
    %2432 = vmatprep.subr.mxu0 %v542
    %2433 = vmatpush1.msra.mxu0 %v541
    %2434 = vmatprep.subr.mxu0 %v538
    %2435 = vmatpush1.msra.mxu0 %v537
    %2436 = vmatprep.subr.mxu0 %v534
    %2437 = vmatpush1.msra.mxu0 %v533
    %2438 = vmatprep.subr.mxu0 %v530
    %2439 = vmatpush1.msra.mxu0 %v529
    %2440 = vmatprep.subr.mxu0 %v526
    %2441 = vmatpush1.msra.mxu0 %v525
    %2442 = vmatprep.subr.mxu0 %v522
    %2443 = vmatpush1.msra.mxu0 %v521
    %2444 = vmatprep.subr.mxu0 0.0
    %2445 = vmatpush2.msra.mxu0 0.0
    %2446 = vmatprep.subr.mxu0 0.0
    %2447 = vmatpush2.msra.mxu0 0.0
    %2448 = vmatprep.subr.mxu0 0.0
    %2449 = vmatpush2.msra.mxu0 0.0
    %2450 = vmatprep.subr.mxu0 0.0
    %2451 = vmatpush2.msra.mxu0 0.0
    %2452 = vmatprep.subr.mxu0 0.0
    %2453 = vmatpush2.msra.mxu0 0.0
    %2454 = vmatprep.subr.mxu0 0.0
    %2455 = vmatpush2.msra.mxu0 0.0
    %2456 = vmatprep.subr.mxu0 0.0
    %2457 = vmatpush2.msra.mxu0 0.0
    %2458 = vmatprep.subr.mxu0 0.0
    %2459 = vmatpush2.msra.mxu0 0.0
    %2460 = vmatprep.subr.mxu0 0.0
    %2461 = vmatpush2.msra.mxu0 0.0
    %2462 = vmatprep.subr.mxu0 0.0
    %2463 = vmatpush2.msra.mxu0 0.0
    %2464 = vmatprep.subr.mxu0 0.0
    %2465 = vmatpush2.msra.mxu0 0.0
    %2466 = vmatprep.subr.mxu0 0.0
    %2467 = vmatpush2.msra.mxu0 0.0
    %2468 = vmatprep.subr.mxu0 0.0
    %2469 = vmatpush2.msra.mxu0 0.0
    %2470 = vmatprep.subr.mxu0 0.0
    %2471 = vmatpush2.msra.mxu0 0.0
    %2472 = vmatprep.subr.mxu0 0.0
    %2473 = vmatpush2.msra.mxu0 0.0
    %2474 = vmatprep.subr.mxu0 0.0
    %2475 = vmatpush2.msra.mxu0 0.0
    %2476 = vmatprep.mubr.f32.mxu0 0.0
    %2477 = vmatmul.mubr.f32.gmra.mxu0 %v2339
    %v2478 = vpop.f32.mrf.mxu0
    %v2479 = vadd.f32 %v781, %v2478
    %v2480 = vpop.f32.mrf.mxu0
    %v2481 = vadd.f32 %v785, %v2480
    %2482 = vdwg.mxu0
    %v2484 = vsel %vm935, %v2139, 0
    %2486 = vmatprep.subr.mxu0 0.0
    %2487 = vmatpush1.msra.mxu0 0.0
    %2488 = vmatprep.subr.mxu0 0.0
    %2489 = vmatpush1.msra.mxu0 0.0
    %2490 = vmatprep.subr.mxu0 0.0
    %2491 = vmatpush1.msra.mxu0 0.0
    %2492 = vmatprep.subr.mxu0 0.0
    %2493 = vmatpush1.msra.mxu0 0.0
    %2494 = vmatprep.subr.mxu0 0.0
    %2495 = vmatpush1.msra.mxu0 0.0
    %2496 = vmatprep.subr.mxu0 0.0
    %2497 = vmatpush1.msra.mxu0 0.0
    %2498 = vmatprep.subr.mxu0 0.0
    %2499 = vmatpush1.msra.mxu0 0.0
    %2500 = vmatprep.subr.mxu0 0.0
    %2501 = vmatpush1.msra.mxu0 0.0
    %2502 = vmatprep.subr.mxu0 0.0
    %2503 = vmatpush1.msra.mxu0 0.0
    %2504 = vmatprep.subr.mxu0 0.0
    %2505 = vmatpush1.msra.mxu0 0.0
    %2506 = vmatprep.subr.mxu0 0.0
    %2507 = vmatpush1.msra.mxu0 0.0
    %2508 = vmatprep.subr.mxu0 0.0
    %2509 = vmatpush1.msra.mxu0 0.0
    %2510 = vmatprep.subr.mxu0 %v564
    %2511 = vmatpush1.msra.mxu0 %v563
    %2512 = vmatprep.subr.mxu0 %v560
    %2513 = vmatpush1.msra.mxu0 %v559
    %2514 = vmatprep.subr.mxu0 %v556
    %2515 = vmatpush1.msra.mxu0 %v555
    %2516 = vmatprep.subr.mxu0 %v552
    %2517 = vmatpush1.msra.mxu0 %v551
    %2518 = vmatprep.subr.mxu0 0.0
    %2519 = vmatpush2.msra.mxu0 0.0
    %2520 = vmatprep.subr.mxu0 0.0
    %2521 = vmatpush2.msra.mxu0 0.0
    %2522 = vmatprep.subr.mxu0 0.0
    %2523 = vmatpush2.msra.mxu0 0.0
    %2524 = vmatprep.subr.mxu0 0.0
    %2525 = vmatpush2.msra.mxu0 0.0
    %2526 = vmatprep.subr.mxu0 0.0
    %2527 = vmatpush2.msra.mxu0 0.0
    %2528 = vmatprep.subr.mxu0 0.0
    %2529 = vmatpush2.msra.mxu0 0.0
    %2530 = vmatprep.subr.mxu0 0.0
    %2531 = vmatpush2.msra.mxu0 0.0
    %2532 = vmatprep.subr.mxu0 0.0
    %2533 = vmatpush2.msra.mxu0 0.0
    %2534 = vmatprep.subr.mxu0 0.0
    %2535 = vmatpush2.msra.mxu0 0.0
    %2536 = vmatprep.subr.mxu0 0.0
    %2537 = vmatpush2.msra.mxu0 0.0
    %2538 = vmatprep.subr.mxu0 0.0
    %2539 = vmatpush2.msra.mxu0 0.0
    %2540 = vmatprep.subr.mxu0 0.0
    %2541 = vmatpush2.msra.mxu0 0.0
    %2542 = vmatprep.subr.mxu0 0.0
    %2543 = vmatpush2.msra.mxu0 0.0
    %2544 = vmatprep.subr.mxu0 0.0
    %2545 = vmatpush2.msra.mxu0 0.0
    %2546 = vmatprep.subr.mxu0 0.0
    %2547 = vmatpush2.msra.mxu0 0.0
    %2548 = vmatprep.subr.mxu0 0.0
    %2549 = vmatpush2.msra.mxu0 0.0
    %2550 = vmatprep.mubr.f32.mxu0 0.0
    %2551 = vmatmul.mubr.f32.gmra.mxu0 %v2484
    %v2552 = vpop.f32.mrf.mxu0
    %v2553 = vadd.f32 0.0, %v2552
    %v2554 = vpop.f32.mrf.mxu0
    %v2555 = vadd.f32 0.0, %v2554
    %2556 = vdwg.mxu0
    %2557 = vmatprep.subr.mxu0 0.0
    %2558 = vmatpush1.msra.mxu0 0.0
    %2559 = vmatprep.subr.mxu0 0.0
    %2560 = vmatpush1.msra.mxu0 0.0
    %2561 = vmatprep.subr.mxu0 0.0
    %2562 = vmatpush1.msra.mxu0 0.0
    %2563 = vmatprep.subr.mxu0 0.0
    %2564 = vmatpush1.msra.mxu0 0.0
    %2565 = vmatprep.subr.mxu0 0.0
    %2566 = vmatpush1.msra.mxu0 0.0
    %2567 = vmatprep.subr.mxu0 0.0
    %2568 = vmatpush1.msra.mxu0 0.0
    %2569 = vmatprep.subr.mxu0 0.0
    %2570 = vmatpush1.msra.mxu0 0.0
    %2571 = vmatprep.subr.mxu0 0.0
    %2572 = vmatpush1.msra.mxu0 0.0
    %2573 = vmatprep.subr.mxu0 0.0
    %2574 = vmatpush1.msra.mxu0 0.0
    %2575 = vmatprep.subr.mxu0 0.0
    %2576 = vmatpush1.msra.mxu0 0.0
    %2577 = vmatprep.subr.mxu0 0.0
    %2578 = vmatpush1.msra.mxu0 0.0
    %2579 = vmatprep.subr.mxu0 0.0
    %2580 = vmatpush1.msra.mxu0 0.0
    %2581 = vmatprep.subr.mxu0 %v566
    %2582 = vmatpush1.msra.mxu0 %v565
    %2583 = vmatprep.subr.mxu0 %v562
    %2584 = vmatpush1.msra.mxu0 %v561
    %2585 = vmatprep.subr.mxu0 %v558
    %2586 = vmatpush1.msra.mxu0 %v557
    %2587 = vmatprep.subr.mxu0 %v554
    %2588 = vmatpush1.msra.mxu0 %v553
    %2589 = vmatprep.subr.mxu0 0.0
    %2590 = vmatpush2.msra.mxu0 0.0
    %2591 = vmatprep.subr.mxu0 0.0
    %2592 = vmatpush2.msra.mxu0 0.0
    %2593 = vmatprep.subr.mxu0 0.0
    %2594 = vmatpush2.msra.mxu0 0.0
    %2595 = vmatprep.subr.mxu0 0.0
    %2596 = vmatpush2.msra.mxu0 0.0
    %2597 = vmatprep.subr.mxu0 0.0
    %2598 = vmatpush2.msra.mxu0 0.0
    %2599 = vmatprep.subr.mxu0 0.0
    %2600 = vmatpush2.msra.mxu0 0.0
    %2601 = vmatprep.subr.mxu0 0.0
    %2602 = vmatpush2.msra.mxu0 0.0
    %2603 = vmatprep.subr.mxu0 0.0
    %2604 = vmatpush2.msra.mxu0 0.0
    %2605 = vmatprep.subr.mxu0 0.0
    %2606 = vmatpush2.msra.mxu0 0.0
    %2607 = vmatprep.subr.mxu0 0.0
    %2608 = vmatpush2.msra.mxu0 0.0
    %2609 = vmatprep.subr.mxu0 0.0
    %2610 = vmatpush2.msra.mxu0 0.0
    %2611 = vmatprep.subr.mxu0 0.0
    %2612 = vmatpush2.msra.mxu0 0.0
    %2613 = vmatprep.subr.mxu0 0.0
    %2614 = vmatpush2.msra.mxu0 0.0
    %2615 = vmatprep.subr.mxu0 0.0
    %2616 = vmatpush2.msra.mxu0 0.0
    %2617 = vmatprep.subr.mxu0 0.0
    %2618 = vmatpush2.msra.mxu0 0.0
    %2619 = vmatprep.subr.mxu0 0.0
    %2620 = vmatpush2.msra.mxu0 0.0
    %2621 = vmatprep.mubr.f32.mxu0 0.0
    %2622 = vmatmul.mubr.f32.gmra.mxu0 %v2484
    %v2623 = vpop.f32.mrf.mxu0
    %v2624 = vadd.f32 0.0, %v2623
    %v2625 = vpop.f32.mrf.mxu0
    %v2626 = vadd.f32 0.0, %v2625
    %2627 = vdwg.mxu0
    %v2628 = vadd.f32 %v2408, %v2553
    %v2629 = vadd.f32 %v2410, %v2555
    %v2630 = vadd.f32 %v2479, %v2624
    %v2631 = vadd.f32 %v2481, %v2626
    %v2632 = vxor.u32 %v2628, 2147483648
    %v2633 = vmul.f32 %v2632, 1.442695
    %v2634 = vpow.pop %v2633
    %v2635 = vadd.f32 %v2634, 1.0
    %v2636 = vrcp.pop %v2635
    %v2637 = vmul.f32 1.0, %v2636
    %v2638 = vxor.u32 %v2629, 2147483648
    %v2639 = vmul.f32 %v2638, 1.442695
    %v2640 = vpow.pop %v2639
    %v2641 = vadd.f32 %v2640, 1.0
    %v2642 = vrcp.pop %v2641
    %v2643 = vmul.f32 1.0, %v2642
    %v2644 = vtanh.pop %v2630
    %v2645 = vxor.u32 %v2631, 2147483648
    %v2646 = vmul.f32 %v2645, 1.442695
    %v2647 = vpow.pop %v2646
    %v2648 = vadd.f32 %v2647, 1.0
    %v2649 = vrcp.pop %v2648
    %v2650 = vmul.f32 1.0, %v2649
    %v2651 = vmul.f32 %v2643, %v2137
    %v2652 = vmul.f32 %v2637, %v2644
    %v2653 = vadd.f32 %v2651, %v2652
    %v2654 = vtanh.pop %v2653
    %v2655 = vmul.f32 %v2650, %v2654
    %s2656 = scalar_lea.vmem [#allocation2], 32
    %v2657 = vld [vmem:[%s2656] sm:$0xff]
    %2658 = vmatprep.subr.mxu0 0.0
    %2659 = vmatpush1.msra.mxu0 0.0
    %2660 = vmatprep.subr.mxu0 0.0
    %2661 = vmatpush1.msra.mxu0 0.0
    %2662 = vmatprep.subr.mxu0 0.0
    %2663 = vmatpush1.msra.mxu0 0.0
    %2664 = vmatprep.subr.mxu0 0.0
    %2665 = vmatpush1.msra.mxu0 0.0
    %2666 = vmatprep.subr.mxu0 0.0
    %2667 = vmatpush1.msra.mxu0 0.0
    %2668 = vmatprep.subr.mxu0 0.0
    %2669 = vmatpush1.msra.mxu0 0.0
    %2670 = vmatprep.subr.mxu0 0.0
    %2671 = vmatpush1.msra.mxu0 0.0
    %2672 = vmatprep.subr.mxu0 0.0
    %2673 = vmatpush1.msra.mxu0 0.0
    %2674 = vmatprep.subr.mxu0 %v516
    %2675 = vmatpush1.msra.mxu0 %v515
    %2676 = vmatprep.subr.mxu0 %v512
    %2677 = vmatpush1.msra.mxu0 %v511
    %2678 = vmatprep.subr.mxu0 %v508
    %2679 = vmatpush1.msra.mxu0 %v507
    %2680 = vmatprep.subr.mxu0 %v504
    %2681 = vmatpush1.msra.mxu0 %v503
    %2682 = vmatprep.subr.mxu0 %v500
    %2683 = vmatpush1.msra.mxu0 %v499
    %2684 = vmatprep.subr.mxu0 %v496
    %2685 = vmatpush1.msra.mxu0 %v495
    %2686 = vmatprep.subr.mxu0 %v492
    %2687 = vmatpush1.msra.mxu0 %v491
    %2688 = vmatprep.subr.mxu0 %v488
    %2689 = vmatpush1.msra.mxu0 %v487
    %2690 = vmatprep.subr.mxu0 0.0
    %2691 = vmatpush2.msra.mxu0 0.0
    %2692 = vmatprep.subr.mxu0 0.0
    %2693 = vmatpush2.msra.mxu0 0.0
    %2694 = vmatprep.subr.mxu0 0.0
    %2695 = vmatpush2.msra.mxu0 0.0
    %2696 = vmatprep.subr.mxu0 0.0
    %2697 = vmatpush2.msra.mxu0 0.0
    %2698 = vmatprep.subr.mxu0 0.0
    %2699 = vmatpush2.msra.mxu0 0.0
    %2700 = vmatprep.subr.mxu0 0.0
    %2701 = vmatpush2.msra.mxu0 0.0
    %2702 = vmatprep.subr.mxu0 0.0
    %2703 = vmatpush2.msra.mxu0 0.0
    %2704 = vmatprep.subr.mxu0 0.0
    %2705 = vmatpush2.msra.mxu0 0.0
    %2706 = vmatprep.subr.mxu0 0.0
    %2707 = vmatpush2.msra.mxu0 0.0
    %2708 = vmatprep.subr.mxu0 0.0
    %2709 = vmatpush2.msra.mxu0 0.0
    %2710 = vmatprep.subr.mxu0 0.0
    %2711 = vmatpush2.msra.mxu0 0.0
    %2712 = vmatprep.subr.mxu0 0.0
    %2713 = vmatpush2.msra.mxu0 0.0
    %2714 = vmatprep.subr.mxu0 0.0
    %2715 = vmatpush2.msra.mxu0 0.0
    %2716 = vmatprep.subr.mxu0 0.0
    %2717 = vmatpush2.msra.mxu0 0.0
    %2718 = vmatprep.subr.mxu0 0.0
    %2719 = vmatpush2.msra.mxu0 0.0
    %2720 = vmatprep.subr.mxu0 0.0
    %2721 = vmatpush2.msra.mxu0 0.0
    %2722 = vmatprep.mubr.f32.mxu0 0.0
    %2723 = vmatmul.mubr.f32.gmra.mxu0 %v2339
    %v2724 = vpop.f32.mrf.mxu0
    %v2725 = vadd.f32 0.0, %v2724
    %v2726 = vpop.f32.mrf.mxu0
    %v2727 = vadd.f32 0.0, %v2726
    %2728 = vdwg.mxu0
    %2729 = vmatprep.subr.mxu0 0.0
    %2730 = vmatpush1.msra.mxu0 0.0
    %2731 = vmatprep.subr.mxu0 0.0
    %2732 = vmatpush1.msra.mxu0 0.0
    %2733 = vmatprep.subr.mxu0 0.0
    %2734 = vmatpush1.msra.mxu0 0.0
    %2735 = vmatprep.subr.mxu0 0.0
    %2736 = vmatpush1.msra.mxu0 0.0
    %2737 = vmatprep.subr.mxu0 0.0
    %2738 = vmatpush1.msra.mxu0 0.0
    %2739 = vmatprep.subr.mxu0 0.0
    %2740 = vmatpush1.msra.mxu0 0.0
    %2741 = vmatprep.subr.mxu0 0.0
    %2742 = vmatpush1.msra.mxu0 0.0
    %2743 = vmatprep.subr.mxu0 0.0
    %2744 = vmatpush1.msra.mxu0 0.0
    %2745 = vmatprep.subr.mxu0 %v518
    %2746 = vmatpush1.msra.mxu0 %v517
    %2747 = vmatprep.subr.mxu0 %v514
    %2748 = vmatpush1.msra.mxu0 %v513
    %2749 = vmatprep.subr.mxu0 %v510
    %2750 = vmatpush1.msra.mxu0 %v509
    %2751 = vmatprep.subr.mxu0 %v506
    %2752 = vmatpush1.msra.mxu0 %v505
    %2753 = vmatprep.subr.mxu0 %v502
    %2754 = vmatpush1.msra.mxu0 %v501
    %2755 = vmatprep.subr.mxu0 %v498
    %2756 = vmatpush1.msra.mxu0 %v497
    %2757 = vmatprep.subr.mxu0 %v494
    %2758 = vmatpush1.msra.mxu0 %v493
    %2759 = vmatprep.subr.mxu0 %v490
    %2760 = vmatpush1.msra.mxu0 %v489
    %2761 = vmatprep.subr.mxu0 0.0
    %2762 = vmatpush2.msra.mxu0 0.0
    %2763 = vmatprep.subr.mxu0 0.0
    %2764 = vmatpush2.msra.mxu0 0.0
    %2765 = vmatprep.subr.mxu0 0.0
    %2766 = vmatpush2.msra.mxu0 0.0
    %2767 = vmatprep.subr.mxu0 0.0
    %2768 = vmatpush2.msra.mxu0 0.0
    %2769 = vmatprep.subr.mxu0 0.0
    %2770 = vmatpush2.msra.mxu0 0.0
    %2771 = vmatprep.subr.mxu0 0.0
    %2772 = vmatpush2.msra.mxu0 0.0
    %2773 = vmatprep.subr.mxu0 0.0
    %2774 = vmatpush2.msra.mxu0 0.0
    %2775 = vmatprep.subr.mxu0 0.0
    %2776 = vmatpush2.msra.mxu0 0.0
    %2777 = vmatprep.subr.mxu0 0.0
    %2778 = vmatpush2.msra.mxu0 0.0
    %2779 = vmatprep.subr.mxu0 0.0
    %2780 = vmatpush2.msra.mxu0 0.0
    %2781 = vmatprep.subr.mxu0 0.0
    %2782 = vmatpush2.msra.mxu0 0.0
    %2783 = vmatprep.subr.mxu0 0.0
    %2784 = vmatpush2.msra.mxu0 0.0
    %2785 = vmatprep.subr.mxu0 0.0
    %2786 = vmatpush2.msra.mxu0 0.0
    %2787 = vmatprep.subr.mxu0 0.0
    %2788 = vmatpush2.msra.mxu0 0.0
    %2789 = vmatprep.subr.mxu0 0.0
    %2790 = vmatpush2.msra.mxu0 0.0
    %2791 = vmatprep.subr.mxu0 0.0
    %2792 = vmatpush2.msra.mxu0 0.0
    %2793 = vmatprep.mubr.f32.mxu0 0.0
    %2794 = vmatmul.mubr.f32.gmra.mxu0 %v2339
    %v2795 = vpop.f32.mrf.mxu0
    %v2796 = vadd.f32 0.0, %v2795
    %v2797 = vpop.f32.mrf.mxu0
    %v2798 = vadd.f32 0.0, %v2797
    %2799 = vdwg.mxu0
    %v2804 = vcombine.low %v2725, %v2727
    %v2805 = vcombine.low %v2796, %v2798
    %v2807 = vunpack.c.l.s4 1983009808
    %v2808 = vunpack.c.0.s8 %v2807
    %v2809 = vlaneseq
    %v2810 = vshrl.u32 %v2809, 7
    %v2811 = vsub.s32 %v2808, %v2810
    %v2812 = vrot.slane %v2804, %v2811
    %v2814 = vunpack.c.l.s4 1983009808
    %v2815 = vunpack.c.0.s8 %v2814
    %v2816 = vlaneseq
    %v2817 = vshrl.u32 %v2816, 7
    %v2818 = vsub.s32 %v2815, %v2817
    %v2819 = vrot.slane %v2805, %v2818
    %v2820 = vcombine.low %v2812, %v2819
    %v2822 = vadd.f32 %v2657, %v2820
    %v2823 = vxor.u32 %v2822, 2147483648
    %v2824 = vmul.f32 %v2823, 1.442695
    %v2825 = vpow.pop %v2824
    %v2826 = vadd.f32 %v2825, 1.0
    %v2827 = vrcp.pop %v2826
    %v2828 = vmul.f32 1.0, %v2827
    %v2830 = vrot.slane %v2822, 2
    %v2832 = vxor.u32 %v2830, 2147483648
    %v2833 = vmul.f32 %v2832, 1.442695
    %v2834 = vpow.pop %v2833
    %v2835 = vadd.f32 %v2834, 1.0
    %v2836 = vrcp.pop %v2835
    %v2837 = vmul.f32 1.0, %v2836
    %v2838 = vrot.slane %v2822, 4
    %v2840 = vtanh.pop %v2838
    %v2841 = vrot.slane %v2822, 6
    %v2843 = vxor.u32 %v2841, 2147483648
    %v2844 = vmul.f32 %v2843, 1.442695
    %v2845 = vpow.pop %v2844
    %v2846 = vadd.f32 %v2845, 1.0
    %v2847 = vrcp.pop %v2846
    %v2848 = vmul.f32 1.0, %v2847
    %v2849 = vmul.f32 %v2837, %v2335
    %v2850 = vmul.f32 %v2828, %v2840
    %v2851 = vadd.f32 %v2849, %v2850
    %v2852 = vtanh.pop %v2851
    %v2853 = vmul.f32 %v2848, %v2852
    %v2855 = vsel %vm569, %v2853, 0
    %2857 = vmatprep.subr.mxu0 0.0
    %2858 = vmatpush1.msra.mxu0 0.0
    %2859 = vmatprep.subr.mxu0 0.0
    %2860 = vmatpush1.msra.mxu0 0.0
    %2861 = vmatprep.subr.mxu0 0.0
    %2862 = vmatpush1.msra.mxu0 0.0
    %2863 = vmatprep.subr.mxu0 0.0
    %2864 = vmatpush1.msra.mxu0 0.0
    %2865 = vmatprep.subr.mxu0 0.0
    %2866 = vmatpush1.msra.mxu0 0.0
    %2867 = vmatprep.subr.mxu0 0.0
    %2868 = vmatpush1.msra.mxu0 0.0
    %2869 = vmatprep.subr.mxu0 0.0
    %2870 = vmatpush1.msra.mxu0 0.0
    %2871 = vmatprep.subr.mxu0 0.0
    %2872 = vmatpush1.msra.mxu0 0.0
    %2873 = vmatprep.subr.mxu0 %v548
    %2874 = vmatpush1.msra.mxu0 %v547
    %2875 = vmatprep.subr.mxu0 %v544
    %2876 = vmatpush1.msra.mxu0 %v543
    %2877 = vmatprep.subr.mxu0 %v540
    %2878 = vmatpush1.msra.mxu0 %v539
    %2879 = vmatprep.subr.mxu0 %v536
    %2880 = vmatpush1.msra.mxu0 %v535
    %2881 = vmatprep.subr.mxu0 %v532
    %2882 = vmatpush1.msra.mxu0 %v531
    %2883 = vmatprep.subr.mxu0 %v528
    %2884 = vmatpush1.msra.mxu0 %v527
    %2885 = vmatprep.subr.mxu0 %v524
    %2886 = vmatpush1.msra.mxu0 %v523
    %2887 = vmatprep.subr.mxu0 %v520
    %2888 = vmatpush1.msra.mxu0 %v519
    %2889 = vmatprep.subr.mxu0 0.0
    %2890 = vmatpush2.msra.mxu0 0.0
    %2891 = vmatprep.subr.mxu0 0.0
    %2892 = vmatpush2.msra.mxu0 0.0
    %2893 = vmatprep.subr.mxu0 0.0
    %2894 = vmatpush2.msra.mxu0 0.0
    %2895 = vmatprep.subr.mxu0 0.0
    %2896 = vmatpush2.msra.mxu0 0.0
    %2897 = vmatprep.subr.mxu0 0.0
    %2898 = vmatpush2.msra.mxu0 0.0
    %2899 = vmatprep.subr.mxu0 0.0
    %2900 = vmatpush2.msra.mxu0 0.0
    %2901 = vmatprep.subr.mxu0 0.0
    %2902 = vmatpush2.msra.mxu0 0.0
    %2903 = vmatprep.subr.mxu0 0.0
    %2904 = vmatpush2.msra.mxu0 0.0
    %2905 = vmatprep.subr.mxu0 0.0
    %2906 = vmatpush2.msra.mxu0 0.0
    %2907 = vmatprep.subr.mxu0 0.0
    %2908 = vmatpush2.msra.mxu0 0.0
    %2909 = vmatprep.subr.mxu0 0.0
    %2910 = vmatpush2.msra.mxu0 0.0
    %2911 = vmatprep.subr.mxu0 0.0
    %2912 = vmatpush2.msra.mxu0 0.0
    %2913 = vmatprep.subr.mxu0 0.0
    %2914 = vmatpush2.msra.mxu0 0.0
    %2915 = vmatprep.subr.mxu0 0.0
    %2916 = vmatpush2.msra.mxu0 0.0
    %2917 = vmatprep.subr.mxu0 0.0
    %2918 = vmatpush2.msra.mxu0 0.0
    %2919 = vmatprep.subr.mxu0 0.0
    %2920 = vmatpush2.msra.mxu0 0.0
    %2921 = vmatprep.mubr.f32.mxu0 0.0
    %2922 = vmatmul.mubr.f32.gmra.mxu0 %v2855
    %v2923 = vpop.f32.mrf.mxu0
    %v2924 = vadd.f32 %v773, %v2923
    %v2925 = vpop.f32.mrf.mxu0
    %v2926 = vadd.f32 %v777, %v2925
    %2927 = vdwg.mxu0
    %2928 = vmatprep.subr.mxu0 0.0
    %2929 = vmatpush1.msra.mxu0 0.0
    %2930 = vmatprep.subr.mxu0 0.0
    %2931 = vmatpush1.msra.mxu0 0.0
    %2932 = vmatprep.subr.mxu0 0.0
    %2933 = vmatpush1.msra.mxu0 0.0
    %2934 = vmatprep.subr.mxu0 0.0
    %2935 = vmatpush1.msra.mxu0 0.0
    %2936 = vmatprep.subr.mxu0 0.0
    %2937 = vmatpush1.msra.mxu0 0.0
    %2938 = vmatprep.subr.mxu0 0.0
    %2939 = vmatpush1.msra.mxu0 0.0
    %2940 = vmatprep.subr.mxu0 0.0
    %2941 = vmatpush1.msra.mxu0 0.0
    %2942 = vmatprep.subr.mxu0 0.0
    %2943 = vmatpush1.msra.mxu0 0.0
    %2944 = vmatprep.subr.mxu0 %v550
    %2945 = vmatpush1.msra.mxu0 %v549
    %2946 = vmatprep.subr.mxu0 %v546
    %2947 = vmatpush1.msra.mxu0 %v545
    %2948 = vmatprep.subr.mxu0 %v542
    %2949 = vmatpush1.msra.mxu0 %v541
    %2950 = vmatprep.subr.mxu0 %v538
    %2951 = vmatpush1.msra.mxu0 %v537
    %2952 = vmatprep.subr.mxu0 %v534
    %2953 = vmatpush1.msra.mxu0 %v533
    %2954 = vmatprep.subr.mxu0 %v530
    %2955 = vmatpush1.msra.mxu0 %v529
    %2956 = vmatprep.subr.mxu0 %v526
    %2957 = vmatpush1.msra.mxu0 %v525
    %2958 = vmatprep.subr.mxu0 %v522
    %2959 = vmatpush1.msra.mxu0 %v521
    %2960 = vmatprep.subr.mxu0 0.0
    %2961 = vmatpush2.msra.mxu0 0.0
    %2962 = vmatprep.subr.mxu0 0.0
    %2963 = vmatpush2.msra.mxu0 0.0
    %2964 = vmatprep.subr.mxu0 0.0
    %2965 = vmatpush2.msra.mxu0 0.0
    %2966 = vmatprep.subr.mxu0 0.0
    %2967 = vmatpush2.msra.mxu0 0.0
    %2968 = vmatprep.subr.mxu0 0.0
    %2969 = vmatpush2.msra.mxu0 0.0
    %2970 = vmatprep.subr.mxu0 0.0
    %2971 = vmatpush2.msra.mxu0 0.0
    %2972 = vmatprep.subr.mxu0 0.0
    %2973 = vmatpush2.msra.mxu0 0.0
    %2974 = vmatprep.subr.mxu0 0.0
    %2975 = vmatpush2.msra.mxu0 0.0
    %2976 = vmatprep.subr.mxu0 0.0
    %2977 = vmatpush2.msra.mxu0 0.0
    %2978 = vmatprep.subr.mxu0 0.0
    %2979 = vmatpush2.msra.mxu0 0.0
    %2980 = vmatprep.subr.mxu0 0.0
    %2981 = vmatpush2.msra.mxu0 0.0
    %2982 = vmatprep.subr.mxu0 0.0
    %2983 = vmatpush2.msra.mxu0 0.0
    %2984 = vmatprep.subr.mxu0 0.0
    %2985 = vmatpush2.msra.mxu0 0.0
    %2986 = vmatprep.subr.mxu0 0.0
    %2987 = vmatpush2.msra.mxu0 0.0
    %2988 = vmatprep.subr.mxu0 0.0
    %2989 = vmatpush2.msra.mxu0 0.0
    %2990 = vmatprep.subr.mxu0 0.0
    %2991 = vmatpush2.msra.mxu0 0.0
    %2992 = vmatprep.mubr.f32.mxu0 0.0
    %2993 = vmatmul.mubr.f32.gmra.mxu0 %v2855
    %v2994 = vpop.f32.mrf.mxu0
    %v2995 = vadd.f32 %v781, %v2994
    %v2996 = vpop.f32.mrf.mxu0
    %v2997 = vadd.f32 %v785, %v2996
    %2998 = vdwg.mxu0
    %v3000 = vsel %vm935, %v2655, 0
    %3002 = vmatprep.subr.mxu0 0.0
    %3003 = vmatpush1.msra.mxu0 0.0
    %3004 = vmatprep.subr.mxu0 0.0
    %3005 = vmatpush1.msra.mxu0 0.0
    %3006 = vmatprep.subr.mxu0 0.0
    %3007 = vmatpush1.msra.mxu0 0.0
    %3008 = vmatprep.subr.mxu0 0.0
    %3009 = vmatpush1.msra.mxu0 0.0
    %3010 = vmatprep.subr.mxu0 0.0
    %3011 = vmatpush1.msra.mxu0 0.0
    %3012 = vmatprep.subr.mxu0 0.0
    %3013 = vmatpush1.msra.mxu0 0.0
    %3014 = vmatprep.subr.mxu0 0.0
    %3015 = vmatpush1.msra.mxu0 0.0
    %3016 = vmatprep.subr.mxu0 0.0
    %3017 = vmatpush1.msra.mxu0 0.0
    %3018 = vmatprep.subr.mxu0 0.0
    %3019 = vmatpush1.msra.mxu0 0.0
    %3020 = vmatprep.subr.mxu0 0.0
    %3021 = vmatpush1.msra.mxu0 0.0
    %3022 = vmatprep.subr.mxu0 0.0
    %3023 = vmatpush1.msra.mxu0 0.0
    %3024 = vmatprep.subr.mxu0 0.0
    %3025 = vmatpush1.msra.mxu0 0.0
    %3026 = vmatprep.subr.mxu0 %v564
    %3027 = vmatpush1.msra.mxu0 %v563
    %3028 = vmatprep.subr.mxu0 %v560
    %3029 = vmatpush1.msra.mxu0 %v559
    %3030 = vmatprep.subr.mxu0 %v556
    %3031 = vmatpush1.msra.mxu0 %v555
    %3032 = vmatprep.subr.mxu0 %v552
    %3033 = vmatpush1.msra.mxu0 %v551
    %3034 = vmatprep.subr.mxu0 0.0
    %3035 = vmatpush2.msra.mxu0 0.0
    %3036 = vmatprep.subr.mxu0 0.0
    %3037 = vmatpush2.msra.mxu0 0.0
    %3038 = vmatprep.subr.mxu0 0.0
    %3039 = vmatpush2.msra.mxu0 0.0
    %3040 = vmatprep.subr.mxu0 0.0
    %3041 = vmatpush2.msra.mxu0 0.0
    %3042 = vmatprep.subr.mxu0 0.0
    %3043 = vmatpush2.msra.mxu0 0.0
    %3044 = vmatprep.subr.mxu0 0.0
    %3045 = vmatpush2.msra.mxu0 0.0
    %3046 = vmatprep.subr.mxu0 0.0
    %3047 = vmatpush2.msra.mxu0 0.0
    %3048 = vmatprep.subr.mxu0 0.0
    %3049 = vmatpush2.msra.mxu0 0.0
    %3050 = vmatprep.subr.mxu0 0.0
    %3051 = vmatpush2.msra.mxu0 0.0
    %3052 = vmatprep.subr.mxu0 0.0
    %3053 = vmatpush2.msra.mxu0 0.0
    %3054 = vmatprep.subr.mxu0 0.0
    %3055 = vmatpush2.msra.mxu0 0.0
    %3056 = vmatprep.subr.mxu0 0.0
    %3057 = vmatpush2.msra.mxu0 0.0
    %3058 = vmatprep.subr.mxu0 0.0
    %3059 = vmatpush2.msra.mxu0 0.0
    %3060 = vmatprep.subr.mxu0 0.0
    %3061 = vmatpush2.msra.mxu0 0.0
    %3062 = vmatprep.subr.mxu0 0.0
    %3063 = vmatpush2.msra.mxu0 0.0
    %3064 = vmatprep.subr.mxu0 0.0
    %3065 = vmatpush2.msra.mxu0 0.0
    %3066 = vmatprep.mubr.f32.mxu0 0.0
    %3067 = vmatmul.mubr.f32.gmra.mxu0 %v3000
    %v3068 = vpop.f32.mrf.mxu0
    %v3069 = vadd.f32 0.0, %v3068
    %v3070 = vpop.f32.mrf.mxu0
    %v3071 = vadd.f32 0.0, %v3070
    %3072 = vdwg.mxu0
    %3073 = vmatprep.subr.mxu0 0.0
    %3074 = vmatpush1.msra.mxu0 0.0
    %3075 = vmatprep.subr.mxu0 0.0
    %3076 = vmatpush1.msra.mxu0 0.0
    %3077 = vmatprep.subr.mxu0 0.0
    %3078 = vmatpush1.msra.mxu0 0.0
    %3079 = vmatprep.subr.mxu0 0.0
    %3080 = vmatpush1.msra.mxu0 0.0
    %3081 = vmatprep.subr.mxu0 0.0
    %3082 = vmatpush1.msra.mxu0 0.0
    %3083 = vmatprep.subr.mxu0 0.0
    %3084 = vmatpush1.msra.mxu0 0.0
    %3085 = vmatprep.subr.mxu0 0.0
    %3086 = vmatpush1.msra.mxu0 0.0
    %3087 = vmatprep.subr.mxu0 0.0
    %3088 = vmatpush1.msra.mxu0 0.0
    %3089 = vmatprep.subr.mxu0 0.0
    %3090 = vmatpush1.msra.mxu0 0.0
    %3091 = vmatprep.subr.mxu0 0.0
    %3092 = vmatpush1.msra.mxu0 0.0
    %3093 = vmatprep.subr.mxu0 0.0
    %3094 = vmatpush1.msra.mxu0 0.0
    %3095 = vmatprep.subr.mxu0 0.0
    %3096 = vmatpush1.msra.mxu0 0.0
    %3097 = vmatprep.subr.mxu0 %v566
    %3098 = vmatpush1.msra.mxu0 %v565
    %3099 = vmatprep.subr.mxu0 %v562
    %3100 = vmatpush1.msra.mxu0 %v561
    %3101 = vmatprep.subr.mxu0 %v558
    %3102 = vmatpush1.msra.mxu0 %v557
    %3103 = vmatprep.subr.mxu0 %v554
    %3104 = vmatpush1.msra.mxu0 %v553
    %3105 = vmatprep.subr.mxu0 0.0
    %3106 = vmatpush2.msra.mxu0 0.0
    %3107 = vmatprep.subr.mxu0 0.0
    %3108 = vmatpush2.msra.mxu0 0.0
    %3109 = vmatprep.subr.mxu0 0.0
    %3110 = vmatpush2.msra.mxu0 0.0
    %3111 = vmatprep.subr.mxu0 0.0
    %3112 = vmatpush2.msra.mxu0 0.0
    %3113 = vmatprep.subr.mxu0 0.0
    %3114 = vmatpush2.msra.mxu0 0.0
    %3115 = vmatprep.subr.mxu0 0.0
    %3116 = vmatpush2.msra.mxu0 0.0
    %3117 = vmatprep.subr.mxu0 0.0
    %3118 = vmatpush2.msra.mxu0 0.0
    %3119 = vmatprep.subr.mxu0 0.0
    %3120 = vmatpush2.msra.mxu0 0.0
    %3121 = vmatprep.subr.mxu0 0.0
    %3122 = vmatpush2.msra.mxu0 0.0
    %3123 = vmatprep.subr.mxu0 0.0
    %3124 = vmatpush2.msra.mxu0 0.0
    %3125 = vmatprep.subr.mxu0 0.0
    %3126 = vmatpush2.msra.mxu0 0.0
    %3127 = vmatprep.subr.mxu0 0.0
    %3128 = vmatpush2.msra.mxu0 0.0
    %3129 = vmatprep.subr.mxu0 0.0
    %3130 = vmatpush2.msra.mxu0 0.0
    %3131 = vmatprep.subr.mxu0 0.0
    %3132 = vmatpush2.msra.mxu0 0.0
    %3133 = vmatprep.subr.mxu0 0.0
    %3134 = vmatpush2.msra.mxu0 0.0
    %3135 = vmatprep.subr.mxu0 0.0
    %3136 = vmatpush2.msra.mxu0 0.0
    %3137 = vmatprep.mubr.f32.mxu0 0.0
    %3138 = vmatmul.mubr.f32.gmra.mxu0 %v3000
    %v3139 = vpop.f32.mrf.mxu0
    %v3140 = vadd.f32 0.0, %v3139
    %v3141 = vpop.f32.mrf.mxu0
    %v3142 = vadd.f32 0.0, %v3141
    %3143 = vdwg.mxu0
    %v3144 = vadd.f32 %v2924, %v3069
    %v3145 = vadd.f32 %v2926, %v3071
    %v3146 = vadd.f32 %v2995, %v3140
    %v3147 = vadd.f32 %v2997, %v3142
    %v3148 = vxor.u32 %v3144, 2147483648
    %v3149 = vmul.f32 %v3148, 1.442695
    %v3150 = vpow.pop %v3149
    %v3151 = vadd.f32 %v3150, 1.0
    %v3152 = vrcp.pop %v3151
    %v3153 = vmul.f32 1.0, %v3152
    %v3154 = vxor.u32 %v3145, 2147483648
    %v3155 = vmul.f32 %v3154, 1.442695
    %v3156 = vpow.pop %v3155
    %v3157 = vadd.f32 %v3156, 1.0
    %v3158 = vrcp.pop %v3157
    %v3159 = vmul.f32 1.0, %v3158
    %v3160 = vtanh.pop %v3146
    %v3161 = vxor.u32 %v3147, 2147483648
    %v3162 = vmul.f32 %v3161, 1.442695
    %v3163 = vpow.pop %v3162
    %v3164 = vadd.f32 %v3163, 1.0
    %v3165 = vrcp.pop %v3164
    %v3166 = vmul.f32 1.0, %v3165
    %v3167 = vmul.f32 %v3159, %v2653
    %v3168 = vmul.f32 %v3153, %v3160
    %v3169 = vadd.f32 %v3167, %v3168
    %v3170 = vtanh.pop %v3169
    %v3171 = vmul.f32 %v3166, %v3170
    %s3172 = scalar_lea.vmem [#allocation2], 40
    %v3173 = vld [vmem:[%s3172] sm:$0xff]
    %3174 = vmatprep.subr.mxu0 0.0
    %3175 = vmatpush1.msra.mxu0 0.0
    %3176 = vmatprep.subr.mxu0 0.0
    %3177 = vmatpush1.msra.mxu0 0.0
    %3178 = vmatprep.subr.mxu0 0.0
    %3179 = vmatpush1.msra.mxu0 0.0
    %3180 = vmatprep.subr.mxu0 0.0
    %3181 = vmatpush1.msra.mxu0 0.0
    %3182 = vmatprep.subr.mxu0 0.0
    %3183 = vmatpush1.msra.mxu0 0.0
    %3184 = vmatprep.subr.mxu0 0.0
    %3185 = vmatpush1.msra.mxu0 0.0
    %3186 = vmatprep.subr.mxu0 0.0
    %3187 = vmatpush1.msra.mxu0 0.0
    %3188 = vmatprep.subr.mxu0 0.0
    %3189 = vmatpush1.msra.mxu0 0.0
    %3190 = vmatprep.subr.mxu0 %v516
    %3191 = vmatpush1.msra.mxu0 %v515
    %3192 = vmatprep.subr.mxu0 %v512
    %3193 = vmatpush1.msra.mxu0 %v511
    %3194 = vmatprep.subr.mxu0 %v508
    %3195 = vmatpush1.msra.mxu0 %v507
    %3196 = vmatprep.subr.mxu0 %v504
    %3197 = vmatpush1.msra.mxu0 %v503
    %3198 = vmatprep.subr.mxu0 %v500
    %3199 = vmatpush1.msra.mxu0 %v499
    %3200 = vmatprep.subr.mxu0 %v496
    %3201 = vmatpush1.msra.mxu0 %v495
    %3202 = vmatprep.subr.mxu0 %v492
    %3203 = vmatpush1.msra.mxu0 %v491
    %3204 = vmatprep.subr.mxu0 %v488
    %3205 = vmatpush1.msra.mxu0 %v487
    %3206 = vmatprep.subr.mxu0 0.0
    %3207 = vmatpush2.msra.mxu0 0.0
    %3208 = vmatprep.subr.mxu0 0.0
    %3209 = vmatpush2.msra.mxu0 0.0
    %3210 = vmatprep.subr.mxu0 0.0
    %3211 = vmatpush2.msra.mxu0 0.0
    %3212 = vmatprep.subr.mxu0 0.0
    %3213 = vmatpush2.msra.mxu0 0.0
    %3214 = vmatprep.subr.mxu0 0.0
    %3215 = vmatpush2.msra.mxu0 0.0
    %3216 = vmatprep.subr.mxu0 0.0
    %3217 = vmatpush2.msra.mxu0 0.0
    %3218 = vmatprep.subr.mxu0 0.0
    %3219 = vmatpush2.msra.mxu0 0.0
    %3220 = vmatprep.subr.mxu0 0.0
    %3221 = vmatpush2.msra.mxu0 0.0
    %3222 = vmatprep.subr.mxu0 0.0
    %3223 = vmatpush2.msra.mxu0 0.0
    %3224 = vmatprep.subr.mxu0 0.0
    %3225 = vmatpush2.msra.mxu0 0.0
    %3226 = vmatprep.subr.mxu0 0.0
    %3227 = vmatpush2.msra.mxu0 0.0
    %3228 = vmatprep.subr.mxu0 0.0
    %3229 = vmatpush2.msra.mxu0 0.0
    %3230 = vmatprep.subr.mxu0 0.0
    %3231 = vmatpush2.msra.mxu0 0.0
    %3232 = vmatprep.subr.mxu0 0.0
    %3233 = vmatpush2.msra.mxu0 0.0
    %3234 = vmatprep.subr.mxu0 0.0
    %3235 = vmatpush2.msra.mxu0 0.0
    %3236 = vmatprep.subr.mxu0 0.0
    %3237 = vmatpush2.msra.mxu0 0.0
    %3238 = vmatprep.mubr.f32.mxu0 0.0
    %3239 = vmatmul.mubr.f32.gmra.mxu0 %v2855
    %v3240 = vpop.f32.mrf.mxu0
    %v3241 = vadd.f32 0.0, %v3240
    %v3242 = vpop.f32.mrf.mxu0
    %v3243 = vadd.f32 0.0, %v3242
    %3244 = vdwg.mxu0
    %3245 = vmatprep.subr.mxu0 0.0
    %3246 = vmatpush1.msra.mxu0 0.0
    %3247 = vmatprep.subr.mxu0 0.0
    %3248 = vmatpush1.msra.mxu0 0.0
    %3249 = vmatprep.subr.mxu0 0.0
    %3250 = vmatpush1.msra.mxu0 0.0
    %3251 = vmatprep.subr.mxu0 0.0
    %3252 = vmatpush1.msra.mxu0 0.0
    %3253 = vmatprep.subr.mxu0 0.0
    %3254 = vmatpush1.msra.mxu0 0.0
    %3255 = vmatprep.subr.mxu0 0.0
    %3256 = vmatpush1.msra.mxu0 0.0
    %3257 = vmatprep.subr.mxu0 0.0
    %3258 = vmatpush1.msra.mxu0 0.0
    %3259 = vmatprep.subr.mxu0 0.0
    %3260 = vmatpush1.msra.mxu0 0.0
    %3261 = vmatprep.subr.mxu0 %v518
    %3262 = vmatpush1.msra.mxu0 %v517
    %3263 = vmatprep.subr.mxu0 %v514
    %3264 = vmatpush1.msra.mxu0 %v513
    %3265 = vmatprep.subr.mxu0 %v510
    %3266 = vmatpush1.msra.mxu0 %v509
    %3267 = vmatprep.subr.mxu0 %v506
    %3268 = vmatpush1.msra.mxu0 %v505
    %3269 = vmatprep.subr.mxu0 %v502
    %3270 = vmatpush1.msra.mxu0 %v501
    %3271 = vmatprep.subr.mxu0 %v498
    %3272 = vmatpush1.msra.mxu0 %v497
    %3273 = vmatprep.subr.mxu0 %v494
    %3274 = vmatpush1.msra.mxu0 %v493
    %3275 = vmatprep.subr.mxu0 %v490
    %3276 = vmatpush1.msra.mxu0 %v489
    %3277 = vmatprep.subr.mxu0 0.0
    %3278 = vmatpush2.msra.mxu0 0.0
    %3279 = vmatprep.subr.mxu0 0.0
    %3280 = vmatpush2.msra.mxu0 0.0
    %3281 = vmatprep.subr.mxu0 0.0
    %3282 = vmatpush2.msra.mxu0 0.0
    %3283 = vmatprep.subr.mxu0 0.0
    %3284 = vmatpush2.msra.mxu0 0.0
    %3285 = vmatprep.subr.mxu0 0.0
    %3286 = vmatpush2.msra.mxu0 0.0
    %3287 = vmatprep.subr.mxu0 0.0
    %3288 = vmatpush2.msra.mxu0 0.0
    %3289 = vmatprep.subr.mxu0 0.0
    %3290 = vmatpush2.msra.mxu0 0.0
    %3291 = vmatprep.subr.mxu0 0.0
    %3292 = vmatpush2.msra.mxu0 0.0
    %3293 = vmatprep.subr.mxu0 0.0
    %3294 = vmatpush2.msra.mxu0 0.0
    %3295 = vmatprep.subr.mxu0 0.0
    %3296 = vmatpush2.msra.mxu0 0.0
    %3297 = vmatprep.subr.mxu0 0.0
    %3298 = vmatpush2.msra.mxu0 0.0
    %3299 = vmatprep.subr.mxu0 0.0
    %3300 = vmatpush2.msra.mxu0 0.0
    %3301 = vmatprep.subr.mxu0 0.0
    %3302 = vmatpush2.msra.mxu0 0.0
    %3303 = vmatprep.subr.mxu0 0.0
    %3304 = vmatpush2.msra.mxu0 0.0
    %3305 = vmatprep.subr.mxu0 0.0
    %3306 = vmatpush2.msra.mxu0 0.0
    %3307 = vmatprep.subr.mxu0 0.0
    %3308 = vmatpush2.msra.mxu0 0.0
    %3309 = vmatprep.mubr.f32.mxu0 0.0
    %3310 = vmatmul.mubr.f32.gmra.mxu0 %v2855
    %v3311 = vpop.f32.mrf.mxu0
    %v3312 = vadd.f32 0.0, %v3311
    %v3313 = vpop.f32.mrf.mxu0
    %v3314 = vadd.f32 0.0, %v3313
    %3315 = vdwg.mxu0
    %v3320 = vcombine.low %v3241, %v3243
    %v3321 = vcombine.low %v3312, %v3314
    %v3323 = vunpack.c.l.s4 1983009808
    %v3324 = vunpack.c.0.s8 %v3323
    %v3325 = vlaneseq
    %v3326 = vshrl.u32 %v3325, 7
    %v3327 = vsub.s32 %v3324, %v3326
    %v3328 = vrot.slane %v3320, %v3327
    %v3330 = vunpack.c.l.s4 1983009808
    %v3331 = vunpack.c.0.s8 %v3330
    %v3332 = vlaneseq
    %v3333 = vshrl.u32 %v3332, 7
    %v3334 = vsub.s32 %v3331, %v3333
    %v3335 = vrot.slane %v3321, %v3334
    %v3336 = vcombine.low %v3328, %v3335
    %v3338 = vadd.f32 %v3173, %v3336
    %v3339 = vxor.u32 %v3338, 2147483648
    %v3340 = vmul.f32 %v3339, 1.442695
    %v3341 = vpow.pop %v3340
    %v3342 = vadd.f32 %v3341, 1.0
    %v3343 = vrcp.pop %v3342
    %v3344 = vmul.f32 1.0, %v3343
    %v3346 = vrot.slane %v3338, 2
    %v3348 = vxor.u32 %v3346, 2147483648
    %v3349 = vmul.f32 %v3348, 1.442695
    %v3350 = vpow.pop %v3349
    %v3351 = vadd.f32 %v3350, 1.0
    %v3352 = vrcp.pop %v3351
    %v3353 = vmul.f32 1.0, %v3352
    %v3354 = vrot.slane %v3338, 4
    %v3356 = vtanh.pop %v3354
    %v3357 = vrot.slane %v3338, 6
    %v3359 = vxor.u32 %v3357, 2147483648
    %v3360 = vmul.f32 %v3359, 1.442695
    %v3361 = vpow.pop %v3360
    %v3362 = vadd.f32 %v3361, 1.0
    %v3363 = vrcp.pop %v3362
    %v3364 = vmul.f32 1.0, %v3363
    %v3365 = vmul.f32 %v3353, %v2851
    %v3366 = vmul.f32 %v3344, %v3356
    %v3367 = vadd.f32 %v3365, %v3366
    %v3368 = vtanh.pop %v3367
    %v3369 = vmul.f32 %v3364, %v3368
    %v3371 = vsel %vm569, %v3369, 0
    %3373 = vmatprep.subr.mxu0 0.0
    %3374 = vmatpush1.msra.mxu0 0.0
    %3375 = vmatprep.subr.mxu0 0.0
    %3376 = vmatpush1.msra.mxu0 0.0
    %3377 = vmatprep.subr.mxu0 0.0
    %3378 = vmatpush1.msra.mxu0 0.0
    %3379 = vmatprep.subr.mxu0 0.0
    %3380 = vmatpush1.msra.mxu0 0.0
    %3381 = vmatprep.subr.mxu0 0.0
    %3382 = vmatpush1.msra.mxu0 0.0
    %3383 = vmatprep.subr.mxu0 0.0
    %3384 = vmatpush1.msra.mxu0 0.0
    %3385 = vmatprep.subr.mxu0 0.0
    %3386 = vmatpush1.msra.mxu0 0.0
    %3387 = vmatprep.subr.mxu0 0.0
    %3388 = vmatpush1.msra.mxu0 0.0
    %3389 = vmatprep.subr.mxu0 %v548
    %3390 = vmatpush1.msra.mxu0 %v547
    %3391 = vmatprep.subr.mxu0 %v544
    %3392 = vmatpush1.msra.mxu0 %v543
    %3393 = vmatprep.subr.mxu0 %v540
    %3394 = vmatpush1.msra.mxu0 %v539
    %3395 = vmatprep.subr.mxu0 %v536
    %3396 = vmatpush1.msra.mxu0 %v535
    %3397 = vmatprep.subr.mxu0 %v532
    %3398 = vmatpush1.msra.mxu0 %v531
    %3399 = vmatprep.subr.mxu0 %v528
    %3400 = vmatpush1.msra.mxu0 %v527
    %3401 = vmatprep.subr.mxu0 %v524
    %3402 = vmatpush1.msra.mxu0 %v523
    %3403 = vmatprep.subr.mxu0 %v520
    %3404 = vmatpush1.msra.mxu0 %v519
    %3405 = vmatprep.subr.mxu0 0.0
    %3406 = vmatpush2.msra.mxu0 0.0
    %3407 = vmatprep.subr.mxu0 0.0
    %3408 = vmatpush2.msra.mxu0 0.0
    %3409 = vmatprep.subr.mxu0 0.0
    %3410 = vmatpush2.msra.mxu0 0.0
    %3411 = vmatprep.subr.mxu0 0.0
    %3412 = vmatpush2.msra.mxu0 0.0
    %3413 = vmatprep.subr.mxu0 0.0
    %3414 = vmatpush2.msra.mxu0 0.0
    %3415 = vmatprep.subr.mxu0 0.0
    %3416 = vmatpush2.msra.mxu0 0.0
    %3417 = vmatprep.subr.mxu0 0.0
    %3418 = vmatpush2.msra.mxu0 0.0
    %3419 = vmatprep.subr.mxu0 0.0
    %3420 = vmatpush2.msra.mxu0 0.0
    %3421 = vmatprep.subr.mxu0 0.0
    %3422 = vmatpush2.msra.mxu0 0.0
    %3423 = vmatprep.subr.mxu0 0.0
    %3424 = vmatpush2.msra.mxu0 0.0
    %3425 = vmatprep.subr.mxu0 0.0
    %3426 = vmatpush2.msra.mxu0 0.0
    %3427 = vmatprep.subr.mxu0 0.0
    %3428 = vmatpush2.msra.mxu0 0.0
    %3429 = vmatprep.subr.mxu0 0.0
    %3430 = vmatpush2.msra.mxu0 0.0
    %3431 = vmatprep.subr.mxu0 0.0
    %3432 = vmatpush2.msra.mxu0 0.0
    %3433 = vmatprep.subr.mxu0 0.0
    %3434 = vmatpush2.msra.mxu0 0.0
    %3435 = vmatprep.subr.mxu0 0.0
    %3436 = vmatpush2.msra.mxu0 0.0
    %3437 = vmatprep.mubr.f32.mxu0 0.0
    %3438 = vmatmul.mubr.f32.gmra.mxu0 %v3371
    %v3439 = vpop.f32.mrf.mxu0
    %v3440 = vadd.f32 %v773, %v3439
    %v3441 = vpop.f32.mrf.mxu0
    %v3442 = vadd.f32 %v777, %v3441
    %3443 = vdwg.mxu0
    %3444 = vmatprep.subr.mxu0 0.0
    %3445 = vmatpush1.msra.mxu0 0.0
    %3446 = vmatprep.subr.mxu0 0.0
    %3447 = vmatpush1.msra.mxu0 0.0
    %3448 = vmatprep.subr.mxu0 0.0
    %3449 = vmatpush1.msra.mxu0 0.0
    %3450 = vmatprep.subr.mxu0 0.0
    %3451 = vmatpush1.msra.mxu0 0.0
    %3452 = vmatprep.subr.mxu0 0.0
    %3453 = vmatpush1.msra.mxu0 0.0
    %3454 = vmatprep.subr.mxu0 0.0
    %3455 = vmatpush1.msra.mxu0 0.0
    %3456 = vmatprep.subr.mxu0 0.0
    %3457 = vmatpush1.msra.mxu0 0.0
    %3458 = vmatprep.subr.mxu0 0.0
    %3459 = vmatpush1.msra.mxu0 0.0
    %3460 = vmatprep.subr.mxu0 %v550
    %3461 = vmatpush1.msra.mxu0 %v549
    %3462 = vmatprep.subr.mxu0 %v546
    %3463 = vmatpush1.msra.mxu0 %v545
    %3464 = vmatprep.subr.mxu0 %v542
    %3465 = vmatpush1.msra.mxu0 %v541
    %3466 = vmatprep.subr.mxu0 %v538
    %3467 = vmatpush1.msra.mxu0 %v537
    %3468 = vmatprep.subr.mxu0 %v534
    %3469 = vmatpush1.msra.mxu0 %v533
    %3470 = vmatprep.subr.mxu0 %v530
    %3471 = vmatpush1.msra.mxu0 %v529
    %3472 = vmatprep.subr.mxu0 %v526
    %3473 = vmatpush1.msra.mxu0 %v525
    %3474 = vmatprep.subr.mxu0 %v522
    %3475 = vmatpush1.msra.mxu0 %v521
    %3476 = vmatprep.subr.mxu0 0.0
    %3477 = vmatpush2.msra.mxu0 0.0
    %3478 = vmatprep.subr.mxu0 0.0
    %3479 = vmatpush2.msra.mxu0 0.0
    %3480 = vmatprep.subr.mxu0 0.0
    %3481 = vmatpush2.msra.mxu0 0.0
    %3482 = vmatprep.subr.mxu0 0.0
    %3483 = vmatpush2.msra.mxu0 0.0
    %3484 = vmatprep.subr.mxu0 0.0
    %3485 = vmatpush2.msra.mxu0 0.0
    %3486 = vmatprep.subr.mxu0 0.0
    %3487 = vmatpush2.msra.mxu0 0.0
    %3488 = vmatprep.subr.mxu0 0.0
    %3489 = vmatpush2.msra.mxu0 0.0
    %3490 = vmatprep.subr.mxu0 0.0
    %3491 = vmatpush2.msra.mxu0 0.0
    %3492 = vmatprep.subr.mxu0 0.0
    %3493 = vmatpush2.msra.mxu0 0.0
    %3494 = vmatprep.subr.mxu0 0.0
    %3495 = vmatpush2.msra.mxu0 0.0
    %3496 = vmatprep.subr.mxu0 0.0
    %3497 = vmatpush2.msra.mxu0 0.0
    %3498 = vmatprep.subr.mxu0 0.0
    %3499 = vmatpush2.msra.mxu0 0.0
    %3500 = vmatprep.subr.mxu0 0.0
    %3501 = vmatpush2.msra.mxu0 0.0
    %3502 = vmatprep.subr.mxu0 0.0
    %3503 = vmatpush2.msra.mxu0 0.0
    %3504 = vmatprep.subr.mxu0 0.0
    %3505 = vmatpush2.msra.mxu0 0.0
    %3506 = vmatprep.subr.mxu0 0.0
    %3507 = vmatpush2.msra.mxu0 0.0
    %3508 = vmatprep.mubr.f32.mxu0 0.0
    %3509 = vmatmul.mubr.f32.gmra.mxu0 %v3371
    %v3510 = vpop.f32.mrf.mxu0
    %v3511 = vadd.f32 %v781, %v3510
    %v3512 = vpop.f32.mrf.mxu0
    %v3513 = vadd.f32 %v785, %v3512
    %3514 = vdwg.mxu0
    %v3516 = vsel %vm935, %v3171, 0
    %3518 = vmatprep.subr.mxu0 0.0
    %3519 = vmatpush1.msra.mxu0 0.0
    %3520 = vmatprep.subr.mxu0 0.0
    %3521 = vmatpush1.msra.mxu0 0.0
    %3522 = vmatprep.subr.mxu0 0.0
    %3523 = vmatpush1.msra.mxu0 0.0
    %3524 = vmatprep.subr.mxu0 0.0
    %3525 = vmatpush1.msra.mxu0 0.0
    %3526 = vmatprep.subr.mxu0 0.0
    %3527 = vmatpush1.msra.mxu0 0.0
    %3528 = vmatprep.subr.mxu0 0.0
    %3529 = vmatpush1.msra.mxu0 0.0
    %3530 = vmatprep.subr.mxu0 0.0
    %3531 = vmatpush1.msra.mxu0 0.0
    %3532 = vmatprep.subr.mxu0 0.0
    %3533 = vmatpush1.msra.mxu0 0.0
    %3534 = vmatprep.subr.mxu0 0.0
    %3535 = vmatpush1.msra.mxu0 0.0
    %3536 = vmatprep.subr.mxu0 0.0
    %3537 = vmatpush1.msra.mxu0 0.0
    %3538 = vmatprep.subr.mxu0 0.0
    %3539 = vmatpush1.msra.mxu0 0.0
    %3540 = vmatprep.subr.mxu0 0.0
    %3541 = vmatpush1.msra.mxu0 0.0
    %3542 = vmatprep.subr.mxu0 %v564
    %3543 = vmatpush1.msra.mxu0 %v563
    %3544 = vmatprep.subr.mxu0 %v560
    %3545 = vmatpush1.msra.mxu0 %v559
    %3546 = vmatprep.subr.mxu0 %v556
    %3547 = vmatpush1.msra.mxu0 %v555
    %3548 = vmatprep.subr.mxu0 %v552
    %3549 = vmatpush1.msra.mxu0 %v551
    %3550 = vmatprep.subr.mxu0 0.0
    %3551 = vmatpush2.msra.mxu0 0.0
    %3552 = vmatprep.subr.mxu0 0.0
    %3553 = vmatpush2.msra.mxu0 0.0
    %3554 = vmatprep.subr.mxu0 0.0
    %3555 = vmatpush2.msra.mxu0 0.0
    %3556 = vmatprep.subr.mxu0 0.0
    %3557 = vmatpush2.msra.mxu0 0.0
    %3558 = vmatprep.subr.mxu0 0.0
    %3559 = vmatpush2.msra.mxu0 0.0
    %3560 = vmatprep.subr.mxu0 0.0
    %3561 = vmatpush2.msra.mxu0 0.0
    %3562 = vmatprep.subr.mxu0 0.0
    %3563 = vmatpush2.msra.mxu0 0.0
    %3564 = vmatprep.subr.mxu0 0.0
    %3565 = vmatpush2.msra.mxu0 0.0
    %3566 = vmatprep.subr.mxu0 0.0
    %3567 = vmatpush2.msra.mxu0 0.0
    %3568 = vmatprep.subr.mxu0 0.0
    %3569 = vmatpush2.msra.mxu0 0.0
    %3570 = vmatprep.subr.mxu0 0.0
    %3571 = vmatpush2.msra.mxu0 0.0
    %3572 = vmatprep.subr.mxu0 0.0
    %3573 = vmatpush2.msra.mxu0 0.0
    %3574 = vmatprep.subr.mxu0 0.0
    %3575 = vmatpush2.msra.mxu0 0.0
    %3576 = vmatprep.subr.mxu0 0.0
    %3577 = vmatpush2.msra.mxu0 0.0
    %3578 = vmatprep.subr.mxu0 0.0
    %3579 = vmatpush2.msra.mxu0 0.0
    %3580 = vmatprep.subr.mxu0 0.0
    %3581 = vmatpush2.msra.mxu0 0.0
    %3582 = vmatprep.mubr.f32.mxu0 0.0
    %3583 = vmatmul.mubr.f32.gmra.mxu0 %v3516
    %v3584 = vpop.f32.mrf.mxu0
    %v3585 = vadd.f32 0.0, %v3584
    %v3586 = vpop.f32.mrf.mxu0
    %v3587 = vadd.f32 0.0, %v3586
    %3588 = vdwg.mxu0
    %3589 = vmatprep.subr.mxu0 0.0
    %3590 = vmatpush1.msra.mxu0 0.0
    %3591 = vmatprep.subr.mxu0 0.0
    %3592 = vmatpush1.msra.mxu0 0.0
    %3593 = vmatprep.subr.mxu0 0.0
    %3594 = vmatpush1.msra.mxu0 0.0
    %3595 = vmatprep.subr.mxu0 0.0
    %3596 = vmatpush1.msra.mxu0 0.0
    %3597 = vmatprep.subr.mxu0 0.0
    %3598 = vmatpush1.msra.mxu0 0.0
    %3599 = vmatprep.subr.mxu0 0.0
    %3600 = vmatpush1.msra.mxu0 0.0
    %3601 = vmatprep.subr.mxu0 0.0
    %3602 = vmatpush1.msra.mxu0 0.0
    %3603 = vmatprep.subr.mxu0 0.0
    %3604 = vmatpush1.msra.mxu0 0.0
    %3605 = vmatprep.subr.mxu0 0.0
    %3606 = vmatpush1.msra.mxu0 0.0
    %3607 = vmatprep.subr.mxu0 0.0
    %3608 = vmatpush1.msra.mxu0 0.0
    %3609 = vmatprep.subr.mxu0 0.0
    %3610 = vmatpush1.msra.mxu0 0.0
    %3611 = vmatprep.subr.mxu0 0.0
    %3612 = vmatpush1.msra.mxu0 0.0
    %3613 = vmatprep.subr.mxu0 %v566
    %3614 = vmatpush1.msra.mxu0 %v565
    %3615 = vmatprep.subr.mxu0 %v562
    %3616 = vmatpush1.msra.mxu0 %v561
    %3617 = vmatprep.subr.mxu0 %v558
    %3618 = vmatpush1.msra.mxu0 %v557
    %3619 = vmatprep.subr.mxu0 %v554
    %3620 = vmatpush1.msra.mxu0 %v553
    %3621 = vmatprep.subr.mxu0 0.0
    %3622 = vmatpush2.msra.mxu0 0.0
    %3623 = vmatprep.subr.mxu0 0.0
    %3624 = vmatpush2.msra.mxu0 0.0
    %3625 = vmatprep.subr.mxu0 0.0
    %3626 = vmatpush2.msra.mxu0 0.0
    %3627 = vmatprep.subr.mxu0 0.0
    %3628 = vmatpush2.msra.mxu0 0.0
    %3629 = vmatprep.subr.mxu0 0.0
    %3630 = vmatpush2.msra.mxu0 0.0
    %3631 = vmatprep.subr.mxu0 0.0
    %3632 = vmatpush2.msra.mxu0 0.0
    %3633 = vmatprep.subr.mxu0 0.0
    %3634 = vmatpush2.msra.mxu0 0.0
    %3635 = vmatprep.subr.mxu0 0.0
    %3636 = vmatpush2.msra.mxu0 0.0
    %3637 = vmatprep.subr.mxu0 0.0
    %3638 = vmatpush2.msra.mxu0 0.0
    %3639 = vmatprep.subr.mxu0 0.0
    %3640 = vmatpush2.msra.mxu0 0.0
    %3641 = vmatprep.subr.mxu0 0.0
    %3642 = vmatpush2.msra.mxu0 0.0
    %3643 = vmatprep.subr.mxu0 0.0
    %3644 = vmatpush2.msra.mxu0 0.0
    %3645 = vmatprep.subr.mxu0 0.0
    %3646 = vmatpush2.msra.mxu0 0.0
    %3647 = vmatprep.subr.mxu0 0.0
    %3648 = vmatpush2.msra.mxu0 0.0
    %3649 = vmatprep.subr.mxu0 0.0
    %3650 = vmatpush2.msra.mxu0 0.0
    %3651 = vmatprep.subr.mxu0 0.0
    %3652 = vmatpush2.msra.mxu0 0.0
    %3653 = vmatprep.mubr.f32.mxu0 0.0
    %3654 = vmatmul.mubr.f32.gmra.mxu0 %v3516
    %v3655 = vpop.f32.mrf.mxu0
    %v3656 = vadd.f32 0.0, %v3655
    %v3657 = vpop.f32.mrf.mxu0
    %v3658 = vadd.f32 0.0, %v3657
    %3659 = vdwg.mxu0
    %v3660 = vadd.f32 %v3440, %v3585
    %v3661 = vadd.f32 %v3442, %v3587
    %v3662 = vadd.f32 %v3511, %v3656
    %v3663 = vadd.f32 %v3513, %v3658
    %v3664 = vxor.u32 %v3660, 2147483648
    %v3665 = vmul.f32 %v3664, 1.442695
    %v3666 = vpow.pop %v3665
    %v3667 = vadd.f32 %v3666, 1.0
    %v3668 = vrcp.pop %v3667
    %v3669 = vmul.f32 1.0, %v3668
    %v3670 = vxor.u32 %v3661, 2147483648
    %v3671 = vmul.f32 %v3670, 1.442695
    %v3672 = vpow.pop %v3671
    %v3673 = vadd.f32 %v3672, 1.0
    %v3674 = vrcp.pop %v3673
    %v3675 = vmul.f32 1.0, %v3674
    %v3676 = vtanh.pop %v3662
    %v3677 = vxor.u32 %v3663, 2147483648
    %v3678 = vmul.f32 %v3677, 1.442695
    %v3679 = vpow.pop %v3678
    %v3680 = vadd.f32 %v3679, 1.0
    %v3681 = vrcp.pop %v3680
    %v3682 = vmul.f32 1.0, %v3681
    %v3683 = vmul.f32 %v3675, %v3169
    %v3684 = vmul.f32 %v3669, %v3676
    %v3685 = vadd.f32 %v3683, %v3684
    %v3686 = vtanh.pop %v3685
    %v3687 = vmul.f32 %v3682, %v3686
    %s3688 = scalar_lea.vmem [#allocation2], 48
    %v3689 = vld [vmem:[%s3688] sm:$0xff]
    %3690 = vmatprep.subr.mxu0 0.0
    %3691 = vmatpush1.msra.mxu0 0.0
    %3692 = vmatprep.subr.mxu0 0.0
    %3693 = vmatpush1.msra.mxu0 0.0
    %3694 = vmatprep.subr.mxu0 0.0
    %3695 = vmatpush1.msra.mxu0 0.0
    %3696 = vmatprep.subr.mxu0 0.0
    %3697 = vmatpush1.msra.mxu0 0.0
    %3698 = vmatprep.subr.mxu0 0.0
    %3699 = vmatpush1.msra.mxu0 0.0
    %3700 = vmatprep.subr.mxu0 0.0
    %3701 = vmatpush1.msra.mxu0 0.0
    %3702 = vmatprep.subr.mxu0 0.0
    %3703 = vmatpush1.msra.mxu0 0.0
    %3704 = vmatprep.subr.mxu0 0.0
    %3705 = vmatpush1.msra.mxu0 0.0
    %3706 = vmatprep.subr.mxu0 %v516
    %3707 = vmatpush1.msra.mxu0 %v515
    %3708 = vmatprep.subr.mxu0 %v512
    %3709 = vmatpush1.msra.mxu0 %v511
    %3710 = vmatprep.subr.mxu0 %v508
    %3711 = vmatpush1.msra.mxu0 %v507
    %3712 = vmatprep.subr.mxu0 %v504
    %3713 = vmatpush1.msra.mxu0 %v503
    %3714 = vmatprep.subr.mxu0 %v500
    %3715 = vmatpush1.msra.mxu0 %v499
    %3716 = vmatprep.subr.mxu0 %v496
    %3717 = vmatpush1.msra.mxu0 %v495
    %3718 = vmatprep.subr.mxu0 %v492
    %3719 = vmatpush1.msra.mxu0 %v491
    %3720 = vmatprep.subr.mxu0 %v488
    %3721 = vmatpush1.msra.mxu0 %v487
    %3722 = vmatprep.subr.mxu0 0.0
    %3723 = vmatpush2.msra.mxu0 0.0
    %3724 = vmatprep.subr.mxu0 0.0
    %3725 = vmatpush2.msra.mxu0 0.0
    %3726 = vmatprep.subr.mxu0 0.0
    %3727 = vmatpush2.msra.mxu0 0.0
    %3728 = vmatprep.subr.mxu0 0.0
    %3729 = vmatpush2.msra.mxu0 0.0
    %3730 = vmatprep.subr.mxu0 0.0
    %3731 = vmatpush2.msra.mxu0 0.0
    %3732 = vmatprep.subr.mxu0 0.0
    %3733 = vmatpush2.msra.mxu0 0.0
    %3734 = vmatprep.subr.mxu0 0.0
    %3735 = vmatpush2.msra.mxu0 0.0
    %3736 = vmatprep.subr.mxu0 0.0
    %3737 = vmatpush2.msra.mxu0 0.0
    %3738 = vmatprep.subr.mxu0 0.0
    %3739 = vmatpush2.msra.mxu0 0.0
    %3740 = vmatprep.subr.mxu0 0.0
    %3741 = vmatpush2.msra.mxu0 0.0
    %3742 = vmatprep.subr.mxu0 0.0
    %3743 = vmatpush2.msra.mxu0 0.0
    %3744 = vmatprep.subr.mxu0 0.0
    %3745 = vmatpush2.msra.mxu0 0.0
    %3746 = vmatprep.subr.mxu0 0.0
    %3747 = vmatpush2.msra.mxu0 0.0
    %3748 = vmatprep.subr.mxu0 0.0
    %3749 = vmatpush2.msra.mxu0 0.0
    %3750 = vmatprep.subr.mxu0 0.0
    %3751 = vmatpush2.msra.mxu0 0.0
    %3752 = vmatprep.subr.mxu0 0.0
    %3753 = vmatpush2.msra.mxu0 0.0
    %3754 = vmatprep.mubr.f32.mxu0 0.0
    %3755 = vmatmul.mubr.f32.gmra.mxu0 %v3371
    %v3756 = vpop.f32.mrf.mxu0
    %v3757 = vadd.f32 0.0, %v3756
    %v3758 = vpop.f32.mrf.mxu0
    %v3759 = vadd.f32 0.0, %v3758
    %3760 = vdwg.mxu0
    %3761 = vmatprep.subr.mxu0 0.0
    %3762 = vmatpush1.msra.mxu0 0.0
    %3763 = vmatprep.subr.mxu0 0.0
    %3764 = vmatpush1.msra.mxu0 0.0
    %3765 = vmatprep.subr.mxu0 0.0
    %3766 = vmatpush1.msra.mxu0 0.0
    %3767 = vmatprep.subr.mxu0 0.0
    %3768 = vmatpush1.msra.mxu0 0.0
    %3769 = vmatprep.subr.mxu0 0.0
    %3770 = vmatpush1.msra.mxu0 0.0
    %3771 = vmatprep.subr.mxu0 0.0
    %3772 = vmatpush1.msra.mxu0 0.0
    %3773 = vmatprep.subr.mxu0 0.0
    %3774 = vmatpush1.msra.mxu0 0.0
    %3775 = vmatprep.subr.mxu0 0.0
    %3776 = vmatpush1.msra.mxu0 0.0
    %3777 = vmatprep.subr.mxu0 %v518
    %3778 = vmatpush1.msra.mxu0 %v517
    %3779 = vmatprep.subr.mxu0 %v514
    %3780 = vmatpush1.msra.mxu0 %v513
    %3781 = vmatprep.subr.mxu0 %v510
    %3782 = vmatpush1.msra.mxu0 %v509
    %3783 = vmatprep.subr.mxu0 %v506
    %3784 = vmatpush1.msra.mxu0 %v505
    %3785 = vmatprep.subr.mxu0 %v502
    %3786 = vmatpush1.msra.mxu0 %v501
    %3787 = vmatprep.subr.mxu0 %v498
    %3788 = vmatpush1.msra.mxu0 %v497
    %3789 = vmatprep.subr.mxu0 %v494
    %3790 = vmatpush1.msra.mxu0 %v493
    %3791 = vmatprep.subr.mxu0 %v490
    %3792 = vmatpush1.msra.mxu0 %v489
    %3793 = vmatprep.subr.mxu0 0.0
    %3794 = vmatpush2.msra.mxu0 0.0
    %3795 = vmatprep.subr.mxu0 0.0
    %3796 = vmatpush2.msra.mxu0 0.0
    %3797 = vmatprep.subr.mxu0 0.0
    %3798 = vmatpush2.msra.mxu0 0.0
    %3799 = vmatprep.subr.mxu0 0.0
    %3800 = vmatpush2.msra.mxu0 0.0
    %3801 = vmatprep.subr.mxu0 0.0
    %3802 = vmatpush2.msra.mxu0 0.0
    %3803 = vmatprep.subr.mxu0 0.0
    %3804 = vmatpush2.msra.mxu0 0.0
    %3805 = vmatprep.subr.mxu0 0.0
    %3806 = vmatpush2.msra.mxu0 0.0
    %3807 = vmatprep.subr.mxu0 0.0
    %3808 = vmatpush2.msra.mxu0 0.0
    %3809 = vmatprep.subr.mxu0 0.0
    %3810 = vmatpush2.msra.mxu0 0.0
    %3811 = vmatprep.subr.mxu0 0.0
    %3812 = vmatpush2.msra.mxu0 0.0
    %3813 = vmatprep.subr.mxu0 0.0
    %3814 = vmatpush2.msra.mxu0 0.0
    %3815 = vmatprep.subr.mxu0 0.0
    %3816 = vmatpush2.msra.mxu0 0.0
    %3817 = vmatprep.subr.mxu0 0.0
    %3818 = vmatpush2.msra.mxu0 0.0
    %3819 = vmatprep.subr.mxu0 0.0
    %3820 = vmatpush2.msra.mxu0 0.0
    %3821 = vmatprep.subr.mxu0 0.0
    %3822 = vmatpush2.msra.mxu0 0.0
    %3823 = vmatprep.subr.mxu0 0.0
    %3824 = vmatpush2.msra.mxu0 0.0
    %3825 = vmatprep.mubr.f32.mxu0 0.0
    %3826 = vmatmul.mubr.f32.gmra.mxu0 %v3371
    %v3827 = vpop.f32.mrf.mxu0
    %v3828 = vadd.f32 0.0, %v3827
    %v3829 = vpop.f32.mrf.mxu0
    %v3830 = vadd.f32 0.0, %v3829
    %3831 = vdwg.mxu0
    %v3836 = vcombine.low %v3757, %v3759
    %v3837 = vcombine.low %v3828, %v3830
    %v3839 = vunpack.c.l.s4 1983009808
    %v3840 = vunpack.c.0.s8 %v3839
    %v3841 = vlaneseq
    %v3842 = vshrl.u32 %v3841, 7
    %v3843 = vsub.s32 %v3840, %v3842
    %v3844 = vrot.slane %v3836, %v3843
    %v3846 = vunpack.c.l.s4 1983009808
    %v3847 = vunpack.c.0.s8 %v3846
    %v3848 = vlaneseq
    %v3849 = vshrl.u32 %v3848, 7
    %v3850 = vsub.s32 %v3847, %v3849
    %v3851 = vrot.slane %v3837, %v3850
    %v3852 = vcombine.low %v3844, %v3851
    %v3854 = vadd.f32 %v3689, %v3852
    %v3855 = vxor.u32 %v3854, 2147483648
    %v3856 = vmul.f32 %v3855, 1.442695
    %v3857 = vpow.pop %v3856
    %v3858 = vadd.f32 %v3857, 1.0
    %v3859 = vrcp.pop %v3858
    %v3860 = vmul.f32 1.0, %v3859
    %v3862 = vrot.slane %v3854, 2
    %v3864 = vxor.u32 %v3862, 2147483648
    %v3865 = vmul.f32 %v3864, 1.442695
    %v3866 = vpow.pop %v3865
    %v3867 = vadd.f32 %v3866, 1.0
    %v3868 = vrcp.pop %v3867
    %v3869 = vmul.f32 1.0, %v3868
    %v3870 = vrot.slane %v3854, 4
    %v3872 = vtanh.pop %v3870
    %v3873 = vrot.slane %v3854, 6
    %v3875 = vxor.u32 %v3873, 2147483648
    %v3876 = vmul.f32 %v3875, 1.442695
    %v3877 = vpow.pop %v3876
    %v3878 = vadd.f32 %v3877, 1.0
    %v3879 = vrcp.pop %v3878
    %v3880 = vmul.f32 1.0, %v3879
    %v3881 = vmul.f32 %v3869, %v3367
    %v3882 = vmul.f32 %v3860, %v3872
    %v3883 = vadd.f32 %v3881, %v3882
    %v3884 = vtanh.pop %v3883
    %v3885 = vmul.f32 %v3880, %v3884
    %v3887 = vsel %vm569, %v3885, 0
    %3889 = vmatprep.subr.mxu0 0.0
    %3890 = vmatpush1.msra.mxu0 0.0
    %3891 = vmatprep.subr.mxu0 0.0
    %3892 = vmatpush1.msra.mxu0 0.0
    %3893 = vmatprep.subr.mxu0 0.0
    %3894 = vmatpush1.msra.mxu0 0.0
    %3895 = vmatprep.subr.mxu0 0.0
    %3896 = vmatpush1.msra.mxu0 0.0
    %3897 = vmatprep.subr.mxu0 0.0
    %3898 = vmatpush1.msra.mxu0 0.0
    %3899 = vmatprep.subr.mxu0 0.0
    %3900 = vmatpush1.msra.mxu0 0.0
    %3901 = vmatprep.subr.mxu0 0.0
    %3902 = vmatpush1.msra.mxu0 0.0
    %3903 = vmatprep.subr.mxu0 0.0
    %3904 = vmatpush1.msra.mxu0 0.0
    %3905 = vmatprep.subr.mxu0 %v548
    %3906 = vmatpush1.msra.mxu0 %v547
    %3907 = vmatprep.subr.mxu0 %v544
    %3908 = vmatpush1.msra.mxu0 %v543
    %3909 = vmatprep.subr.mxu0 %v540
    %3910 = vmatpush1.msra.mxu0 %v539
    %3911 = vmatprep.subr.mxu0 %v536
    %3912 = vmatpush1.msra.mxu0 %v535
    %3913 = vmatprep.subr.mxu0 %v532
    %3914 = vmatpush1.msra.mxu0 %v531
    %3915 = vmatprep.subr.mxu0 %v528
    %3916 = vmatpush1.msra.mxu0 %v527
    %3917 = vmatprep.subr.mxu0 %v524
    %3918 = vmatpush1.msra.mxu0 %v523
    %3919 = vmatprep.subr.mxu0 %v520
    %3920 = vmatpush1.msra.mxu0 %v519
    %3921 = vmatprep.subr.mxu0 0.0
    %3922 = vmatpush2.msra.mxu0 0.0
    %3923 = vmatprep.subr.mxu0 0.0
    %3924 = vmatpush2.msra.mxu0 0.0
    %3925 = vmatprep.subr.mxu0 0.0
    %3926 = vmatpush2.msra.mxu0 0.0
    %3927 = vmatprep.subr.mxu0 0.0
    %3928 = vmatpush2.msra.mxu0 0.0
    %3929 = vmatprep.subr.mxu0 0.0
    %3930 = vmatpush2.msra.mxu0 0.0
    %3931 = vmatprep.subr.mxu0 0.0
    %3932 = vmatpush2.msra.mxu0 0.0
    %3933 = vmatprep.subr.mxu0 0.0
    %3934 = vmatpush2.msra.mxu0 0.0
    %3935 = vmatprep.subr.mxu0 0.0
    %3936 = vmatpush2.msra.mxu0 0.0
    %3937 = vmatprep.subr.mxu0 0.0
    %3938 = vmatpush2.msra.mxu0 0.0
    %3939 = vmatprep.subr.mxu0 0.0
    %3940 = vmatpush2.msra.mxu0 0.0
    %3941 = vmatprep.subr.mxu0 0.0
    %3942 = vmatpush2.msra.mxu0 0.0
    %3943 = vmatprep.subr.mxu0 0.0
    %3944 = vmatpush2.msra.mxu0 0.0
    %3945 = vmatprep.subr.mxu0 0.0
    %3946 = vmatpush2.msra.mxu0 0.0
    %3947 = vmatprep.subr.mxu0 0.0
    %3948 = vmatpush2.msra.mxu0 0.0
    %3949 = vmatprep.subr.mxu0 0.0
    %3950 = vmatpush2.msra.mxu0 0.0
    %3951 = vmatprep.subr.mxu0 0.0
    %3952 = vmatpush2.msra.mxu0 0.0
    %3953 = vmatprep.mubr.f32.mxu0 0.0
    %3954 = vmatmul.mubr.f32.gmra.mxu0 %v3887
    %v3955 = vpop.f32.mrf.mxu0
    %v3956 = vadd.f32 %v773, %v3955
    %v3957 = vpop.f32.mrf.mxu0
    %v3958 = vadd.f32 %v777, %v3957
    %3959 = vdwg.mxu0
    %3960 = vmatprep.subr.mxu0 0.0
    %3961 = vmatpush1.msra.mxu0 0.0
    %3962 = vmatprep.subr.mxu0 0.0
    %3963 = vmatpush1.msra.mxu0 0.0
    %3964 = vmatprep.subr.mxu0 0.0
    %3965 = vmatpush1.msra.mxu0 0.0
    %3966 = vmatprep.subr.mxu0 0.0
    %3967 = vmatpush1.msra.mxu0 0.0
    %3968 = vmatprep.subr.mxu0 0.0
    %3969 = vmatpush1.msra.mxu0 0.0
    %3970 = vmatprep.subr.mxu0 0.0
    %3971 = vmatpush1.msra.mxu0 0.0
    %3972 = vmatprep.subr.mxu0 0.0
    %3973 = vmatpush1.msra.mxu0 0.0
    %3974 = vmatprep.subr.mxu0 0.0
    %3975 = vmatpush1.msra.mxu0 0.0
    %3976 = vmatprep.subr.mxu0 %v550
    %3977 = vmatpush1.msra.mxu0 %v549
    %3978 = vmatprep.subr.mxu0 %v546
    %3979 = vmatpush1.msra.mxu0 %v545
    %3980 = vmatprep.subr.mxu0 %v542
    %3981 = vmatpush1.msra.mxu0 %v541
    %3982 = vmatprep.subr.mxu0 %v538
    %3983 = vmatpush1.msra.mxu0 %v537
    %3984 = vmatprep.subr.mxu0 %v534
    %3985 = vmatpush1.msra.mxu0 %v533
    %3986 = vmatprep.subr.mxu0 %v530
    %3987 = vmatpush1.msra.mxu0 %v529
    %3988 = vmatprep.subr.mxu0 %v526
    %3989 = vmatpush1.msra.mxu0 %v525
    %3990 = vmatprep.subr.mxu0 %v522
    %3991 = vmatpush1.msra.mxu0 %v521
    %3992 = vmatprep.subr.mxu0 0.0
    %3993 = vmatpush2.msra.mxu0 0.0
    %3994 = vmatprep.subr.mxu0 0.0
    %3995 = vmatpush2.msra.mxu0 0.0
    %3996 = vmatprep.subr.mxu0 0.0
    %3997 = vmatpush2.msra.mxu0 0.0
    %3998 = vmatprep.subr.mxu0 0.0
    %3999 = vmatpush2.msra.mxu0 0.0
    %4000 = vmatprep.subr.mxu0 0.0
    %4001 = vmatpush2.msra.mxu0 0.0
    %4002 = vmatprep.subr.mxu0 0.0
    %4003 = vmatpush2.msra.mxu0 0.0
    %4004 = vmatprep.subr.mxu0 0.0
    %4005 = vmatpush2.msra.mxu0 0.0
    %4006 = vmatprep.subr.mxu0 0.0
    %4007 = vmatpush2.msra.mxu0 0.0
    %4008 = vmatprep.subr.mxu0 0.0
    %4009 = vmatpush2.msra.mxu0 0.0
    %4010 = vmatprep.subr.mxu0 0.0
    %4011 = vmatpush2.msra.mxu0 0.0
    %4012 = vmatprep.subr.mxu0 0.0
    %4013 = vmatpush2.msra.mxu0 0.0
    %4014 = vmatprep.subr.mxu0 0.0
    %4015 = vmatpush2.msra.mxu0 0.0
    %4016 = vmatprep.subr.mxu0 0.0
    %4017 = vmatpush2.msra.mxu0 0.0
    %4018 = vmatprep.subr.mxu0 0.0
    %4019 = vmatpush2.msra.mxu0 0.0
    %4020 = vmatprep.subr.mxu0 0.0
    %4021 = vmatpush2.msra.mxu0 0.0
    %4022 = vmatprep.subr.mxu0 0.0
    %4023 = vmatpush2.msra.mxu0 0.0
    %4024 = vmatprep.mubr.f32.mxu0 0.0
    %4025 = vmatmul.mubr.f32.gmra.mxu0 %v3887
    %v4026 = vpop.f32.mrf.mxu0
    %v4027 = vadd.f32 %v781, %v4026
    %v4028 = vpop.f32.mrf.mxu0
    %v4029 = vadd.f32 %v785, %v4028
    %4030 = vdwg.mxu0
    %v4032 = vsel %vm935, %v3687, 0
    %4034 = vmatprep.subr.mxu0 0.0
    %4035 = vmatpush1.msra.mxu0 0.0
    %4036 = vmatprep.subr.mxu0 0.0
    %4037 = vmatpush1.msra.mxu0 0.0
    %4038 = vmatprep.subr.mxu0 0.0
    %4039 = vmatpush1.msra.mxu0 0.0
    %4040 = vmatprep.subr.mxu0 0.0
    %4041 = vmatpush1.msra.mxu0 0.0
    %4042 = vmatprep.subr.mxu0 0.0
    %4043 = vmatpush1.msra.mxu0 0.0
    %4044 = vmatprep.subr.mxu0 0.0
    %4045 = vmatpush1.msra.mxu0 0.0
    %4046 = vmatprep.subr.mxu0 0.0
    %4047 = vmatpush1.msra.mxu0 0.0
    %4048 = vmatprep.subr.mxu0 0.0
    %4049 = vmatpush1.msra.mxu0 0.0
    %4050 = vmatprep.subr.mxu0 0.0
    %4051 = vmatpush1.msra.mxu0 0.0
    %4052 = vmatprep.subr.mxu0 0.0
    %4053 = vmatpush1.msra.mxu0 0.0
    %4054 = vmatprep.subr.mxu0 0.0
    %4055 = vmatpush1.msra.mxu0 0.0
    %4056 = vmatprep.subr.mxu0 0.0
    %4057 = vmatpush1.msra.mxu0 0.0
    %4058 = vmatprep.subr.mxu0 %v564
    %4059 = vmatpush1.msra.mxu0 %v563
    %4060 = vmatprep.subr.mxu0 %v560
    %4061 = vmatpush1.msra.mxu0 %v559
    %4062 = vmatprep.subr.mxu0 %v556
    %4063 = vmatpush1.msra.mxu0 %v555
    %4064 = vmatprep.subr.mxu0 %v552
    %4065 = vmatpush1.msra.mxu0 %v551
    %4066 = vmatprep.subr.mxu0 0.0
    %4067 = vmatpush2.msra.mxu0 0.0
    %4068 = vmatprep.subr.mxu0 0.0
    %4069 = vmatpush2.msra.mxu0 0.0
    %4070 = vmatprep.subr.mxu0 0.0
    %4071 = vmatpush2.msra.mxu0 0.0
    %4072 = vmatprep.subr.mxu0 0.0
    %4073 = vmatpush2.msra.mxu0 0.0
    %4074 = vmatprep.subr.mxu0 0.0
    %4075 = vmatpush2.msra.mxu0 0.0
    %4076 = vmatprep.subr.mxu0 0.0
    %4077 = vmatpush2.msra.mxu0 0.0
    %4078 = vmatprep.subr.mxu0 0.0
    %4079 = vmatpush2.msra.mxu0 0.0
    %4080 = vmatprep.subr.mxu0 0.0
    %4081 = vmatpush2.msra.mxu0 0.0
    %4082 = vmatprep.subr.mxu0 0.0
    %4083 = vmatpush2.msra.mxu0 0.0
    %4084 = vmatprep.subr.mxu0 0.0
    %4085 = vmatpush2.msra.mxu0 0.0
    %4086 = vmatprep.subr.mxu0 0.0
    %4087 = vmatpush2.msra.mxu0 0.0
    %4088 = vmatprep.subr.mxu0 0.0
    %4089 = vmatpush2.msra.mxu0 0.0
    %4090 = vmatprep.subr.mxu0 0.0
    %4091 = vmatpush2.msra.mxu0 0.0
    %4092 = vmatprep.subr.mxu0 0.0
    %4093 = vmatpush2.msra.mxu0 0.0
    %4094 = vmatprep.subr.mxu0 0.0
    %4095 = vmatpush2.msra.mxu0 0.0
    %4096 = vmatprep.subr.mxu0 0.0
    %4097 = vmatpush2.msra.mxu0 0.0
    %4098 = vmatprep.mubr.f32.mxu0 0.0
    %4099 = vmatmul.mubr.f32.gmra.mxu0 %v4032
    %v4100 = vpop.f32.mrf.mxu0
    %v4101 = vadd.f32 0.0, %v4100
    %v4102 = vpop.f32.mrf.mxu0
    %v4103 = vadd.f32 0.0, %v4102
    %4104 = vdwg.mxu0
    %4105 = vmatprep.subr.mxu0 0.0
    %4106 = vmatpush1.msra.mxu0 0.0
    %4107 = vmatprep.subr.mxu0 0.0
    %4108 = vmatpush1.msra.mxu0 0.0
    %4109 = vmatprep.subr.mxu0 0.0
    %4110 = vmatpush1.msra.mxu0 0.0
    %4111 = vmatprep.subr.mxu0 0.0
    %4112 = vmatpush1.msra.mxu0 0.0
    %4113 = vmatprep.subr.mxu0 0.0
    %4114 = vmatpush1.msra.mxu0 0.0
    %4115 = vmatprep.subr.mxu0 0.0
    %4116 = vmatpush1.msra.mxu0 0.0
    %4117 = vmatprep.subr.mxu0 0.0
    %4118 = vmatpush1.msra.mxu0 0.0
    %4119 = vmatprep.subr.mxu0 0.0
    %4120 = vmatpush1.msra.mxu0 0.0
    %4121 = vmatprep.subr.mxu0 0.0
    %4122 = vmatpush1.msra.mxu0 0.0
    %4123 = vmatprep.subr.mxu0 0.0
    %4124 = vmatpush1.msra.mxu0 0.0
    %4125 = vmatprep.subr.mxu0 0.0
    %4126 = vmatpush1.msra.mxu0 0.0
    %4127 = vmatprep.subr.mxu0 0.0
    %4128 = vmatpush1.msra.mxu0 0.0
    %4129 = vmatprep.subr.mxu0 %v566
    %4130 = vmatpush1.msra.mxu0 %v565
    %4131 = vmatprep.subr.mxu0 %v562
    %4132 = vmatpush1.msra.mxu0 %v561
    %4133 = vmatprep.subr.mxu0 %v558
    %4134 = vmatpush1.msra.mxu0 %v557
    %4135 = vmatprep.subr.mxu0 %v554
    %4136 = vmatpush1.msra.mxu0 %v553
    %4137 = vmatprep.subr.mxu0 0.0
    %4138 = vmatpush2.msra.mxu0 0.0
    %4139 = vmatprep.subr.mxu0 0.0
    %4140 = vmatpush2.msra.mxu0 0.0
    %4141 = vmatprep.subr.mxu0 0.0
    %4142 = vmatpush2.msra.mxu0 0.0
    %4143 = vmatprep.subr.mxu0 0.0
    %4144 = vmatpush2.msra.mxu0 0.0
    %4145 = vmatprep.subr.mxu0 0.0
    %4146 = vmatpush2.msra.mxu0 0.0
    %4147 = vmatprep.subr.mxu0 0.0
    %4148 = vmatpush2.msra.mxu0 0.0
    %4149 = vmatprep.subr.mxu0 0.0
    %4150 = vmatpush2.msra.mxu0 0.0
    %4151 = vmatprep.subr.mxu0 0.0
    %4152 = vmatpush2.msra.mxu0 0.0
    %4153 = vmatprep.subr.mxu0 0.0
    %4154 = vmatpush2.msra.mxu0 0.0
    %4155 = vmatprep.subr.mxu0 0.0
    %4156 = vmatpush2.msra.mxu0 0.0
    %4157 = vmatprep.subr.mxu0 0.0
    %4158 = vmatpush2.msra.mxu0 0.0
    %4159 = vmatprep.subr.mxu0 0.0
    %4160 = vmatpush2.msra.mxu0 0.0
    %4161 = vmatprep.subr.mxu0 0.0
    %4162 = vmatpush2.msra.mxu0 0.0
    %4163 = vmatprep.subr.mxu0 0.0
    %4164 = vmatpush2.msra.mxu0 0.0
    %4165 = vmatprep.subr.mxu0 0.0
    %4166 = vmatpush2.msra.mxu0 0.0
    %4167 = vmatprep.subr.mxu0 0.0
    %4168 = vmatpush2.msra.mxu0 0.0
    %4169 = vmatprep.mubr.f32.mxu0 0.0
    %4170 = vmatmul.mubr.f32.gmra.mxu0 %v4032
    %v4171 = vpop.f32.mrf.mxu0
    %v4172 = vadd.f32 0.0, %v4171
    %v4173 = vpop.f32.mrf.mxu0
    %v4174 = vadd.f32 0.0, %v4173
    %4175 = vdwg.mxu0
    %v4176 = vadd.f32 %v3956, %v4101
    %v4177 = vadd.f32 %v3958, %v4103
    %v4178 = vadd.f32 %v4027, %v4172
    %v4179 = vadd.f32 %v4029, %v4174
    %v4180 = vxor.u32 %v4176, 2147483648
    %v4181 = vmul.f32 %v4180, 1.442695
    %v4182 = vpow.pop %v4181
    %v4183 = vadd.f32 %v4182, 1.0
    %v4184 = vrcp.pop %v4183
    %v4185 = vmul.f32 1.0, %v4184
    %v4186 = vxor.u32 %v4177, 2147483648
    %v4187 = vmul.f32 %v4186, 1.442695
    %v4188 = vpow.pop %v4187
    %v4189 = vadd.f32 %v4188, 1.0
    %v4190 = vrcp.pop %v4189
    %v4191 = vmul.f32 1.0, %v4190
    %v4192 = vtanh.pop %v4178
    %v4193 = vxor.u32 %v4179, 2147483648
    %v4194 = vmul.f32 %v4193, 1.442695
    %v4195 = vpow.pop %v4194
    %v4196 = vadd.f32 %v4195, 1.0
    %v4197 = vrcp.pop %v4196
    %v4198 = vmul.f32 1.0, %v4197
    %v4199 = vmul.f32 %v4191, %v3685
    %v4200 = vmul.f32 %v4185, %v4192
    %v4201 = vadd.f32 %v4199, %v4200
    %v4202 = vtanh.pop %v4201
    %v4203 = vmul.f32 %v4198, %v4202
    %s4204 = scalar_lea.vmem [#allocation2], 56
    %v4205 = vld [vmem:[%s4204] sm:$0xff]
    %4206 = vmatprep.subr.mxu0 0.0
    %4207 = vmatpush1.msra.mxu0 0.0
    %4208 = vmatprep.subr.mxu0 0.0
    %4209 = vmatpush1.msra.mxu0 0.0
    %4210 = vmatprep.subr.mxu0 0.0
    %4211 = vmatpush1.msra.mxu0 0.0
    %4212 = vmatprep.subr.mxu0 0.0
    %4213 = vmatpush1.msra.mxu0 0.0
    %4214 = vmatprep.subr.mxu0 0.0
    %4215 = vmatpush1.msra.mxu0 0.0
    %4216 = vmatprep.subr.mxu0 0.0
    %4217 = vmatpush1.msra.mxu0 0.0
    %4218 = vmatprep.subr.mxu0 0.0
    %4219 = vmatpush1.msra.mxu0 0.0
    %4220 = vmatprep.subr.mxu0 0.0
    %4221 = vmatpush1.msra.mxu0 0.0
    %4222 = vmatprep.subr.mxu0 %v516
    %4223 = vmatpush1.msra.mxu0 %v515
    %4224 = vmatprep.subr.mxu0 %v512
    %4225 = vmatpush1.msra.mxu0 %v511
    %4226 = vmatprep.subr.mxu0 %v508
    %4227 = vmatpush1.msra.mxu0 %v507
    %4228 = vmatprep.subr.mxu0 %v504
    %4229 = vmatpush1.msra.mxu0 %v503
    %4230 = vmatprep.subr.mxu0 %v500
    %4231 = vmatpush1.msra.mxu0 %v499
    %4232 = vmatprep.subr.mxu0 %v496
    %4233 = vmatpush1.msra.mxu0 %v495
    %4234 = vmatprep.subr.mxu0 %v492
    %4235 = vmatpush1.msra.mxu0 %v491
    %4236 = vmatprep.subr.mxu0 %v488
    %4237 = vmatpush1.msra.mxu0 %v487
    %4238 = vmatprep.subr.mxu0 0.0
    %4239 = vmatpush2.msra.mxu0 0.0
    %4240 = vmatprep.subr.mxu0 0.0
    %4241 = vmatpush2.msra.mxu0 0.0
    %4242 = vmatprep.subr.mxu0 0.0
    %4243 = vmatpush2.msra.mxu0 0.0
    %4244 = vmatprep.subr.mxu0 0.0
    %4245 = vmatpush2.msra.mxu0 0.0
    %4246 = vmatprep.subr.mxu0 0.0
    %4247 = vmatpush2.msra.mxu0 0.0
    %4248 = vmatprep.subr.mxu0 0.0
    %4249 = vmatpush2.msra.mxu0 0.0
    %4250 = vmatprep.subr.mxu0 0.0
    %4251 = vmatpush2.msra.mxu0 0.0
    %4252 = vmatprep.subr.mxu0 0.0
    %4253 = vmatpush2.msra.mxu0 0.0
    %4254 = vmatprep.subr.mxu0 0.0
    %4255 = vmatpush2.msra.mxu0 0.0
    %4256 = vmatprep.subr.mxu0 0.0
    %4257 = vmatpush2.msra.mxu0 0.0
    %4258 = vmatprep.subr.mxu0 0.0
    %4259 = vmatpush2.msra.mxu0 0.0
    %4260 = vmatprep.subr.mxu0 0.0
    %4261 = vmatpush2.msra.mxu0 0.0
    %4262 = vmatprep.subr.mxu0 0.0
    %4263 = vmatpush2.msra.mxu0 0.0
    %4264 = vmatprep.subr.mxu0 0.0
    %4265 = vmatpush2.msra.mxu0 0.0
    %4266 = vmatprep.subr.mxu0 0.0
    %4267 = vmatpush2.msra.mxu0 0.0
    %4268 = vmatprep.subr.mxu0 0.0
    %4269 = vmatpush2.msra.mxu0 0.0
    %4270 = vmatprep.mubr.f32.mxu0 0.0
    %4271 = vmatmul.mubr.f32.gmra.mxu0 %v3887
    %v4272 = vpop.f32.mrf.mxu0
    %v4273 = vadd.f32 0.0, %v4272
    %v4274 = vpop.f32.mrf.mxu0
    %v4275 = vadd.f32 0.0, %v4274
    %4276 = vdwg.mxu0
    %4277 = vmatprep.subr.mxu0 0.0
    %4278 = vmatpush1.msra.mxu0 0.0
    %4279 = vmatprep.subr.mxu0 0.0
    %4280 = vmatpush1.msra.mxu0 0.0
    %4281 = vmatprep.subr.mxu0 0.0
    %4282 = vmatpush1.msra.mxu0 0.0
    %4283 = vmatprep.subr.mxu0 0.0
    %4284 = vmatpush1.msra.mxu0 0.0
    %4285 = vmatprep.subr.mxu0 0.0
    %4286 = vmatpush1.msra.mxu0 0.0
    %4287 = vmatprep.subr.mxu0 0.0
    %4288 = vmatpush1.msra.mxu0 0.0
    %4289 = vmatprep.subr.mxu0 0.0
    %4290 = vmatpush1.msra.mxu0 0.0
    %4291 = vmatprep.subr.mxu0 0.0
    %4292 = vmatpush1.msra.mxu0 0.0
    %4293 = vmatprep.subr.mxu0 %v518
    %4294 = vmatpush1.msra.mxu0 %v517
    %4295 = vmatprep.subr.mxu0 %v514
    %4296 = vmatpush1.msra.mxu0 %v513
    %4297 = vmatprep.subr.mxu0 %v510
    %4298 = vmatpush1.msra.mxu0 %v509
    %4299 = vmatprep.subr.mxu0 %v506
    %4300 = vmatpush1.msra.mxu0 %v505
    %4301 = vmatprep.subr.mxu0 %v502
    %4302 = vmatpush1.msra.mxu0 %v501
    %4303 = vmatprep.subr.mxu0 %v498
    %4304 = vmatpush1.msra.mxu0 %v497
    %4305 = vmatprep.subr.mxu0 %v494
    %4306 = vmatpush1.msra.mxu0 %v493
    %4307 = vmatprep.subr.mxu0 %v490
    %4308 = vmatpush1.msra.mxu0 %v489
    %4309 = vmatprep.subr.mxu0 0.0
    %4310 = vmatpush2.msra.mxu0 0.0
    %4311 = vmatprep.subr.mxu0 0.0
    %4312 = vmatpush2.msra.mxu0 0.0
    %4313 = vmatprep.subr.mxu0 0.0
    %4314 = vmatpush2.msra.mxu0 0.0
    %4315 = vmatprep.subr.mxu0 0.0
    %4316 = vmatpush2.msra.mxu0 0.0
    %4317 = vmatprep.subr.mxu0 0.0
    %4318 = vmatpush2.msra.mxu0 0.0
    %4319 = vmatprep.subr.mxu0 0.0
    %4320 = vmatpush2.msra.mxu0 0.0
    %4321 = vmatprep.subr.mxu0 0.0
    %4322 = vmatpush2.msra.mxu0 0.0
    %4323 = vmatprep.subr.mxu0 0.0
    %4324 = vmatpush2.msra.mxu0 0.0
    %4325 = vmatprep.subr.mxu0 0.0
    %4326 = vmatpush2.msra.mxu0 0.0
    %4327 = vmatprep.subr.mxu0 0.0
    %4328 = vmatpush2.msra.mxu0 0.0
    %4329 = vmatprep.subr.mxu0 0.0
    %4330 = vmatpush2.msra.mxu0 0.0
    %4331 = vmatprep.subr.mxu0 0.0
    %4332 = vmatpush2.msra.mxu0 0.0
    %4333 = vmatprep.subr.mxu0 0.0
    %4334 = vmatpush2.msra.mxu0 0.0
    %4335 = vmatprep.subr.mxu0 0.0
    %4336 = vmatpush2.msra.mxu0 0.0
    %4337 = vmatprep.subr.mxu0 0.0
    %4338 = vmatpush2.msra.mxu0 0.0
    %4339 = vmatprep.subr.mxu0 0.0
    %4340 = vmatpush2.msra.mxu0 0.0
    %4341 = vmatprep.mubr.f32.mxu0 0.0
    %4342 = vmatmul.mubr.f32.gmra.mxu0 %v3887
    %v4343 = vpop.f32.mrf.mxu0
    %v4344 = vadd.f32 0.0, %v4343
    %v4345 = vpop.f32.mrf.mxu0
    %v4346 = vadd.f32 0.0, %v4345
    %4347 = vdwg.mxu0
    %v4352 = vcombine.low %v4273, %v4275
    %v4353 = vcombine.low %v4344, %v4346
    %v4355 = vunpack.c.l.s4 1983009808
    %v4356 = vunpack.c.0.s8 %v4355
    %v4357 = vlaneseq
    %v4358 = vshrl.u32 %v4357, 7
    %v4359 = vsub.s32 %v4356, %v4358
    %v4360 = vrot.slane %v4352, %v4359
    %v4362 = vunpack.c.l.s4 1983009808
    %v4363 = vunpack.c.0.s8 %v4362
    %v4364 = vlaneseq
    %v4365 = vshrl.u32 %v4364, 7
    %v4366 = vsub.s32 %v4363, %v4365
    %v4367 = vrot.slane %v4353, %v4366
    %v4368 = vcombine.low %v4360, %v4367
    %v4370 = vadd.f32 %v4205, %v4368
    %v4371 = vxor.u32 %v4370, 2147483648
    %v4372 = vmul.f32 %v4371, 1.442695
    %v4373 = vpow.pop %v4372
    %v4374 = vadd.f32 %v4373, 1.0
    %v4375 = vrcp.pop %v4374
    %v4376 = vmul.f32 1.0, %v4375
    %v4378 = vrot.slane %v4370, 2
    %v4380 = vxor.u32 %v4378, 2147483648
    %v4381 = vmul.f32 %v4380, 1.442695
    %v4382 = vpow.pop %v4381
    %v4383 = vadd.f32 %v4382, 1.0
    %v4384 = vrcp.pop %v4383
    %v4385 = vmul.f32 1.0, %v4384
    %v4386 = vrot.slane %v4370, 4
    %v4388 = vtanh.pop %v4386
    %v4389 = vrot.slane %v4370, 6
    %v4391 = vxor.u32 %v4389, 2147483648
    %v4392 = vmul.f32 %v4391, 1.442695
    %v4393 = vpow.pop %v4392
    %v4394 = vadd.f32 %v4393, 1.0
    %v4395 = vrcp.pop %v4394
    %v4396 = vmul.f32 1.0, %v4395
    %v4397 = vmul.f32 %v4385, %v3883
    %v4398 = vmul.f32 %v4376, %v4388
    %v4399 = vadd.f32 %v4397, %v4398
    %v4400 = vtanh.pop %v4399
    %v4401 = vmul.f32 %v4396, %v4400
    %v4403 = vsel %vm569, %v4401, 0
    %4405 = vmatprep.subr.mxu0 0.0
    %4406 = vmatpush1.msra.mxu0 0.0
    %4407 = vmatprep.subr.mxu0 0.0
    %4408 = vmatpush1.msra.mxu0 0.0
    %4409 = vmatprep.subr.mxu0 0.0
    %4410 = vmatpush1.msra.mxu0 0.0
    %4411 = vmatprep.subr.mxu0 0.0
    %4412 = vmatpush1.msra.mxu0 0.0
    %4413 = vmatprep.subr.mxu0 0.0
    %4414 = vmatpush1.msra.mxu0 0.0
    %4415 = vmatprep.subr.mxu0 0.0
    %4416 = vmatpush1.msra.mxu0 0.0
    %4417 = vmatprep.subr.mxu0 0.0
    %4418 = vmatpush1.msra.mxu0 0.0
    %4419 = vmatprep.subr.mxu0 0.0
    %4420 = vmatpush1.msra.mxu0 0.0
    %4421 = vmatprep.subr.mxu0 %v548
    %4422 = vmatpush1.msra.mxu0 %v547
    %4423 = vmatprep.subr.mxu0 %v544
    %4424 = vmatpush1.msra.mxu0 %v543
    %4425 = vmatprep.subr.mxu0 %v540
    %4426 = vmatpush1.msra.mxu0 %v539
    %4427 = vmatprep.subr.mxu0 %v536
    %4428 = vmatpush1.msra.mxu0 %v535
    %4429 = vmatprep.subr.mxu0 %v532
    %4430 = vmatpush1.msra.mxu0 %v531
    %4431 = vmatprep.subr.mxu0 %v528
    %4432 = vmatpush1.msra.mxu0 %v527
    %4433 = vmatprep.subr.mxu0 %v524
    %4434 = vmatpush1.msra.mxu0 %v523
    %4435 = vmatprep.subr.mxu0 %v520
    %4436 = vmatpush1.msra.mxu0 %v519
    %4437 = vmatprep.subr.mxu0 0.0
    %4438 = vmatpush2.msra.mxu0 0.0
    %4439 = vmatprep.subr.mxu0 0.0
    %4440 = vmatpush2.msra.mxu0 0.0
    %4441 = vmatprep.subr.mxu0 0.0
    %4442 = vmatpush2.msra.mxu0 0.0
    %4443 = vmatprep.subr.mxu0 0.0
    %4444 = vmatpush2.msra.mxu0 0.0
    %4445 = vmatprep.subr.mxu0 0.0
    %4446 = vmatpush2.msra.mxu0 0.0
    %4447 = vmatprep.subr.mxu0 0.0
    %4448 = vmatpush2.msra.mxu0 0.0
    %4449 = vmatprep.subr.mxu0 0.0
    %4450 = vmatpush2.msra.mxu0 0.0
    %4451 = vmatprep.subr.mxu0 0.0
    %4452 = vmatpush2.msra.mxu0 0.0
    %4453 = vmatprep.subr.mxu0 0.0
    %4454 = vmatpush2.msra.mxu0 0.0
    %4455 = vmatprep.subr.mxu0 0.0
    %4456 = vmatpush2.msra.mxu0 0.0
    %4457 = vmatprep.subr.mxu0 0.0
    %4458 = vmatpush2.msra.mxu0 0.0
    %4459 = vmatprep.subr.mxu0 0.0
    %4460 = vmatpush2.msra.mxu0 0.0
    %4461 = vmatprep.subr.mxu0 0.0
    %4462 = vmatpush2.msra.mxu0 0.0
    %4463 = vmatprep.subr.mxu0 0.0
    %4464 = vmatpush2.msra.mxu0 0.0
    %4465 = vmatprep.subr.mxu0 0.0
    %4466 = vmatpush2.msra.mxu0 0.0
    %4467 = vmatprep.subr.mxu0 0.0
    %4468 = vmatpush2.msra.mxu0 0.0
    %4469 = vmatprep.mubr.f32.mxu0 0.0
    %4470 = vmatmul.mubr.f32.gmra.mxu0 %v4403
    %v4471 = vpop.f32.mrf.mxu0
    %v4472 = vadd.f32 %v773, %v4471
    %v4473 = vpop.f32.mrf.mxu0
    %v4474 = vadd.f32 %v777, %v4473
    %4475 = vdwg.mxu0
    %4476 = vmatprep.subr.mxu0 0.0
    %4477 = vmatpush1.msra.mxu0 0.0
    %4478 = vmatprep.subr.mxu0 0.0
    %4479 = vmatpush1.msra.mxu0 0.0
    %4480 = vmatprep.subr.mxu0 0.0
    %4481 = vmatpush1.msra.mxu0 0.0
    %4482 = vmatprep.subr.mxu0 0.0
    %4483 = vmatpush1.msra.mxu0 0.0
    %4484 = vmatprep.subr.mxu0 0.0
    %4485 = vmatpush1.msra.mxu0 0.0
    %4486 = vmatprep.subr.mxu0 0.0
    %4487 = vmatpush1.msra.mxu0 0.0
    %4488 = vmatprep.subr.mxu0 0.0
    %4489 = vmatpush1.msra.mxu0 0.0
    %4490 = vmatprep.subr.mxu0 0.0
    %4491 = vmatpush1.msra.mxu0 0.0
    %4492 = vmatprep.subr.mxu0 %v550
    %4493 = vmatpush1.msra.mxu0 %v549
    %4494 = vmatprep.subr.mxu0 %v546
    %4495 = vmatpush1.msra.mxu0 %v545
    %4496 = vmatprep.subr.mxu0 %v542
    %4497 = vmatpush1.msra.mxu0 %v541
    %4498 = vmatprep.subr.mxu0 %v538
    %4499 = vmatpush1.msra.mxu0 %v537
    %4500 = vmatprep.subr.mxu0 %v534
    %4501 = vmatpush1.msra.mxu0 %v533
    %4502 = vmatprep.subr.mxu0 %v530
    %4503 = vmatpush1.msra.mxu0 %v529
    %4504 = vmatprep.subr.mxu0 %v526
    %4505 = vmatpush1.msra.mxu0 %v525
    %4506 = vmatprep.subr.mxu0 %v522
    %4507 = vmatpush1.msra.mxu0 %v521
    %4508 = vmatprep.subr.mxu0 0.0
    %4509 = vmatpush2.msra.mxu0 0.0
    %4510 = vmatprep.subr.mxu0 0.0
    %4511 = vmatpush2.msra.mxu0 0.0
    %4512 = vmatprep.subr.mxu0 0.0
    %4513 = vmatpush2.msra.mxu0 0.0
    %4514 = vmatprep.subr.mxu0 0.0
    %4515 = vmatpush2.msra.mxu0 0.0
    %4516 = vmatprep.subr.mxu0 0.0
    %4517 = vmatpush2.msra.mxu0 0.0
    %4518 = vmatprep.subr.mxu0 0.0
    %4519 = vmatpush2.msra.mxu0 0.0
    %4520 = vmatprep.subr.mxu0 0.0
    %4521 = vmatpush2.msra.mxu0 0.0
    %4522 = vmatprep.subr.mxu0 0.0
    %4523 = vmatpush2.msra.mxu0 0.0
    %4524 = vmatprep.subr.mxu0 0.0
    %4525 = vmatpush2.msra.mxu0 0.0
    %4526 = vmatprep.subr.mxu0 0.0
    %4527 = vmatpush2.msra.mxu0 0.0
    %4528 = vmatprep.subr.mxu0 0.0
    %4529 = vmatpush2.msra.mxu0 0.0
    %4530 = vmatprep.subr.mxu0 0.0
    %4531 = vmatpush2.msra.mxu0 0.0
    %4532 = vmatprep.subr.mxu0 0.0
    %4533 = vmatpush2.msra.mxu0 0.0
    %4534 = vmatprep.subr.mxu0 0.0
    %4535 = vmatpush2.msra.mxu0 0.0
    %4536 = vmatprep.subr.mxu0 0.0
    %4537 = vmatpush2.msra.mxu0 0.0
    %4538 = vmatprep.subr.mxu0 0.0
    %4539 = vmatpush2.msra.mxu0 0.0
    %4540 = vmatprep.mubr.f32.mxu0 0.0
    %4541 = vmatmul.mubr.f32.gmra.mxu0 %v4403
    %v4542 = vpop.f32.mrf.mxu0
    %v4543 = vadd.f32 %v781, %v4542
    %v4544 = vpop.f32.mrf.mxu0
    %v4545 = vadd.f32 %v785, %v4544
    %4546 = vdwg.mxu0
    %v4548 = vsel %vm935, %v4203, 0
    %4550 = vmatprep.subr.mxu0 0.0
    %4551 = vmatpush1.msra.mxu0 0.0
    %4552 = vmatprep.subr.mxu0 0.0
    %4553 = vmatpush1.msra.mxu0 0.0
    %4554 = vmatprep.subr.mxu0 0.0
    %4555 = vmatpush1.msra.mxu0 0.0
    %4556 = vmatprep.subr.mxu0 0.0
    %4557 = vmatpush1.msra.mxu0 0.0
    %4558 = vmatprep.subr.mxu0 0.0
    %4559 = vmatpush1.msra.mxu0 0.0
    %4560 = vmatprep.subr.mxu0 0.0
    %4561 = vmatpush1.msra.mxu0 0.0
    %4562 = vmatprep.subr.mxu0 0.0
    %4563 = vmatpush1.msra.mxu0 0.0
    %4564 = vmatprep.subr.mxu0 0.0
    %4565 = vmatpush1.msra.mxu0 0.0
    %4566 = vmatprep.subr.mxu0 0.0
    %4567 = vmatpush1.msra.mxu0 0.0
    %4568 = vmatprep.subr.mxu0 0.0
    %4569 = vmatpush1.msra.mxu0 0.0
    %4570 = vmatprep.subr.mxu0 0.0
    %4571 = vmatpush1.msra.mxu0 0.0
    %4572 = vmatprep.subr.mxu0 0.0
    %4573 = vmatpush1.msra.mxu0 0.0
    %4574 = vmatprep.subr.mxu0 %v564
    %4575 = vmatpush1.msra.mxu0 %v563
    %4576 = vmatprep.subr.mxu0 %v560
    %4577 = vmatpush1.msra.mxu0 %v559
    %4578 = vmatprep.subr.mxu0 %v556
    %4579 = vmatpush1.msra.mxu0 %v555
    %4580 = vmatprep.subr.mxu0 %v552
    %4581 = vmatpush1.msra.mxu0 %v551
    %4582 = vmatprep.subr.mxu0 0.0
    %4583 = vmatpush2.msra.mxu0 0.0
    %4584 = vmatprep.subr.mxu0 0.0
    %4585 = vmatpush2.msra.mxu0 0.0
    %4586 = vmatprep.subr.mxu0 0.0
    %4587 = vmatpush2.msra.mxu0 0.0
    %4588 = vmatprep.subr.mxu0 0.0
    %4589 = vmatpush2.msra.mxu0 0.0
    %4590 = vmatprep.subr.mxu0 0.0
    %4591 = vmatpush2.msra.mxu0 0.0
    %4592 = vmatprep.subr.mxu0 0.0
    %4593 = vmatpush2.msra.mxu0 0.0
    %4594 = vmatprep.subr.mxu0 0.0
    %4595 = vmatpush2.msra.mxu0 0.0
    %4596 = vmatprep.subr.mxu0 0.0
    %4597 = vmatpush2.msra.mxu0 0.0
    %4598 = vmatprep.subr.mxu0 0.0
    %4599 = vmatpush2.msra.mxu0 0.0
    %4600 = vmatprep.subr.mxu0 0.0
    %4601 = vmatpush2.msra.mxu0 0.0
    %4602 = vmatprep.subr.mxu0 0.0
    %4603 = vmatpush2.msra.mxu0 0.0
    %4604 = vmatprep.subr.mxu0 0.0
    %4605 = vmatpush2.msra.mxu0 0.0
    %4606 = vmatprep.subr.mxu0 0.0
    %4607 = vmatpush2.msra.mxu0 0.0
    %4608 = vmatprep.subr.mxu0 0.0
    %4609 = vmatpush2.msra.mxu0 0.0
    %4610 = vmatprep.subr.mxu0 0.0
    %4611 = vmatpush2.msra.mxu0 0.0
    %4612 = vmatprep.subr.mxu0 0.0
    %4613 = vmatpush2.msra.mxu0 0.0
    %4614 = vmatprep.mubr.f32.mxu0 0.0
    %4615 = vmatmul.mubr.f32.gmra.mxu0 %v4548
    %v4616 = vpop.f32.mrf.mxu0
    %v4617 = vadd.f32 0.0, %v4616
    %v4618 = vpop.f32.mrf.mxu0
    %v4619 = vadd.f32 0.0, %v4618
    %4620 = vdwg.mxu0
    %4621 = vmatprep.subr.mxu0 0.0
    %4622 = vmatpush1.msra.mxu0 0.0
    %4623 = vmatprep.subr.mxu0 0.0
    %4624 = vmatpush1.msra.mxu0 0.0
    %4625 = vmatprep.subr.mxu0 0.0
    %4626 = vmatpush1.msra.mxu0 0.0
    %4627 = vmatprep.subr.mxu0 0.0
    %4628 = vmatpush1.msra.mxu0 0.0
    %4629 = vmatprep.subr.mxu0 0.0
    %4630 = vmatpush1.msra.mxu0 0.0
    %4631 = vmatprep.subr.mxu0 0.0
    %4632 = vmatpush1.msra.mxu0 0.0
    %4633 = vmatprep.subr.mxu0 0.0
    %4634 = vmatpush1.msra.mxu0 0.0
    %4635 = vmatprep.subr.mxu0 0.0
    %4636 = vmatpush1.msra.mxu0 0.0
    %4637 = vmatprep.subr.mxu0 0.0
    %4638 = vmatpush1.msra.mxu0 0.0
    %4639 = vmatprep.subr.mxu0 0.0
    %4640 = vmatpush1.msra.mxu0 0.0
    %4641 = vmatprep.subr.mxu0 0.0
    %4642 = vmatpush1.msra.mxu0 0.0
    %4643 = vmatprep.subr.mxu0 0.0
    %4644 = vmatpush1.msra.mxu0 0.0
    %4645 = vmatprep.subr.mxu0 %v566
    %4646 = vmatpush1.msra.mxu0 %v565
    %4647 = vmatprep.subr.mxu0 %v562
    %4648 = vmatpush1.msra.mxu0 %v561
    %4649 = vmatprep.subr.mxu0 %v558
    %4650 = vmatpush1.msra.mxu0 %v557
    %4651 = vmatprep.subr.mxu0 %v554
    %4652 = vmatpush1.msra.mxu0 %v553
    %4653 = vmatprep.subr.mxu0 0.0
    %4654 = vmatpush2.msra.mxu0 0.0
    %4655 = vmatprep.subr.mxu0 0.0
    %4656 = vmatpush2.msra.mxu0 0.0
    %4657 = vmatprep.subr.mxu0 0.0
    %4658 = vmatpush2.msra.mxu0 0.0
    %4659 = vmatprep.subr.mxu0 0.0
    %4660 = vmatpush2.msra.mxu0 0.0
    %4661 = vmatprep.subr.mxu0 0.0
    %4662 = vmatpush2.msra.mxu0 0.0
    %4663 = vmatprep.subr.mxu0 0.0
    %4664 = vmatpush2.msra.mxu0 0.0
    %4665 = vmatprep.subr.mxu0 0.0
    %4666 = vmatpush2.msra.mxu0 0.0
    %4667 = vmatprep.subr.mxu0 0.0
    %4668 = vmatpush2.msra.mxu0 0.0
    %4669 = vmatprep.subr.mxu0 0.0
    %4670 = vmatpush2.msra.mxu0 0.0
    %4671 = vmatprep.subr.mxu0 0.0
    %4672 = vmatpush2.msra.mxu0 0.0
    %4673 = vmatprep.subr.mxu0 0.0
    %4674 = vmatpush2.msra.mxu0 0.0
    %4675 = vmatprep.subr.mxu0 0.0
    %4676 = vmatpush2.msra.mxu0 0.0
    %4677 = vmatprep.subr.mxu0 0.0
    %4678 = vmatpush2.msra.mxu0 0.0
    %4679 = vmatprep.subr.mxu0 0.0
    %4680 = vmatpush2.msra.mxu0 0.0
    %4681 = vmatprep.subr.mxu0 0.0
    %4682 = vmatpush2.msra.mxu0 0.0
    %4683 = vmatprep.subr.mxu0 0.0
    %4684 = vmatpush2.msra.mxu0 0.0
    %4685 = vmatprep.mubr.f32.mxu0 0.0
    %4686 = vmatmul.mubr.f32.gmra.mxu0 %v4548
    %v4687 = vpop.f32.mrf.mxu0
    %v4688 = vadd.f32 0.0, %v4687
    %v4689 = vpop.f32.mrf.mxu0
    %v4690 = vadd.f32 0.0, %v4689
    %4691 = vdwg.mxu0
    %v4692 = vadd.f32 %v4472, %v4617
    %v4693 = vadd.f32 %v4474, %v4619
    %v4694 = vadd.f32 %v4543, %v4688
    %v4695 = vadd.f32 %v4545, %v4690
    %v4696 = vxor.u32 %v4692, 2147483648
    %v4697 = vmul.f32 %v4696, 1.442695
    %v4698 = vpow.pop %v4697
    %v4699 = vadd.f32 %v4698, 1.0
    %v4700 = vrcp.pop %v4699
    %v4701 = vmul.f32 1.0, %v4700
    %v4702 = vxor.u32 %v4693, 2147483648
    %v4703 = vmul.f32 %v4702, 1.442695
    %v4704 = vpow.pop %v4703
    %v4705 = vadd.f32 %v4704, 1.0
    %v4706 = vrcp.pop %v4705
    %v4707 = vmul.f32 1.0, %v4706
    %v4708 = vtanh.pop %v4694
    %v4709 = vxor.u32 %v4695, 2147483648
    %v4710 = vmul.f32 %v4709, 1.442695
    %v4711 = vpow.pop %v4710
    %v4712 = vadd.f32 %v4711, 1.0
    %v4713 = vrcp.pop %v4712
    %v4714 = vmul.f32 1.0, %v4713
    %v4715 = vmul.f32 %v4707, %v4201
    %v4716 = vmul.f32 %v4701, %v4708
    %v4717 = vadd.f32 %v4715, %v4716
    %v4718 = vtanh.pop %v4717
    %v4719 = vmul.f32 %v4714, %v4718
    %v4720 = vld [vmem:[#allocation9] sm:$0xff]
    %v4721 = vld [vmem:[#allocation9 + $0x8] sm:$0xff]
    %v4722 = vld [vmem:[#allocation9 + $0x10] sm:$0xff]
    %v4723 = vld [vmem:[#allocation9 + $0x18] sm:$0xff]
    %v4724 = vld [vmem:[#allocation9 + $0x20] sm:$0xff]
    %v4725 = vld [vmem:[#allocation9 + $0x28] sm:$0xff]
    %v4726 = vld [vmem:[#allocation9 + $0x30] sm:$0xff]
    %v4727 = vld [vmem:[#allocation9 + $0x38] sm:$0xff]
    %v4728 = vld [vmem:[#allocation9 + $0x40] sm:$0xff]
    %v4729 = vld [vmem:[#allocation9 + $0x48] sm:$0xff]
    %v4730 = vld [vmem:[#allocation9 + $0x50] sm:$0xff]
    %v4731 = vld [vmem:[#allocation9 + $0x58] sm:$0xff]
    %v4732 = vld [vmem:[#allocation9 + $0x60] sm:$0xff]
    %v4733 = vld [vmem:[#allocation9 + $0x68] sm:$0xff]
    %v4734 = vld [vmem:[#allocation9 + $0x70] sm:$0xff]
    %v4735 = vld [vmem:[#allocation9 + $0x78] sm:$0xff]
    %v4736 = vld [vmem:[%s9] sm:$0xf]
    %v4738 = vlaneseq
    %v4739 = vshrl.u32 %v4738, 7
    %v4740 = vsub.s32 0, %v4739
    %v4741 = vrot.slane %v4736, %v4740
    %v4742 = vlaneseq
    %v4743 = vshrl.u32 %v4742, 7
    %v4744 = vsub.s32 1, %v4743
    %v4745 = vrot.slane %v4736, %v4744
    %v4746 = vlaneseq
    %v4747 = vshrl.u32 %v4746, 7
    %v4748 = vsub.s32 2, %v4747
    %v4749 = vrot.slane %v4736, %v4748
    %v4750 = vlaneseq
    %v4751 = vshrl.u32 %v4750, 7
    %v4752 = vsub.s32 3, %v4751
    %v4753 = vrot.slane %v4736, %v4752
    %v4759 = vsel %vm935, %v4719, 0
    %4761 = vmatprep.subr.mxu0 0.0
    %4762 = vmatpush1.msra.mxu0 0.0
    %4763 = vmatprep.subr.mxu0 0.0
    %4764 = vmatpush1.msra.mxu0 0.0
    %4765 = vmatprep.subr.mxu0 0.0
    %4766 = vmatpush1.msra.mxu0 0.0
    %4767 = vmatprep.subr.mxu0 0.0
    %4768 = vmatpush1.msra.mxu0 0.0
    %4769 = vmatprep.subr.mxu0 0.0
    %4770 = vmatpush1.msra.mxu0 0.0
    %4771 = vmatprep.subr.mxu0 0.0
    %4772 = vmatpush1.msra.mxu0 0.0
    %4773 = vmatprep.subr.mxu0 0.0
    %4774 = vmatpush1.msra.mxu0 0.0
    %4775 = vmatprep.subr.mxu0 0.0
    %4776 = vmatpush1.msra.mxu0 0.0
    %4777 = vmatprep.subr.mxu0 0.0
    %4778 = vmatpush1.msra.mxu0 0.0
    %4779 = vmatprep.subr.mxu0 0.0
    %4780 = vmatpush1.msra.mxu0 0.0
    %4781 = vmatprep.subr.mxu0 0.0
    %4782 = vmatpush1.msra.mxu0 0.0
    %4783 = vmatprep.subr.mxu0 0.0
    %4784 = vmatpush1.msra.mxu0 0.0
    %4785 = vmatprep.subr.mxu0 %v4733
    %4786 = vmatpush1.msra.mxu0 %v4732
    %4787 = vmatprep.subr.mxu0 %v4729
    %4788 = vmatpush1.msra.mxu0 %v4728
    %4789 = vmatprep.subr.mxu0 %v4725
    %4790 = vmatpush1.msra.mxu0 %v4724
    %4791 = vmatprep.subr.mxu0 %v4721
    %4792 = vmatpush1.msra.mxu0 %v4720
    %4793 = vmatprep.subr.mxu0 0.0
    %4794 = vmatpush2.msra.mxu0 0.0
    %4795 = vmatprep.subr.mxu0 0.0
    %4796 = vmatpush2.msra.mxu0 0.0
    %4797 = vmatprep.subr.mxu0 0.0
    %4798 = vmatpush2.msra.mxu0 0.0
    %4799 = vmatprep.subr.mxu0 0.0
    %4800 = vmatpush2.msra.mxu0 0.0
    %4801 = vmatprep.subr.mxu0 0.0
    %4802 = vmatpush2.msra.mxu0 0.0
    %4803 = vmatprep.subr.mxu0 0.0
    %4804 = vmatpush2.msra.mxu0 0.0
    %4805 = vmatprep.subr.mxu0 0.0
    %4806 = vmatpush2.msra.mxu0 0.0
    %4807 = vmatprep.subr.mxu0 0.0
    %4808 = vmatpush2.msra.mxu0 0.0
    %4809 = vmatprep.subr.mxu0 0.0
    %4810 = vmatpush2.msra.mxu0 0.0
    %4811 = vmatprep.subr.mxu0 0.0
    %4812 = vmatpush2.msra.mxu0 0.0
    %4813 = vmatprep.subr.mxu0 0.0
    %4814 = vmatpush2.msra.mxu0 0.0
    %4815 = vmatprep.subr.mxu0 0.0
    %4816 = vmatpush2.msra.mxu0 0.0
    %4817 = vmatprep.subr.mxu0 0.0
    %4818 = vmatpush2.msra.mxu0 0.0
    %4819 = vmatprep.subr.mxu0 0.0
    %4820 = vmatpush2.msra.mxu0 0.0
    %4821 = vmatprep.subr.mxu0 0.0
    %4822 = vmatpush2.msra.mxu0 0.0
    %4823 = vmatprep.subr.mxu0 0.0
    %4824 = vmatpush2.msra.mxu0 0.0
    %4825 = vmatprep.mubr.f32.mxu0 0.0
    %4826 = vmatmul.mubr.f32.gmra.mxu0 %v4759
    %v4827 = vpop.f32.mrf.mxu0
    %v4828 = vadd.f32 %v4741, %v4827
    %v4829 = vpop.f32.mrf.mxu0
    %v4830 = vadd.f32 %v4745, %v4829
    %4831 = vdwg.mxu0
    %4832 = vmatprep.subr.mxu0 0.0
    %4833 = vmatpush1.msra.mxu0 0.0
    %4834 = vmatprep.subr.mxu0 0.0
    %4835 = vmatpush1.msra.mxu0 0.0
    %4836 = vmatprep.subr.mxu0 0.0
    %4837 = vmatpush1.msra.mxu0 0.0
    %4838 = vmatprep.subr.mxu0 0.0
    %4839 = vmatpush1.msra.mxu0 0.0
    %4840 = vmatprep.subr.mxu0 0.0
    %4841 = vmatpush1.msra.mxu0 0.0
    %4842 = vmatprep.subr.mxu0 0.0
    %4843 = vmatpush1.msra.mxu0 0.0
    %4844 = vmatprep.subr.mxu0 0.0
    %4845 = vmatpush1.msra.mxu0 0.0
    %4846 = vmatprep.subr.mxu0 0.0
    %4847 = vmatpush1.msra.mxu0 0.0
    %4848 = vmatprep.subr.mxu0 0.0
    %4849 = vmatpush1.msra.mxu0 0.0
    %4850 = vmatprep.subr.mxu0 0.0
    %4851 = vmatpush1.msra.mxu0 0.0
    %4852 = vmatprep.subr.mxu0 0.0
    %4853 = vmatpush1.msra.mxu0 0.0
    %4854 = vmatprep.subr.mxu0 0.0
    %4855 = vmatpush1.msra.mxu0 0.0
    %4856 = vmatprep.subr.mxu0 %v4735
    %4857 = vmatpush1.msra.mxu0 %v4734
    %4858 = vmatprep.subr.mxu0 %v4731
    %4859 = vmatpush1.msra.mxu0 %v4730
    %4860 = vmatprep.subr.mxu0 %v4727
    %4861 = vmatpush1.msra.mxu0 %v4726
    %4862 = vmatprep.subr.mxu0 %v4723
    %4863 = vmatpush1.msra.mxu0 %v4722
    %4864 = vmatprep.subr.mxu0 0.0
    %4865 = vmatpush2.msra.mxu0 0.0
    %4866 = vmatprep.subr.mxu0 0.0
    %4867 = vmatpush2.msra.mxu0 0.0
    %4868 = vmatprep.subr.mxu0 0.0
    %4869 = vmatpush2.msra.mxu0 0.0
    %4870 = vmatprep.subr.mxu0 0.0
    %4871 = vmatpush2.msra.mxu0 0.0
    %4872 = vmatprep.subr.mxu0 0.0
    %4873 = vmatpush2.msra.mxu0 0.0
    %4874 = vmatprep.subr.mxu0 0.0
    %4875 = vmatpush2.msra.mxu0 0.0
    %4876 = vmatprep.subr.mxu0 0.0
    %4877 = vmatpush2.msra.mxu0 0.0
    %4878 = vmatprep.subr.mxu0 0.0
    %4879 = vmatpush2.msra.mxu0 0.0
    %4880 = vmatprep.subr.mxu0 0.0
    %4881 = vmatpush2.msra.mxu0 0.0
    %4882 = vmatprep.subr.mxu0 0.0
    %4883 = vmatpush2.msra.mxu0 0.0
    %4884 = vmatprep.subr.mxu0 0.0
    %4885 = vmatpush2.msra.mxu0 0.0
    %4886 = vmatprep.subr.mxu0 0.0
    %4887 = vmatpush2.msra.mxu0 0.0
    %4888 = vmatprep.subr.mxu0 0.0
    %4889 = vmatpush2.msra.mxu0 0.0
    %4890 = vmatprep.subr.mxu0 0.0
    %4891 = vmatpush2.msra.mxu0 0.0
    %4892 = vmatprep.subr.mxu0 0.0
    %4893 = vmatpush2.msra.mxu0 0.0
    %4894 = vmatprep.subr.mxu0 0.0
    %4895 = vmatpush2.msra.mxu0 0.0
    %4896 = vmatprep.mubr.f32.mxu0 0.0
    %4897 = vmatmul.mubr.f32.gmra.mxu0 %v4759
    %v4898 = vpop.f32.mrf.mxu0
    %v4899 = vadd.f32 %v4749, %v4898
    %v4900 = vpop.f32.mrf.mxu0
    %v4901 = vadd.f32 %v4753, %v4900
    %4902 = vdwg.mxu0
    %v4903 = vld [vmem:[#allocation11] sm:$0xff]
    %v4904 = vld [vmem:[#allocation11 + $0x8] sm:$0xff]
    %v4905 = vld [vmem:[#allocation11 + $0x10] sm:$0xff]
    %v4906 = vld [vmem:[#allocation11 + $0x18] sm:$0xff]
    %v4907 = vld [vmem:[#allocation11 + $0x20] sm:$0xff]
    %v4908 = vld [vmem:[#allocation11 + $0x28] sm:$0xff]
    %v4909 = vld [vmem:[#allocation11 + $0x30] sm:$0xff]
    %v4910 = vld [vmem:[#allocation11 + $0x38] sm:$0xff]
    %v4911 = vld [vmem:[#allocation11 + $0x40] sm:$0xff]
    %v4912 = vld [vmem:[#allocation11 + $0x48] sm:$0xff]
    %v4913 = vld [vmem:[#allocation11 + $0x50] sm:$0xff]
    %v4914 = vld [vmem:[#allocation11 + $0x58] sm:$0xff]
    %v4915 = vld [vmem:[#allocation11 + $0x60] sm:$0xff]
    %v4916 = vld [vmem:[#allocation11 + $0x68] sm:$0xff]
    %v4917 = vld [vmem:[#allocation11 + $0x70] sm:$0xff]
    %v4918 = vld [vmem:[#allocation11 + $0x78] sm:$0xff]
    %v4919 = vld [vmem:[#allocation12] sm:$0xff]
    %v4920 = vld [vmem:[#allocation12 + $0x8] sm:$0xff]
    %v4921 = vld [vmem:[#allocation12 + $0x10] sm:$0xff]
    %v4922 = vld [vmem:[#allocation12 + $0x18] sm:$0xff]
    %v4923 = vld [vmem:[#allocation12 + $0x20] sm:$0xff]
    %v4924 = vld [vmem:[#allocation12 + $0x28] sm:$0xff]
    %v4925 = vld [vmem:[#allocation12 + $0x30] sm:$0xff]
    %v4926 = vld [vmem:[#allocation12 + $0x38] sm:$0xff]
    %v4927 = vld [vmem:[#allocation12 + $0x40] sm:$0xff]
    %v4928 = vld [vmem:[#allocation12 + $0x48] sm:$0xff]
    %v4929 = vld [vmem:[#allocation12 + $0x50] sm:$0xff]
    %v4930 = vld [vmem:[#allocation12 + $0x58] sm:$0xff]
    %v4931 = vld [vmem:[#allocation12 + $0x60] sm:$0xff]
    %v4932 = vld [vmem:[#allocation12 + $0x68] sm:$0xff]
    %v4933 = vld [vmem:[#allocation12 + $0x70] sm:$0xff]
    %v4934 = vld [vmem:[#allocation12 + $0x78] sm:$0xff]
    %v4935 = vld [vmem:[#allocation14] sm:$0xff]
    %v4936 = vld [vmem:[#allocation14 + $0x8] sm:$0xff]
    %v4937 = vld [vmem:[#allocation14 + $0x10] sm:$0xff]
    %v4938 = vld [vmem:[#allocation14 + $0x18] sm:$0xff]
    %v4939 = vld [vmem:[#allocation14 + $0x20] sm:$0xff]
    %v4940 = vld [vmem:[#allocation14 + $0x28] sm:$0xff]
    %v4941 = vld [vmem:[#allocation14 + $0x30] sm:$0xff]
    %v4942 = vld [vmem:[#allocation14 + $0x38] sm:$0xff]
    %v4943 = vld [vmem:[#allocation14 + $0x40] sm:$0xff]
    %v4944 = vld [vmem:[#allocation14 + $0x48] sm:$0xff]
    %v4945 = vld [vmem:[#allocation14 + $0x50] sm:$0xff]
    %v4946 = vld [vmem:[#allocation14 + $0x58] sm:$0xff]
    %v4947 = vld [vmem:[#allocation14 + $0x60] sm:$0xff]
    %v4948 = vld [vmem:[#allocation14 + $0x68] sm:$0xff]
    %v4949 = vld [vmem:[#allocation14 + $0x70] sm:$0xff]
    %v4950 = vld [vmem:[#allocation14 + $0x78] sm:$0xff]
    %v4951 = vld [vmem:[#allocation14 + $0x80] sm:$0xff]
    %v4952 = vld [vmem:[#allocation14 + $0x88] sm:$0xff]
    %v4953 = vld [vmem:[#allocation14 + $0x90] sm:$0xff]
    %v4954 = vld [vmem:[#allocation14 + $0x98] sm:$0xff]
    %v4955 = vld [vmem:[#allocation14 + $0xa0] sm:$0xff]
    %v4956 = vld [vmem:[#allocation14 + $0xa8] sm:$0xff]
    %v4957 = vld [vmem:[#allocation14 + $0xb0] sm:$0xff]
    %v4958 = vld [vmem:[#allocation14 + $0xb8] sm:$0xff]
    %v4959 = vld [vmem:[#allocation14 + $0xc0] sm:$0xff]
    %v4960 = vld [vmem:[#allocation14 + $0xc8] sm:$0xff]
    %v4961 = vld [vmem:[#allocation14 + $0xd0] sm:$0xff]
    %v4962 = vld [vmem:[#allocation14 + $0xd8] sm:$0xff]
    %v4963 = vld [vmem:[#allocation14 + $0xe0] sm:$0xff]
    %v4964 = vld [vmem:[#allocation14 + $0xe8] sm:$0xff]
    %v4965 = vld [vmem:[#allocation14 + $0xf0] sm:$0xff]
    %v4966 = vld [vmem:[#allocation14 + $0xf8] sm:$0xff]
    %v4967 = vld [vmem:[%s12] sm:$0xf]
    %4968 = vmatprep.subr.mxu0 0.0
    %4969 = vmatpush1.msra.mxu0 0.0
    %4970 = vmatprep.subr.mxu0 0.0
    %4971 = vmatpush1.msra.mxu0 0.0
    %4972 = vmatprep.subr.mxu0 0.0
    %4973 = vmatpush1.msra.mxu0 0.0
    %4974 = vmatprep.subr.mxu0 0.0
    %4975 = vmatpush1.msra.mxu0 0.0
    %4976 = vmatprep.subr.mxu0 0.0
    %4977 = vmatpush1.msra.mxu0 0.0
    %4978 = vmatprep.subr.mxu0 0.0
    %4979 = vmatpush1.msra.mxu0 0.0
    %4980 = vmatprep.subr.mxu0 0.0
    %4981 = vmatpush1.msra.mxu0 0.0
    %4982 = vmatprep.subr.mxu0 0.0
    %4983 = vmatpush1.msra.mxu0 0.0
    %4984 = vmatprep.subr.mxu0 0.0
    %4985 = vmatpush1.msra.mxu0 0.0
    %4986 = vmatprep.subr.mxu0 0.0
    %4987 = vmatpush1.msra.mxu0 0.0
    %4988 = vmatprep.subr.mxu0 0.0
    %4989 = vmatpush1.msra.mxu0 0.0
    %4990 = vmatprep.subr.mxu0 0.0
    %4991 = vmatpush1.msra.mxu0 0.0
    %4992 = vmatprep.subr.mxu0 %v4916
    %4993 = vmatpush1.msra.mxu0 %v4915
    %4994 = vmatprep.subr.mxu0 %v4912
    %4995 = vmatpush1.msra.mxu0 %v4911
    %4996 = vmatprep.subr.mxu0 %v4908
    %4997 = vmatpush1.msra.mxu0 %v4907
    %4998 = vmatprep.subr.mxu0 %v4904
    %4999 = vmatpush1.msra.mxu0 %v4903
    %5000 = vmatprep.subr.mxu0 0.0
    %5001 = vmatpush2.msra.mxu0 0.0
    %5002 = vmatprep.subr.mxu0 0.0
    %5003 = vmatpush2.msra.mxu0 0.0
    %5004 = vmatprep.subr.mxu0 0.0
    %5005 = vmatpush2.msra.mxu0 0.0
    %5006 = vmatprep.subr.mxu0 0.0
    %5007 = vmatpush2.msra.mxu0 0.0
    %5008 = vmatprep.subr.mxu0 0.0
    %5009 = vmatpush2.msra.mxu0 0.0
    %5010 = vmatprep.subr.mxu0 0.0
    %5011 = vmatpush2.msra.mxu0 0.0
    %5012 = vmatprep.subr.mxu0 0.0
    %5013 = vmatpush2.msra.mxu0 0.0
    %5014 = vmatprep.subr.mxu0 0.0
    %5015 = vmatpush2.msra.mxu0 0.0
    %5016 = vmatprep.subr.mxu0 0.0
    %5017 = vmatpush2.msra.mxu0 0.0
    %5018 = vmatprep.subr.mxu0 0.0
    %5019 = vmatpush2.msra.mxu0 0.0
    %5020 = vmatprep.subr.mxu0 0.0
    %5021 = vmatpush2.msra.mxu0 0.0
    %5022 = vmatprep.subr.mxu0 0.0
    %5023 = vmatpush2.msra.mxu0 0.0
    %5024 = vmatprep.subr.mxu0 0.0
    %5025 = vmatpush2.msra.mxu0 0.0
    %5026 = vmatprep.subr.mxu0 0.0
    %5027 = vmatpush2.msra.mxu0 0.0
    %5028 = vmatprep.subr.mxu0 0.0
    %5029 = vmatpush2.msra.mxu0 0.0
    %5030 = vmatprep.subr.mxu0 0.0
    %5031 = vmatpush2.msra.mxu0 0.0
    %5032 = vmatprep.mubr.f32.mxu0 0.0
    %5033 = vmatmul.mubr.f32.gmra.mxu0 %v936
    %v5034 = vpop.f32.mrf.mxu0
    %v5035 = vadd.f32 0.0, %v5034
    %v5036 = vpop.f32.mrf.mxu0
    %v5037 = vadd.f32 0.0, %v5036
    %5038 = vdwg.mxu0
    %5039 = vmatprep.subr.mxu0 0.0
    %5040 = vmatpush1.msra.mxu0 0.0
    %5041 = vmatprep.subr.mxu0 0.0
    %5042 = vmatpush1.msra.mxu0 0.0
    %5043 = vmatprep.subr.mxu0 0.0
    %5044 = vmatpush1.msra.mxu0 0.0
    %5045 = vmatprep.subr.mxu0 0.0
    %5046 = vmatpush1.msra.mxu0 0.0
    %5047 = vmatprep.subr.mxu0 0.0
    %5048 = vmatpush1.msra.mxu0 0.0
    %5049 = vmatprep.subr.mxu0 0.0
    %5050 = vmatpush1.msra.mxu0 0.0
    %5051 = vmatprep.subr.mxu0 0.0
    %5052 = vmatpush1.msra.mxu0 0.0
    %5053 = vmatprep.subr.mxu0 0.0
    %5054 = vmatpush1.msra.mxu0 0.0
    %5055 = vmatprep.subr.mxu0 0.0
    %5056 = vmatpush1.msra.mxu0 0.0
    %5057 = vmatprep.subr.mxu0 0.0
    %5058 = vmatpush1.msra.mxu0 0.0
    %5059 = vmatprep.subr.mxu0 0.0
    %5060 = vmatpush1.msra.mxu0 0.0
    %5061 = vmatprep.subr.mxu0 0.0
    %5062 = vmatpush1.msra.mxu0 0.0
    %5063 = vmatprep.subr.mxu0 %v4918
    %5064 = vmatpush1.msra.mxu0 %v4917
    %5065 = vmatprep.subr.mxu0 %v4914
    %5066 = vmatpush1.msra.mxu0 %v4913
    %5067 = vmatprep.subr.mxu0 %v4910
    %5068 = vmatpush1.msra.mxu0 %v4909
    %5069 = vmatprep.subr.mxu0 %v4906
    %5070 = vmatpush1.msra.mxu0 %v4905
    %5071 = vmatprep.subr.mxu0 0.0
    %5072 = vmatpush2.msra.mxu0 0.0
    %5073 = vmatprep.subr.mxu0 0.0
    %5074 = vmatpush2.msra.mxu0 0.0
    %5075 = vmatprep.subr.mxu0 0.0
    %5076 = vmatpush2.msra.mxu0 0.0
    %5077 = vmatprep.subr.mxu0 0.0
    %5078 = vmatpush2.msra.mxu0 0.0
    %5079 = vmatprep.subr.mxu0 0.0
    %5080 = vmatpush2.msra.mxu0 0.0
    %5081 = vmatprep.subr.mxu0 0.0
    %5082 = vmatpush2.msra.mxu0 0.0
    %5083 = vmatprep.subr.mxu0 0.0
    %5084 = vmatpush2.msra.mxu0 0.0
    %5085 = vmatprep.subr.mxu0 0.0
    %5086 = vmatpush2.msra.mxu0 0.0
    %5087 = vmatprep.subr.mxu0 0.0
    %5088 = vmatpush2.msra.mxu0 0.0
    %5089 = vmatprep.subr.mxu0 0.0
    %5090 = vmatpush2.msra.mxu0 0.0
    %5091 = vmatprep.subr.mxu0 0.0
    %5092 = vmatpush2.msra.mxu0 0.0
    %5093 = vmatprep.subr.mxu0 0.0
    %5094 = vmatpush2.msra.mxu0 0.0
    %5095 = vmatprep.subr.mxu0 0.0
    %5096 = vmatpush2.msra.mxu0 0.0
    %5097 = vmatprep.subr.mxu0 0.0
    %5098 = vmatpush2.msra.mxu0 0.0
    %5099 = vmatprep.subr.mxu0 0.0
    %5100 = vmatpush2.msra.mxu0 0.0
    %5101 = vmatprep.subr.mxu0 0.0
    %5102 = vmatpush2.msra.mxu0 0.0
    %5103 = vmatprep.mubr.f32.mxu0 0.0
    %5104 = vmatmul.mubr.f32.gmra.mxu0 %v936
    %v5105 = vpop.f32.mrf.mxu0
    %v5106 = vadd.f32 0.0, %v5105
    %v5107 = vpop.f32.mrf.mxu0
    %v5108 = vadd.f32 0.0, %v5107
    %5109 = vdwg.mxu0
    %v5110 = vadd.f32 %v4828, %v5035
    %v5111 = vadd.f32 %v4830, %v5037
    %v5112 = vadd.f32 %v4899, %v5106
    %v5113 = vadd.f32 %v4901, %v5108
    %v5114 = vxor.u32 %v5110, 2147483648
    %v5115 = vmul.f32 %v5114, 1.442695
    %v5116 = vpow.pop %v5115
    %v5117 = vadd.f32 %v5116, 1.0
    %v5118 = vrcp.pop %v5117
    %v5119 = vmul.f32 1.0, %v5118
    %v5120 = vxor.u32 %v5111, 2147483648
    %v5121 = vmul.f32 %v5120, 1.442695
    %v5122 = vpow.pop %v5121
    %v5123 = vadd.f32 %v5122, 1.0
    %v5124 = vrcp.pop %v5123
    %v5125 = vmul.f32 1.0, %v5124
    %v5126 = vtanh.pop %v5112
    %v5127 = vxor.u32 %v5113, 2147483648
    %v5128 = vmul.f32 %v5127, 1.442695
    %v5129 = vpow.pop %v5128
    %v5130 = vadd.f32 %v5129, 1.0
    %v5131 = vrcp.pop %v5130
    %v5132 = vmul.f32 1.0, %v5131
    %v5133 = vmul.f32 %v5125, 0.0
    %v5134 = vmul.f32 %v5119, %v5126
    %v5135 = vadd.f32 %v5133, %v5134
    %v5136 = vtanh.pop %v5135
    %v5137 = vmul.f32 %v5132, %v5136
    %v5139 = vlaneseq
    %v5140 = vshrl.u32 %v5139, 7
    %v5141 = vsub.s32 0, %v5140
    %v5142 = vrot.slane %v4967, %v5141
    %v5143 = vlaneseq
    %v5144 = vshrl.u32 %v5143, 7
    %v5145 = vsub.s32 1, %v5144
    %v5146 = vrot.slane %v4967, %v5145
    %v5147 = vlaneseq
    %v5148 = vshrl.u32 %v5147, 7
    %v5149 = vsub.s32 2, %v5148
    %v5150 = vrot.slane %v4967, %v5149
    %v5151 = vlaneseq
    %v5152 = vshrl.u32 %v5151, 7
    %v5153 = vsub.s32 3, %v5152
    %v5154 = vrot.slane %v4967, %v5153
    %v5160 = vsel %vm935, %v5137, 0
    %5162 = vmatprep.subr.mxu0 0.0
    %5163 = vmatpush1.msra.mxu0 0.0
    %5164 = vmatprep.subr.mxu0 0.0
    %5165 = vmatpush1.msra.mxu0 0.0
    %5166 = vmatprep.subr.mxu0 0.0
    %5167 = vmatpush1.msra.mxu0 0.0
    %5168 = vmatprep.subr.mxu0 0.0
    %5169 = vmatpush1.msra.mxu0 0.0
    %5170 = vmatprep.subr.mxu0 0.0
    %5171 = vmatpush1.msra.mxu0 0.0
    %5172 = vmatprep.subr.mxu0 0.0
    %5173 = vmatpush1.msra.mxu0 0.0
    %5174 = vmatprep.subr.mxu0 0.0
    %5175 = vmatpush1.msra.mxu0 0.0
    %5176 = vmatprep.subr.mxu0 0.0
    %5177 = vmatpush1.msra.mxu0 0.0
    %5178 = vmatprep.subr.mxu0 0.0
    %5179 = vmatpush1.msra.mxu0 0.0
    %5180 = vmatprep.subr.mxu0 0.0
    %5181 = vmatpush1.msra.mxu0 0.0
    %5182 = vmatprep.subr.mxu0 0.0
    %5183 = vmatpush1.msra.mxu0 0.0
    %5184 = vmatprep.subr.mxu0 0.0
    %5185 = vmatpush1.msra.mxu0 0.0
    %5186 = vmatprep.subr.mxu0 %v4932
    %5187 = vmatpush1.msra.mxu0 %v4931
    %5188 = vmatprep.subr.mxu0 %v4928
    %5189 = vmatpush1.msra.mxu0 %v4927
    %5190 = vmatprep.subr.mxu0 %v4924
    %5191 = vmatpush1.msra.mxu0 %v4923
    %5192 = vmatprep.subr.mxu0 %v4920
    %5193 = vmatpush1.msra.mxu0 %v4919
    %5194 = vmatprep.subr.mxu0 0.0
    %5195 = vmatpush2.msra.mxu0 0.0
    %5196 = vmatprep.subr.mxu0 0.0
    %5197 = vmatpush2.msra.mxu0 0.0
    %5198 = vmatprep.subr.mxu0 0.0
    %5199 = vmatpush2.msra.mxu0 0.0
    %5200 = vmatprep.subr.mxu0 0.0
    %5201 = vmatpush2.msra.mxu0 0.0
    %5202 = vmatprep.subr.mxu0 0.0
    %5203 = vmatpush2.msra.mxu0 0.0
    %5204 = vmatprep.subr.mxu0 0.0
    %5205 = vmatpush2.msra.mxu0 0.0
    %5206 = vmatprep.subr.mxu0 0.0
    %5207 = vmatpush2.msra.mxu0 0.0
    %5208 = vmatprep.subr.mxu0 0.0
    %5209 = vmatpush2.msra.mxu0 0.0
    %5210 = vmatprep.subr.mxu0 0.0
    %5211 = vmatpush2.msra.mxu0 0.0
    %5212 = vmatprep.subr.mxu0 0.0
    %5213 = vmatpush2.msra.mxu0 0.0
    %5214 = vmatprep.subr.mxu0 0.0
    %5215 = vmatpush2.msra.mxu0 0.0
    %5216 = vmatprep.subr.mxu0 0.0
    %5217 = vmatpush2.msra.mxu0 0.0
    %5218 = vmatprep.subr.mxu0 0.0
    %5219 = vmatpush2.msra.mxu0 0.0
    %5220 = vmatprep.subr.mxu0 0.0
    %5221 = vmatpush2.msra.mxu0 0.0
    %5222 = vmatprep.subr.mxu0 0.0
    %5223 = vmatpush2.msra.mxu0 0.0
    %5224 = vmatprep.subr.mxu0 0.0
    %5225 = vmatpush2.msra.mxu0 0.0
    %5226 = vmatprep.mubr.f32.mxu0 0.0
    %5227 = vmatmul.mubr.f32.gmra.mxu0 %v5160
    %v5228 = vpop.f32.mrf.mxu0
    %v5229 = vadd.f32 %v5142, %v5228
    %v5230 = vpop.f32.mrf.mxu0
    %v5231 = vadd.f32 %v5146, %v5230
    %5232 = vdwg.mxu0
    %5233 = vmatprep.subr.mxu0 0.0
    %5234 = vmatpush1.msra.mxu0 0.0
    %5235 = vmatprep.subr.mxu0 0.0
    %5236 = vmatpush1.msra.mxu0 0.0
    %5237 = vmatprep.subr.mxu0 0.0
    %5238 = vmatpush1.msra.mxu0 0.0
    %5239 = vmatprep.subr.mxu0 0.0
    %5240 = vmatpush1.msra.mxu0 0.0
    %5241 = vmatprep.subr.mxu0 0.0
    %5242 = vmatpush1.msra.mxu0 0.0
    %5243 = vmatprep.subr.mxu0 0.0
    %5244 = vmatpush1.msra.mxu0 0.0
    %5245 = vmatprep.subr.mxu0 0.0
    %5246 = vmatpush1.msra.mxu0 0.0
    %5247 = vmatprep.subr.mxu0 0.0
    %5248 = vmatpush1.msra.mxu0 0.0
    %5249 = vmatprep.subr.mxu0 0.0
    %5250 = vmatpush1.msra.mxu0 0.0
    %5251 = vmatprep.subr.mxu0 0.0
    %5252 = vmatpush1.msra.mxu0 0.0
    %5253 = vmatprep.subr.mxu0 0.0
    %5254 = vmatpush1.msra.mxu0 0.0
    %5255 = vmatprep.subr.mxu0 0.0
    %5256 = vmatpush1.msra.mxu0 0.0
    %5257 = vmatprep.subr.mxu0 %v4934
    %5258 = vmatpush1.msra.mxu0 %v4933
    %5259 = vmatprep.subr.mxu0 %v4930
    %5260 = vmatpush1.msra.mxu0 %v4929
    %5261 = vmatprep.subr.mxu0 %v4926
    %5262 = vmatpush1.msra.mxu0 %v4925
    %5263 = vmatprep.subr.mxu0 %v4922
    %5264 = vmatpush1.msra.mxu0 %v4921
    %5265 = vmatprep.subr.mxu0 0.0
    %5266 = vmatpush2.msra.mxu0 0.0
    %5267 = vmatprep.subr.mxu0 0.0
    %5268 = vmatpush2.msra.mxu0 0.0
    %5269 = vmatprep.subr.mxu0 0.0
    %5270 = vmatpush2.msra.mxu0 0.0
    %5271 = vmatprep.subr.mxu0 0.0
    %5272 = vmatpush2.msra.mxu0 0.0
    %5273 = vmatprep.subr.mxu0 0.0
    %5274 = vmatpush2.msra.mxu0 0.0
    %5275 = vmatprep.subr.mxu0 0.0
    %5276 = vmatpush2.msra.mxu0 0.0
    %5277 = vmatprep.subr.mxu0 0.0
    %5278 = vmatpush2.msra.mxu0 0.0
    %5279 = vmatprep.subr.mxu0 0.0
    %5280 = vmatpush2.msra.mxu0 0.0
    %5281 = vmatprep.subr.mxu0 0.0
    %5282 = vmatpush2.msra.mxu0 0.0
    %5283 = vmatprep.subr.mxu0 0.0
    %5284 = vmatpush2.msra.mxu0 0.0
    %5285 = vmatprep.subr.mxu0 0.0
    %5286 = vmatpush2.msra.mxu0 0.0
    %5287 = vmatprep.subr.mxu0 0.0
    %5288 = vmatpush2.msra.mxu0 0.0
    %5289 = vmatprep.subr.mxu0 0.0
    %5290 = vmatpush2.msra.mxu0 0.0
    %5291 = vmatprep.subr.mxu0 0.0
    %5292 = vmatpush2.msra.mxu0 0.0
    %5293 = vmatprep.subr.mxu0 0.0
    %5294 = vmatpush2.msra.mxu0 0.0
    %5295 = vmatprep.subr.mxu0 0.0
    %5296 = vmatpush2.msra.mxu0 0.0
    %5297 = vmatprep.mubr.f32.mxu0 0.0
    %5298 = vmatmul.mubr.f32.gmra.mxu0 %v5160
    %v5299 = vpop.f32.mrf.mxu0
    %v5300 = vadd.f32 %v5150, %v5299
    %v5301 = vpop.f32.mrf.mxu0
    %v5302 = vadd.f32 %v5154, %v5301
    %5303 = vdwg.mxu0
    %5304 = vmatprep.subr.mxu0 0.0
    %5305 = vmatpush1.msra.mxu0 0.0
    %5306 = vmatprep.subr.mxu0 0.0
    %5307 = vmatpush1.msra.mxu0 0.0
    %5308 = vmatprep.subr.mxu0 0.0
    %5309 = vmatpush1.msra.mxu0 0.0
    %5310 = vmatprep.subr.mxu0 0.0
    %5311 = vmatpush1.msra.mxu0 0.0
    %5312 = vmatprep.subr.mxu0 0.0
    %5313 = vmatpush1.msra.mxu0 0.0
    %5314 = vmatprep.subr.mxu0 0.0
    %5315 = vmatpush1.msra.mxu0 0.0
    %5316 = vmatprep.subr.mxu0 0.0
    %5317 = vmatpush1.msra.mxu0 0.0
    %5318 = vmatprep.subr.mxu0 0.0
    %5319 = vmatpush1.msra.mxu0 0.0
    %5320 = vmatprep.subr.mxu0 %v4964
    %5321 = vmatpush1.msra.mxu0 %v4963
    %5322 = vmatprep.subr.mxu0 %v4960
    %5323 = vmatpush1.msra.mxu0 %v4959
    %5324 = vmatprep.subr.mxu0 %v4956
    %5325 = vmatpush1.msra.mxu0 %v4955
    %5326 = vmatprep.subr.mxu0 %v4952
    %5327 = vmatpush1.msra.mxu0 %v4951
    %5328 = vmatprep.subr.mxu0 %v4948
    %5329 = vmatpush1.msra.mxu0 %v4947
    %5330 = vmatprep.subr.mxu0 %v4944
    %5331 = vmatpush1.msra.mxu0 %v4943
    %5332 = vmatprep.subr.mxu0 %v4940
    %5333 = vmatpush1.msra.mxu0 %v4939
    %5334 = vmatprep.subr.mxu0 %v4936
    %5335 = vmatpush1.msra.mxu0 %v4935
    %5336 = vmatprep.subr.mxu0 0.0
    %5337 = vmatpush2.msra.mxu0 0.0
    %5338 = vmatprep.subr.mxu0 0.0
    %5339 = vmatpush2.msra.mxu0 0.0
    %5340 = vmatprep.subr.mxu0 0.0
    %5341 = vmatpush2.msra.mxu0 0.0
    %5342 = vmatprep.subr.mxu0 0.0
    %5343 = vmatpush2.msra.mxu0 0.0
    %5344 = vmatprep.subr.mxu0 0.0
    %5345 = vmatpush2.msra.mxu0 0.0
    %5346 = vmatprep.subr.mxu0 0.0
    %5347 = vmatpush2.msra.mxu0 0.0
    %5348 = vmatprep.subr.mxu0 0.0
    %5349 = vmatpush2.msra.mxu0 0.0
    %5350 = vmatprep.subr.mxu0 0.0
    %5351 = vmatpush2.msra.mxu0 0.0
    %5352 = vmatprep.subr.mxu0 0.0
    %5353 = vmatpush2.msra.mxu0 0.0
    %5354 = vmatprep.subr.mxu0 0.0
    %5355 = vmatpush2.msra.mxu0 0.0
    %5356 = vmatprep.subr.mxu0 0.0
    %5357 = vmatpush2.msra.mxu0 0.0
    %5358 = vmatprep.subr.mxu0 0.0
    %5359 = vmatpush2.msra.mxu0 0.0
    %5360 = vmatprep.subr.mxu0 0.0
    %5361 = vmatpush2.msra.mxu0 0.0
    %5362 = vmatprep.subr.mxu0 0.0
    %5363 = vmatpush2.msra.mxu0 0.0
    %5364 = vmatprep.subr.mxu0 0.0
    %5365 = vmatpush2.msra.mxu0 0.0
    %5366 = vmatprep.subr.mxu0 0.0
    %5367 = vmatpush2.msra.mxu0 0.0
    %5368 = vmatprep.mubr.f32.mxu0 0.0
    %5369 = vmatmul.mubr.f32.gmra.mxu0 %v571
    %v5370 = vpop.f32.mrf.mxu0
    %v5371 = vadd.f32 0.0, %v5370
    %v5372 = vpop.f32.mrf.mxu0
    %v5373 = vadd.f32 0.0, %v5372
    %5374 = vdwg.mxu0
    %5375 = vmatprep.subr.mxu0 0.0
    %5376 = vmatpush1.msra.mxu0 0.0
    %5377 = vmatprep.subr.mxu0 0.0
    %5378 = vmatpush1.msra.mxu0 0.0
    %5379 = vmatprep.subr.mxu0 0.0
    %5380 = vmatpush1.msra.mxu0 0.0
    %5381 = vmatprep.subr.mxu0 0.0
    %5382 = vmatpush1.msra.mxu0 0.0
    %5383 = vmatprep.subr.mxu0 0.0
    %5384 = vmatpush1.msra.mxu0 0.0
    %5385 = vmatprep.subr.mxu0 0.0
    %5386 = vmatpush1.msra.mxu0 0.0
    %5387 = vmatprep.subr.mxu0 0.0
    %5388 = vmatpush1.msra.mxu0 0.0
    %5389 = vmatprep.subr.mxu0 0.0
    %5390 = vmatpush1.msra.mxu0 0.0
    %5391 = vmatprep.subr.mxu0 %v4966
    %5392 = vmatpush1.msra.mxu0 %v4965
    %5393 = vmatprep.subr.mxu0 %v4962
    %5394 = vmatpush1.msra.mxu0 %v4961
    %5395 = vmatprep.subr.mxu0 %v4958
    %5396 = vmatpush1.msra.mxu0 %v4957
    %5397 = vmatprep.subr.mxu0 %v4954
    %5398 = vmatpush1.msra.mxu0 %v4953
    %5399 = vmatprep.subr.mxu0 %v4950
    %5400 = vmatpush1.msra.mxu0 %v4949
    %5401 = vmatprep.subr.mxu0 %v4946
    %5402 = vmatpush1.msra.mxu0 %v4945
    %5403 = vmatprep.subr.mxu0 %v4942
    %5404 = vmatpush1.msra.mxu0 %v4941
    %5405 = vmatprep.subr.mxu0 %v4938
    %5406 = vmatpush1.msra.mxu0 %v4937
    %5407 = vmatprep.subr.mxu0 0.0
    %5408 = vmatpush2.msra.mxu0 0.0
    %5409 = vmatprep.subr.mxu0 0.0
    %5410 = vmatpush2.msra.mxu0 0.0
    %5411 = vmatprep.subr.mxu0 0.0
    %5412 = vmatpush2.msra.mxu0 0.0
    %5413 = vmatprep.subr.mxu0 0.0
    %5414 = vmatpush2.msra.mxu0 0.0
    %5415 = vmatprep.subr.mxu0 0.0
    %5416 = vmatpush2.msra.mxu0 0.0
    %5417 = vmatprep.subr.mxu0 0.0
    %5418 = vmatpush2.msra.mxu0 0.0
    %5419 = vmatprep.subr.mxu0 0.0
    %5420 = vmatpush2.msra.mxu0 0.0
    %5421 = vmatprep.subr.mxu0 0.0
    %5422 = vmatpush2.msra.mxu0 0.0
    %5423 = vmatprep.subr.mxu0 0.0
    %5424 = vmatpush2.msra.mxu0 0.0
    %5425 = vmatprep.subr.mxu0 0.0
    %5426 = vmatpush2.msra.mxu0 0.0
    %5427 = vmatprep.subr.mxu0 0.0
    %5428 = vmatpush2.msra.mxu0 0.0
    %5429 = vmatprep.subr.mxu0 0.0
    %5430 = vmatpush2.msra.mxu0 0.0
    %5431 = vmatprep.subr.mxu0 0.0
    %5432 = vmatpush2.msra.mxu0 0.0
    %5433 = vmatprep.subr.mxu0 0.0
    %5434 = vmatpush2.msra.mxu0 0.0
    %5435 = vmatprep.subr.mxu0 0.0
    %5436 = vmatpush2.msra.mxu0 0.0
    %5437 = vmatprep.subr.mxu0 0.0
    %5438 = vmatpush2.msra.mxu0 0.0
    %5439 = vmatprep.mubr.f32.mxu0 0.0
    %5440 = vmatmul.mubr.f32.gmra.mxu0 %v571
    %v5441 = vpop.f32.mrf.mxu0
    %v5442 = vadd.f32 0.0, %v5441
    %v5443 = vpop.f32.mrf.mxu0
    %v5444 = vadd.f32 0.0, %v5443
    %5445 = vdwg.mxu0
    %v5446 = vadd.f32 %v5229, %v5371
    %v5447 = vadd.f32 %v5231, %v5373
    %v5448 = vadd.f32 %v5300, %v5442
    %v5449 = vadd.f32 %v5302, %v5444
    %v5450 = vxor.u32 %v5446, 2147483648
    %v5451 = vmul.f32 %v5450, 1.442695
    %v5452 = vpow.pop %v5451
    %v5453 = vadd.f32 %v5452, 1.0
    %v5454 = vrcp.pop %v5453
    %v5455 = vmul.f32 1.0, %v5454
    %v5456 = vxor.u32 %v5447, 2147483648
    %v5457 = vmul.f32 %v5456, 1.442695
    %v5458 = vpow.pop %v5457
    %v5459 = vadd.f32 %v5458, 1.0
    %v5460 = vrcp.pop %v5459
    %v5461 = vmul.f32 1.0, %v5460
    %v5462 = vtanh.pop %v5448
    %v5463 = vxor.u32 %v5449, 2147483648
    %v5464 = vmul.f32 %v5463, 1.442695
    %v5465 = vpow.pop %v5464
    %v5466 = vadd.f32 %v5465, 1.0
    %v5467 = vrcp.pop %v5466
    %v5468 = vmul.f32 1.0, %v5467
    %v5469 = vmul.f32 %v5461, 0.0
    %v5470 = vmul.f32 %v5455, %v5462
    %v5471 = vadd.f32 %v5469, %v5470
    %v5472 = vtanh.pop %v5471
    %v5473 = vmul.f32 %v5468, %v5472
    %vm5474 = vcmask 517120
    %5475 = vst.msk [vmem:[#allocation3] sm:$0x3] %vm5474, %v5473
    %5476 = vmatprep.subr.mxu0 0.0
    %5477 = vmatpush1.msra.mxu0 0.0
    %5478 = vmatprep.subr.mxu0 0.0
    %5479 = vmatpush1.msra.mxu0 0.0
    %5480 = vmatprep.subr.mxu0 0.0
    %5481 = vmatpush1.msra.mxu0 0.0
    %5482 = vmatprep.subr.mxu0 0.0
    %5483 = vmatpush1.msra.mxu0 0.0
    %5484 = vmatprep.subr.mxu0 0.0
    %5485 = vmatpush1.msra.mxu0 0.0
    %5486 = vmatprep.subr.mxu0 0.0
    %5487 = vmatpush1.msra.mxu0 0.0
    %5488 = vmatprep.subr.mxu0 0.0
    %5489 = vmatpush1.msra.mxu0 0.0
    %5490 = vmatprep.subr.mxu0 0.0
    %5491 = vmatpush1.msra.mxu0 0.0
    %5492 = vmatprep.subr.mxu0 0.0
    %5493 = vmatpush1.msra.mxu0 0.0
    %5494 = vmatprep.subr.mxu0 0.0
    %5495 = vmatpush1.msra.mxu0 0.0
    %5496 = vmatprep.subr.mxu0 0.0
    %5497 = vmatpush1.msra.mxu0 0.0
    %5498 = vmatprep.subr.mxu0 0.0
    %5499 = vmatpush1.msra.mxu0 0.0
    %5500 = vmatprep.subr.mxu0 %v4916
    %5501 = vmatpush1.msra.mxu0 %v4915
    %5502 = vmatprep.subr.mxu0 %v4912
    %5503 = vmatpush1.msra.mxu0 %v4911
    %5504 = vmatprep.subr.mxu0 %v4908
    %5505 = vmatpush1.msra.mxu0 %v4907
    %5506 = vmatprep.subr.mxu0 %v4904
    %5507 = vmatpush1.msra.mxu0 %v4903
    %5508 = vmatprep.subr.mxu0 0.0
    %5509 = vmatpush2.msra.mxu0 0.0
    %5510 = vmatprep.subr.mxu0 0.0
    %5511 = vmatpush2.msra.mxu0 0.0
    %5512 = vmatprep.subr.mxu0 0.0
    %5513 = vmatpush2.msra.mxu0 0.0
    %5514 = vmatprep.subr.mxu0 0.0
    %5515 = vmatpush2.msra.mxu0 0.0
    %5516 = vmatprep.subr.mxu0 0.0
    %5517 = vmatpush2.msra.mxu0 0.0
    %5518 = vmatprep.subr.mxu0 0.0
    %5519 = vmatpush2.msra.mxu0 0.0
    %5520 = vmatprep.subr.mxu0 0.0
    %5521 = vmatpush2.msra.mxu0 0.0
    %5522 = vmatprep.subr.mxu0 0.0
    %5523 = vmatpush2.msra.mxu0 0.0
    %5524 = vmatprep.subr.mxu0 0.0
    %5525 = vmatpush2.msra.mxu0 0.0
    %5526 = vmatprep.subr.mxu0 0.0
    %5527 = vmatpush2.msra.mxu0 0.0
    %5528 = vmatprep.subr.mxu0 0.0
    %5529 = vmatpush2.msra.mxu0 0.0
    %5530 = vmatprep.subr.mxu0 0.0
    %5531 = vmatpush2.msra.mxu0 0.0
    %5532 = vmatprep.subr.mxu0 0.0
    %5533 = vmatpush2.msra.mxu0 0.0
    %5534 = vmatprep.subr.mxu0 0.0
    %5535 = vmatpush2.msra.mxu0 0.0
    %5536 = vmatprep.subr.mxu0 0.0
    %5537 = vmatpush2.msra.mxu0 0.0
    %5538 = vmatprep.subr.mxu0 0.0
    %5539 = vmatpush2.msra.mxu0 0.0
    %5540 = vmatprep.mubr.f32.mxu0 0.0
    %5541 = vmatmul.mubr.f32.gmra.mxu0 %v5160
    %v5542 = vpop.f32.mrf.mxu0
    %v5543 = vadd.f32 0.0, %v5542
    %v5544 = vpop.f32.mrf.mxu0
    %v5545 = vadd.f32 0.0, %v5544
    %5546 = vdwg.mxu0
    %5547 = vmatprep.subr.mxu0 0.0
    %5548 = vmatpush1.msra.mxu0 0.0
    %5549 = vmatprep.subr.mxu0 0.0
    %5550 = vmatpush1.msra.mxu0 0.0
    %5551 = vmatprep.subr.mxu0 0.0
    %5552 = vmatpush1.msra.mxu0 0.0
    %5553 = vmatprep.subr.mxu0 0.0
    %5554 = vmatpush1.msra.mxu0 0.0
    %5555 = vmatprep.subr.mxu0 0.0
    %5556 = vmatpush1.msra.mxu0 0.0
    %5557 = vmatprep.subr.mxu0 0.0
    %5558 = vmatpush1.msra.mxu0 0.0
    %5559 = vmatprep.subr.mxu0 0.0
    %5560 = vmatpush1.msra.mxu0 0.0
    %5561 = vmatprep.subr.mxu0 0.0
    %5562 = vmatpush1.msra.mxu0 0.0
    %5563 = vmatprep.subr.mxu0 0.0
    %5564 = vmatpush1.msra.mxu0 0.0
    %5565 = vmatprep.subr.mxu0 0.0
    %5566 = vmatpush1.msra.mxu0 0.0
    %5567 = vmatprep.subr.mxu0 0.0
    %5568 = vmatpush1.msra.mxu0 0.0
    %5569 = vmatprep.subr.mxu0 0.0
    %5570 = vmatpush1.msra.mxu0 0.0
    %5571 = vmatprep.subr.mxu0 %v4918
    %5572 = vmatpush1.msra.mxu0 %v4917
    %5573 = vmatprep.subr.mxu0 %v4914
    %5574 = vmatpush1.msra.mxu0 %v4913
    %5575 = vmatprep.subr.mxu0 %v4910
    %5576 = vmatpush1.msra.mxu0 %v4909
    %5577 = vmatprep.subr.mxu0 %v4906
    %5578 = vmatpush1.msra.mxu0 %v4905
    %5579 = vmatprep.subr.mxu0 0.0
    %5580 = vmatpush2.msra.mxu0 0.0
    %5581 = vmatprep.subr.mxu0 0.0
    %5582 = vmatpush2.msra.mxu0 0.0
    %5583 = vmatprep.subr.mxu0 0.0
    %5584 = vmatpush2.msra.mxu0 0.0
    %5585 = vmatprep.subr.mxu0 0.0
    %5586 = vmatpush2.msra.mxu0 0.0
    %5587 = vmatprep.subr.mxu0 0.0
    %5588 = vmatpush2.msra.mxu0 0.0
    %5589 = vmatprep.subr.mxu0 0.0
    %5590 = vmatpush2.msra.mxu0 0.0
    %5591 = vmatprep.subr.mxu0 0.0
    %5592 = vmatpush2.msra.mxu0 0.0
    %5593 = vmatprep.subr.mxu0 0.0
    %5594 = vmatpush2.msra.mxu0 0.0
    %5595 = vmatprep.subr.mxu0 0.0
    %5596 = vmatpush2.msra.mxu0 0.0
    %5597 = vmatprep.subr.mxu0 0.0
    %5598 = vmatpush2.msra.mxu0 0.0
    %5599 = vmatprep.subr.mxu0 0.0
    %5600 = vmatpush2.msra.mxu0 0.0
    %5601 = vmatprep.subr.mxu0 0.0
    %5602 = vmatpush2.msra.mxu0 0.0
    %5603 = vmatprep.subr.mxu0 0.0
    %5604 = vmatpush2.msra.mxu0 0.0
    %5605 = vmatprep.subr.mxu0 0.0
    %5606 = vmatpush2.msra.mxu0 0.0
    %5607 = vmatprep.subr.mxu0 0.0
    %5608 = vmatpush2.msra.mxu0 0.0
    %5609 = vmatprep.subr.mxu0 0.0
    %5610 = vmatpush2.msra.mxu0 0.0
    %5611 = vmatprep.mubr.f32.mxu0 0.0
    %5612 = vmatmul.mubr.f32.gmra.mxu0 %v5160
    %v5613 = vpop.f32.mrf.mxu0
    %v5614 = vadd.f32 0.0, %v5613
    %v5615 = vpop.f32.mrf.mxu0
    %v5616 = vadd.f32 0.0, %v5615
    %5617 = vdwg.mxu0
    %v5618 = vadd.f32 %v4828, %v5543
    %v5619 = vadd.f32 %v4830, %v5545
    %v5620 = vadd.f32 %v4899, %v5614
    %v5621 = vadd.f32 %v4901, %v5616
    %v5622 = vxor.u32 %v5618, 2147483648
    %v5623 = vmul.f32 %v5622, 1.442695
    %v5624 = vpow.pop %v5623
    %v5625 = vadd.f32 %v5624, 1.0
    %v5626 = vrcp.pop %v5625
    %v5627 = vmul.f32 1.0, %v5626
    %v5628 = vxor.u32 %v5619, 2147483648
    %v5629 = vmul.f32 %v5628, 1.442695
    %v5630 = vpow.pop %v5629
    %v5631 = vadd.f32 %v5630, 1.0
    %v5632 = vrcp.pop %v5631
    %v5633 = vmul.f32 1.0, %v5632
    %v5634 = vtanh.pop %v5620
    %v5635 = vxor.u32 %v5621, 2147483648
    %v5636 = vmul.f32 %v5635, 1.442695
    %v5637 = vpow.pop %v5636
    %v5638 = vadd.f32 %v5637, 1.0
    %v5639 = vrcp.pop %v5638
    %v5640 = vmul.f32 1.0, %v5639
    %v5641 = vmul.f32 %v5633, %v5135
    %v5642 = vmul.f32 %v5627, %v5634
    %v5643 = vadd.f32 %v5641, %v5642
    %v5644 = vtanh.pop %v5643
    %v5645 = vmul.f32 %v5640, %v5644
    %v5647 = vsel %vm935, %v5645, 0
    %5649 = vmatprep.subr.mxu0 0.0
    %5650 = vmatpush1.msra.mxu0 0.0
    %5651 = vmatprep.subr.mxu0 0.0
    %5652 = vmatpush1.msra.mxu0 0.0
    %5653 = vmatprep.subr.mxu0 0.0
    %5654 = vmatpush1.msra.mxu0 0.0
    %5655 = vmatprep.subr.mxu0 0.0
    %5656 = vmatpush1.msra.mxu0 0.0
    %5657 = vmatprep.subr.mxu0 0.0
    %5658 = vmatpush1.msra.mxu0 0.0
    %5659 = vmatprep.subr.mxu0 0.0
    %5660 = vmatpush1.msra.mxu0 0.0
    %5661 = vmatprep.subr.mxu0 0.0
    %5662 = vmatpush1.msra.mxu0 0.0
    %5663 = vmatprep.subr.mxu0 0.0
    %5664 = vmatpush1.msra.mxu0 0.0
    %5665 = vmatprep.subr.mxu0 0.0
    %5666 = vmatpush1.msra.mxu0 0.0
    %5667 = vmatprep.subr.mxu0 0.0
    %5668 = vmatpush1.msra.mxu0 0.0
    %5669 = vmatprep.subr.mxu0 0.0
    %5670 = vmatpush1.msra.mxu0 0.0
    %5671 = vmatprep.subr.mxu0 0.0
    %5672 = vmatpush1.msra.mxu0 0.0
    %5673 = vmatprep.subr.mxu0 %v4932
    %5674 = vmatpush1.msra.mxu0 %v4931
    %5675 = vmatprep.subr.mxu0 %v4928
    %5676 = vmatpush1.msra.mxu0 %v4927
    %5677 = vmatprep.subr.mxu0 %v4924
    %5678 = vmatpush1.msra.mxu0 %v4923
    %5679 = vmatprep.subr.mxu0 %v4920
    %5680 = vmatpush1.msra.mxu0 %v4919
    %5681 = vmatprep.subr.mxu0 0.0
    %5682 = vmatpush2.msra.mxu0 0.0
    %5683 = vmatprep.subr.mxu0 0.0
    %5684 = vmatpush2.msra.mxu0 0.0
    %5685 = vmatprep.subr.mxu0 0.0
    %5686 = vmatpush2.msra.mxu0 0.0
    %5687 = vmatprep.subr.mxu0 0.0
    %5688 = vmatpush2.msra.mxu0 0.0
    %5689 = vmatprep.subr.mxu0 0.0
    %5690 = vmatpush2.msra.mxu0 0.0
    %5691 = vmatprep.subr.mxu0 0.0
    %5692 = vmatpush2.msra.mxu0 0.0
    %5693 = vmatprep.subr.mxu0 0.0
    %5694 = vmatpush2.msra.mxu0 0.0
    %5695 = vmatprep.subr.mxu0 0.0
    %5696 = vmatpush2.msra.mxu0 0.0
    %5697 = vmatprep.subr.mxu0 0.0
    %5698 = vmatpush2.msra.mxu0 0.0
    %5699 = vmatprep.subr.mxu0 0.0
    %5700 = vmatpush2.msra.mxu0 0.0
    %5701 = vmatprep.subr.mxu0 0.0
    %5702 = vmatpush2.msra.mxu0 0.0
    %5703 = vmatprep.subr.mxu0 0.0
    %5704 = vmatpush2.msra.mxu0 0.0
    %5705 = vmatprep.subr.mxu0 0.0
    %5706 = vmatpush2.msra.mxu0 0.0
    %5707 = vmatprep.subr.mxu0 0.0
    %5708 = vmatpush2.msra.mxu0 0.0
    %5709 = vmatprep.subr.mxu0 0.0
    %5710 = vmatpush2.msra.mxu0 0.0
    %5711 = vmatprep.subr.mxu0 0.0
    %5712 = vmatpush2.msra.mxu0 0.0
    %5713 = vmatprep.mubr.f32.mxu0 0.0
    %5714 = vmatmul.mubr.f32.gmra.mxu0 %v5647
    %v5715 = vpop.f32.mrf.mxu0
    %v5716 = vadd.f32 %v5142, %v5715
    %v5717 = vpop.f32.mrf.mxu0
    %v5718 = vadd.f32 %v5146, %v5717
    %5719 = vdwg.mxu0
    %5720 = vmatprep.subr.mxu0 0.0
    %5721 = vmatpush1.msra.mxu0 0.0
    %5722 = vmatprep.subr.mxu0 0.0
    %5723 = vmatpush1.msra.mxu0 0.0
    %5724 = vmatprep.subr.mxu0 0.0
    %5725 = vmatpush1.msra.mxu0 0.0
    %5726 = vmatprep.subr.mxu0 0.0
    %5727 = vmatpush1.msra.mxu0 0.0
    %5728 = vmatprep.subr.mxu0 0.0
    %5729 = vmatpush1.msra.mxu0 0.0
    %5730 = vmatprep.subr.mxu0 0.0
    %5731 = vmatpush1.msra.mxu0 0.0
    %5732 = vmatprep.subr.mxu0 0.0
    %5733 = vmatpush1.msra.mxu0 0.0
    %5734 = vmatprep.subr.mxu0 0.0
    %5735 = vmatpush1.msra.mxu0 0.0
    %5736 = vmatprep.subr.mxu0 0.0
    %5737 = vmatpush1.msra.mxu0 0.0
    %5738 = vmatprep.subr.mxu0 0.0
    %5739 = vmatpush1.msra.mxu0 0.0
    %5740 = vmatprep.subr.mxu0 0.0
    %5741 = vmatpush1.msra.mxu0 0.0
    %5742 = vmatprep.subr.mxu0 0.0
    %5743 = vmatpush1.msra.mxu0 0.0
    %5744 = vmatprep.subr.mxu0 %v4934
    %5745 = vmatpush1.msra.mxu0 %v4933
    %5746 = vmatprep.subr.mxu0 %v4930
    %5747 = vmatpush1.msra.mxu0 %v4929
    %5748 = vmatprep.subr.mxu0 %v4926
    %5749 = vmatpush1.msra.mxu0 %v4925
    %5750 = vmatprep.subr.mxu0 %v4922
    %5751 = vmatpush1.msra.mxu0 %v4921
    %5752 = vmatprep.subr.mxu0 0.0
    %5753 = vmatpush2.msra.mxu0 0.0
    %5754 = vmatprep.subr.mxu0 0.0
    %5755 = vmatpush2.msra.mxu0 0.0
    %5756 = vmatprep.subr.mxu0 0.0
    %5757 = vmatpush2.msra.mxu0 0.0
    %5758 = vmatprep.subr.mxu0 0.0
    %5759 = vmatpush2.msra.mxu0 0.0
    %5760 = vmatprep.subr.mxu0 0.0
    %5761 = vmatpush2.msra.mxu0 0.0
    %5762 = vmatprep.subr.mxu0 0.0
    %5763 = vmatpush2.msra.mxu0 0.0
    %5764 = vmatprep.subr.mxu0 0.0
    %5765 = vmatpush2.msra.mxu0 0.0
    %5766 = vmatprep.subr.mxu0 0.0
    %5767 = vmatpush2.msra.mxu0 0.0
    %5768 = vmatprep.subr.mxu0 0.0
    %5769 = vmatpush2.msra.mxu0 0.0
    %5770 = vmatprep.subr.mxu0 0.0
    %5771 = vmatpush2.msra.mxu0 0.0
    %5772 = vmatprep.subr.mxu0 0.0
    %5773 = vmatpush2.msra.mxu0 0.0
    %5774 = vmatprep.subr.mxu0 0.0
    %5775 = vmatpush2.msra.mxu0 0.0
    %5776 = vmatprep.subr.mxu0 0.0
    %5777 = vmatpush2.msra.mxu0 0.0
    %5778 = vmatprep.subr.mxu0 0.0
    %5779 = vmatpush2.msra.mxu0 0.0
    %5780 = vmatprep.subr.mxu0 0.0
    %5781 = vmatpush2.msra.mxu0 0.0
    %5782 = vmatprep.subr.mxu0 0.0
    %5783 = vmatpush2.msra.mxu0 0.0
    %5784 = vmatprep.mubr.f32.mxu0 0.0
    %5785 = vmatmul.mubr.f32.gmra.mxu0 %v5647
    %v5786 = vpop.f32.mrf.mxu0
    %v5787 = vadd.f32 %v5150, %v5786
    %v5788 = vpop.f32.mrf.mxu0
    %v5789 = vadd.f32 %v5154, %v5788
    %5790 = vdwg.mxu0
    %v5792 = vsel %vm569, %v5473, 0
    %5794 = vmatprep.subr.mxu0 0.0
    %5795 = vmatpush1.msra.mxu0 0.0
    %5796 = vmatprep.subr.mxu0 0.0
    %5797 = vmatpush1.msra.mxu0 0.0
    %5798 = vmatprep.subr.mxu0 0.0
    %5799 = vmatpush1.msra.mxu0 0.0
    %5800 = vmatprep.subr.mxu0 0.0
    %5801 = vmatpush1.msra.mxu0 0.0
    %5802 = vmatprep.subr.mxu0 0.0
    %5803 = vmatpush1.msra.mxu0 0.0
    %5804 = vmatprep.subr.mxu0 0.0
    %5805 = vmatpush1.msra.mxu0 0.0
    %5806 = vmatprep.subr.mxu0 0.0
    %5807 = vmatpush1.msra.mxu0 0.0
    %5808 = vmatprep.subr.mxu0 0.0
    %5809 = vmatpush1.msra.mxu0 0.0
    %5810 = vmatprep.subr.mxu0 %v4964
    %5811 = vmatpush1.msra.mxu0 %v4963
    %5812 = vmatprep.subr.mxu0 %v4960
    %5813 = vmatpush1.msra.mxu0 %v4959
    %5814 = vmatprep.subr.mxu0 %v4956
    %5815 = vmatpush1.msra.mxu0 %v4955
    %5816 = vmatprep.subr.mxu0 %v4952
    %5817 = vmatpush1.msra.mxu0 %v4951
    %5818 = vmatprep.subr.mxu0 %v4948
    %5819 = vmatpush1.msra.mxu0 %v4947
    %5820 = vmatprep.subr.mxu0 %v4944
    %5821 = vmatpush1.msra.mxu0 %v4943
    %5822 = vmatprep.subr.mxu0 %v4940
    %5823 = vmatpush1.msra.mxu0 %v4939
    %5824 = vmatprep.subr.mxu0 %v4936
    %5825 = vmatpush1.msra.mxu0 %v4935
    %5826 = vmatprep.subr.mxu0 0.0
    %5827 = vmatpush2.msra.mxu0 0.0
    %5828 = vmatprep.subr.mxu0 0.0
    %5829 = vmatpush2.msra.mxu0 0.0
    %5830 = vmatprep.subr.mxu0 0.0
    %5831 = vmatpush2.msra.mxu0 0.0
    %5832 = vmatprep.subr.mxu0 0.0
    %5833 = vmatpush2.msra.mxu0 0.0
    %5834 = vmatprep.subr.mxu0 0.0
    %5835 = vmatpush2.msra.mxu0 0.0
    %5836 = vmatprep.subr.mxu0 0.0
    %5837 = vmatpush2.msra.mxu0 0.0
    %5838 = vmatprep.subr.mxu0 0.0
    %5839 = vmatpush2.msra.mxu0 0.0
    %5840 = vmatprep.subr.mxu0 0.0
    %5841 = vmatpush2.msra.mxu0 0.0
    %5842 = vmatprep.subr.mxu0 0.0
    %5843 = vmatpush2.msra.mxu0 0.0
    %5844 = vmatprep.subr.mxu0 0.0
    %5845 = vmatpush2.msra.mxu0 0.0
    %5846 = vmatprep.subr.mxu0 0.0
    %5847 = vmatpush2.msra.mxu0 0.0
    %5848 = vmatprep.subr.mxu0 0.0
    %5849 = vmatpush2.msra.mxu0 0.0
    %5850 = vmatprep.subr.mxu0 0.0
    %5851 = vmatpush2.msra.mxu0 0.0
    %5852 = vmatprep.subr.mxu0 0.0
    %5853 = vmatpush2.msra.mxu0 0.0
    %5854 = vmatprep.subr.mxu0 0.0
    %5855 = vmatpush2.msra.mxu0 0.0
    %5856 = vmatprep.subr.mxu0 0.0
    %5857 = vmatpush2.msra.mxu0 0.0
    %5858 = vmatprep.mubr.f32.mxu0 0.0
    %5859 = vmatmul.mubr.f32.gmra.mxu0 %v5792
    %v5860 = vpop.f32.mrf.mxu0
    %v5861 = vadd.f32 0.0, %v5860
    %v5862 = vpop.f32.mrf.mxu0
    %v5863 = vadd.f32 0.0, %v5862
    %5864 = vdwg.mxu0
    %5865 = vmatprep.subr.mxu0 0.0
    %5866 = vmatpush1.msra.mxu0 0.0
    %5867 = vmatprep.subr.mxu0 0.0
    %5868 = vmatpush1.msra.mxu0 0.0
    %5869 = vmatprep.subr.mxu0 0.0
    %5870 = vmatpush1.msra.mxu0 0.0
    %5871 = vmatprep.subr.mxu0 0.0
    %5872 = vmatpush1.msra.mxu0 0.0
    %5873 = vmatprep.subr.mxu0 0.0
    %5874 = vmatpush1.msra.mxu0 0.0
    %5875 = vmatprep.subr.mxu0 0.0
    %5876 = vmatpush1.msra.mxu0 0.0
    %5877 = vmatprep.subr.mxu0 0.0
    %5878 = vmatpush1.msra.mxu0 0.0
    %5879 = vmatprep.subr.mxu0 0.0
    %5880 = vmatpush1.msra.mxu0 0.0
    %5881 = vmatprep.subr.mxu0 %v4966
    %5882 = vmatpush1.msra.mxu0 %v4965
    %5883 = vmatprep.subr.mxu0 %v4962
    %5884 = vmatpush1.msra.mxu0 %v4961
    %5885 = vmatprep.subr.mxu0 %v4958
    %5886 = vmatpush1.msra.mxu0 %v4957
    %5887 = vmatprep.subr.mxu0 %v4954
    %5888 = vmatpush1.msra.mxu0 %v4953
    %5889 = vmatprep.subr.mxu0 %v4950
    %5890 = vmatpush1.msra.mxu0 %v4949
    %5891 = vmatprep.subr.mxu0 %v4946
    %5892 = vmatpush1.msra.mxu0 %v4945
    %5893 = vmatprep.subr.mxu0 %v4942
    %5894 = vmatpush1.msra.mxu0 %v4941
    %5895 = vmatprep.subr.mxu0 %v4938
    %5896 = vmatpush1.msra.mxu0 %v4937
    %5897 = vmatprep.subr.mxu0 0.0
    %5898 = vmatpush2.msra.mxu0 0.0
    %5899 = vmatprep.subr.mxu0 0.0
    %5900 = vmatpush2.msra.mxu0 0.0
    %5901 = vmatprep.subr.mxu0 0.0
    %5902 = vmatpush2.msra.mxu0 0.0
    %5903 = vmatprep.subr.mxu0 0.0
    %5904 = vmatpush2.msra.mxu0 0.0
    %5905 = vmatprep.subr.mxu0 0.0
    %5906 = vmatpush2.msra.mxu0 0.0
    %5907 = vmatprep.subr.mxu0 0.0
    %5908 = vmatpush2.msra.mxu0 0.0
    %5909 = vmatprep.subr.mxu0 0.0
    %5910 = vmatpush2.msra.mxu0 0.0
    %5911 = vmatprep.subr.mxu0 0.0
    %5912 = vmatpush2.msra.mxu0 0.0
    %5913 = vmatprep.subr.mxu0 0.0
    %5914 = vmatpush2.msra.mxu0 0.0
    %5915 = vmatprep.subr.mxu0 0.0
    %5916 = vmatpush2.msra.mxu0 0.0
    %5917 = vmatprep.subr.mxu0 0.0
    %5918 = vmatpush2.msra.mxu0 0.0
    %5919 = vmatprep.subr.mxu0 0.0
    %5920 = vmatpush2.msra.mxu0 0.0
    %5921 = vmatprep.subr.mxu0 0.0
    %5922 = vmatpush2.msra.mxu0 0.0
    %5923 = vmatprep.subr.mxu0 0.0
    %5924 = vmatpush2.msra.mxu0 0.0
    %5925 = vmatprep.subr.mxu0 0.0
    %5926 = vmatpush2.msra.mxu0 0.0
    %5927 = vmatprep.subr.mxu0 0.0
    %5928 = vmatpush2.msra.mxu0 0.0
    %5929 = vmatprep.mubr.f32.mxu0 0.0
    %5930 = vmatmul.mubr.f32.gmra.mxu0 %v5792
    %v5931 = vpop.f32.mrf.mxu0
    %v5932 = vadd.f32 0.0, %v5931
    %v5933 = vpop.f32.mrf.mxu0
    %v5934 = vadd.f32 0.0, %v5933
    %5935 = vdwg.mxu0
    %v5936 = vadd.f32 %v5716, %v5861
    %v5937 = vadd.f32 %v5718, %v5863
    %v5938 = vadd.f32 %v5787, %v5932
    %v5939 = vadd.f32 %v5789, %v5934
    %v5940 = vxor.u32 %v5936, 2147483648
    %v5941 = vmul.f32 %v5940, 1.442695
    %v5942 = vpow.pop %v5941
    %v5943 = vadd.f32 %v5942, 1.0
    %v5944 = vrcp.pop %v5943
    %v5945 = vmul.f32 1.0, %v5944
    %v5946 = vxor.u32 %v5937, 2147483648
    %v5947 = vmul.f32 %v5946, 1.442695
    %v5948 = vpow.pop %v5947
    %v5949 = vadd.f32 %v5948, 1.0
    %v5950 = vrcp.pop %v5949
    %v5951 = vmul.f32 1.0, %v5950
    %v5952 = vtanh.pop %v5938
    %v5953 = vxor.u32 %v5939, 2147483648
    %v5954 = vmul.f32 %v5953, 1.442695
    %v5955 = vpow.pop %v5954
    %v5956 = vadd.f32 %v5955, 1.0
    %v5957 = vrcp.pop %v5956
    %v5958 = vmul.f32 1.0, %v5957
    %v5959 = vmul.f32 %v5951, %v5471
    %v5960 = vmul.f32 %v5945, %v5952
    %v5961 = vadd.f32 %v5959, %v5960
    %v5962 = vtanh.pop %v5961
    %v5963 = vmul.f32 %v5958, %v5962
    %s5964 = scalar_lea.vmem [#allocation3], 2
    %5965 = vst.msk [vmem:[%s5964] sm:$0x3] %vm5474, %v5963
    %5966 = vmatprep.subr.mxu0 0.0
    %5967 = vmatpush1.msra.mxu0 0.0
    %5968 = vmatprep.subr.mxu0 0.0
    %5969 = vmatpush1.msra.mxu0 0.0
    %5970 = vmatprep.subr.mxu0 0.0
    %5971 = vmatpush1.msra.mxu0 0.0
    %5972 = vmatprep.subr.mxu0 0.0
    %5973 = vmatpush1.msra.mxu0 0.0
    %5974 = vmatprep.subr.mxu0 0.0
    %5975 = vmatpush1.msra.mxu0 0.0
    %5976 = vmatprep.subr.mxu0 0.0
    %5977 = vmatpush1.msra.mxu0 0.0
    %5978 = vmatprep.subr.mxu0 0.0
    %5979 = vmatpush1.msra.mxu0 0.0
    %5980 = vmatprep.subr.mxu0 0.0
    %5981 = vmatpush1.msra.mxu0 0.0
    %5982 = vmatprep.subr.mxu0 0.0
    %5983 = vmatpush1.msra.mxu0 0.0
    %5984 = vmatprep.subr.mxu0 0.0
    %5985 = vmatpush1.msra.mxu0 0.0
    %5986 = vmatprep.subr.mxu0 0.0
    %5987 = vmatpush1.msra.mxu0 0.0
    %5988 = vmatprep.subr.mxu0 0.0
    %5989 = vmatpush1.msra.mxu0 0.0
    %5990 = vmatprep.subr.mxu0 %v4916
    %5991 = vmatpush1.msra.mxu0 %v4915
    %5992 = vmatprep.subr.mxu0 %v4912
    %5993 = vmatpush1.msra.mxu0 %v4911
    %5994 = vmatprep.subr.mxu0 %v4908
    %5995 = vmatpush1.msra.mxu0 %v4907
    %5996 = vmatprep.subr.mxu0 %v4904
    %5997 = vmatpush1.msra.mxu0 %v4903
    %5998 = vmatprep.subr.mxu0 0.0
    %5999 = vmatpush2.msra.mxu0 0.0
    %6000 = vmatprep.subr.mxu0 0.0
    %6001 = vmatpush2.msra.mxu0 0.0
    %6002 = vmatprep.subr.mxu0 0.0
    %6003 = vmatpush2.msra.mxu0 0.0
    %6004 = vmatprep.subr.mxu0 0.0
    %6005 = vmatpush2.msra.mxu0 0.0
    %6006 = vmatprep.subr.mxu0 0.0
    %6007 = vmatpush2.msra.mxu0 0.0
    %6008 = vmatprep.subr.mxu0 0.0
    %6009 = vmatpush2.msra.mxu0 0.0
    %6010 = vmatprep.subr.mxu0 0.0
    %6011 = vmatpush2.msra.mxu0 0.0
    %6012 = vmatprep.subr.mxu0 0.0
    %6013 = vmatpush2.msra.mxu0 0.0
    %6014 = vmatprep.subr.mxu0 0.0
    %6015 = vmatpush2.msra.mxu0 0.0
    %6016 = vmatprep.subr.mxu0 0.0
    %6017 = vmatpush2.msra.mxu0 0.0
    %6018 = vmatprep.subr.mxu0 0.0
    %6019 = vmatpush2.msra.mxu0 0.0
    %6020 = vmatprep.subr.mxu0 0.0
    %6021 = vmatpush2.msra.mxu0 0.0
    %6022 = vmatprep.subr.mxu0 0.0
    %6023 = vmatpush2.msra.mxu0 0.0
    %6024 = vmatprep.subr.mxu0 0.0
    %6025 = vmatpush2.msra.mxu0 0.0
    %6026 = vmatprep.subr.mxu0 0.0
    %6027 = vmatpush2.msra.mxu0 0.0
    %6028 = vmatprep.subr.mxu0 0.0
    %6029 = vmatpush2.msra.mxu0 0.0
    %6030 = vmatprep.mubr.f32.mxu0 0.0
    %6031 = vmatmul.mubr.f32.gmra.mxu0 %v5647
    %v6032 = vpop.f32.mrf.mxu0
    %v6033 = vadd.f32 0.0, %v6032
    %v6034 = vpop.f32.mrf.mxu0
    %v6035 = vadd.f32 0.0, %v6034
    %6036 = vdwg.mxu0
    %6037 = vmatprep.subr.mxu0 0.0
    %6038 = vmatpush1.msra.mxu0 0.0
    %6039 = vmatprep.subr.mxu0 0.0
    %6040 = vmatpush1.msra.mxu0 0.0
    %6041 = vmatprep.subr.mxu0 0.0
    %6042 = vmatpush1.msra.mxu0 0.0
    %6043 = vmatprep.subr.mxu0 0.0
    %6044 = vmatpush1.msra.mxu0 0.0
    %6045 = vmatprep.subr.mxu0 0.0
    %6046 = vmatpush1.msra.mxu0 0.0
    %6047 = vmatprep.subr.mxu0 0.0
    %6048 = vmatpush1.msra.mxu0 0.0
    %6049 = vmatprep.subr.mxu0 0.0
    %6050 = vmatpush1.msra.mxu0 0.0
    %6051 = vmatprep.subr.mxu0 0.0
    %6052 = vmatpush1.msra.mxu0 0.0
    %6053 = vmatprep.subr.mxu0 0.0
    %6054 = vmatpush1.msra.mxu0 0.0
    %6055 = vmatprep.subr.mxu0 0.0
    %6056 = vmatpush1.msra.mxu0 0.0
    %6057 = vmatprep.subr.mxu0 0.0
    %6058 = vmatpush1.msra.mxu0 0.0
    %6059 = vmatprep.subr.mxu0 0.0
    %6060 = vmatpush1.msra.mxu0 0.0
    %6061 = vmatprep.subr.mxu0 %v4918
    %6062 = vmatpush1.msra.mxu0 %v4917
    %6063 = vmatprep.subr.mxu0 %v4914
    %6064 = vmatpush1.msra.mxu0 %v4913
    %6065 = vmatprep.subr.mxu0 %v4910
    %6066 = vmatpush1.msra.mxu0 %v4909
    %6067 = vmatprep.subr.mxu0 %v4906
    %6068 = vmatpush1.msra.mxu0 %v4905
    %6069 = vmatprep.subr.mxu0 0.0
    %6070 = vmatpush2.msra.mxu0 0.0
    %6071 = vmatprep.subr.mxu0 0.0
    %6072 = vmatpush2.msra.mxu0 0.0
    %6073 = vmatprep.subr.mxu0 0.0
    %6074 = vmatpush2.msra.mxu0 0.0
    %6075 = vmatprep.subr.mxu0 0.0
    %6076 = vmatpush2.msra.mxu0 0.0
    %6077 = vmatprep.subr.mxu0 0.0
    %6078 = vmatpush2.msra.mxu0 0.0
    %6079 = vmatprep.subr.mxu0 0.0
    %6080 = vmatpush2.msra.mxu0 0.0
    %6081 = vmatprep.subr.mxu0 0.0
    %6082 = vmatpush2.msra.mxu0 0.0
    %6083 = vmatprep.subr.mxu0 0.0
    %6084 = vmatpush2.msra.mxu0 0.0
    %6085 = vmatprep.subr.mxu0 0.0
    %6086 = vmatpush2.msra.mxu0 0.0
    %6087 = vmatprep.subr.mxu0 0.0
    %6088 = vmatpush2.msra.mxu0 0.0
    %6089 = vmatprep.subr.mxu0 0.0
    %6090 = vmatpush2.msra.mxu0 0.0
    %6091 = vmatprep.subr.mxu0 0.0
    %6092 = vmatpush2.msra.mxu0 0.0
    %6093 = vmatprep.subr.mxu0 0.0
    %6094 = vmatpush2.msra.mxu0 0.0
    %6095 = vmatprep.subr.mxu0 0.0
    %6096 = vmatpush2.msra.mxu0 0.0
    %6097 = vmatprep.subr.mxu0 0.0
    %6098 = vmatpush2.msra.mxu0 0.0
    %6099 = vmatprep.subr.mxu0 0.0
    %6100 = vmatpush2.msra.mxu0 0.0
    %6101 = vmatprep.mubr.f32.mxu0 0.0
    %6102 = vmatmul.mubr.f32.gmra.mxu0 %v5647
    %v6103 = vpop.f32.mrf.mxu0
    %v6104 = vadd.f32 0.0, %v6103
    %v6105 = vpop.f32.mrf.mxu0
    %v6106 = vadd.f32 0.0, %v6105
    %6107 = vdwg.mxu0
    %v6108 = vadd.f32 %v4828, %v6033
    %v6109 = vadd.f32 %v4830, %v6035
    %v6110 = vadd.f32 %v4899, %v6104
    %v6111 = vadd.f32 %v4901, %v6106
    %v6112 = vxor.u32 %v6108, 2147483648
    %v6113 = vmul.f32 %v6112, 1.442695
    %v6114 = vpow.pop %v6113
    %v6115 = vadd.f32 %v6114, 1.0
    %v6116 = vrcp.pop %v6115
    %v6117 = vmul.f32 1.0, %v6116
    %v6118 = vxor.u32 %v6109, 2147483648
    %v6119 = vmul.f32 %v6118, 1.442695
    %v6120 = vpow.pop %v6119
    %v6121 = vadd.f32 %v6120, 1.0
    %v6122 = vrcp.pop %v6121
    %v6123 = vmul.f32 1.0, %v6122
    %v6124 = vtanh.pop %v6110
    %v6125 = vxor.u32 %v6111, 2147483648
    %v6126 = vmul.f32 %v6125, 1.442695
    %v6127 = vpow.pop %v6126
    %v6128 = vadd.f32 %v6127, 1.0
    %v6129 = vrcp.pop %v6128
    %v6130 = vmul.f32 1.0, %v6129
    %v6131 = vmul.f32 %v6123, %v5643
    %v6132 = vmul.f32 %v6117, %v6124
    %v6133 = vadd.f32 %v6131, %v6132
    %v6134 = vtanh.pop %v6133
    %v6135 = vmul.f32 %v6130, %v6134
    %v6137 = vsel %vm935, %v6135, 0
    %6139 = vmatprep.subr.mxu0 0.0
    %6140 = vmatpush1.msra.mxu0 0.0
    %6141 = vmatprep.subr.mxu0 0.0
    %6142 = vmatpush1.msra.mxu0 0.0
    %6143 = vmatprep.subr.mxu0 0.0
    %6144 = vmatpush1.msra.mxu0 0.0
    %6145 = vmatprep.subr.mxu0 0.0
    %6146 = vmatpush1.msra.mxu0 0.0
    %6147 = vmatprep.subr.mxu0 0.0
    %6148 = vmatpush1.msra.mxu0 0.0
    %6149 = vmatprep.subr.mxu0 0.0
    %6150 = vmatpush1.msra.mxu0 0.0
    %6151 = vmatprep.subr.mxu0 0.0
    %6152 = vmatpush1.msra.mxu0 0.0
    %6153 = vmatprep.subr.mxu0 0.0
    %6154 = vmatpush1.msra.mxu0 0.0
    %6155 = vmatprep.subr.mxu0 0.0
    %6156 = vmatpush1.msra.mxu0 0.0
    %6157 = vmatprep.subr.mxu0 0.0
    %6158 = vmatpush1.msra.mxu0 0.0
    %6159 = vmatprep.subr.mxu0 0.0
    %6160 = vmatpush1.msra.mxu0 0.0
    %6161 = vmatprep.subr.mxu0 0.0
    %6162 = vmatpush1.msra.mxu0 0.0
    %6163 = vmatprep.subr.mxu0 %v4932
    %6164 = vmatpush1.msra.mxu0 %v4931
    %6165 = vmatprep.subr.mxu0 %v4928
    %6166 = vmatpush1.msra.mxu0 %v4927
    %6167 = vmatprep.subr.mxu0 %v4924
    %6168 = vmatpush1.msra.mxu0 %v4923
    %6169 = vmatprep.subr.mxu0 %v4920
    %6170 = vmatpush1.msra.mxu0 %v4919
    %6171 = vmatprep.subr.mxu0 0.0
    %6172 = vmatpush2.msra.mxu0 0.0
    %6173 = vmatprep.subr.mxu0 0.0
    %6174 = vmatpush2.msra.mxu0 0.0
    %6175 = vmatprep.subr.mxu0 0.0
    %6176 = vmatpush2.msra.mxu0 0.0
    %6177 = vmatprep.subr.mxu0 0.0
    %6178 = vmatpush2.msra.mxu0 0.0
    %6179 = vmatprep.subr.mxu0 0.0
    %6180 = vmatpush2.msra.mxu0 0.0
    %6181 = vmatprep.subr.mxu0 0.0
    %6182 = vmatpush2.msra.mxu0 0.0
    %6183 = vmatprep.subr.mxu0 0.0
    %6184 = vmatpush2.msra.mxu0 0.0
    %6185 = vmatprep.subr.mxu0 0.0
    %6186 = vmatpush2.msra.mxu0 0.0
    %6187 = vmatprep.subr.mxu0 0.0
    %6188 = vmatpush2.msra.mxu0 0.0
    %6189 = vmatprep.subr.mxu0 0.0
    %6190 = vmatpush2.msra.mxu0 0.0
    %6191 = vmatprep.subr.mxu0 0.0
    %6192 = vmatpush2.msra.mxu0 0.0
    %6193 = vmatprep.subr.mxu0 0.0
    %6194 = vmatpush2.msra.mxu0 0.0
    %6195 = vmatprep.subr.mxu0 0.0
    %6196 = vmatpush2.msra.mxu0 0.0
    %6197 = vmatprep.subr.mxu0 0.0
    %6198 = vmatpush2.msra.mxu0 0.0
    %6199 = vmatprep.subr.mxu0 0.0
    %6200 = vmatpush2.msra.mxu0 0.0
    %6201 = vmatprep.subr.mxu0 0.0
    %6202 = vmatpush2.msra.mxu0 0.0
    %6203 = vmatprep.mubr.f32.mxu0 0.0
    %6204 = vmatmul.mubr.f32.gmra.mxu0 %v6137
    %v6205 = vpop.f32.mrf.mxu0
    %v6206 = vadd.f32 %v5142, %v6205
    %v6207 = vpop.f32.mrf.mxu0
    %v6208 = vadd.f32 %v5146, %v6207
    %6209 = vdwg.mxu0
    %6210 = vmatprep.subr.mxu0 0.0
    %6211 = vmatpush1.msra.mxu0 0.0
    %6212 = vmatprep.subr.mxu0 0.0
    %6213 = vmatpush1.msra.mxu0 0.0
    %6214 = vmatprep.subr.mxu0 0.0
    %6215 = vmatpush1.msra.mxu0 0.0
    %6216 = vmatprep.subr.mxu0 0.0
    %6217 = vmatpush1.msra.mxu0 0.0
    %6218 = vmatprep.subr.mxu0 0.0
    %6219 = vmatpush1.msra.mxu0 0.0
    %6220 = vmatprep.subr.mxu0 0.0
    %6221 = vmatpush1.msra.mxu0 0.0
    %6222 = vmatprep.subr.mxu0 0.0
    %6223 = vmatpush1.msra.mxu0 0.0
    %6224 = vmatprep.subr.mxu0 0.0
    %6225 = vmatpush1.msra.mxu0 0.0
    %6226 = vmatprep.subr.mxu0 0.0
    %6227 = vmatpush1.msra.mxu0 0.0
    %6228 = vmatprep.subr.mxu0 0.0
    %6229 = vmatpush1.msra.mxu0 0.0
    %6230 = vmatprep.subr.mxu0 0.0
    %6231 = vmatpush1.msra.mxu0 0.0
    %6232 = vmatprep.subr.mxu0 0.0
    %6233 = vmatpush1.msra.mxu0 0.0
    %6234 = vmatprep.subr.mxu0 %v4934
    %6235 = vmatpush1.msra.mxu0 %v4933
    %6236 = vmatprep.subr.mxu0 %v4930
    %6237 = vmatpush1.msra.mxu0 %v4929
    %6238 = vmatprep.subr.mxu0 %v4926
    %6239 = vmatpush1.msra.mxu0 %v4925
    %6240 = vmatprep.subr.mxu0 %v4922
    %6241 = vmatpush1.msra.mxu0 %v4921
    %6242 = vmatprep.subr.mxu0 0.0
    %6243 = vmatpush2.msra.mxu0 0.0
    %6244 = vmatprep.subr.mxu0 0.0
    %6245 = vmatpush2.msra.mxu0 0.0
    %6246 = vmatprep.subr.mxu0 0.0
    %6247 = vmatpush2.msra.mxu0 0.0
    %6248 = vmatprep.subr.mxu0 0.0
    %6249 = vmatpush2.msra.mxu0 0.0
    %6250 = vmatprep.subr.mxu0 0.0
    %6251 = vmatpush2.msra.mxu0 0.0
    %6252 = vmatprep.subr.mxu0 0.0
    %6253 = vmatpush2.msra.mxu0 0.0
    %6254 = vmatprep.subr.mxu0 0.0
    %6255 = vmatpush2.msra.mxu0 0.0
    %6256 = vmatprep.subr.mxu0 0.0
    %6257 = vmatpush2.msra.mxu0 0.0
    %6258 = vmatprep.subr.mxu0 0.0
    %6259 = vmatpush2.msra.mxu0 0.0
    %6260 = vmatprep.subr.mxu0 0.0
    %6261 = vmatpush2.msra.mxu0 0.0
    %6262 = vmatprep.subr.mxu0 0.0
    %6263 = vmatpush2.msra.mxu0 0.0
    %6264 = vmatprep.subr.mxu0 0.0
    %6265 = vmatpush2.msra.mxu0 0.0
    %6266 = vmatprep.subr.mxu0 0.0
    %6267 = vmatpush2.msra.mxu0 0.0
    %6268 = vmatprep.subr.mxu0 0.0
    %6269 = vmatpush2.msra.mxu0 0.0
    %6270 = vmatprep.subr.mxu0 0.0
    %6271 = vmatpush2.msra.mxu0 0.0
    %6272 = vmatprep.subr.mxu0 0.0
    %6273 = vmatpush2.msra.mxu0 0.0
    %6274 = vmatprep.mubr.f32.mxu0 0.0
    %6275 = vmatmul.mubr.f32.gmra.mxu0 %v6137
    %v6276 = vpop.f32.mrf.mxu0
    %v6277 = vadd.f32 %v5150, %v6276
    %v6278 = vpop.f32.mrf.mxu0
    %v6279 = vadd.f32 %v5154, %v6278
    %6280 = vdwg.mxu0
    %v6282 = vsel %vm569, %v5963, 0
    %6284 = vmatprep.subr.mxu0 0.0
    %6285 = vmatpush1.msra.mxu0 0.0
    %6286 = vmatprep.subr.mxu0 0.0
    %6287 = vmatpush1.msra.mxu0 0.0
    %6288 = vmatprep.subr.mxu0 0.0
    %6289 = vmatpush1.msra.mxu0 0.0
    %6290 = vmatprep.subr.mxu0 0.0
    %6291 = vmatpush1.msra.mxu0 0.0
    %6292 = vmatprep.subr.mxu0 0.0
    %6293 = vmatpush1.msra.mxu0 0.0
    %6294 = vmatprep.subr.mxu0 0.0
    %6295 = vmatpush1.msra.mxu0 0.0
    %6296 = vmatprep.subr.mxu0 0.0
    %6297 = vmatpush1.msra.mxu0 0.0
    %6298 = vmatprep.subr.mxu0 0.0
    %6299 = vmatpush1.msra.mxu0 0.0
    %6300 = vmatprep.subr.mxu0 %v4964
    %6301 = vmatpush1.msra.mxu0 %v4963
    %6302 = vmatprep.subr.mxu0 %v4960
    %6303 = vmatpush1.msra.mxu0 %v4959
    %6304 = vmatprep.subr.mxu0 %v4956
    %6305 = vmatpush1.msra.mxu0 %v4955
    %6306 = vmatprep.subr.mxu0 %v4952
    %6307 = vmatpush1.msra.mxu0 %v4951
    %6308 = vmatprep.subr.mxu0 %v4948
    %6309 = vmatpush1.msra.mxu0 %v4947
    %6310 = vmatprep.subr.mxu0 %v4944
    %6311 = vmatpush1.msra.mxu0 %v4943
    %6312 = vmatprep.subr.mxu0 %v4940
    %6313 = vmatpush1.msra.mxu0 %v4939
    %6314 = vmatprep.subr.mxu0 %v4936
    %6315 = vmatpush1.msra.mxu0 %v4935
    %6316 = vmatprep.subr.mxu0 0.0
    %6317 = vmatpush2.msra.mxu0 0.0
    %6318 = vmatprep.subr.mxu0 0.0
    %6319 = vmatpush2.msra.mxu0 0.0
    %6320 = vmatprep.subr.mxu0 0.0
    %6321 = vmatpush2.msra.mxu0 0.0
    %6322 = vmatprep.subr.mxu0 0.0
    %6323 = vmatpush2.msra.mxu0 0.0
    %6324 = vmatprep.subr.mxu0 0.0
    %6325 = vmatpush2.msra.mxu0 0.0
    %6326 = vmatprep.subr.mxu0 0.0
    %6327 = vmatpush2.msra.mxu0 0.0
    %6328 = vmatprep.subr.mxu0 0.0
    %6329 = vmatpush2.msra.mxu0 0.0
    %6330 = vmatprep.subr.mxu0 0.0
    %6331 = vmatpush2.msra.mxu0 0.0
    %6332 = vmatprep.subr.mxu0 0.0
    %6333 = vmatpush2.msra.mxu0 0.0
    %6334 = vmatprep.subr.mxu0 0.0
    %6335 = vmatpush2.msra.mxu0 0.0
    %6336 = vmatprep.subr.mxu0 0.0
    %6337 = vmatpush2.msra.mxu0 0.0
    %6338 = vmatprep.subr.mxu0 0.0
    %6339 = vmatpush2.msra.mxu0 0.0
    %6340 = vmatprep.subr.mxu0 0.0
    %6341 = vmatpush2.msra.mxu0 0.0
    %6342 = vmatprep.subr.mxu0 0.0
    %6343 = vmatpush2.msra.mxu0 0.0
    %6344 = vmatprep.subr.mxu0 0.0
    %6345 = vmatpush2.msra.mxu0 0.0
    %6346 = vmatprep.subr.mxu0 0.0
    %6347 = vmatpush2.msra.mxu0 0.0
    %6348 = vmatprep.mubr.f32.mxu0 0.0
    %6349 = vmatmul.mubr.f32.gmra.mxu0 %v6282
    %v6350 = vpop.f32.mrf.mxu0
    %v6351 = vadd.f32 0.0, %v6350
    %v6352 = vpop.f32.mrf.mxu0
    %v6353 = vadd.f32 0.0, %v6352
    %6354 = vdwg.mxu0
    %6355 = vmatprep.subr.mxu0 0.0
    %6356 = vmatpush1.msra.mxu0 0.0
    %6357 = vmatprep.subr.mxu0 0.0
    %6358 = vmatpush1.msra.mxu0 0.0
    %6359 = vmatprep.subr.mxu0 0.0
    %6360 = vmatpush1.msra.mxu0 0.0
    %6361 = vmatprep.subr.mxu0 0.0
    %6362 = vmatpush1.msra.mxu0 0.0
    %6363 = vmatprep.subr.mxu0 0.0
    %6364 = vmatpush1.msra.mxu0 0.0
    %6365 = vmatprep.subr.mxu0 0.0
    %6366 = vmatpush1.msra.mxu0 0.0
    %6367 = vmatprep.subr.mxu0 0.0
    %6368 = vmatpush1.msra.mxu0 0.0
    %6369 = vmatprep.subr.mxu0 0.0
    %6370 = vmatpush1.msra.mxu0 0.0
    %6371 = vmatprep.subr.mxu0 %v4966
    %6372 = vmatpush1.msra.mxu0 %v4965
    %6373 = vmatprep.subr.mxu0 %v4962
    %6374 = vmatpush1.msra.mxu0 %v4961
    %6375 = vmatprep.subr.mxu0 %v4958
    %6376 = vmatpush1.msra.mxu0 %v4957
    %6377 = vmatprep.subr.mxu0 %v4954
    %6378 = vmatpush1.msra.mxu0 %v4953
    %6379 = vmatprep.subr.mxu0 %v4950
    %6380 = vmatpush1.msra.mxu0 %v4949
    %6381 = vmatprep.subr.mxu0 %v4946
    %6382 = vmatpush1.msra.mxu0 %v4945
    %6383 = vmatprep.subr.mxu0 %v4942
    %6384 = vmatpush1.msra.mxu0 %v4941
    %6385 = vmatprep.subr.mxu0 %v4938
    %6386 = vmatpush1.msra.mxu0 %v4937
    %6387 = vmatprep.subr.mxu0 0.0
    %6388 = vmatpush2.msra.mxu0 0.0
    %6389 = vmatprep.subr.mxu0 0.0
    %6390 = vmatpush2.msra.mxu0 0.0
    %6391 = vmatprep.subr.mxu0 0.0
    %6392 = vmatpush2.msra.mxu0 0.0
    %6393 = vmatprep.subr.mxu0 0.0
    %6394 = vmatpush2.msra.mxu0 0.0
    %6395 = vmatprep.subr.mxu0 0.0
    %6396 = vmatpush2.msra.mxu0 0.0
    %6397 = vmatprep.subr.mxu0 0.0
    %6398 = vmatpush2.msra.mxu0 0.0
    %6399 = vmatprep.subr.mxu0 0.0
    %6400 = vmatpush2.msra.mxu0 0.0
    %6401 = vmatprep.subr.mxu0 0.0
    %6402 = vmatpush2.msra.mxu0 0.0
    %6403 = vmatprep.subr.mxu0 0.0
    %6404 = vmatpush2.msra.mxu0 0.0
    %6405 = vmatprep.subr.mxu0 0.0
    %6406 = vmatpush2.msra.mxu0 0.0
    %6407 = vmatprep.subr.mxu0 0.0
    %6408 = vmatpush2.msra.mxu0 0.0
    %6409 = vmatprep.subr.mxu0 0.0
    %6410 = vmatpush2.msra.mxu0 0.0
    %6411 = vmatprep.subr.mxu0 0.0
    %6412 = vmatpush2.msra.mxu0 0.0
    %6413 = vmatprep.subr.mxu0 0.0
    %6414 = vmatpush2.msra.mxu0 0.0
    %6415 = vmatprep.subr.mxu0 0.0
    %6416 = vmatpush2.msra.mxu0 0.0
    %6417 = vmatprep.subr.mxu0 0.0
    %6418 = vmatpush2.msra.mxu0 0.0
    %6419 = vmatprep.mubr.f32.mxu0 0.0
    %6420 = vmatmul.mubr.f32.gmra.mxu0 %v6282
    %v6421 = vpop.f32.mrf.mxu0
    %v6422 = vadd.f32 0.0, %v6421
    %v6423 = vpop.f32.mrf.mxu0
    %v6424 = vadd.f32 0.0, %v6423
    %6425 = vdwg.mxu0
    %v6426 = vadd.f32 %v6206, %v6351
    %v6427 = vadd.f32 %v6208, %v6353
    %v6428 = vadd.f32 %v6277, %v6422
    %v6429 = vadd.f32 %v6279, %v6424
    %v6430 = vxor.u32 %v6426, 2147483648
    %v6431 = vmul.f32 %v6430, 1.442695
    %v6432 = vpow.pop %v6431
    %v6433 = vadd.f32 %v6432, 1.0
    %v6434 = vrcp.pop %v6433
    %v6435 = vmul.f32 1.0, %v6434
    %v6436 = vxor.u32 %v6427, 2147483648
    %v6437 = vmul.f32 %v6436, 1.442695
    %v6438 = vpow.pop %v6437
    %v6439 = vadd.f32 %v6438, 1.0
    %v6440 = vrcp.pop %v6439
    %v6441 = vmul.f32 1.0, %v6440
    %v6442 = vtanh.pop %v6428
    %v6443 = vxor.u32 %v6429, 2147483648
    %v6444 = vmul.f32 %v6443, 1.442695
    %v6445 = vpow.pop %v6444
    %v6446 = vadd.f32 %v6445, 1.0
    %v6447 = vrcp.pop %v6446
    %v6448 = vmul.f32 1.0, %v6447
    %v6449 = vmul.f32 %v6441, %v5961
    %v6450 = vmul.f32 %v6435, %v6442
    %v6451 = vadd.f32 %v6449, %v6450
    %v6452 = vtanh.pop %v6451
    %v6453 = vmul.f32 %v6448, %v6452
    %s6454 = scalar_lea.vmem [#allocation3], 4
    %6455 = vst.msk [vmem:[%s6454] sm:$0x3] %vm5474, %v6453
    %6456 = vmatprep.subr.mxu0 0.0
    %6457 = vmatpush1.msra.mxu0 0.0
    %6458 = vmatprep.subr.mxu0 0.0
    %6459 = vmatpush1.msra.mxu0 0.0
    %6460 = vmatprep.subr.mxu0 0.0
    %6461 = vmatpush1.msra.mxu0 0.0
    %6462 = vmatprep.subr.mxu0 0.0
    %6463 = vmatpush1.msra.mxu0 0.0
    %6464 = vmatprep.subr.mxu0 0.0
    %6465 = vmatpush1.msra.mxu0 0.0
    %6466 = vmatprep.subr.mxu0 0.0
    %6467 = vmatpush1.msra.mxu0 0.0
    %6468 = vmatprep.subr.mxu0 0.0
    %6469 = vmatpush1.msra.mxu0 0.0
    %6470 = vmatprep.subr.mxu0 0.0
    %6471 = vmatpush1.msra.mxu0 0.0
    %6472 = vmatprep.subr.mxu0 0.0
    %6473 = vmatpush1.msra.mxu0 0.0
    %6474 = vmatprep.subr.mxu0 0.0
    %6475 = vmatpush1.msra.mxu0 0.0
    %6476 = vmatprep.subr.mxu0 0.0
    %6477 = vmatpush1.msra.mxu0 0.0
    %6478 = vmatprep.subr.mxu0 0.0
    %6479 = vmatpush1.msra.mxu0 0.0
    %6480 = vmatprep.subr.mxu0 %v4916
    %6481 = vmatpush1.msra.mxu0 %v4915
    %6482 = vmatprep.subr.mxu0 %v4912
    %6483 = vmatpush1.msra.mxu0 %v4911
    %6484 = vmatprep.subr.mxu0 %v4908
    %6485 = vmatpush1.msra.mxu0 %v4907
    %6486 = vmatprep.subr.mxu0 %v4904
    %6487 = vmatpush1.msra.mxu0 %v4903
    %6488 = vmatprep.subr.mxu0 0.0
    %6489 = vmatpush2.msra.mxu0 0.0
    %6490 = vmatprep.subr.mxu0 0.0
    %6491 = vmatpush2.msra.mxu0 0.0
    %6492 = vmatprep.subr.mxu0 0.0
    %6493 = vmatpush2.msra.mxu0 0.0
    %6494 = vmatprep.subr.mxu0 0.0
    %6495 = vmatpush2.msra.mxu0 0.0
    %6496 = vmatprep.subr.mxu0 0.0
    %6497 = vmatpush2.msra.mxu0 0.0
    %6498 = vmatprep.subr.mxu0 0.0
    %6499 = vmatpush2.msra.mxu0 0.0
    %6500 = vmatprep.subr.mxu0 0.0
    %6501 = vmatpush2.msra.mxu0 0.0
    %6502 = vmatprep.subr.mxu0 0.0
    %6503 = vmatpush2.msra.mxu0 0.0
    %6504 = vmatprep.subr.mxu0 0.0
    %6505 = vmatpush2.msra.mxu0 0.0
    %6506 = vmatprep.subr.mxu0 0.0
    %6507 = vmatpush2.msra.mxu0 0.0
    %6508 = vmatprep.subr.mxu0 0.0
    %6509 = vmatpush2.msra.mxu0 0.0
    %6510 = vmatprep.subr.mxu0 0.0
    %6511 = vmatpush2.msra.mxu0 0.0
    %6512 = vmatprep.subr.mxu0 0.0
    %6513 = vmatpush2.msra.mxu0 0.0
    %6514 = vmatprep.subr.mxu0 0.0
    %6515 = vmatpush2.msra.mxu0 0.0
    %6516 = vmatprep.subr.mxu0 0.0
    %6517 = vmatpush2.msra.mxu0 0.0
    %6518 = vmatprep.subr.mxu0 0.0
    %6519 = vmatpush2.msra.mxu0 0.0
    %6520 = vmatprep.mubr.f32.mxu0 0.0
    %6521 = vmatmul.mubr.f32.gmra.mxu0 %v6137
    %v6522 = vpop.f32.mrf.mxu0
    %v6523 = vadd.f32 0.0, %v6522
    %v6524 = vpop.f32.mrf.mxu0
    %v6525 = vadd.f32 0.0, %v6524
    %6526 = vdwg.mxu0
    %6527 = vmatprep.subr.mxu0 0.0
    %6528 = vmatpush1.msra.mxu0 0.0
    %6529 = vmatprep.subr.mxu0 0.0
    %6530 = vmatpush1.msra.mxu0 0.0
    %6531 = vmatprep.subr.mxu0 0.0
    %6532 = vmatpush1.msra.mxu0 0.0
    %6533 = vmatprep.subr.mxu0 0.0
    %6534 = vmatpush1.msra.mxu0 0.0
    %6535 = vmatprep.subr.mxu0 0.0
    %6536 = vmatpush1.msra.mxu0 0.0
    %6537 = vmatprep.subr.mxu0 0.0
    %6538 = vmatpush1.msra.mxu0 0.0
    %6539 = vmatprep.subr.mxu0 0.0
    %6540 = vmatpush1.msra.mxu0 0.0
    %6541 = vmatprep.subr.mxu0 0.0
    %6542 = vmatpush1.msra.mxu0 0.0
    %6543 = vmatprep.subr.mxu0 0.0
    %6544 = vmatpush1.msra.mxu0 0.0
    %6545 = vmatprep.subr.mxu0 0.0
    %6546 = vmatpush1.msra.mxu0 0.0
    %6547 = vmatprep.subr.mxu0 0.0
    %6548 = vmatpush1.msra.mxu0 0.0
    %6549 = vmatprep.subr.mxu0 0.0
    %6550 = vmatpush1.msra.mxu0 0.0
    %6551 = vmatprep.subr.mxu0 %v4918
    %6552 = vmatpush1.msra.mxu0 %v4917
    %6553 = vmatprep.subr.mxu0 %v4914
    %6554 = vmatpush1.msra.mxu0 %v4913
    %6555 = vmatprep.subr.mxu0 %v4910
    %6556 = vmatpush1.msra.mxu0 %v4909
    %6557 = vmatprep.subr.mxu0 %v4906
    %6558 = vmatpush1.msra.mxu0 %v4905
    %6559 = vmatprep.subr.mxu0 0.0
    %6560 = vmatpush2.msra.mxu0 0.0
    %6561 = vmatprep.subr.mxu0 0.0
    %6562 = vmatpush2.msra.mxu0 0.0
    %6563 = vmatprep.subr.mxu0 0.0
    %6564 = vmatpush2.msra.mxu0 0.0
    %6565 = vmatprep.subr.mxu0 0.0
    %6566 = vmatpush2.msra.mxu0 0.0
    %6567 = vmatprep.subr.mxu0 0.0
    %6568 = vmatpush2.msra.mxu0 0.0
    %6569 = vmatprep.subr.mxu0 0.0
    %6570 = vmatpush2.msra.mxu0 0.0
    %6571 = vmatprep.subr.mxu0 0.0
    %6572 = vmatpush2.msra.mxu0 0.0
    %6573 = vmatprep.subr.mxu0 0.0
    %6574 = vmatpush2.msra.mxu0 0.0
    %6575 = vmatprep.subr.mxu0 0.0
    %6576 = vmatpush2.msra.mxu0 0.0
    %6577 = vmatprep.subr.mxu0 0.0
    %6578 = vmatpush2.msra.mxu0 0.0
    %6579 = vmatprep.subr.mxu0 0.0
    %6580 = vmatpush2.msra.mxu0 0.0
    %6581 = vmatprep.subr.mxu0 0.0
    %6582 = vmatpush2.msra.mxu0 0.0
    %6583 = vmatprep.subr.mxu0 0.0
    %6584 = vmatpush2.msra.mxu0 0.0
    %6585 = vmatprep.subr.mxu0 0.0
    %6586 = vmatpush2.msra.mxu0 0.0
    %6587 = vmatprep.subr.mxu0 0.0
    %6588 = vmatpush2.msra.mxu0 0.0
    %6589 = vmatprep.subr.mxu0 0.0
    %6590 = vmatpush2.msra.mxu0 0.0
    %6591 = vmatprep.mubr.f32.mxu0 0.0
    %6592 = vmatmul.mubr.f32.gmra.mxu0 %v6137
    %v6593 = vpop.f32.mrf.mxu0
    %v6594 = vadd.f32 0.0, %v6593
    %v6595 = vpop.f32.mrf.mxu0
    %v6596 = vadd.f32 0.0, %v6595
    %6597 = vdwg.mxu0
    %v6598 = vadd.f32 %v4828, %v6523
    %v6599 = vadd.f32 %v4830, %v6525
    %v6600 = vadd.f32 %v4899, %v6594
    %v6601 = vadd.f32 %v4901, %v6596
    %v6602 = vxor.u32 %v6598, 2147483648
    %v6603 = vmul.f32 %v6602, 1.442695
    %v6604 = vpow.pop %v6603
    %v6605 = vadd.f32 %v6604, 1.0
    %v6606 = vrcp.pop %v6605
    %v6607 = vmul.f32 1.0, %v6606
    %v6608 = vxor.u32 %v6599, 2147483648
    %v6609 = vmul.f32 %v6608, 1.442695
    %v6610 = vpow.pop %v6609
    %v6611 = vadd.f32 %v6610, 1.0
    %v6612 = vrcp.pop %v6611
    %v6613 = vmul.f32 1.0, %v6612
    %v6614 = vtanh.pop %v6600
    %v6615 = vxor.u32 %v6601, 2147483648
    %v6616 = vmul.f32 %v6615, 1.442695
    %v6617 = vpow.pop %v6616
    %v6618 = vadd.f32 %v6617, 1.0
    %v6619 = vrcp.pop %v6618
    %v6620 = vmul.f32 1.0, %v6619
    %v6621 = vmul.f32 %v6613, %v6133
    %v6622 = vmul.f32 %v6607, %v6614
    %v6623 = vadd.f32 %v6621, %v6622
    %v6624 = vtanh.pop %v6623
    %v6625 = vmul.f32 %v6620, %v6624
    %v6627 = vsel %vm935, %v6625, 0
    %6629 = vmatprep.subr.mxu0 0.0
    %6630 = vmatpush1.msra.mxu0 0.0
    %6631 = vmatprep.subr.mxu0 0.0
    %6632 = vmatpush1.msra.mxu0 0.0
    %6633 = vmatprep.subr.mxu0 0.0
    %6634 = vmatpush1.msra.mxu0 0.0
    %6635 = vmatprep.subr.mxu0 0.0
    %6636 = vmatpush1.msra.mxu0 0.0
    %6637 = vmatprep.subr.mxu0 0.0
    %6638 = vmatpush1.msra.mxu0 0.0
    %6639 = vmatprep.subr.mxu0 0.0
    %6640 = vmatpush1.msra.mxu0 0.0
    %6641 = vmatprep.subr.mxu0 0.0
    %6642 = vmatpush1.msra.mxu0 0.0
    %6643 = vmatprep.subr.mxu0 0.0
    %6644 = vmatpush1.msra.mxu0 0.0
    %6645 = vmatprep.subr.mxu0 0.0
    %6646 = vmatpush1.msra.mxu0 0.0
    %6647 = vmatprep.subr.mxu0 0.0
    %6648 = vmatpush1.msra.mxu0 0.0
    %6649 = vmatprep.subr.mxu0 0.0
    %6650 = vmatpush1.msra.mxu0 0.0
    %6651 = vmatprep.subr.mxu0 0.0
    %6652 = vmatpush1.msra.mxu0 0.0
    %6653 = vmatprep.subr.mxu0 %v4932
    %6654 = vmatpush1.msra.mxu0 %v4931
    %6655 = vmatprep.subr.mxu0 %v4928
    %6656 = vmatpush1.msra.mxu0 %v4927
    %6657 = vmatprep.subr.mxu0 %v4924
    %6658 = vmatpush1.msra.mxu0 %v4923
    %6659 = vmatprep.subr.mxu0 %v4920
    %6660 = vmatpush1.msra.mxu0 %v4919
    %6661 = vmatprep.subr.mxu0 0.0
    %6662 = vmatpush2.msra.mxu0 0.0
    %6663 = vmatprep.subr.mxu0 0.0
    %6664 = vmatpush2.msra.mxu0 0.0
    %6665 = vmatprep.subr.mxu0 0.0
    %6666 = vmatpush2.msra.mxu0 0.0
    %6667 = vmatprep.subr.mxu0 0.0
    %6668 = vmatpush2.msra.mxu0 0.0
    %6669 = vmatprep.subr.mxu0 0.0
    %6670 = vmatpush2.msra.mxu0 0.0
    %6671 = vmatprep.subr.mxu0 0.0
    %6672 = vmatpush2.msra.mxu0 0.0
    %6673 = vmatprep.subr.mxu0 0.0
    %6674 = vmatpush2.msra.mxu0 0.0
    %6675 = vmatprep.subr.mxu0 0.0
    %6676 = vmatpush2.msra.mxu0 0.0
    %6677 = vmatprep.subr.mxu0 0.0
    %6678 = vmatpush2.msra.mxu0 0.0
    %6679 = vmatprep.subr.mxu0 0.0
    %6680 = vmatpush2.msra.mxu0 0.0
    %6681 = vmatprep.subr.mxu0 0.0
    %6682 = vmatpush2.msra.mxu0 0.0
    %6683 = vmatprep.subr.mxu0 0.0
    %6684 = vmatpush2.msra.mxu0 0.0
    %6685 = vmatprep.subr.mxu0 0.0
    %6686 = vmatpush2.msra.mxu0 0.0
    %6687 = vmatprep.subr.mxu0 0.0
    %6688 = vmatpush2.msra.mxu0 0.0
    %6689 = vmatprep.subr.mxu0 0.0
    %6690 = vmatpush2.msra.mxu0 0.0
    %6691 = vmatprep.subr.mxu0 0.0
    %6692 = vmatpush2.msra.mxu0 0.0
    %6693 = vmatprep.mubr.f32.mxu0 0.0
    %6694 = vmatmul.mubr.f32.gmra.mxu0 %v6627
    %v6695 = vpop.f32.mrf.mxu0
    %v6696 = vadd.f32 %v5142, %v6695
    %v6697 = vpop.f32.mrf.mxu0
    %v6698 = vadd.f32 %v5146, %v6697
    %6699 = vdwg.mxu0
    %6700 = vmatprep.subr.mxu0 0.0
    %6701 = vmatpush1.msra.mxu0 0.0
    %6702 = vmatprep.subr.mxu0 0.0
    %6703 = vmatpush1.msra.mxu0 0.0
    %6704 = vmatprep.subr.mxu0 0.0
    %6705 = vmatpush1.msra.mxu0 0.0
    %6706 = vmatprep.subr.mxu0 0.0
    %6707 = vmatpush1.msra.mxu0 0.0
    %6708 = vmatprep.subr.mxu0 0.0
    %6709 = vmatpush1.msra.mxu0 0.0
    %6710 = vmatprep.subr.mxu0 0.0
    %6711 = vmatpush1.msra.mxu0 0.0
    %6712 = vmatprep.subr.mxu0 0.0
    %6713 = vmatpush1.msra.mxu0 0.0
    %6714 = vmatprep.subr.mxu0 0.0
    %6715 = vmatpush1.msra.mxu0 0.0
    %6716 = vmatprep.subr.mxu0 0.0
    %6717 = vmatpush1.msra.mxu0 0.0
    %6718 = vmatprep.subr.mxu0 0.0
    %6719 = vmatpush1.msra.mxu0 0.0
    %6720 = vmatprep.subr.mxu0 0.0
    %6721 = vmatpush1.msra.mxu0 0.0
    %6722 = vmatprep.subr.mxu0 0.0
    %6723 = vmatpush1.msra.mxu0 0.0
    %6724 = vmatprep.subr.mxu0 %v4934
    %6725 = vmatpush1.msra.mxu0 %v4933
    %6726 = vmatprep.subr.mxu0 %v4930
    %6727 = vmatpush1.msra.mxu0 %v4929
    %6728 = vmatprep.subr.mxu0 %v4926
    %6729 = vmatpush1.msra.mxu0 %v4925
    %6730 = vmatprep.subr.mxu0 %v4922
    %6731 = vmatpush1.msra.mxu0 %v4921
    %6732 = vmatprep.subr.mxu0 0.0
    %6733 = vmatpush2.msra.mxu0 0.0
    %6734 = vmatprep.subr.mxu0 0.0
    %6735 = vmatpush2.msra.mxu0 0.0
    %6736 = vmatprep.subr.mxu0 0.0
    %6737 = vmatpush2.msra.mxu0 0.0
    %6738 = vmatprep.subr.mxu0 0.0
    %6739 = vmatpush2.msra.mxu0 0.0
    %6740 = vmatprep.subr.mxu0 0.0
    %6741 = vmatpush2.msra.mxu0 0.0
    %6742 = vmatprep.subr.mxu0 0.0
    %6743 = vmatpush2.msra.mxu0 0.0
    %6744 = vmatprep.subr.mxu0 0.0
    %6745 = vmatpush2.msra.mxu0 0.0
    %6746 = vmatprep.subr.mxu0 0.0
    %6747 = vmatpush2.msra.mxu0 0.0
    %6748 = vmatprep.subr.mxu0 0.0
    %6749 = vmatpush2.msra.mxu0 0.0
    %6750 = vmatprep.subr.mxu0 0.0
    %6751 = vmatpush2.msra.mxu0 0.0
    %6752 = vmatprep.subr.mxu0 0.0
    %6753 = vmatpush2.msra.mxu0 0.0
    %6754 = vmatprep.subr.mxu0 0.0
    %6755 = vmatpush2.msra.mxu0 0.0
    %6756 = vmatprep.subr.mxu0 0.0
    %6757 = vmatpush2.msra.mxu0 0.0
    %6758 = vmatprep.subr.mxu0 0.0
    %6759 = vmatpush2.msra.mxu0 0.0
    %6760 = vmatprep.subr.mxu0 0.0
    %6761 = vmatpush2.msra.mxu0 0.0
    %6762 = vmatprep.subr.mxu0 0.0
    %6763 = vmatpush2.msra.mxu0 0.0
    %6764 = vmatprep.mubr.f32.mxu0 0.0
    %6765 = vmatmul.mubr.f32.gmra.mxu0 %v6627
    %v6766 = vpop.f32.mrf.mxu0
    %v6767 = vadd.f32 %v5150, %v6766
    %v6768 = vpop.f32.mrf.mxu0
    %v6769 = vadd.f32 %v5154, %v6768
    %6770 = vdwg.mxu0
    %v6772 = vsel %vm569, %v6453, 0
    %6774 = vmatprep.subr.mxu0 0.0
    %6775 = vmatpush1.msra.mxu0 0.0
    %6776 = vmatprep.subr.mxu0 0.0
    %6777 = vmatpush1.msra.mxu0 0.0
    %6778 = vmatprep.subr.mxu0 0.0
    %6779 = vmatpush1.msra.mxu0 0.0
    %6780 = vmatprep.subr.mxu0 0.0
    %6781 = vmatpush1.msra.mxu0 0.0
    %6782 = vmatprep.subr.mxu0 0.0
    %6783 = vmatpush1.msra.mxu0 0.0
    %6784 = vmatprep.subr.mxu0 0.0
    %6785 = vmatpush1.msra.mxu0 0.0
    %6786 = vmatprep.subr.mxu0 0.0
    %6787 = vmatpush1.msra.mxu0 0.0
    %6788 = vmatprep.subr.mxu0 0.0
    %6789 = vmatpush1.msra.mxu0 0.0
    %6790 = vmatprep.subr.mxu0 %v4964
    %6791 = vmatpush1.msra.mxu0 %v4963
    %6792 = vmatprep.subr.mxu0 %v4960
    %6793 = vmatpush1.msra.mxu0 %v4959
    %6794 = vmatprep.subr.mxu0 %v4956
    %6795 = vmatpush1.msra.mxu0 %v4955
    %6796 = vmatprep.subr.mxu0 %v4952
    %6797 = vmatpush1.msra.mxu0 %v4951
    %6798 = vmatprep.subr.mxu0 %v4948
    %6799 = vmatpush1.msra.mxu0 %v4947
    %6800 = vmatprep.subr.mxu0 %v4944
    %6801 = vmatpush1.msra.mxu0 %v4943
    %6802 = vmatprep.subr.mxu0 %v4940
    %6803 = vmatpush1.msra.mxu0 %v4939
    %6804 = vmatprep.subr.mxu0 %v4936
    %6805 = vmatpush1.msra.mxu0 %v4935
    %6806 = vmatprep.subr.mxu0 0.0
    %6807 = vmatpush2.msra.mxu0 0.0
    %6808 = vmatprep.subr.mxu0 0.0
    %6809 = vmatpush2.msra.mxu0 0.0
    %6810 = vmatprep.subr.mxu0 0.0
    %6811 = vmatpush2.msra.mxu0 0.0
    %6812 = vmatprep.subr.mxu0 0.0
    %6813 = vmatpush2.msra.mxu0 0.0
    %6814 = vmatprep.subr.mxu0 0.0
    %6815 = vmatpush2.msra.mxu0 0.0
    %6816 = vmatprep.subr.mxu0 0.0
    %6817 = vmatpush2.msra.mxu0 0.0
    %6818 = vmatprep.subr.mxu0 0.0
    %6819 = vmatpush2.msra.mxu0 0.0
    %6820 = vmatprep.subr.mxu0 0.0
    %6821 = vmatpush2.msra.mxu0 0.0
    %6822 = vmatprep.subr.mxu0 0.0
    %6823 = vmatpush2.msra.mxu0 0.0
    %6824 = vmatprep.subr.mxu0 0.0
    %6825 = vmatpush2.msra.mxu0 0.0
    %6826 = vmatprep.subr.mxu0 0.0
    %6827 = vmatpush2.msra.mxu0 0.0
    %6828 = vmatprep.subr.mxu0 0.0
    %6829 = vmatpush2.msra.mxu0 0.0
    %6830 = vmatprep.subr.mxu0 0.0
    %6831 = vmatpush2.msra.mxu0 0.0
    %6832 = vmatprep.subr.mxu0 0.0
    %6833 = vmatpush2.msra.mxu0 0.0
    %6834 = vmatprep.subr.mxu0 0.0
    %6835 = vmatpush2.msra.mxu0 0.0
    %6836 = vmatprep.subr.mxu0 0.0
    %6837 = vmatpush2.msra.mxu0 0.0
    %6838 = vmatprep.mubr.f32.mxu0 0.0
    %6839 = vmatmul.mubr.f32.gmra.mxu0 %v6772
    %v6840 = vpop.f32.mrf.mxu0
    %v6841 = vadd.f32 0.0, %v6840
    %v6842 = vpop.f32.mrf.mxu0
    %v6843 = vadd.f32 0.0, %v6842
    %6844 = vdwg.mxu0
    %6845 = vmatprep.subr.mxu0 0.0
    %6846 = vmatpush1.msra.mxu0 0.0
    %6847 = vmatprep.subr.mxu0 0.0
    %6848 = vmatpush1.msra.mxu0 0.0
    %6849 = vmatprep.subr.mxu0 0.0
    %6850 = vmatpush1.msra.mxu0 0.0
    %6851 = vmatprep.subr.mxu0 0.0
    %6852 = vmatpush1.msra.mxu0 0.0
    %6853 = vmatprep.subr.mxu0 0.0
    %6854 = vmatpush1.msra.mxu0 0.0
    %6855 = vmatprep.subr.mxu0 0.0
    %6856 = vmatpush1.msra.mxu0 0.0
    %6857 = vmatprep.subr.mxu0 0.0
    %6858 = vmatpush1.msra.mxu0 0.0
    %6859 = vmatprep.subr.mxu0 0.0
    %6860 = vmatpush1.msra.mxu0 0.0
    %6861 = vmatprep.subr.mxu0 %v4966
    %6862 = vmatpush1.msra.mxu0 %v4965
    %6863 = vmatprep.subr.mxu0 %v4962
    %6864 = vmatpush1.msra.mxu0 %v4961
    %6865 = vmatprep.subr.mxu0 %v4958
    %6866 = vmatpush1.msra.mxu0 %v4957
    %6867 = vmatprep.subr.mxu0 %v4954
    %6868 = vmatpush1.msra.mxu0 %v4953
    %6869 = vmatprep.subr.mxu0 %v4950
    %6870 = vmatpush1.msra.mxu0 %v4949
    %6871 = vmatprep.subr.mxu0 %v4946
    %6872 = vmatpush1.msra.mxu0 %v4945
    %6873 = vmatprep.subr.mxu0 %v4942
    %6874 = vmatpush1.msra.mxu0 %v4941
    %6875 = vmatprep.subr.mxu0 %v4938
    %6876 = vmatpush1.msra.mxu0 %v4937
    %6877 = vmatprep.subr.mxu0 0.0
    %6878 = vmatpush2.msra.mxu0 0.0
    %6879 = vmatprep.subr.mxu0 0.0
    %6880 = vmatpush2.msra.mxu0 0.0
    %6881 = vmatprep.subr.mxu0 0.0
    %6882 = vmatpush2.msra.mxu0 0.0
    %6883 = vmatprep.subr.mxu0 0.0
    %6884 = vmatpush2.msra.mxu0 0.0
    %6885 = vmatprep.subr.mxu0 0.0
    %6886 = vmatpush2.msra.mxu0 0.0
    %6887 = vmatprep.subr.mxu0 0.0
    %6888 = vmatpush2.msra.mxu0 0.0
    %6889 = vmatprep.subr.mxu0 0.0
    %6890 = vmatpush2.msra.mxu0 0.0
    %6891 = vmatprep.subr.mxu0 0.0
    %6892 = vmatpush2.msra.mxu0 0.0
    %6893 = vmatprep.subr.mxu0 0.0
    %6894 = vmatpush2.msra.mxu0 0.0
    %6895 = vmatprep.subr.mxu0 0.0
    %6896 = vmatpush2.msra.mxu0 0.0
    %6897 = vmatprep.subr.mxu0 0.0
    %6898 = vmatpush2.msra.mxu0 0.0
    %6899 = vmatprep.subr.mxu0 0.0
    %6900 = vmatpush2.msra.mxu0 0.0
    %6901 = vmatprep.subr.mxu0 0.0
    %6902 = vmatpush2.msra.mxu0 0.0
    %6903 = vmatprep.subr.mxu0 0.0
    %6904 = vmatpush2.msra.mxu0 0.0
    %6905 = vmatprep.subr.mxu0 0.0
    %6906 = vmatpush2.msra.mxu0 0.0
    %6907 = vmatprep.subr.mxu0 0.0
    %6908 = vmatpush2.msra.mxu0 0.0
    %6909 = vmatprep.mubr.f32.mxu0 0.0
    %6910 = vmatmul.mubr.f32.gmra.mxu0 %v6772
    %v6911 = vpop.f32.mrf.mxu0
    %v6912 = vadd.f32 0.0, %v6911
    %v6913 = vpop.f32.mrf.mxu0
    %v6914 = vadd.f32 0.0, %v6913
    %6915 = vdwg.mxu0
    %v6916 = vadd.f32 %v6696, %v6841
    %v6917 = vadd.f32 %v6698, %v6843
    %v6918 = vadd.f32 %v6767, %v6912
    %v6919 = vadd.f32 %v6769, %v6914
    %v6920 = vxor.u32 %v6916, 2147483648
    %v6921 = vmul.f32 %v6920, 1.442695
    %v6922 = vpow.pop %v6921
    %v6923 = vadd.f32 %v6922, 1.0
    %v6924 = vrcp.pop %v6923
    %v6925 = vmul.f32 1.0, %v6924
    %v6926 = vxor.u32 %v6917, 2147483648
    %v6927 = vmul.f32 %v6926, 1.442695
    %v6928 = vpow.pop %v6927
    %v6929 = vadd.f32 %v6928, 1.0
    %v6930 = vrcp.pop %v6929
    %v6931 = vmul.f32 1.0, %v6930
    %v6932 = vtanh.pop %v6918
    %v6933 = vxor.u32 %v6919, 2147483648
    %v6934 = vmul.f32 %v6933, 1.442695
    %v6935 = vpow.pop %v6934
    %v6936 = vadd.f32 %v6935, 1.0
    %v6937 = vrcp.pop %v6936
    %v6938 = vmul.f32 1.0, %v6937
    %v6939 = vmul.f32 %v6931, %v6451
    %v6940 = vmul.f32 %v6925, %v6932
    %v6941 = vadd.f32 %v6939, %v6940
    %v6942 = vtanh.pop %v6941
    %v6943 = vmul.f32 %v6938, %v6942
    %s6944 = scalar_lea.vmem [#allocation3], 6
    %6945 = vst.msk [vmem:[%s6944] sm:$0x3] %vm5474, %v6943
    %6946 = vmatprep.subr.mxu0 0.0
    %6947 = vmatpush1.msra.mxu0 0.0
    %6948 = vmatprep.subr.mxu0 0.0
    %6949 = vmatpush1.msra.mxu0 0.0
    %6950 = vmatprep.subr.mxu0 0.0
    %6951 = vmatpush1.msra.mxu0 0.0
    %6952 = vmatprep.subr.mxu0 0.0
    %6953 = vmatpush1.msra.mxu0 0.0
    %6954 = vmatprep.subr.mxu0 0.0
    %6955 = vmatpush1.msra.mxu0 0.0
    %6956 = vmatprep.subr.mxu0 0.0
    %6957 = vmatpush1.msra.mxu0 0.0
    %6958 = vmatprep.subr.mxu0 0.0
    %6959 = vmatpush1.msra.mxu0 0.0
    %6960 = vmatprep.subr.mxu0 0.0
    %6961 = vmatpush1.msra.mxu0 0.0
    %6962 = vmatprep.subr.mxu0 0.0
    %6963 = vmatpush1.msra.mxu0 0.0
    %6964 = vmatprep.subr.mxu0 0.0
    %6965 = vmatpush1.msra.mxu0 0.0
    %6966 = vmatprep.subr.mxu0 0.0
    %6967 = vmatpush1.msra.mxu0 0.0
    %6968 = vmatprep.subr.mxu0 0.0
    %6969 = vmatpush1.msra.mxu0 0.0
    %6970 = vmatprep.subr.mxu0 %v4916
    %6971 = vmatpush1.msra.mxu0 %v4915
    %6972 = vmatprep.subr.mxu0 %v4912
    %6973 = vmatpush1.msra.mxu0 %v4911
    %6974 = vmatprep.subr.mxu0 %v4908
    %6975 = vmatpush1.msra.mxu0 %v4907
    %6976 = vmatprep.subr.mxu0 %v4904
    %6977 = vmatpush1.msra.mxu0 %v4903
    %6978 = vmatprep.subr.mxu0 0.0
    %6979 = vmatpush2.msra.mxu0 0.0
    %6980 = vmatprep.subr.mxu0 0.0
    %6981 = vmatpush2.msra.mxu0 0.0
    %6982 = vmatprep.subr.mxu0 0.0
    %6983 = vmatpush2.msra.mxu0 0.0
    %6984 = vmatprep.subr.mxu0 0.0
    %6985 = vmatpush2.msra.mxu0 0.0
    %6986 = vmatprep.subr.mxu0 0.0
    %6987 = vmatpush2.msra.mxu0 0.0
    %6988 = vmatprep.subr.mxu0 0.0
    %6989 = vmatpush2.msra.mxu0 0.0
    %6990 = vmatprep.subr.mxu0 0.0
    %6991 = vmatpush2.msra.mxu0 0.0
    %6992 = vmatprep.subr.mxu0 0.0
    %6993 = vmatpush2.msra.mxu0 0.0
    %6994 = vmatprep.subr.mxu0 0.0
    %6995 = vmatpush2.msra.mxu0 0.0
    %6996 = vmatprep.subr.mxu0 0.0
    %6997 = vmatpush2.msra.mxu0 0.0
    %6998 = vmatprep.subr.mxu0 0.0
    %6999 = vmatpush2.msra.mxu0 0.0
    %7000 = vmatprep.subr.mxu0 0.0
    %7001 = vmatpush2.msra.mxu0 0.0
    %7002 = vmatprep.subr.mxu0 0.0
    %7003 = vmatpush2.msra.mxu0 0.0
    %7004 = vmatprep.subr.mxu0 0.0
    %7005 = vmatpush2.msra.mxu0 0.0
    %7006 = vmatprep.subr.mxu0 0.0
    %7007 = vmatpush2.msra.mxu0 0.0
    %7008 = vmatprep.subr.mxu0 0.0
    %7009 = vmatpush2.msra.mxu0 0.0
    %7010 = vmatprep.mubr.f32.mxu0 0.0
    %7011 = vmatmul.mubr.f32.gmra.mxu0 %v6627
    %v7012 = vpop.f32.mrf.mxu0
    %v7013 = vadd.f32 0.0, %v7012
    %v7014 = vpop.f32.mrf.mxu0
    %v7015 = vadd.f32 0.0, %v7014
    %7016 = vdwg.mxu0
    %7017 = vmatprep.subr.mxu0 0.0
    %7018 = vmatpush1.msra.mxu0 0.0
    %7019 = vmatprep.subr.mxu0 0.0
    %7020 = vmatpush1.msra.mxu0 0.0
    %7021 = vmatprep.subr.mxu0 0.0
    %7022 = vmatpush1.msra.mxu0 0.0
    %7023 = vmatprep.subr.mxu0 0.0
    %7024 = vmatpush1.msra.mxu0 0.0
    %7025 = vmatprep.subr.mxu0 0.0
    %7026 = vmatpush1.msra.mxu0 0.0
    %7027 = vmatprep.subr.mxu0 0.0
    %7028 = vmatpush1.msra.mxu0 0.0
    %7029 = vmatprep.subr.mxu0 0.0
    %7030 = vmatpush1.msra.mxu0 0.0
    %7031 = vmatprep.subr.mxu0 0.0
    %7032 = vmatpush1.msra.mxu0 0.0
    %7033 = vmatprep.subr.mxu0 0.0
    %7034 = vmatpush1.msra.mxu0 0.0
    %7035 = vmatprep.subr.mxu0 0.0
    %7036 = vmatpush1.msra.mxu0 0.0
    %7037 = vmatprep.subr.mxu0 0.0
    %7038 = vmatpush1.msra.mxu0 0.0
    %7039 = vmatprep.subr.mxu0 0.0
    %7040 = vmatpush1.msra.mxu0 0.0
    %7041 = vmatprep.subr.mxu0 %v4918
    %7042 = vmatpush1.msra.mxu0 %v4917
    %7043 = vmatprep.subr.mxu0 %v4914
    %7044 = vmatpush1.msra.mxu0 %v4913
    %7045 = vmatprep.subr.mxu0 %v4910
    %7046 = vmatpush1.msra.mxu0 %v4909
    %7047 = vmatprep.subr.mxu0 %v4906
    %7048 = vmatpush1.msra.mxu0 %v4905
    %7049 = vmatprep.subr.mxu0 0.0
    %7050 = vmatpush2.msra.mxu0 0.0
    %7051 = vmatprep.subr.mxu0 0.0
    %7052 = vmatpush2.msra.mxu0 0.0
    %7053 = vmatprep.subr.mxu0 0.0
    %7054 = vmatpush2.msra.mxu0 0.0
    %7055 = vmatprep.subr.mxu0 0.0
    %7056 = vmatpush2.msra.mxu0 0.0
    %7057 = vmatprep.subr.mxu0 0.0
    %7058 = vmatpush2.msra.mxu0 0.0
    %7059 = vmatprep.subr.mxu0 0.0
    %7060 = vmatpush2.msra.mxu0 0.0
    %7061 = vmatprep.subr.mxu0 0.0
    %7062 = vmatpush2.msra.mxu0 0.0
    %7063 = vmatprep.subr.mxu0 0.0
    %7064 = vmatpush2.msra.mxu0 0.0
    %7065 = vmatprep.subr.mxu0 0.0
    %7066 = vmatpush2.msra.mxu0 0.0
    %7067 = vmatprep.subr.mxu0 0.0
    %7068 = vmatpush2.msra.mxu0 0.0
    %7069 = vmatprep.subr.mxu0 0.0
    %7070 = vmatpush2.msra.mxu0 0.0
    %7071 = vmatprep.subr.mxu0 0.0
    %7072 = vmatpush2.msra.mxu0 0.0
    %7073 = vmatprep.subr.mxu0 0.0
    %7074 = vmatpush2.msra.mxu0 0.0
    %7075 = vmatprep.subr.mxu0 0.0
    %7076 = vmatpush2.msra.mxu0 0.0
    %7077 = vmatprep.subr.mxu0 0.0
    %7078 = vmatpush2.msra.mxu0 0.0
    %7079 = vmatprep.subr.mxu0 0.0
    %7080 = vmatpush2.msra.mxu0 0.0
    %7081 = vmatprep.mubr.f32.mxu0 0.0
    %7082 = vmatmul.mubr.f32.gmra.mxu0 %v6627
    %v7083 = vpop.f32.mrf.mxu0
    %v7084 = vadd.f32 0.0, %v7083
    %v7085 = vpop.f32.mrf.mxu0
    %v7086 = vadd.f32 0.0, %v7085
    %7087 = vdwg.mxu0
    %v7088 = vadd.f32 %v4828, %v7013
    %v7089 = vadd.f32 %v4830, %v7015
    %v7090 = vadd.f32 %v4899, %v7084
    %v7091 = vadd.f32 %v4901, %v7086
    %v7092 = vxor.u32 %v7088, 2147483648
    %v7093 = vmul.f32 %v7092, 1.442695
    %v7094 = vpow.pop %v7093
    %v7095 = vadd.f32 %v7094, 1.0
    %v7096 = vrcp.pop %v7095
    %v7097 = vmul.f32 1.0, %v7096
    %v7098 = vxor.u32 %v7089, 2147483648
    %v7099 = vmul.f32 %v7098, 1.442695
    %v7100 = vpow.pop %v7099
    %v7101 = vadd.f32 %v7100, 1.0
    %v7102 = vrcp.pop %v7101
    %v7103 = vmul.f32 1.0, %v7102
    %v7104 = vtanh.pop %v7090
    %v7105 = vxor.u32 %v7091, 2147483648
    %v7106 = vmul.f32 %v7105, 1.442695
    %v7107 = vpow.pop %v7106
    %v7108 = vadd.f32 %v7107, 1.0
    %v7109 = vrcp.pop %v7108
    %v7110 = vmul.f32 1.0, %v7109
    %v7111 = vmul.f32 %v7103, %v6623
    %v7112 = vmul.f32 %v7097, %v7104
    %v7113 = vadd.f32 %v7111, %v7112
    %v7114 = vtanh.pop %v7113
    %v7115 = vmul.f32 %v7110, %v7114
    %v7117 = vsel %vm935, %v7115, 0
    %7119 = vmatprep.subr.mxu0 0.0
    %7120 = vmatpush1.msra.mxu0 0.0
    %7121 = vmatprep.subr.mxu0 0.0
    %7122 = vmatpush1.msra.mxu0 0.0
    %7123 = vmatprep.subr.mxu0 0.0
    %7124 = vmatpush1.msra.mxu0 0.0
    %7125 = vmatprep.subr.mxu0 0.0
    %7126 = vmatpush1.msra.mxu0 0.0
    %7127 = vmatprep.subr.mxu0 0.0
    %7128 = vmatpush1.msra.mxu0 0.0
    %7129 = vmatprep.subr.mxu0 0.0
    %7130 = vmatpush1.msra.mxu0 0.0
    %7131 = vmatprep.subr.mxu0 0.0
    %7132 = vmatpush1.msra.mxu0 0.0
    %7133 = vmatprep.subr.mxu0 0.0
    %7134 = vmatpush1.msra.mxu0 0.0
    %7135 = vmatprep.subr.mxu0 0.0
    %7136 = vmatpush1.msra.mxu0 0.0
    %7137 = vmatprep.subr.mxu0 0.0
    %7138 = vmatpush1.msra.mxu0 0.0
    %7139 = vmatprep.subr.mxu0 0.0
    %7140 = vmatpush1.msra.mxu0 0.0
    %7141 = vmatprep.subr.mxu0 0.0
    %7142 = vmatpush1.msra.mxu0 0.0
    %7143 = vmatprep.subr.mxu0 %v4932
    %7144 = vmatpush1.msra.mxu0 %v4931
    %7145 = vmatprep.subr.mxu0 %v4928
    %7146 = vmatpush1.msra.mxu0 %v4927
    %7147 = vmatprep.subr.mxu0 %v4924
    %7148 = vmatpush1.msra.mxu0 %v4923
    %7149 = vmatprep.subr.mxu0 %v4920
    %7150 = vmatpush1.msra.mxu0 %v4919
    %7151 = vmatprep.subr.mxu0 0.0
    %7152 = vmatpush2.msra.mxu0 0.0
    %7153 = vmatprep.subr.mxu0 0.0
    %7154 = vmatpush2.msra.mxu0 0.0
    %7155 = vmatprep.subr.mxu0 0.0
    %7156 = vmatpush2.msra.mxu0 0.0
    %7157 = vmatprep.subr.mxu0 0.0
    %7158 = vmatpush2.msra.mxu0 0.0
    %7159 = vmatprep.subr.mxu0 0.0
    %7160 = vmatpush2.msra.mxu0 0.0
    %7161 = vmatprep.subr.mxu0 0.0
    %7162 = vmatpush2.msra.mxu0 0.0
    %7163 = vmatprep.subr.mxu0 0.0
    %7164 = vmatpush2.msra.mxu0 0.0
    %7165 = vmatprep.subr.mxu0 0.0
    %7166 = vmatpush2.msra.mxu0 0.0
    %7167 = vmatprep.subr.mxu0 0.0
    %7168 = vmatpush2.msra.mxu0 0.0
    %7169 = vmatprep.subr.mxu0 0.0
    %7170 = vmatpush2.msra.mxu0 0.0
    %7171 = vmatprep.subr.mxu0 0.0
    %7172 = vmatpush2.msra.mxu0 0.0
    %7173 = vmatprep.subr.mxu0 0.0
    %7174 = vmatpush2.msra.mxu0 0.0
    %7175 = vmatprep.subr.mxu0 0.0
    %7176 = vmatpush2.msra.mxu0 0.0
    %7177 = vmatprep.subr.mxu0 0.0
    %7178 = vmatpush2.msra.mxu0 0.0
    %7179 = vmatprep.subr.mxu0 0.0
    %7180 = vmatpush2.msra.mxu0 0.0
    %7181 = vmatprep.subr.mxu0 0.0
    %7182 = vmatpush2.msra.mxu0 0.0
    %7183 = vmatprep.mubr.f32.mxu0 0.0
    %7184 = vmatmul.mubr.f32.gmra.mxu0 %v7117
    %v7185 = vpop.f32.mrf.mxu0
    %v7186 = vadd.f32 %v5142, %v7185
    %v7187 = vpop.f32.mrf.mxu0
    %v7188 = vadd.f32 %v5146, %v7187
    %7189 = vdwg.mxu0
    %7190 = vmatprep.subr.mxu0 0.0
    %7191 = vmatpush1.msra.mxu0 0.0
    %7192 = vmatprep.subr.mxu0 0.0
    %7193 = vmatpush1.msra.mxu0 0.0
    %7194 = vmatprep.subr.mxu0 0.0
    %7195 = vmatpush1.msra.mxu0 0.0
    %7196 = vmatprep.subr.mxu0 0.0
    %7197 = vmatpush1.msra.mxu0 0.0
    %7198 = vmatprep.subr.mxu0 0.0
    %7199 = vmatpush1.msra.mxu0 0.0
    %7200 = vmatprep.subr.mxu0 0.0
    %7201 = vmatpush1.msra.mxu0 0.0
    %7202 = vmatprep.subr.mxu0 0.0
    %7203 = vmatpush1.msra.mxu0 0.0
    %7204 = vmatprep.subr.mxu0 0.0
    %7205 = vmatpush1.msra.mxu0 0.0
    %7206 = vmatprep.subr.mxu0 0.0
    %7207 = vmatpush1.msra.mxu0 0.0
    %7208 = vmatprep.subr.mxu0 0.0
    %7209 = vmatpush1.msra.mxu0 0.0
    %7210 = vmatprep.subr.mxu0 0.0
    %7211 = vmatpush1.msra.mxu0 0.0
    %7212 = vmatprep.subr.mxu0 0.0
    %7213 = vmatpush1.msra.mxu0 0.0
    %7214 = vmatprep.subr.mxu0 %v4934
    %7215 = vmatpush1.msra.mxu0 %v4933
    %7216 = vmatprep.subr.mxu0 %v4930
    %7217 = vmatpush1.msra.mxu0 %v4929
    %7218 = vmatprep.subr.mxu0 %v4926
    %7219 = vmatpush1.msra.mxu0 %v4925
    %7220 = vmatprep.subr.mxu0 %v4922
    %7221 = vmatpush1.msra.mxu0 %v4921
    %7222 = vmatprep.subr.mxu0 0.0
    %7223 = vmatpush2.msra.mxu0 0.0
    %7224 = vmatprep.subr.mxu0 0.0
    %7225 = vmatpush2.msra.mxu0 0.0
    %7226 = vmatprep.subr.mxu0 0.0
    %7227 = vmatpush2.msra.mxu0 0.0
    %7228 = vmatprep.subr.mxu0 0.0
    %7229 = vmatpush2.msra.mxu0 0.0
    %7230 = vmatprep.subr.mxu0 0.0
    %7231 = vmatpush2.msra.mxu0 0.0
    %7232 = vmatprep.subr.mxu0 0.0
    %7233 = vmatpush2.msra.mxu0 0.0
    %7234 = vmatprep.subr.mxu0 0.0
    %7235 = vmatpush2.msra.mxu0 0.0
    %7236 = vmatprep.subr.mxu0 0.0
    %7237 = vmatpush2.msra.mxu0 0.0
    %7238 = vmatprep.subr.mxu0 0.0
    %7239 = vmatpush2.msra.mxu0 0.0
    %7240 = vmatprep.subr.mxu0 0.0
    %7241 = vmatpush2.msra.mxu0 0.0
    %7242 = vmatprep.subr.mxu0 0.0
    %7243 = vmatpush2.msra.mxu0 0.0
    %7244 = vmatprep.subr.mxu0 0.0
    %7245 = vmatpush2.msra.mxu0 0.0
    %7246 = vmatprep.subr.mxu0 0.0
    %7247 = vmatpush2.msra.mxu0 0.0
    %7248 = vmatprep.subr.mxu0 0.0
    %7249 = vmatpush2.msra.mxu0 0.0
    %7250 = vmatprep.subr.mxu0 0.0
    %7251 = vmatpush2.msra.mxu0 0.0
    %7252 = vmatprep.subr.mxu0 0.0
    %7253 = vmatpush2.msra.mxu0 0.0
    %7254 = vmatprep.mubr.f32.mxu0 0.0
    %7255 = vmatmul.mubr.f32.gmra.mxu0 %v7117
    %v7256 = vpop.f32.mrf.mxu0
    %v7257 = vadd.f32 %v5150, %v7256
    %v7258 = vpop.f32.mrf.mxu0
    %v7259 = vadd.f32 %v5154, %v7258
    %7260 = vdwg.mxu0
    %v7262 = vsel %vm569, %v6943, 0
    %7264 = vmatprep.subr.mxu0 0.0
    %7265 = vmatpush1.msra.mxu0 0.0
    %7266 = vmatprep.subr.mxu0 0.0
    %7267 = vmatpush1.msra.mxu0 0.0
    %7268 = vmatprep.subr.mxu0 0.0
    %7269 = vmatpush1.msra.mxu0 0.0
    %7270 = vmatprep.subr.mxu0 0.0
    %7271 = vmatpush1.msra.mxu0 0.0
    %7272 = vmatprep.subr.mxu0 0.0
    %7273 = vmatpush1.msra.mxu0 0.0
    %7274 = vmatprep.subr.mxu0 0.0
    %7275 = vmatpush1.msra.mxu0 0.0
    %7276 = vmatprep.subr.mxu0 0.0
    %7277 = vmatpush1.msra.mxu0 0.0
    %7278 = vmatprep.subr.mxu0 0.0
    %7279 = vmatpush1.msra.mxu0 0.0
    %7280 = vmatprep.subr.mxu0 %v4964
    %7281 = vmatpush1.msra.mxu0 %v4963
    %7282 = vmatprep.subr.mxu0 %v4960
    %7283 = vmatpush1.msra.mxu0 %v4959
    %7284 = vmatprep.subr.mxu0 %v4956
    %7285 = vmatpush1.msra.mxu0 %v4955
    %7286 = vmatprep.subr.mxu0 %v4952
    %7287 = vmatpush1.msra.mxu0 %v4951
    %7288 = vmatprep.subr.mxu0 %v4948
    %7289 = vmatpush1.msra.mxu0 %v4947
    %7290 = vmatprep.subr.mxu0 %v4944
    %7291 = vmatpush1.msra.mxu0 %v4943
    %7292 = vmatprep.subr.mxu0 %v4940
    %7293 = vmatpush1.msra.mxu0 %v4939
    %7294 = vmatprep.subr.mxu0 %v4936
    %7295 = vmatpush1.msra.mxu0 %v4935
    %7296 = vmatprep.subr.mxu0 0.0
    %7297 = vmatpush2.msra.mxu0 0.0
    %7298 = vmatprep.subr.mxu0 0.0
    %7299 = vmatpush2.msra.mxu0 0.0
    %7300 = vmatprep.subr.mxu0 0.0
    %7301 = vmatpush2.msra.mxu0 0.0
    %7302 = vmatprep.subr.mxu0 0.0
    %7303 = vmatpush2.msra.mxu0 0.0
    %7304 = vmatprep.subr.mxu0 0.0
    %7305 = vmatpush2.msra.mxu0 0.0
    %7306 = vmatprep.subr.mxu0 0.0
    %7307 = vmatpush2.msra.mxu0 0.0
    %7308 = vmatprep.subr.mxu0 0.0
    %7309 = vmatpush2.msra.mxu0 0.0
    %7310 = vmatprep.subr.mxu0 0.0
    %7311 = vmatpush2.msra.mxu0 0.0
    %7312 = vmatprep.subr.mxu0 0.0
    %7313 = vmatpush2.msra.mxu0 0.0
    %7314 = vmatprep.subr.mxu0 0.0
    %7315 = vmatpush2.msra.mxu0 0.0
    %7316 = vmatprep.subr.mxu0 0.0
    %7317 = vmatpush2.msra.mxu0 0.0
    %7318 = vmatprep.subr.mxu0 0.0
    %7319 = vmatpush2.msra.mxu0 0.0
    %7320 = vmatprep.subr.mxu0 0.0
    %7321 = vmatpush2.msra.mxu0 0.0
    %7322 = vmatprep.subr.mxu0 0.0
    %7323 = vmatpush2.msra.mxu0 0.0
    %7324 = vmatprep.subr.mxu0 0.0
    %7325 = vmatpush2.msra.mxu0 0.0
    %7326 = vmatprep.subr.mxu0 0.0
    %7327 = vmatpush2.msra.mxu0 0.0
    %7328 = vmatprep.mubr.f32.mxu0 0.0
    %7329 = vmatmul.mubr.f32.gmra.mxu0 %v7262
    %v7330 = vpop.f32.mrf.mxu0
    %v7331 = vadd.f32 0.0, %v7330
    %v7332 = vpop.f32.mrf.mxu0
    %v7333 = vadd.f32 0.0, %v7332
    %7334 = vdwg.mxu0
    %7335 = vmatprep.subr.mxu0 0.0
    %7336 = vmatpush1.msra.mxu0 0.0
    %7337 = vmatprep.subr.mxu0 0.0
    %7338 = vmatpush1.msra.mxu0 0.0
    %7339 = vmatprep.subr.mxu0 0.0
    %7340 = vmatpush1.msra.mxu0 0.0
    %7341 = vmatprep.subr.mxu0 0.0
    %7342 = vmatpush1.msra.mxu0 0.0
    %7343 = vmatprep.subr.mxu0 0.0
    %7344 = vmatpush1.msra.mxu0 0.0
    %7345 = vmatprep.subr.mxu0 0.0
    %7346 = vmatpush1.msra.mxu0 0.0
    %7347 = vmatprep.subr.mxu0 0.0
    %7348 = vmatpush1.msra.mxu0 0.0
    %7349 = vmatprep.subr.mxu0 0.0
    %7350 = vmatpush1.msra.mxu0 0.0
    %7351 = vmatprep.subr.mxu0 %v4966
    %7352 = vmatpush1.msra.mxu0 %v4965
    %7353 = vmatprep.subr.mxu0 %v4962
    %7354 = vmatpush1.msra.mxu0 %v4961
    %7355 = vmatprep.subr.mxu0 %v4958
    %7356 = vmatpush1.msra.mxu0 %v4957
    %7357 = vmatprep.subr.mxu0 %v4954
    %7358 = vmatpush1.msra.mxu0 %v4953
    %7359 = vmatprep.subr.mxu0 %v4950
    %7360 = vmatpush1.msra.mxu0 %v4949
    %7361 = vmatprep.subr.mxu0 %v4946
    %7362 = vmatpush1.msra.mxu0 %v4945
    %7363 = vmatprep.subr.mxu0 %v4942
    %7364 = vmatpush1.msra.mxu0 %v4941
    %7365 = vmatprep.subr.mxu0 %v4938
    %7366 = vmatpush1.msra.mxu0 %v4937
    %7367 = vmatprep.subr.mxu0 0.0
    %7368 = vmatpush2.msra.mxu0 0.0
    %7369 = vmatprep.subr.mxu0 0.0
    %7370 = vmatpush2.msra.mxu0 0.0
    %7371 = vmatprep.subr.mxu0 0.0
    %7372 = vmatpush2.msra.mxu0 0.0
    %7373 = vmatprep.subr.mxu0 0.0
    %7374 = vmatpush2.msra.mxu0 0.0
    %7375 = vmatprep.subr.mxu0 0.0
    %7376 = vmatpush2.msra.mxu0 0.0
    %7377 = vmatprep.subr.mxu0 0.0
    %7378 = vmatpush2.msra.mxu0 0.0
    %7379 = vmatprep.subr.mxu0 0.0
    %7380 = vmatpush2.msra.mxu0 0.0
    %7381 = vmatprep.subr.mxu0 0.0
    %7382 = vmatpush2.msra.mxu0 0.0
    %7383 = vmatprep.subr.mxu0 0.0
    %7384 = vmatpush2.msra.mxu0 0.0
    %7385 = vmatprep.subr.mxu0 0.0
    %7386 = vmatpush2.msra.mxu0 0.0
    %7387 = vmatprep.subr.mxu0 0.0
    %7388 = vmatpush2.msra.mxu0 0.0
    %7389 = vmatprep.subr.mxu0 0.0
    %7390 = vmatpush2.msra.mxu0 0.0
    %7391 = vmatprep.subr.mxu0 0.0
    %7392 = vmatpush2.msra.mxu0 0.0
    %7393 = vmatprep.subr.mxu0 0.0
    %7394 = vmatpush2.msra.mxu0 0.0
    %7395 = vmatprep.subr.mxu0 0.0
    %7396 = vmatpush2.msra.mxu0 0.0
    %7397 = vmatprep.subr.mxu0 0.0
    %7398 = vmatpush2.msra.mxu0 0.0
    %7399 = vmatprep.mubr.f32.mxu0 0.0
    %7400 = vmatmul.mubr.f32.gmra.mxu0 %v7262
    %v7401 = vpop.f32.mrf.mxu0
    %v7402 = vadd.f32 0.0, %v7401
    %v7403 = vpop.f32.mrf.mxu0
    %v7404 = vadd.f32 0.0, %v7403
    %7405 = vdwg.mxu0
    %v7406 = vadd.f32 %v7186, %v7331
    %v7407 = vadd.f32 %v7188, %v7333
    %v7408 = vadd.f32 %v7257, %v7402
    %v7409 = vadd.f32 %v7259, %v7404
    %v7410 = vxor.u32 %v7406, 2147483648
    %v7411 = vmul.f32 %v7410, 1.442695
    %v7412 = vpow.pop %v7411
    %v7413 = vadd.f32 %v7412, 1.0
    %v7414 = vrcp.pop %v7413
    %v7415 = vmul.f32 1.0, %v7414
    %v7416 = vxor.u32 %v7407, 2147483648
    %v7417 = vmul.f32 %v7416, 1.442695
    %v7418 = vpow.pop %v7417
    %v7419 = vadd.f32 %v7418, 1.0
    %v7420 = vrcp.pop %v7419
    %v7421 = vmul.f32 1.0, %v7420
    %v7422 = vtanh.pop %v7408
    %v7423 = vxor.u32 %v7409, 2147483648
    %v7424 = vmul.f32 %v7423, 1.442695
    %v7425 = vpow.pop %v7424
    %v7426 = vadd.f32 %v7425, 1.0
    %v7427 = vrcp.pop %v7426
    %v7428 = vmul.f32 1.0, %v7427
    %v7429 = vmul.f32 %v7421, %v6941
    %v7430 = vmul.f32 %v7415, %v7422
    %v7431 = vadd.f32 %v7429, %v7430
    %v7432 = vtanh.pop %v7431
    %v7433 = vmul.f32 %v7428, %v7432
    %s7434 = scalar_lea.vmem [#allocation3], 8
    %7435 = vst.msk [vmem:[%s7434] sm:$0x3] %vm5474, %v7433
    %7436 = vmatprep.subr.mxu0 0.0
    %7437 = vmatpush1.msra.mxu0 0.0
    %7438 = vmatprep.subr.mxu0 0.0
    %7439 = vmatpush1.msra.mxu0 0.0
    %7440 = vmatprep.subr.mxu0 0.0
    %7441 = vmatpush1.msra.mxu0 0.0
    %7442 = vmatprep.subr.mxu0 0.0
    %7443 = vmatpush1.msra.mxu0 0.0
    %7444 = vmatprep.subr.mxu0 0.0
    %7445 = vmatpush1.msra.mxu0 0.0
    %7446 = vmatprep.subr.mxu0 0.0
    %7447 = vmatpush1.msra.mxu0 0.0
    %7448 = vmatprep.subr.mxu0 0.0
    %7449 = vmatpush1.msra.mxu0 0.0
    %7450 = vmatprep.subr.mxu0 0.0
    %7451 = vmatpush1.msra.mxu0 0.0
    %7452 = vmatprep.subr.mxu0 0.0
    %7453 = vmatpush1.msra.mxu0 0.0
    %7454 = vmatprep.subr.mxu0 0.0
    %7455 = vmatpush1.msra.mxu0 0.0
    %7456 = vmatprep.subr.mxu0 0.0
    %7457 = vmatpush1.msra.mxu0 0.0
    %7458 = vmatprep.subr.mxu0 0.0
    %7459 = vmatpush1.msra.mxu0 0.0
    %7460 = vmatprep.subr.mxu0 %v4916
    %7461 = vmatpush1.msra.mxu0 %v4915
    %7462 = vmatprep.subr.mxu0 %v4912
    %7463 = vmatpush1.msra.mxu0 %v4911
    %7464 = vmatprep.subr.mxu0 %v4908
    %7465 = vmatpush1.msra.mxu0 %v4907
    %7466 = vmatprep.subr.mxu0 %v4904
    %7467 = vmatpush1.msra.mxu0 %v4903
    %7468 = vmatprep.subr.mxu0 0.0
    %7469 = vmatpush2.msra.mxu0 0.0
    %7470 = vmatprep.subr.mxu0 0.0
    %7471 = vmatpush2.msra.mxu0 0.0
    %7472 = vmatprep.subr.mxu0 0.0
    %7473 = vmatpush2.msra.mxu0 0.0
    %7474 = vmatprep.subr.mxu0 0.0
    %7475 = vmatpush2.msra.mxu0 0.0
    %7476 = vmatprep.subr.mxu0 0.0
    %7477 = vmatpush2.msra.mxu0 0.0
    %7478 = vmatprep.subr.mxu0 0.0
    %7479 = vmatpush2.msra.mxu0 0.0
    %7480 = vmatprep.subr.mxu0 0.0
    %7481 = vmatpush2.msra.mxu0 0.0
    %7482 = vmatprep.subr.mxu0 0.0
    %7483 = vmatpush2.msra.mxu0 0.0
    %7484 = vmatprep.subr.mxu0 0.0
    %7485 = vmatpush2.msra.mxu0 0.0
    %7486 = vmatprep.subr.mxu0 0.0
    %7487 = vmatpush2.msra.mxu0 0.0
    %7488 = vmatprep.subr.mxu0 0.0
    %7489 = vmatpush2.msra.mxu0 0.0
    %7490 = vmatprep.subr.mxu0 0.0
    %7491 = vmatpush2.msra.mxu0 0.0
    %7492 = vmatprep.subr.mxu0 0.0
    %7493 = vmatpush2.msra.mxu0 0.0
    %7494 = vmatprep.subr.mxu0 0.0
    %7495 = vmatpush2.msra.mxu0 0.0
    %7496 = vmatprep.subr.mxu0 0.0
    %7497 = vmatpush2.msra.mxu0 0.0
    %7498 = vmatprep.subr.mxu0 0.0
    %7499 = vmatpush2.msra.mxu0 0.0
    %7500 = vmatprep.mubr.f32.mxu0 0.0
    %7501 = vmatmul.mubr.f32.gmra.mxu0 %v7117
    %v7502 = vpop.f32.mrf.mxu0
    %v7503 = vadd.f32 0.0, %v7502
    %v7504 = vpop.f32.mrf.mxu0
    %v7505 = vadd.f32 0.0, %v7504
    %7506 = vdwg.mxu0
    %7507 = vmatprep.subr.mxu0 0.0
    %7508 = vmatpush1.msra.mxu0 0.0
    %7509 = vmatprep.subr.mxu0 0.0
    %7510 = vmatpush1.msra.mxu0 0.0
    %7511 = vmatprep.subr.mxu0 0.0
    %7512 = vmatpush1.msra.mxu0 0.0
    %7513 = vmatprep.subr.mxu0 0.0
    %7514 = vmatpush1.msra.mxu0 0.0
    %7515 = vmatprep.subr.mxu0 0.0
    %7516 = vmatpush1.msra.mxu0 0.0
    %7517 = vmatprep.subr.mxu0 0.0
    %7518 = vmatpush1.msra.mxu0 0.0
    %7519 = vmatprep.subr.mxu0 0.0
    %7520 = vmatpush1.msra.mxu0 0.0
    %7521 = vmatprep.subr.mxu0 0.0
    %7522 = vmatpush1.msra.mxu0 0.0
    %7523 = vmatprep.subr.mxu0 0.0
    %7524 = vmatpush1.msra.mxu0 0.0
    %7525 = vmatprep.subr.mxu0 0.0
    %7526 = vmatpush1.msra.mxu0 0.0
    %7527 = vmatprep.subr.mxu0 0.0
    %7528 = vmatpush1.msra.mxu0 0.0
    %7529 = vmatprep.subr.mxu0 0.0
    %7530 = vmatpush1.msra.mxu0 0.0
    %7531 = vmatprep.subr.mxu0 %v4918
    %7532 = vmatpush1.msra.mxu0 %v4917
    %7533 = vmatprep.subr.mxu0 %v4914
    %7534 = vmatpush1.msra.mxu0 %v4913
    %7535 = vmatprep.subr.mxu0 %v4910
    %7536 = vmatpush1.msra.mxu0 %v4909
    %7537 = vmatprep.subr.mxu0 %v4906
    %7538 = vmatpush1.msra.mxu0 %v4905
    %7539 = vmatprep.subr.mxu0 0.0
    %7540 = vmatpush2.msra.mxu0 0.0
    %7541 = vmatprep.subr.mxu0 0.0
    %7542 = vmatpush2.msra.mxu0 0.0
    %7543 = vmatprep.subr.mxu0 0.0
    %7544 = vmatpush2.msra.mxu0 0.0
    %7545 = vmatprep.subr.mxu0 0.0
    %7546 = vmatpush2.msra.mxu0 0.0
    %7547 = vmatprep.subr.mxu0 0.0
    %7548 = vmatpush2.msra.mxu0 0.0
    %7549 = vmatprep.subr.mxu0 0.0
    %7550 = vmatpush2.msra.mxu0 0.0
    %7551 = vmatprep.subr.mxu0 0.0
    %7552 = vmatpush2.msra.mxu0 0.0
    %7553 = vmatprep.subr.mxu0 0.0
    %7554 = vmatpush2.msra.mxu0 0.0
    %7555 = vmatprep.subr.mxu0 0.0
    %7556 = vmatpush2.msra.mxu0 0.0
    %7557 = vmatprep.subr.mxu0 0.0
    %7558 = vmatpush2.msra.mxu0 0.0
    %7559 = vmatprep.subr.mxu0 0.0
    %7560 = vmatpush2.msra.mxu0 0.0
    %7561 = vmatprep.subr.mxu0 0.0
    %7562 = vmatpush2.msra.mxu0 0.0
    %7563 = vmatprep.subr.mxu0 0.0
    %7564 = vmatpush2.msra.mxu0 0.0
    %7565 = vmatprep.subr.mxu0 0.0
    %7566 = vmatpush2.msra.mxu0 0.0
    %7567 = vmatprep.subr.mxu0 0.0
    %7568 = vmatpush2.msra.mxu0 0.0
    %7569 = vmatprep.subr.mxu0 0.0
    %7570 = vmatpush2.msra.mxu0 0.0
    %7571 = vmatprep.mubr.f32.mxu0 0.0
    %7572 = vmatmul.mubr.f32.gmra.mxu0 %v7117
    %v7573 = vpop.f32.mrf.mxu0
    %v7574 = vadd.f32 0.0, %v7573
    %v7575 = vpop.f32.mrf.mxu0
    %v7576 = vadd.f32 0.0, %v7575
    %7577 = vdwg.mxu0
    %v7578 = vadd.f32 %v4828, %v7503
    %v7579 = vadd.f32 %v4830, %v7505
    %v7580 = vadd.f32 %v4899, %v7574
    %v7581 = vadd.f32 %v4901, %v7576
    %v7582 = vxor.u32 %v7578, 2147483648
    %v7583 = vmul.f32 %v7582, 1.442695
    %v7584 = vpow.pop %v7583
    %v7585 = vadd.f32 %v7584, 1.0
    %v7586 = vrcp.pop %v7585
    %v7587 = vmul.f32 1.0, %v7586
    %v7588 = vxor.u32 %v7579, 2147483648
    %v7589 = vmul.f32 %v7588, 1.442695
    %v7590 = vpow.pop %v7589
    %v7591 = vadd.f32 %v7590, 1.0
    %v7592 = vrcp.pop %v7591
    %v7593 = vmul.f32 1.0, %v7592
    %v7594 = vtanh.pop %v7580
    %v7595 = vxor.u32 %v7581, 2147483648
    %v7596 = vmul.f32 %v7595, 1.442695
    %v7597 = vpow.pop %v7596
    %v7598 = vadd.f32 %v7597, 1.0
    %v7599 = vrcp.pop %v7598
    %v7600 = vmul.f32 1.0, %v7599
    %v7601 = vmul.f32 %v7593, %v7113
    %v7602 = vmul.f32 %v7587, %v7594
    %v7603 = vadd.f32 %v7601, %v7602
    %v7604 = vtanh.pop %v7603
    %v7605 = vmul.f32 %v7600, %v7604
    %v7607 = vsel %vm935, %v7605, 0
    %7609 = vmatprep.subr.mxu0 0.0
    %7610 = vmatpush1.msra.mxu0 0.0
    %7611 = vmatprep.subr.mxu0 0.0
    %7612 = vmatpush1.msra.mxu0 0.0
    %7613 = vmatprep.subr.mxu0 0.0
    %7614 = vmatpush1.msra.mxu0 0.0
    %7615 = vmatprep.subr.mxu0 0.0
    %7616 = vmatpush1.msra.mxu0 0.0
    %7617 = vmatprep.subr.mxu0 0.0
    %7618 = vmatpush1.msra.mxu0 0.0
    %7619 = vmatprep.subr.mxu0 0.0
    %7620 = vmatpush1.msra.mxu0 0.0
    %7621 = vmatprep.subr.mxu0 0.0
    %7622 = vmatpush1.msra.mxu0 0.0
    %7623 = vmatprep.subr.mxu0 0.0
    %7624 = vmatpush1.msra.mxu0 0.0
    %7625 = vmatprep.subr.mxu0 0.0
    %7626 = vmatpush1.msra.mxu0 0.0
    %7627 = vmatprep.subr.mxu0 0.0
    %7628 = vmatpush1.msra.mxu0 0.0
    %7629 = vmatprep.subr.mxu0 0.0
    %7630 = vmatpush1.msra.mxu0 0.0
    %7631 = vmatprep.subr.mxu0 0.0
    %7632 = vmatpush1.msra.mxu0 0.0
    %7633 = vmatprep.subr.mxu0 %v4932
    %7634 = vmatpush1.msra.mxu0 %v4931
    %7635 = vmatprep.subr.mxu0 %v4928
    %7636 = vmatpush1.msra.mxu0 %v4927
    %7637 = vmatprep.subr.mxu0 %v4924
    %7638 = vmatpush1.msra.mxu0 %v4923
    %7639 = vmatprep.subr.mxu0 %v4920
    %7640 = vmatpush1.msra.mxu0 %v4919
    %7641 = vmatprep.subr.mxu0 0.0
    %7642 = vmatpush2.msra.mxu0 0.0
    %7643 = vmatprep.subr.mxu0 0.0
    %7644 = vmatpush2.msra.mxu0 0.0
    %7645 = vmatprep.subr.mxu0 0.0
    %7646 = vmatpush2.msra.mxu0 0.0
    %7647 = vmatprep.subr.mxu0 0.0
    %7648 = vmatpush2.msra.mxu0 0.0
    %7649 = vmatprep.subr.mxu0 0.0
    %7650 = vmatpush2.msra.mxu0 0.0
    %7651 = vmatprep.subr.mxu0 0.0
    %7652 = vmatpush2.msra.mxu0 0.0
    %7653 = vmatprep.subr.mxu0 0.0
    %7654 = vmatpush2.msra.mxu0 0.0
    %7655 = vmatprep.subr.mxu0 0.0
    %7656 = vmatpush2.msra.mxu0 0.0
    %7657 = vmatprep.subr.mxu0 0.0
    %7658 = vmatpush2.msra.mxu0 0.0
    %7659 = vmatprep.subr.mxu0 0.0
    %7660 = vmatpush2.msra.mxu0 0.0
    %7661 = vmatprep.subr.mxu0 0.0
    %7662 = vmatpush2.msra.mxu0 0.0
    %7663 = vmatprep.subr.mxu0 0.0
    %7664 = vmatpush2.msra.mxu0 0.0
    %7665 = vmatprep.subr.mxu0 0.0
    %7666 = vmatpush2.msra.mxu0 0.0
    %7667 = vmatprep.subr.mxu0 0.0
    %7668 = vmatpush2.msra.mxu0 0.0
    %7669 = vmatprep.subr.mxu0 0.0
    %7670 = vmatpush2.msra.mxu0 0.0
    %7671 = vmatprep.subr.mxu0 0.0
    %7672 = vmatpush2.msra.mxu0 0.0
    %7673 = vmatprep.mubr.f32.mxu0 0.0
    %7674 = vmatmul.mubr.f32.gmra.mxu0 %v7607
    %v7675 = vpop.f32.mrf.mxu0
    %v7676 = vadd.f32 %v5142, %v7675
    %v7677 = vpop.f32.mrf.mxu0
    %v7678 = vadd.f32 %v5146, %v7677
    %7679 = vdwg.mxu0
    %7680 = vmatprep.subr.mxu0 0.0
    %7681 = vmatpush1.msra.mxu0 0.0
    %7682 = vmatprep.subr.mxu0 0.0
    %7683 = vmatpush1.msra.mxu0 0.0
    %7684 = vmatprep.subr.mxu0 0.0
    %7685 = vmatpush1.msra.mxu0 0.0
    %7686 = vmatprep.subr.mxu0 0.0
    %7687 = vmatpush1.msra.mxu0 0.0
    %7688 = vmatprep.subr.mxu0 0.0
    %7689 = vmatpush1.msra.mxu0 0.0
    %7690 = vmatprep.subr.mxu0 0.0
    %7691 = vmatpush1.msra.mxu0 0.0
    %7692 = vmatprep.subr.mxu0 0.0
    %7693 = vmatpush1.msra.mxu0 0.0
    %7694 = vmatprep.subr.mxu0 0.0
    %7695 = vmatpush1.msra.mxu0 0.0
    %7696 = vmatprep.subr.mxu0 0.0
    %7697 = vmatpush1.msra.mxu0 0.0
    %7698 = vmatprep.subr.mxu0 0.0
    %7699 = vmatpush1.msra.mxu0 0.0
    %7700 = vmatprep.subr.mxu0 0.0
    %7701 = vmatpush1.msra.mxu0 0.0
    %7702 = vmatprep.subr.mxu0 0.0
    %7703 = vmatpush1.msra.mxu0 0.0
    %7704 = vmatprep.subr.mxu0 %v4934
    %7705 = vmatpush1.msra.mxu0 %v4933
    %7706 = vmatprep.subr.mxu0 %v4930
    %7707 = vmatpush1.msra.mxu0 %v4929
    %7708 = vmatprep.subr.mxu0 %v4926
    %7709 = vmatpush1.msra.mxu0 %v4925
    %7710 = vmatprep.subr.mxu0 %v4922
    %7711 = vmatpush1.msra.mxu0 %v4921
    %7712 = vmatprep.subr.mxu0 0.0
    %7713 = vmatpush2.msra.mxu0 0.0
    %7714 = vmatprep.subr.mxu0 0.0
    %7715 = vmatpush2.msra.mxu0 0.0
    %7716 = vmatprep.subr.mxu0 0.0
    %7717 = vmatpush2.msra.mxu0 0.0
    %7718 = vmatprep.subr.mxu0 0.0
    %7719 = vmatpush2.msra.mxu0 0.0
    %7720 = vmatprep.subr.mxu0 0.0
    %7721 = vmatpush2.msra.mxu0 0.0
    %7722 = vmatprep.subr.mxu0 0.0
    %7723 = vmatpush2.msra.mxu0 0.0
    %7724 = vmatprep.subr.mxu0 0.0
    %7725 = vmatpush2.msra.mxu0 0.0
    %7726 = vmatprep.subr.mxu0 0.0
    %7727 = vmatpush2.msra.mxu0 0.0
    %7728 = vmatprep.subr.mxu0 0.0
    %7729 = vmatpush2.msra.mxu0 0.0
    %7730 = vmatprep.subr.mxu0 0.0
    %7731 = vmatpush2.msra.mxu0 0.0
    %7732 = vmatprep.subr.mxu0 0.0
    %7733 = vmatpush2.msra.mxu0 0.0
    %7734 = vmatprep.subr.mxu0 0.0
    %7735 = vmatpush2.msra.mxu0 0.0
    %7736 = vmatprep.subr.mxu0 0.0
    %7737 = vmatpush2.msra.mxu0 0.0
    %7738 = vmatprep.subr.mxu0 0.0
    %7739 = vmatpush2.msra.mxu0 0.0
    %7740 = vmatprep.subr.mxu0 0.0
    %7741 = vmatpush2.msra.mxu0 0.0
    %7742 = vmatprep.subr.mxu0 0.0
    %7743 = vmatpush2.msra.mxu0 0.0
    %7744 = vmatprep.mubr.f32.mxu0 0.0
    %7745 = vmatmul.mubr.f32.gmra.mxu0 %v7607
    %v7746 = vpop.f32.mrf.mxu0
    %v7747 = vadd.f32 %v5150, %v7746
    %v7748 = vpop.f32.mrf.mxu0
    %v7749 = vadd.f32 %v5154, %v7748
    %7750 = vdwg.mxu0
    %v7752 = vsel %vm569, %v7433, 0
    %7754 = vmatprep.subr.mxu0 0.0
    %7755 = vmatpush1.msra.mxu0 0.0
    %7756 = vmatprep.subr.mxu0 0.0
    %7757 = vmatpush1.msra.mxu0 0.0
    %7758 = vmatprep.subr.mxu0 0.0
    %7759 = vmatpush1.msra.mxu0 0.0
    %7760 = vmatprep.subr.mxu0 0.0
    %7761 = vmatpush1.msra.mxu0 0.0
    %7762 = vmatprep.subr.mxu0 0.0
    %7763 = vmatpush1.msra.mxu0 0.0
    %7764 = vmatprep.subr.mxu0 0.0
    %7765 = vmatpush1.msra.mxu0 0.0
    %7766 = vmatprep.subr.mxu0 0.0
    %7767 = vmatpush1.msra.mxu0 0.0
    %7768 = vmatprep.subr.mxu0 0.0
    %7769 = vmatpush1.msra.mxu0 0.0
    %7770 = vmatprep.subr.mxu0 %v4964
    %7771 = vmatpush1.msra.mxu0 %v4963
    %7772 = vmatprep.subr.mxu0 %v4960
    %7773 = vmatpush1.msra.mxu0 %v4959
    %7774 = vmatprep.subr.mxu0 %v4956
    %7775 = vmatpush1.msra.mxu0 %v4955
    %7776 = vmatprep.subr.mxu0 %v4952
    %7777 = vmatpush1.msra.mxu0 %v4951
    %7778 = vmatprep.subr.mxu0 %v4948
    %7779 = vmatpush1.msra.mxu0 %v4947
    %7780 = vmatprep.subr.mxu0 %v4944
    %7781 = vmatpush1.msra.mxu0 %v4943
    %7782 = vmatprep.subr.mxu0 %v4940
    %7783 = vmatpush1.msra.mxu0 %v4939
    %7784 = vmatprep.subr.mxu0 %v4936
    %7785 = vmatpush1.msra.mxu0 %v4935
    %7786 = vmatprep.subr.mxu0 0.0
    %7787 = vmatpush2.msra.mxu0 0.0
    %7788 = vmatprep.subr.mxu0 0.0
    %7789 = vmatpush2.msra.mxu0 0.0
    %7790 = vmatprep.subr.mxu0 0.0
    %7791 = vmatpush2.msra.mxu0 0.0
    %7792 = vmatprep.subr.mxu0 0.0
    %7793 = vmatpush2.msra.mxu0 0.0
    %7794 = vmatprep.subr.mxu0 0.0
    %7795 = vmatpush2.msra.mxu0 0.0
    %7796 = vmatprep.subr.mxu0 0.0
    %7797 = vmatpush2.msra.mxu0 0.0
    %7798 = vmatprep.subr.mxu0 0.0
    %7799 = vmatpush2.msra.mxu0 0.0
    %7800 = vmatprep.subr.mxu0 0.0
    %7801 = vmatpush2.msra.mxu0 0.0
    %7802 = vmatprep.subr.mxu0 0.0
    %7803 = vmatpush2.msra.mxu0 0.0
    %7804 = vmatprep.subr.mxu0 0.0
    %7805 = vmatpush2.msra.mxu0 0.0
    %7806 = vmatprep.subr.mxu0 0.0
    %7807 = vmatpush2.msra.mxu0 0.0
    %7808 = vmatprep.subr.mxu0 0.0
    %7809 = vmatpush2.msra.mxu0 0.0
    %7810 = vmatprep.subr.mxu0 0.0
    %7811 = vmatpush2.msra.mxu0 0.0
    %7812 = vmatprep.subr.mxu0 0.0
    %7813 = vmatpush2.msra.mxu0 0.0
    %7814 = vmatprep.subr.mxu0 0.0
    %7815 = vmatpush2.msra.mxu0 0.0
    %7816 = vmatprep.subr.mxu0 0.0
    %7817 = vmatpush2.msra.mxu0 0.0
    %7818 = vmatprep.mubr.f32.mxu0 0.0
    %7819 = vmatmul.mubr.f32.gmra.mxu0 %v7752
    %v7820 = vpop.f32.mrf.mxu0
    %v7821 = vadd.f32 0.0, %v7820
    %v7822 = vpop.f32.mrf.mxu0
    %v7823 = vadd.f32 0.0, %v7822
    %7824 = vdwg.mxu0
    %7825 = vmatprep.subr.mxu0 0.0
    %7826 = vmatpush1.msra.mxu0 0.0
    %7827 = vmatprep.subr.mxu0 0.0
    %7828 = vmatpush1.msra.mxu0 0.0
    %7829 = vmatprep.subr.mxu0 0.0
    %7830 = vmatpush1.msra.mxu0 0.0
    %7831 = vmatprep.subr.mxu0 0.0
    %7832 = vmatpush1.msra.mxu0 0.0
    %7833 = vmatprep.subr.mxu0 0.0
    %7834 = vmatpush1.msra.mxu0 0.0
    %7835 = vmatprep.subr.mxu0 0.0
    %7836 = vmatpush1.msra.mxu0 0.0
    %7837 = vmatprep.subr.mxu0 0.0
    %7838 = vmatpush1.msra.mxu0 0.0
    %7839 = vmatprep.subr.mxu0 0.0
    %7840 = vmatpush1.msra.mxu0 0.0
    %7841 = vmatprep.subr.mxu0 %v4966
    %7842 = vmatpush1.msra.mxu0 %v4965
    %7843 = vmatprep.subr.mxu0 %v4962
    %7844 = vmatpush1.msra.mxu0 %v4961
    %7845 = vmatprep.subr.mxu0 %v4958
    %7846 = vmatpush1.msra.mxu0 %v4957
    %7847 = vmatprep.subr.mxu0 %v4954
    %7848 = vmatpush1.msra.mxu0 %v4953
    %7849 = vmatprep.subr.mxu0 %v4950
    %7850 = vmatpush1.msra.mxu0 %v4949
    %7851 = vmatprep.subr.mxu0 %v4946
    %7852 = vmatpush1.msra.mxu0 %v4945
    %7853 = vmatprep.subr.mxu0 %v4942
    %7854 = vmatpush1.msra.mxu0 %v4941
    %7855 = vmatprep.subr.mxu0 %v4938
    %7856 = vmatpush1.msra.mxu0 %v4937
    %7857 = vmatprep.subr.mxu0 0.0
    %7858 = vmatpush2.msra.mxu0 0.0
    %7859 = vmatprep.subr.mxu0 0.0
    %7860 = vmatpush2.msra.mxu0 0.0
    %7861 = vmatprep.subr.mxu0 0.0
    %7862 = vmatpush2.msra.mxu0 0.0
    %7863 = vmatprep.subr.mxu0 0.0
    %7864 = vmatpush2.msra.mxu0 0.0
    %7865 = vmatprep.subr.mxu0 0.0
    %7866 = vmatpush2.msra.mxu0 0.0
    %7867 = vmatprep.subr.mxu0 0.0
    %7868 = vmatpush2.msra.mxu0 0.0
    %7869 = vmatprep.subr.mxu0 0.0
    %7870 = vmatpush2.msra.mxu0 0.0
    %7871 = vmatprep.subr.mxu0 0.0
    %7872 = vmatpush2.msra.mxu0 0.0
    %7873 = vmatprep.subr.mxu0 0.0
    %7874 = vmatpush2.msra.mxu0 0.0
    %7875 = vmatprep.subr.mxu0 0.0
    %7876 = vmatpush2.msra.mxu0 0.0
    %7877 = vmatprep.subr.mxu0 0.0
    %7878 = vmatpush2.msra.mxu0 0.0
    %7879 = vmatprep.subr.mxu0 0.0
    %7880 = vmatpush2.msra.mxu0 0.0
    %7881 = vmatprep.subr.mxu0 0.0
    %7882 = vmatpush2.msra.mxu0 0.0
    %7883 = vmatprep.subr.mxu0 0.0
    %7884 = vmatpush2.msra.mxu0 0.0
    %7885 = vmatprep.subr.mxu0 0.0
    %7886 = vmatpush2.msra.mxu0 0.0
    %7887 = vmatprep.subr.mxu0 0.0
    %7888 = vmatpush2.msra.mxu0 0.0
    %7889 = vmatprep.mubr.f32.mxu0 0.0
    %7890 = vmatmul.mubr.f32.gmra.mxu0 %v7752
    %v7891 = vpop.f32.mrf.mxu0
    %v7892 = vadd.f32 0.0, %v7891
    %v7893 = vpop.f32.mrf.mxu0
    %v7894 = vadd.f32 0.0, %v7893
    %7895 = vdwg.mxu0
    %v7896 = vadd.f32 %v7676, %v7821
    %v7897 = vadd.f32 %v7678, %v7823
    %v7898 = vadd.f32 %v7747, %v7892
    %v7899 = vadd.f32 %v7749, %v7894
    %v7900 = vxor.u32 %v7896, 2147483648
    %v7901 = vmul.f32 %v7900, 1.442695
    %v7902 = vpow.pop %v7901
    %v7903 = vadd.f32 %v7902, 1.0
    %v7904 = vrcp.pop %v7903
    %v7905 = vmul.f32 1.0, %v7904
    %v7906 = vxor.u32 %v7897, 2147483648
    %v7907 = vmul.f32 %v7906, 1.442695
    %v7908 = vpow.pop %v7907
    %v7909 = vadd.f32 %v7908, 1.0
    %v7910 = vrcp.pop %v7909
    %v7911 = vmul.f32 1.0, %v7910
    %v7912 = vtanh.pop %v7898
    %v7913 = vxor.u32 %v7899, 2147483648
    %v7914 = vmul.f32 %v7913, 1.442695
    %v7915 = vpow.pop %v7914
    %v7916 = vadd.f32 %v7915, 1.0
    %v7917 = vrcp.pop %v7916
    %v7918 = vmul.f32 1.0, %v7917
    %v7919 = vmul.f32 %v7911, %v7431
    %v7920 = vmul.f32 %v7905, %v7912
    %v7921 = vadd.f32 %v7919, %v7920
    %v7922 = vtanh.pop %v7921
    %v7923 = vmul.f32 %v7918, %v7922
    %s7924 = scalar_lea.vmem [#allocation3], 10
    %7925 = vst.msk [vmem:[%s7924] sm:$0x3] %vm5474, %v7923
    %7926 = vmatprep.subr.mxu0 0.0
    %7927 = vmatpush1.msra.mxu0 0.0
    %7928 = vmatprep.subr.mxu0 0.0
    %7929 = vmatpush1.msra.mxu0 0.0
    %7930 = vmatprep.subr.mxu0 0.0
    %7931 = vmatpush1.msra.mxu0 0.0
    %7932 = vmatprep.subr.mxu0 0.0
    %7933 = vmatpush1.msra.mxu0 0.0
    %7934 = vmatprep.subr.mxu0 0.0
    %7935 = vmatpush1.msra.mxu0 0.0
    %7936 = vmatprep.subr.mxu0 0.0
    %7937 = vmatpush1.msra.mxu0 0.0
    %7938 = vmatprep.subr.mxu0 0.0
    %7939 = vmatpush1.msra.mxu0 0.0
    %7940 = vmatprep.subr.mxu0 0.0
    %7941 = vmatpush1.msra.mxu0 0.0
    %7942 = vmatprep.subr.mxu0 0.0
    %7943 = vmatpush1.msra.mxu0 0.0
    %7944 = vmatprep.subr.mxu0 0.0
    %7945 = vmatpush1.msra.mxu0 0.0
    %7946 = vmatprep.subr.mxu0 0.0
    %7947 = vmatpush1.msra.mxu0 0.0
    %7948 = vmatprep.subr.mxu0 0.0
    %7949 = vmatpush1.msra.mxu0 0.0
    %7950 = vmatprep.subr.mxu0 %v4916
    %7951 = vmatpush1.msra.mxu0 %v4915
    %7952 = vmatprep.subr.mxu0 %v4912
    %7953 = vmatpush1.msra.mxu0 %v4911
    %7954 = vmatprep.subr.mxu0 %v4908
    %7955 = vmatpush1.msra.mxu0 %v4907
    %7956 = vmatprep.subr.mxu0 %v4904
    %7957 = vmatpush1.msra.mxu0 %v4903
    %7958 = vmatprep.subr.mxu0 0.0
    %7959 = vmatpush2.msra.mxu0 0.0
    %7960 = vmatprep.subr.mxu0 0.0
    %7961 = vmatpush2.msra.mxu0 0.0
    %7962 = vmatprep.subr.mxu0 0.0
    %7963 = vmatpush2.msra.mxu0 0.0
    %7964 = vmatprep.subr.mxu0 0.0
    %7965 = vmatpush2.msra.mxu0 0.0
    %7966 = vmatprep.subr.mxu0 0.0
    %7967 = vmatpush2.msra.mxu0 0.0
    %7968 = vmatprep.subr.mxu0 0.0
    %7969 = vmatpush2.msra.mxu0 0.0
    %7970 = vmatprep.subr.mxu0 0.0
    %7971 = vmatpush2.msra.mxu0 0.0
    %7972 = vmatprep.subr.mxu0 0.0
    %7973 = vmatpush2.msra.mxu0 0.0
    %7974 = vmatprep.subr.mxu0 0.0
    %7975 = vmatpush2.msra.mxu0 0.0
    %7976 = vmatprep.subr.mxu0 0.0
    %7977 = vmatpush2.msra.mxu0 0.0
    %7978 = vmatprep.subr.mxu0 0.0
    %7979 = vmatpush2.msra.mxu0 0.0
    %7980 = vmatprep.subr.mxu0 0.0
    %7981 = vmatpush2.msra.mxu0 0.0
    %7982 = vmatprep.subr.mxu0 0.0
    %7983 = vmatpush2.msra.mxu0 0.0
    %7984 = vmatprep.subr.mxu0 0.0
    %7985 = vmatpush2.msra.mxu0 0.0
    %7986 = vmatprep.subr.mxu0 0.0
    %7987 = vmatpush2.msra.mxu0 0.0
    %7988 = vmatprep.subr.mxu0 0.0
    %7989 = vmatpush2.msra.mxu0 0.0
    %7990 = vmatprep.mubr.f32.mxu0 0.0
    %7991 = vmatmul.mubr.f32.gmra.mxu0 %v7607
    %v7992 = vpop.f32.mrf.mxu0
    %v7993 = vadd.f32 0.0, %v7992
    %v7994 = vpop.f32.mrf.mxu0
    %v7995 = vadd.f32 0.0, %v7994
    %7996 = vdwg.mxu0
    %7997 = vmatprep.subr.mxu0 0.0
    %7998 = vmatpush1.msra.mxu0 0.0
    %7999 = vmatprep.subr.mxu0 0.0
    %8000 = vmatpush1.msra.mxu0 0.0
    %8001 = vmatprep.subr.mxu0 0.0
    %8002 = vmatpush1.msra.mxu0 0.0
    %8003 = vmatprep.subr.mxu0 0.0
    %8004 = vmatpush1.msra.mxu0 0.0
    %8005 = vmatprep.subr.mxu0 0.0
    %8006 = vmatpush1.msra.mxu0 0.0
    %8007 = vmatprep.subr.mxu0 0.0
    %8008 = vmatpush1.msra.mxu0 0.0
    %8009 = vmatprep.subr.mxu0 0.0
    %8010 = vmatpush1.msra.mxu0 0.0
    %8011 = vmatprep.subr.mxu0 0.0
    %8012 = vmatpush1.msra.mxu0 0.0
    %8013 = vmatprep.subr.mxu0 0.0
    %8014 = vmatpush1.msra.mxu0 0.0
    %8015 = vmatprep.subr.mxu0 0.0
    %8016 = vmatpush1.msra.mxu0 0.0
    %8017 = vmatprep.subr.mxu0 0.0
    %8018 = vmatpush1.msra.mxu0 0.0
    %8019 = vmatprep.subr.mxu0 0.0
    %8020 = vmatpush1.msra.mxu0 0.0
    %8021 = vmatprep.subr.mxu0 %v4918
    %8022 = vmatpush1.msra.mxu0 %v4917
    %8023 = vmatprep.subr.mxu0 %v4914
    %8024 = vmatpush1.msra.mxu0 %v4913
    %8025 = vmatprep.subr.mxu0 %v4910
    %8026 = vmatpush1.msra.mxu0 %v4909
    %8027 = vmatprep.subr.mxu0 %v4906
    %8028 = vmatpush1.msra.mxu0 %v4905
    %8029 = vmatprep.subr.mxu0 0.0
    %8030 = vmatpush2.msra.mxu0 0.0
    %8031 = vmatprep.subr.mxu0 0.0
    %8032 = vmatpush2.msra.mxu0 0.0
    %8033 = vmatprep.subr.mxu0 0.0
    %8034 = vmatpush2.msra.mxu0 0.0
    %8035 = vmatprep.subr.mxu0 0.0
    %8036 = vmatpush2.msra.mxu0 0.0
    %8037 = vmatprep.subr.mxu0 0.0
    %8038 = vmatpush2.msra.mxu0 0.0
    %8039 = vmatprep.subr.mxu0 0.0
    %8040 = vmatpush2.msra.mxu0 0.0
    %8041 = vmatprep.subr.mxu0 0.0
    %8042 = vmatpush2.msra.mxu0 0.0
    %8043 = vmatprep.subr.mxu0 0.0
    %8044 = vmatpush2.msra.mxu0 0.0
    %8045 = vmatprep.subr.mxu0 0.0
    %8046 = vmatpush2.msra.mxu0 0.0
    %8047 = vmatprep.subr.mxu0 0.0
    %8048 = vmatpush2.msra.mxu0 0.0
    %8049 = vmatprep.subr.mxu0 0.0
    %8050 = vmatpush2.msra.mxu0 0.0
    %8051 = vmatprep.subr.mxu0 0.0
    %8052 = vmatpush2.msra.mxu0 0.0
    %8053 = vmatprep.subr.mxu0 0.0
    %8054 = vmatpush2.msra.mxu0 0.0
    %8055 = vmatprep.subr.mxu0 0.0
    %8056 = vmatpush2.msra.mxu0 0.0
    %8057 = vmatprep.subr.mxu0 0.0
    %8058 = vmatpush2.msra.mxu0 0.0
    %8059 = vmatprep.subr.mxu0 0.0
    %8060 = vmatpush2.msra.mxu0 0.0
    %8061 = vmatprep.mubr.f32.mxu0 0.0
    %8062 = vmatmul.mubr.f32.gmra.mxu0 %v7607
    %v8063 = vpop.f32.mrf.mxu0
    %v8064 = vadd.f32 0.0, %v8063
    %v8065 = vpop.f32.mrf.mxu0
    %v8066 = vadd.f32 0.0, %v8065
    %8067 = vdwg.mxu0
    %v8068 = vadd.f32 %v4828, %v7993
    %v8069 = vadd.f32 %v4830, %v7995
    %v8070 = vadd.f32 %v4899, %v8064
    %v8071 = vadd.f32 %v4901, %v8066
    %v8072 = vxor.u32 %v8068, 2147483648
    %v8073 = vmul.f32 %v8072, 1.442695
    %v8074 = vpow.pop %v8073
    %v8075 = vadd.f32 %v8074, 1.0
    %v8076 = vrcp.pop %v8075
    %v8077 = vmul.f32 1.0, %v8076
    %v8078 = vxor.u32 %v8069, 2147483648
    %v8079 = vmul.f32 %v8078, 1.442695
    %v8080 = vpow.pop %v8079
    %v8081 = vadd.f32 %v8080, 1.0
    %v8082 = vrcp.pop %v8081
    %v8083 = vmul.f32 1.0, %v8082
    %v8084 = vtanh.pop %v8070
    %v8085 = vxor.u32 %v8071, 2147483648
    %v8086 = vmul.f32 %v8085, 1.442695
    %v8087 = vpow.pop %v8086
    %v8088 = vadd.f32 %v8087, 1.0
    %v8089 = vrcp.pop %v8088
    %v8090 = vmul.f32 1.0, %v8089
    %v8091 = vmul.f32 %v8083, %v7603
    %v8092 = vmul.f32 %v8077, %v8084
    %v8093 = vadd.f32 %v8091, %v8092
    %v8094 = vtanh.pop %v8093
    %v8095 = vmul.f32 %v8090, %v8094
    %v8097 = vsel %vm935, %v8095, 0
    %8099 = vmatprep.subr.mxu0 0.0
    %8100 = vmatpush1.msra.mxu0 0.0
    %8101 = vmatprep.subr.mxu0 0.0
    %8102 = vmatpush1.msra.mxu0 0.0
    %8103 = vmatprep.subr.mxu0 0.0
    %8104 = vmatpush1.msra.mxu0 0.0
    %8105 = vmatprep.subr.mxu0 0.0
    %8106 = vmatpush1.msra.mxu0 0.0
    %8107 = vmatprep.subr.mxu0 0.0
    %8108 = vmatpush1.msra.mxu0 0.0
    %8109 = vmatprep.subr.mxu0 0.0
    %8110 = vmatpush1.msra.mxu0 0.0
    %8111 = vmatprep.subr.mxu0 0.0
    %8112 = vmatpush1.msra.mxu0 0.0
    %8113 = vmatprep.subr.mxu0 0.0
    %8114 = vmatpush1.msra.mxu0 0.0
    %8115 = vmatprep.subr.mxu0 0.0
    %8116 = vmatpush1.msra.mxu0 0.0
    %8117 = vmatprep.subr.mxu0 0.0
    %8118 = vmatpush1.msra.mxu0 0.0
    %8119 = vmatprep.subr.mxu0 0.0
    %8120 = vmatpush1.msra.mxu0 0.0
    %8121 = vmatprep.subr.mxu0 0.0
    %8122 = vmatpush1.msra.mxu0 0.0
    %8123 = vmatprep.subr.mxu0 %v4932
    %8124 = vmatpush1.msra.mxu0 %v4931
    %8125 = vmatprep.subr.mxu0 %v4928
    %8126 = vmatpush1.msra.mxu0 %v4927
    %8127 = vmatprep.subr.mxu0 %v4924
    %8128 = vmatpush1.msra.mxu0 %v4923
    %8129 = vmatprep.subr.mxu0 %v4920
    %8130 = vmatpush1.msra.mxu0 %v4919
    %8131 = vmatprep.subr.mxu0 0.0
    %8132 = vmatpush2.msra.mxu0 0.0
    %8133 = vmatprep.subr.mxu0 0.0
    %8134 = vmatpush2.msra.mxu0 0.0
    %8135 = vmatprep.subr.mxu0 0.0
    %8136 = vmatpush2.msra.mxu0 0.0
    %8137 = vmatprep.subr.mxu0 0.0
    %8138 = vmatpush2.msra.mxu0 0.0
    %8139 = vmatprep.subr.mxu0 0.0
    %8140 = vmatpush2.msra.mxu0 0.0
    %8141 = vmatprep.subr.mxu0 0.0
    %8142 = vmatpush2.msra.mxu0 0.0
    %8143 = vmatprep.subr.mxu0 0.0
    %8144 = vmatpush2.msra.mxu0 0.0
    %8145 = vmatprep.subr.mxu0 0.0
    %8146 = vmatpush2.msra.mxu0 0.0
    %8147 = vmatprep.subr.mxu0 0.0
    %8148 = vmatpush2.msra.mxu0 0.0
    %8149 = vmatprep.subr.mxu0 0.0
    %8150 = vmatpush2.msra.mxu0 0.0
    %8151 = vmatprep.subr.mxu0 0.0
    %8152 = vmatpush2.msra.mxu0 0.0
    %8153 = vmatprep.subr.mxu0 0.0
    %8154 = vmatpush2.msra.mxu0 0.0
    %8155 = vmatprep.subr.mxu0 0.0
    %8156 = vmatpush2.msra.mxu0 0.0
    %8157 = vmatprep.subr.mxu0 0.0
    %8158 = vmatpush2.msra.mxu0 0.0
    %8159 = vmatprep.subr.mxu0 0.0
    %8160 = vmatpush2.msra.mxu0 0.0
    %8161 = vmatprep.subr.mxu0 0.0
    %8162 = vmatpush2.msra.mxu0 0.0
    %8163 = vmatprep.mubr.f32.mxu0 0.0
    %8164 = vmatmul.mubr.f32.gmra.mxu0 %v8097
    %v8165 = vpop.f32.mrf.mxu0
    %v8166 = vadd.f32 %v5142, %v8165
    %v8167 = vpop.f32.mrf.mxu0
    %v8168 = vadd.f32 %v5146, %v8167
    %8169 = vdwg.mxu0
    %8170 = vmatprep.subr.mxu0 0.0
    %8171 = vmatpush1.msra.mxu0 0.0
    %8172 = vmatprep.subr.mxu0 0.0
    %8173 = vmatpush1.msra.mxu0 0.0
    %8174 = vmatprep.subr.mxu0 0.0
    %8175 = vmatpush1.msra.mxu0 0.0
    %8176 = vmatprep.subr.mxu0 0.0
    %8177 = vmatpush1.msra.mxu0 0.0
    %8178 = vmatprep.subr.mxu0 0.0
    %8179 = vmatpush1.msra.mxu0 0.0
    %8180 = vmatprep.subr.mxu0 0.0
    %8181 = vmatpush1.msra.mxu0 0.0
    %8182 = vmatprep.subr.mxu0 0.0
    %8183 = vmatpush1.msra.mxu0 0.0
    %8184 = vmatprep.subr.mxu0 0.0
    %8185 = vmatpush1.msra.mxu0 0.0
    %8186 = vmatprep.subr.mxu0 0.0
    %8187 = vmatpush1.msra.mxu0 0.0
    %8188 = vmatprep.subr.mxu0 0.0
    %8189 = vmatpush1.msra.mxu0 0.0
    %8190 = vmatprep.subr.mxu0 0.0
    %8191 = vmatpush1.msra.mxu0 0.0
    %8192 = vmatprep.subr.mxu0 0.0
    %8193 = vmatpush1.msra.mxu0 0.0
    %8194 = vmatprep.subr.mxu0 %v4934
    %8195 = vmatpush1.msra.mxu0 %v4933
    %8196 = vmatprep.subr.mxu0 %v4930
    %8197 = vmatpush1.msra.mxu0 %v4929
    %8198 = vmatprep.subr.mxu0 %v4926
    %8199 = vmatpush1.msra.mxu0 %v4925
    %8200 = vmatprep.subr.mxu0 %v4922
    %8201 = vmatpush1.msra.mxu0 %v4921
    %8202 = vmatprep.subr.mxu0 0.0
    %8203 = vmatpush2.msra.mxu0 0.0
    %8204 = vmatprep.subr.mxu0 0.0
    %8205 = vmatpush2.msra.mxu0 0.0
    %8206 = vmatprep.subr.mxu0 0.0
    %8207 = vmatpush2.msra.mxu0 0.0
    %8208 = vmatprep.subr.mxu0 0.0
    %8209 = vmatpush2.msra.mxu0 0.0
    %8210 = vmatprep.subr.mxu0 0.0
    %8211 = vmatpush2.msra.mxu0 0.0
    %8212 = vmatprep.subr.mxu0 0.0
    %8213 = vmatpush2.msra.mxu0 0.0
    %8214 = vmatprep.subr.mxu0 0.0
    %8215 = vmatpush2.msra.mxu0 0.0
    %8216 = vmatprep.subr.mxu0 0.0
    %8217 = vmatpush2.msra.mxu0 0.0
    %8218 = vmatprep.subr.mxu0 0.0
    %8219 = vmatpush2.msra.mxu0 0.0
    %8220 = vmatprep.subr.mxu0 0.0
    %8221 = vmatpush2.msra.mxu0 0.0
    %8222 = vmatprep.subr.mxu0 0.0
    %8223 = vmatpush2.msra.mxu0 0.0
    %8224 = vmatprep.subr.mxu0 0.0
    %8225 = vmatpush2.msra.mxu0 0.0
    %8226 = vmatprep.subr.mxu0 0.0
    %8227 = vmatpush2.msra.mxu0 0.0
    %8228 = vmatprep.subr.mxu0 0.0
    %8229 = vmatpush2.msra.mxu0 0.0
    %8230 = vmatprep.subr.mxu0 0.0
    %8231 = vmatpush2.msra.mxu0 0.0
    %8232 = vmatprep.subr.mxu0 0.0
    %8233 = vmatpush2.msra.mxu0 0.0
    %8234 = vmatprep.mubr.f32.mxu0 0.0
    %8235 = vmatmul.mubr.f32.gmra.mxu0 %v8097
    %v8236 = vpop.f32.mrf.mxu0
    %v8237 = vadd.f32 %v5150, %v8236
    %v8238 = vpop.f32.mrf.mxu0
    %v8239 = vadd.f32 %v5154, %v8238
    %8240 = vdwg.mxu0
    %v8242 = vsel %vm569, %v7923, 0
    %8244 = vmatprep.subr.mxu0 0.0
    %8245 = vmatpush1.msra.mxu0 0.0
    %8246 = vmatprep.subr.mxu0 0.0
    %8247 = vmatpush1.msra.mxu0 0.0
    %8248 = vmatprep.subr.mxu0 0.0
    %8249 = vmatpush1.msra.mxu0 0.0
    %8250 = vmatprep.subr.mxu0 0.0
    %8251 = vmatpush1.msra.mxu0 0.0
    %8252 = vmatprep.subr.mxu0 0.0
    %8253 = vmatpush1.msra.mxu0 0.0
    %8254 = vmatprep.subr.mxu0 0.0
    %8255 = vmatpush1.msra.mxu0 0.0
    %8256 = vmatprep.subr.mxu0 0.0
    %8257 = vmatpush1.msra.mxu0 0.0
    %8258 = vmatprep.subr.mxu0 0.0
    %8259 = vmatpush1.msra.mxu0 0.0
    %8260 = vmatprep.subr.mxu0 %v4964
    %8261 = vmatpush1.msra.mxu0 %v4963
    %8262 = vmatprep.subr.mxu0 %v4960
    %8263 = vmatpush1.msra.mxu0 %v4959
    %8264 = vmatprep.subr.mxu0 %v4956
    %8265 = vmatpush1.msra.mxu0 %v4955
    %8266 = vmatprep.subr.mxu0 %v4952
    %8267 = vmatpush1.msra.mxu0 %v4951
    %8268 = vmatprep.subr.mxu0 %v4948
    %8269 = vmatpush1.msra.mxu0 %v4947
    %8270 = vmatprep.subr.mxu0 %v4944
    %8271 = vmatpush1.msra.mxu0 %v4943
    %8272 = vmatprep.subr.mxu0 %v4940
    %8273 = vmatpush1.msra.mxu0 %v4939
    %8274 = vmatprep.subr.mxu0 %v4936
    %8275 = vmatpush1.msra.mxu0 %v4935
    %8276 = vmatprep.subr.mxu0 0.0
    %8277 = vmatpush2.msra.mxu0 0.0
    %8278 = vmatprep.subr.mxu0 0.0
    %8279 = vmatpush2.msra.mxu0 0.0
    %8280 = vmatprep.subr.mxu0 0.0
    %8281 = vmatpush2.msra.mxu0 0.0
    %8282 = vmatprep.subr.mxu0 0.0
    %8283 = vmatpush2.msra.mxu0 0.0
    %8284 = vmatprep.subr.mxu0 0.0
    %8285 = vmatpush2.msra.mxu0 0.0
    %8286 = vmatprep.subr.mxu0 0.0
    %8287 = vmatpush2.msra.mxu0 0.0
    %8288 = vmatprep.subr.mxu0 0.0
    %8289 = vmatpush2.msra.mxu0 0.0
    %8290 = vmatprep.subr.mxu0 0.0
    %8291 = vmatpush2.msra.mxu0 0.0
    %8292 = vmatprep.subr.mxu0 0.0
    %8293 = vmatpush2.msra.mxu0 0.0
    %8294 = vmatprep.subr.mxu0 0.0
    %8295 = vmatpush2.msra.mxu0 0.0
    %8296 = vmatprep.subr.mxu0 0.0
    %8297 = vmatpush2.msra.mxu0 0.0
    %8298 = vmatprep.subr.mxu0 0.0
    %8299 = vmatpush2.msra.mxu0 0.0
    %8300 = vmatprep.subr.mxu0 0.0
    %8301 = vmatpush2.msra.mxu0 0.0
    %8302 = vmatprep.subr.mxu0 0.0
    %8303 = vmatpush2.msra.mxu0 0.0
    %8304 = vmatprep.subr.mxu0 0.0
    %8305 = vmatpush2.msra.mxu0 0.0
    %8306 = vmatprep.subr.mxu0 0.0
    %8307 = vmatpush2.msra.mxu0 0.0
    %8308 = vmatprep.mubr.f32.mxu0 0.0
    %8309 = vmatmul.mubr.f32.gmra.mxu0 %v8242
    %v8310 = vpop.f32.mrf.mxu0
    %v8311 = vadd.f32 0.0, %v8310
    %v8312 = vpop.f32.mrf.mxu0
    %v8313 = vadd.f32 0.0, %v8312
    %8314 = vdwg.mxu0
    %8315 = vmatprep.subr.mxu0 0.0
    %8316 = vmatpush1.msra.mxu0 0.0
    %8317 = vmatprep.subr.mxu0 0.0
    %8318 = vmatpush1.msra.mxu0 0.0
    %8319 = vmatprep.subr.mxu0 0.0
    %8320 = vmatpush1.msra.mxu0 0.0
    %8321 = vmatprep.subr.mxu0 0.0
    %8322 = vmatpush1.msra.mxu0 0.0
    %8323 = vmatprep.subr.mxu0 0.0
    %8324 = vmatpush1.msra.mxu0 0.0
    %8325 = vmatprep.subr.mxu0 0.0
    %8326 = vmatpush1.msra.mxu0 0.0
    %8327 = vmatprep.subr.mxu0 0.0
    %8328 = vmatpush1.msra.mxu0 0.0
    %8329 = vmatprep.subr.mxu0 0.0
    %8330 = vmatpush1.msra.mxu0 0.0
    %8331 = vmatprep.subr.mxu0 %v4966
    %8332 = vmatpush1.msra.mxu0 %v4965
    %8333 = vmatprep.subr.mxu0 %v4962
    %8334 = vmatpush1.msra.mxu0 %v4961
    %8335 = vmatprep.subr.mxu0 %v4958
    %8336 = vmatpush1.msra.mxu0 %v4957
    %8337 = vmatprep.subr.mxu0 %v4954
    %8338 = vmatpush1.msra.mxu0 %v4953
    %8339 = vmatprep.subr.mxu0 %v4950
    %8340 = vmatpush1.msra.mxu0 %v4949
    %8341 = vmatprep.subr.mxu0 %v4946
    %8342 = vmatpush1.msra.mxu0 %v4945
    %8343 = vmatprep.subr.mxu0 %v4942
    %8344 = vmatpush1.msra.mxu0 %v4941
    %8345 = vmatprep.subr.mxu0 %v4938
    %8346 = vmatpush1.msra.mxu0 %v4937
    %8347 = vmatprep.subr.mxu0 0.0
    %8348 = vmatpush2.msra.mxu0 0.0
    %8349 = vmatprep.subr.mxu0 0.0
    %8350 = vmatpush2.msra.mxu0 0.0
    %8351 = vmatprep.subr.mxu0 0.0
    %8352 = vmatpush2.msra.mxu0 0.0
    %8353 = vmatprep.subr.mxu0 0.0
    %8354 = vmatpush2.msra.mxu0 0.0
    %8355 = vmatprep.subr.mxu0 0.0
    %8356 = vmatpush2.msra.mxu0 0.0
    %8357 = vmatprep.subr.mxu0 0.0
    %8358 = vmatpush2.msra.mxu0 0.0
    %8359 = vmatprep.subr.mxu0 0.0
    %8360 = vmatpush2.msra.mxu0 0.0
    %8361 = vmatprep.subr.mxu0 0.0
    %8362 = vmatpush2.msra.mxu0 0.0
    %8363 = vmatprep.subr.mxu0 0.0
    %8364 = vmatpush2.msra.mxu0 0.0
    %8365 = vmatprep.subr.mxu0 0.0
    %8366 = vmatpush2.msra.mxu0 0.0
    %8367 = vmatprep.subr.mxu0 0.0
    %8368 = vmatpush2.msra.mxu0 0.0
    %8369 = vmatprep.subr.mxu0 0.0
    %8370 = vmatpush2.msra.mxu0 0.0
    %8371 = vmatprep.subr.mxu0 0.0
    %8372 = vmatpush2.msra.mxu0 0.0
    %8373 = vmatprep.subr.mxu0 0.0
    %8374 = vmatpush2.msra.mxu0 0.0
    %8375 = vmatprep.subr.mxu0 0.0
    %8376 = vmatpush2.msra.mxu0 0.0
    %8377 = vmatprep.subr.mxu0 0.0
    %8378 = vmatpush2.msra.mxu0 0.0
    %8379 = vmatprep.mubr.f32.mxu0 0.0
    %8380 = vmatmul.mubr.f32.gmra.mxu0 %v8242
    %v8381 = vpop.f32.mrf.mxu0
    %v8382 = vadd.f32 0.0, %v8381
    %v8383 = vpop.f32.mrf.mxu0
    %v8384 = vadd.f32 0.0, %v8383
    %8385 = vdwg.mxu0
    %v8386 = vadd.f32 %v8166, %v8311
    %v8387 = vadd.f32 %v8168, %v8313
    %v8388 = vadd.f32 %v8237, %v8382
    %v8389 = vadd.f32 %v8239, %v8384
    %v8390 = vxor.u32 %v8386, 2147483648
    %v8391 = vmul.f32 %v8390, 1.442695
    %v8392 = vpow.pop %v8391
    %v8393 = vadd.f32 %v8392, 1.0
    %v8394 = vrcp.pop %v8393
    %v8395 = vmul.f32 1.0, %v8394
    %v8396 = vxor.u32 %v8387, 2147483648
    %v8397 = vmul.f32 %v8396, 1.442695
    %v8398 = vpow.pop %v8397
    %v8399 = vadd.f32 %v8398, 1.0
    %v8400 = vrcp.pop %v8399
    %v8401 = vmul.f32 1.0, %v8400
    %v8402 = vtanh.pop %v8388
    %v8403 = vxor.u32 %v8389, 2147483648
    %v8404 = vmul.f32 %v8403, 1.442695
    %v8405 = vpow.pop %v8404
    %v8406 = vadd.f32 %v8405, 1.0
    %v8407 = vrcp.pop %v8406
    %v8408 = vmul.f32 1.0, %v8407
    %v8409 = vmul.f32 %v8401, %v7921
    %v8410 = vmul.f32 %v8395, %v8402
    %v8411 = vadd.f32 %v8409, %v8410
    %v8412 = vtanh.pop %v8411
    %v8413 = vmul.f32 %v8408, %v8412
    %s8414 = scalar_lea.vmem [#allocation3], 12
    %8415 = vst.msk [vmem:[%s8414] sm:$0x3] %vm5474, %v8413
    %8416 = vmatprep.subr.mxu0 0.0
    %8417 = vmatpush1.msra.mxu0 0.0
    %8418 = vmatprep.subr.mxu0 0.0
    %8419 = vmatpush1.msra.mxu0 0.0
    %8420 = vmatprep.subr.mxu0 0.0
    %8421 = vmatpush1.msra.mxu0 0.0
    %8422 = vmatprep.subr.mxu0 0.0
    %8423 = vmatpush1.msra.mxu0 0.0
    %8424 = vmatprep.subr.mxu0 0.0
    %8425 = vmatpush1.msra.mxu0 0.0
    %8426 = vmatprep.subr.mxu0 0.0
    %8427 = vmatpush1.msra.mxu0 0.0
    %8428 = vmatprep.subr.mxu0 0.0
    %8429 = vmatpush1.msra.mxu0 0.0
    %8430 = vmatprep.subr.mxu0 0.0
    %8431 = vmatpush1.msra.mxu0 0.0
    %8432 = vmatprep.subr.mxu0 0.0
    %8433 = vmatpush1.msra.mxu0 0.0
    %8434 = vmatprep.subr.mxu0 0.0
    %8435 = vmatpush1.msra.mxu0 0.0
    %8436 = vmatprep.subr.mxu0 0.0
    %8437 = vmatpush1.msra.mxu0 0.0
    %8438 = vmatprep.subr.mxu0 0.0
    %8439 = vmatpush1.msra.mxu0 0.0
    %8440 = vmatprep.subr.mxu0 %v4916
    %8441 = vmatpush1.msra.mxu0 %v4915
    %8442 = vmatprep.subr.mxu0 %v4912
    %8443 = vmatpush1.msra.mxu0 %v4911
    %8444 = vmatprep.subr.mxu0 %v4908
    %8445 = vmatpush1.msra.mxu0 %v4907
    %8446 = vmatprep.subr.mxu0 %v4904
    %8447 = vmatpush1.msra.mxu0 %v4903
    %8448 = vmatprep.subr.mxu0 0.0
    %8449 = vmatpush2.msra.mxu0 0.0
    %8450 = vmatprep.subr.mxu0 0.0
    %8451 = vmatpush2.msra.mxu0 0.0
    %8452 = vmatprep.subr.mxu0 0.0
    %8453 = vmatpush2.msra.mxu0 0.0
    %8454 = vmatprep.subr.mxu0 0.0
    %8455 = vmatpush2.msra.mxu0 0.0
    %8456 = vmatprep.subr.mxu0 0.0
    %8457 = vmatpush2.msra.mxu0 0.0
    %8458 = vmatprep.subr.mxu0 0.0
    %8459 = vmatpush2.msra.mxu0 0.0
    %8460 = vmatprep.subr.mxu0 0.0
    %8461 = vmatpush2.msra.mxu0 0.0
    %8462 = vmatprep.subr.mxu0 0.0
    %8463 = vmatpush2.msra.mxu0 0.0
    %8464 = vmatprep.subr.mxu0 0.0
    %8465 = vmatpush2.msra.mxu0 0.0
    %8466 = vmatprep.subr.mxu0 0.0
    %8467 = vmatpush2.msra.mxu0 0.0
    %8468 = vmatprep.subr.mxu0 0.0
    %8469 = vmatpush2.msra.mxu0 0.0
    %8470 = vmatprep.subr.mxu0 0.0
    %8471 = vmatpush2.msra.mxu0 0.0
    %8472 = vmatprep.subr.mxu0 0.0
    %8473 = vmatpush2.msra.mxu0 0.0
    %8474 = vmatprep.subr.mxu0 0.0
    %8475 = vmatpush2.msra.mxu0 0.0
    %8476 = vmatprep.subr.mxu0 0.0
    %8477 = vmatpush2.msra.mxu0 0.0
    %8478 = vmatprep.subr.mxu0 0.0
    %8479 = vmatpush2.msra.mxu0 0.0
    %8480 = vmatprep.mubr.f32.mxu0 0.0
    %8481 = vmatmul.mubr.f32.gmra.mxu0 %v8097
    %v8482 = vpop.f32.mrf.mxu0
    %v8483 = vadd.f32 0.0, %v8482
    %v8484 = vpop.f32.mrf.mxu0
    %v8485 = vadd.f32 0.0, %v8484
    %8486 = vdwg.mxu0
    %8487 = vmatprep.subr.mxu0 0.0
    %8488 = vmatpush1.msra.mxu0 0.0
    %8489 = vmatprep.subr.mxu0 0.0
    %8490 = vmatpush1.msra.mxu0 0.0
    %8491 = vmatprep.subr.mxu0 0.0
    %8492 = vmatpush1.msra.mxu0 0.0
    %8493 = vmatprep.subr.mxu0 0.0
    %8494 = vmatpush1.msra.mxu0 0.0
    %8495 = vmatprep.subr.mxu0 0.0
    %8496 = vmatpush1.msra.mxu0 0.0
    %8497 = vmatprep.subr.mxu0 0.0
    %8498 = vmatpush1.msra.mxu0 0.0
    %8499 = vmatprep.subr.mxu0 0.0
    %8500 = vmatpush1.msra.mxu0 0.0
    %8501 = vmatprep.subr.mxu0 0.0
    %8502 = vmatpush1.msra.mxu0 0.0
    %8503 = vmatprep.subr.mxu0 0.0
    %8504 = vmatpush1.msra.mxu0 0.0
    %8505 = vmatprep.subr.mxu0 0.0
    %8506 = vmatpush1.msra.mxu0 0.0
    %8507 = vmatprep.subr.mxu0 0.0
    %8508 = vmatpush1.msra.mxu0 0.0
    %8509 = vmatprep.subr.mxu0 0.0
    %8510 = vmatpush1.msra.mxu0 0.0
    %8511 = vmatprep.subr.mxu0 %v4918
    %8512 = vmatpush1.msra.mxu0 %v4917
    %8513 = vmatprep.subr.mxu0 %v4914
    %8514 = vmatpush1.msra.mxu0 %v4913
    %8515 = vmatprep.subr.mxu0 %v4910
    %8516 = vmatpush1.msra.mxu0 %v4909
    %8517 = vmatprep.subr.mxu0 %v4906
    %8518 = vmatpush1.msra.mxu0 %v4905
    %8519 = vmatprep.subr.mxu0 0.0
    %8520 = vmatpush2.msra.mxu0 0.0
    %8521 = vmatprep.subr.mxu0 0.0
    %8522 = vmatpush2.msra.mxu0 0.0
    %8523 = vmatprep.subr.mxu0 0.0
    %8524 = vmatpush2.msra.mxu0 0.0
    %8525 = vmatprep.subr.mxu0 0.0
    %8526 = vmatpush2.msra.mxu0 0.0
    %8527 = vmatprep.subr.mxu0 0.0
    %8528 = vmatpush2.msra.mxu0 0.0
    %8529 = vmatprep.subr.mxu0 0.0
    %8530 = vmatpush2.msra.mxu0 0.0
    %8531 = vmatprep.subr.mxu0 0.0
    %8532 = vmatpush2.msra.mxu0 0.0
    %8533 = vmatprep.subr.mxu0 0.0
    %8534 = vmatpush2.msra.mxu0 0.0
    %8535 = vmatprep.subr.mxu0 0.0
    %8536 = vmatpush2.msra.mxu0 0.0
    %8537 = vmatprep.subr.mxu0 0.0
    %8538 = vmatpush2.msra.mxu0 0.0
    %8539 = vmatprep.subr.mxu0 0.0
    %8540 = vmatpush2.msra.mxu0 0.0
    %8541 = vmatprep.subr.mxu0 0.0
    %8542 = vmatpush2.msra.mxu0 0.0
    %8543 = vmatprep.subr.mxu0 0.0
    %8544 = vmatpush2.msra.mxu0 0.0
    %8545 = vmatprep.subr.mxu0 0.0
    %8546 = vmatpush2.msra.mxu0 0.0
    %8547 = vmatprep.subr.mxu0 0.0
    %8548 = vmatpush2.msra.mxu0 0.0
    %8549 = vmatprep.subr.mxu0 0.0
    %8550 = vmatpush2.msra.mxu0 0.0
    %8551 = vmatprep.mubr.f32.mxu0 0.0
    %8552 = vmatmul.mubr.f32.gmra.mxu0 %v8097
    %v8553 = vpop.f32.mrf.mxu0
    %v8554 = vadd.f32 0.0, %v8553
    %v8555 = vpop.f32.mrf.mxu0
    %v8556 = vadd.f32 0.0, %v8555
    %8557 = vdwg.mxu0
    %v8558 = vadd.f32 %v4828, %v8483
    %v8559 = vadd.f32 %v4830, %v8485
    %v8560 = vadd.f32 %v4899, %v8554
    %v8561 = vadd.f32 %v4901, %v8556
    %v8562 = vxor.u32 %v8558, 2147483648
    %v8563 = vmul.f32 %v8562, 1.442695
    %v8564 = vpow.pop %v8563
    %v8565 = vadd.f32 %v8564, 1.0
    %v8566 = vrcp.pop %v8565
    %v8567 = vmul.f32 1.0, %v8566
    %v8568 = vxor.u32 %v8559, 2147483648
    %v8569 = vmul.f32 %v8568, 1.442695
    %v8570 = vpow.pop %v8569
    %v8571 = vadd.f32 %v8570, 1.0
    %v8572 = vrcp.pop %v8571
    %v8573 = vmul.f32 1.0, %v8572
    %v8574 = vtanh.pop %v8560
    %v8575 = vxor.u32 %v8561, 2147483648
    %v8576 = vmul.f32 %v8575, 1.442695
    %v8577 = vpow.pop %v8576
    %v8578 = vadd.f32 %v8577, 1.0
    %v8579 = vrcp.pop %v8578
    %v8580 = vmul.f32 1.0, %v8579
    %v8581 = vmul.f32 %v8573, %v8093
    %v8582 = vmul.f32 %v8567, %v8574
    %v8583 = vadd.f32 %v8581, %v8582
    %v8584 = vtanh.pop %v8583
    %v8585 = vmul.f32 %v8580, %v8584
    %v8587 = vsel %vm935, %v8585, 0
    %8589 = vmatprep.subr.mxu0 0.0
    %8590 = vmatpush1.msra.mxu0 0.0
    %8591 = vmatprep.subr.mxu0 0.0
    %8592 = vmatpush1.msra.mxu0 0.0
    %8593 = vmatprep.subr.mxu0 0.0
    %8594 = vmatpush1.msra.mxu0 0.0
    %8595 = vmatprep.subr.mxu0 0.0
    %8596 = vmatpush1.msra.mxu0 0.0
    %8597 = vmatprep.subr.mxu0 0.0
    %8598 = vmatpush1.msra.mxu0 0.0
    %8599 = vmatprep.subr.mxu0 0.0
    %8600 = vmatpush1.msra.mxu0 0.0
    %8601 = vmatprep.subr.mxu0 0.0
    %8602 = vmatpush1.msra.mxu0 0.0
    %8603 = vmatprep.subr.mxu0 0.0
    %8604 = vmatpush1.msra.mxu0 0.0
    %8605 = vmatprep.subr.mxu0 0.0
    %8606 = vmatpush1.msra.mxu0 0.0
    %8607 = vmatprep.subr.mxu0 0.0
    %8608 = vmatpush1.msra.mxu0 0.0
    %8609 = vmatprep.subr.mxu0 0.0
    %8610 = vmatpush1.msra.mxu0 0.0
    %8611 = vmatprep.subr.mxu0 0.0
    %8612 = vmatpush1.msra.mxu0 0.0
    %8613 = vmatprep.subr.mxu0 %v4932
    %8614 = vmatpush1.msra.mxu0 %v4931
    %8615 = vmatprep.subr.mxu0 %v4928
    %8616 = vmatpush1.msra.mxu0 %v4927
    %8617 = vmatprep.subr.mxu0 %v4924
    %8618 = vmatpush1.msra.mxu0 %v4923
    %8619 = vmatprep.subr.mxu0 %v4920
    %8620 = vmatpush1.msra.mxu0 %v4919
    %8621 = vmatprep.subr.mxu0 0.0
    %8622 = vmatpush2.msra.mxu0 0.0
    %8623 = vmatprep.subr.mxu0 0.0
    %8624 = vmatpush2.msra.mxu0 0.0
    %8625 = vmatprep.subr.mxu0 0.0
    %8626 = vmatpush2.msra.mxu0 0.0
    %8627 = vmatprep.subr.mxu0 0.0
    %8628 = vmatpush2.msra.mxu0 0.0
    %8629 = vmatprep.subr.mxu0 0.0
    %8630 = vmatpush2.msra.mxu0 0.0
    %8631 = vmatprep.subr.mxu0 0.0
    %8632 = vmatpush2.msra.mxu0 0.0
    %8633 = vmatprep.subr.mxu0 0.0
    %8634 = vmatpush2.msra.mxu0 0.0
    %8635 = vmatprep.subr.mxu0 0.0
    %8636 = vmatpush2.msra.mxu0 0.0
    %8637 = vmatprep.subr.mxu0 0.0
    %8638 = vmatpush2.msra.mxu0 0.0
    %8639 = vmatprep.subr.mxu0 0.0
    %8640 = vmatpush2.msra.mxu0 0.0
    %8641 = vmatprep.subr.mxu0 0.0
    %8642 = vmatpush2.msra.mxu0 0.0
    %8643 = vmatprep.subr.mxu0 0.0
    %8644 = vmatpush2.msra.mxu0 0.0
    %8645 = vmatprep.subr.mxu0 0.0
    %8646 = vmatpush2.msra.mxu0 0.0
    %8647 = vmatprep.subr.mxu0 0.0
    %8648 = vmatpush2.msra.mxu0 0.0
    %8649 = vmatprep.subr.mxu0 0.0
    %8650 = vmatpush2.msra.mxu0 0.0
    %8651 = vmatprep.subr.mxu0 0.0
    %8652 = vmatpush2.msra.mxu0 0.0
    %8653 = vmatprep.mubr.f32.mxu0 0.0
    %8654 = vmatmul.mubr.f32.gmra.mxu0 %v8587
    %v8655 = vpop.f32.mrf.mxu0
    %v8656 = vadd.f32 %v5142, %v8655
    %v8657 = vpop.f32.mrf.mxu0
    %v8658 = vadd.f32 %v5146, %v8657
    %8659 = vdwg.mxu0
    %8660 = vmatprep.subr.mxu0 0.0
    %8661 = vmatpush1.msra.mxu0 0.0
    %8662 = vmatprep.subr.mxu0 0.0
    %8663 = vmatpush1.msra.mxu0 0.0
    %8664 = vmatprep.subr.mxu0 0.0
    %8665 = vmatpush1.msra.mxu0 0.0
    %8666 = vmatprep.subr.mxu0 0.0
    %8667 = vmatpush1.msra.mxu0 0.0
    %8668 = vmatprep.subr.mxu0 0.0
    %8669 = vmatpush1.msra.mxu0 0.0
    %8670 = vmatprep.subr.mxu0 0.0
    %8671 = vmatpush1.msra.mxu0 0.0
    %8672 = vmatprep.subr.mxu0 0.0
    %8673 = vmatpush1.msra.mxu0 0.0
    %8674 = vmatprep.subr.mxu0 0.0
    %8675 = vmatpush1.msra.mxu0 0.0
    %8676 = vmatprep.subr.mxu0 0.0
    %8677 = vmatpush1.msra.mxu0 0.0
    %8678 = vmatprep.subr.mxu0 0.0
    %8679 = vmatpush1.msra.mxu0 0.0
    %8680 = vmatprep.subr.mxu0 0.0
    %8681 = vmatpush1.msra.mxu0 0.0
    %8682 = vmatprep.subr.mxu0 0.0
    %8683 = vmatpush1.msra.mxu0 0.0
    %8684 = vmatprep.subr.mxu0 %v4934
    %8685 = vmatpush1.msra.mxu0 %v4933
    %8686 = vmatprep.subr.mxu0 %v4930
    %8687 = vmatpush1.msra.mxu0 %v4929
    %8688 = vmatprep.subr.mxu0 %v4926
    %8689 = vmatpush1.msra.mxu0 %v4925
    %8690 = vmatprep.subr.mxu0 %v4922
    %8691 = vmatpush1.msra.mxu0 %v4921
    %8692 = vmatprep.subr.mxu0 0.0
    %8693 = vmatpush2.msra.mxu0 0.0
    %8694 = vmatprep.subr.mxu0 0.0
    %8695 = vmatpush2.msra.mxu0 0.0
    %8696 = vmatprep.subr.mxu0 0.0
    %8697 = vmatpush2.msra.mxu0 0.0
    %8698 = vmatprep.subr.mxu0 0.0
    %8699 = vmatpush2.msra.mxu0 0.0
    %8700 = vmatprep.subr.mxu0 0.0
    %8701 = vmatpush2.msra.mxu0 0.0
    %8702 = vmatprep.subr.mxu0 0.0
    %8703 = vmatpush2.msra.mxu0 0.0
    %8704 = vmatprep.subr.mxu0 0.0
    %8705 = vmatpush2.msra.mxu0 0.0
    %8706 = vmatprep.subr.mxu0 0.0
    %8707 = vmatpush2.msra.mxu0 0.0
    %8708 = vmatprep.subr.mxu0 0.0
    %8709 = vmatpush2.msra.mxu0 0.0
    %8710 = vmatprep.subr.mxu0 0.0
    %8711 = vmatpush2.msra.mxu0 0.0
    %8712 = vmatprep.subr.mxu0 0.0
    %8713 = vmatpush2.msra.mxu0 0.0
    %8714 = vmatprep.subr.mxu0 0.0
    %8715 = vmatpush2.msra.mxu0 0.0
    %8716 = vmatprep.subr.mxu0 0.0
    %8717 = vmatpush2.msra.mxu0 0.0
    %8718 = vmatprep.subr.mxu0 0.0
    %8719 = vmatpush2.msra.mxu0 0.0
    %8720 = vmatprep.subr.mxu0 0.0
    %8721 = vmatpush2.msra.mxu0 0.0
    %8722 = vmatprep.subr.mxu0 0.0
    %8723 = vmatpush2.msra.mxu0 0.0
    %8724 = vmatprep.mubr.f32.mxu0 0.0
    %8725 = vmatmul.mubr.f32.gmra.mxu0 %v8587
    %v8726 = vpop.f32.mrf.mxu0
    %v8727 = vadd.f32 %v5150, %v8726
    %v8728 = vpop.f32.mrf.mxu0
    %v8729 = vadd.f32 %v5154, %v8728
    %8730 = vdwg.mxu0
    %v8732 = vsel %vm569, %v8413, 0
    %8734 = vmatprep.subr.mxu0 0.0
    %8735 = vmatpush1.msra.mxu0 0.0
    %8736 = vmatprep.subr.mxu0 0.0
    %8737 = vmatpush1.msra.mxu0 0.0
    %8738 = vmatprep.subr.mxu0 0.0
    %8739 = vmatpush1.msra.mxu0 0.0
    %8740 = vmatprep.subr.mxu0 0.0
    %8741 = vmatpush1.msra.mxu0 0.0
    %8742 = vmatprep.subr.mxu0 0.0
    %8743 = vmatpush1.msra.mxu0 0.0
    %8744 = vmatprep.subr.mxu0 0.0
    %8745 = vmatpush1.msra.mxu0 0.0
    %8746 = vmatprep.subr.mxu0 0.0
    %8747 = vmatpush1.msra.mxu0 0.0
    %8748 = vmatprep.subr.mxu0 0.0
    %8749 = vmatpush1.msra.mxu0 0.0
    %8750 = vmatprep.subr.mxu0 %v4964
    %8751 = vmatpush1.msra.mxu0 %v4963
    %8752 = vmatprep.subr.mxu0 %v4960
    %8753 = vmatpush1.msra.mxu0 %v4959
    %8754 = vmatprep.subr.mxu0 %v4956
    %8755 = vmatpush1.msra.mxu0 %v4955
    %8756 = vmatprep.subr.mxu0 %v4952
    %8757 = vmatpush1.msra.mxu0 %v4951
    %8758 = vmatprep.subr.mxu0 %v4948
    %8759 = vmatpush1.msra.mxu0 %v4947
    %8760 = vmatprep.subr.mxu0 %v4944
    %8761 = vmatpush1.msra.mxu0 %v4943
    %8762 = vmatprep.subr.mxu0 %v4940
    %8763 = vmatpush1.msra.mxu0 %v4939
    %8764 = vmatprep.subr.mxu0 %v4936
    %8765 = vmatpush1.msra.mxu0 %v4935
    %8766 = vmatprep.subr.mxu0 0.0
    %8767 = vmatpush2.msra.mxu0 0.0
    %8768 = vmatprep.subr.mxu0 0.0
    %8769 = vmatpush2.msra.mxu0 0.0
    %8770 = vmatprep.subr.mxu0 0.0
    %8771 = vmatpush2.msra.mxu0 0.0
    %8772 = vmatprep.subr.mxu0 0.0
    %8773 = vmatpush2.msra.mxu0 0.0
    %8774 = vmatprep.subr.mxu0 0.0
    %8775 = vmatpush2.msra.mxu0 0.0
    %8776 = vmatprep.subr.mxu0 0.0
    %8777 = vmatpush2.msra.mxu0 0.0
    %8778 = vmatprep.subr.mxu0 0.0
    %8779 = vmatpush2.msra.mxu0 0.0
    %8780 = vmatprep.subr.mxu0 0.0
    %8781 = vmatpush2.msra.mxu0 0.0
    %8782 = vmatprep.subr.mxu0 0.0
    %8783 = vmatpush2.msra.mxu0 0.0
    %8784 = vmatprep.subr.mxu0 0.0
    %8785 = vmatpush2.msra.mxu0 0.0
    %8786 = vmatprep.subr.mxu0 0.0
    %8787 = vmatpush2.msra.mxu0 0.0
    %8788 = vmatprep.subr.mxu0 0.0
    %8789 = vmatpush2.msra.mxu0 0.0
    %8790 = vmatprep.subr.mxu0 0.0
    %8791 = vmatpush2.msra.mxu0 0.0
    %8792 = vmatprep.subr.mxu0 0.0
    %8793 = vmatpush2.msra.mxu0 0.0
    %8794 = vmatprep.subr.mxu0 0.0
    %8795 = vmatpush2.msra.mxu0 0.0
    %8796 = vmatprep.subr.mxu0 0.0
    %8797 = vmatpush2.msra.mxu0 0.0
    %8798 = vmatprep.mubr.f32.mxu0 0.0
    %8799 = vmatmul.mubr.f32.gmra.mxu0 %v8732
    %v8800 = vpop.f32.mrf.mxu0
    %v8801 = vadd.f32 0.0, %v8800
    %v8802 = vpop.f32.mrf.mxu0
    %v8803 = vadd.f32 0.0, %v8802
    %8804 = vdwg.mxu0
    %8805 = vmatprep.subr.mxu0 0.0
    %8806 = vmatpush1.msra.mxu0 0.0
    %8807 = vmatprep.subr.mxu0 0.0
    %8808 = vmatpush1.msra.mxu0 0.0
    %8809 = vmatprep.subr.mxu0 0.0
    %8810 = vmatpush1.msra.mxu0 0.0
    %8811 = vmatprep.subr.mxu0 0.0
    %8812 = vmatpush1.msra.mxu0 0.0
    %8813 = vmatprep.subr.mxu0 0.0
    %8814 = vmatpush1.msra.mxu0 0.0
    %8815 = vmatprep.subr.mxu0 0.0
    %8816 = vmatpush1.msra.mxu0 0.0
    %8817 = vmatprep.subr.mxu0 0.0
    %8818 = vmatpush1.msra.mxu0 0.0
    %8819 = vmatprep.subr.mxu0 0.0
    %8820 = vmatpush1.msra.mxu0 0.0
    %8821 = vmatprep.subr.mxu0 %v4966
    %8822 = vmatpush1.msra.mxu0 %v4965
    %8823 = vmatprep.subr.mxu0 %v4962
    %8824 = vmatpush1.msra.mxu0 %v4961
    %8825 = vmatprep.subr.mxu0 %v4958
    %8826 = vmatpush1.msra.mxu0 %v4957
    %8827 = vmatprep.subr.mxu0 %v4954
    %8828 = vmatpush1.msra.mxu0 %v4953
    %8829 = vmatprep.subr.mxu0 %v4950
    %8830 = vmatpush1.msra.mxu0 %v4949
    %8831 = vmatprep.subr.mxu0 %v4946
    %8832 = vmatpush1.msra.mxu0 %v4945
    %8833 = vmatprep.subr.mxu0 %v4942
    %8834 = vmatpush1.msra.mxu0 %v4941
    %8835 = vmatprep.subr.mxu0 %v4938
    %8836 = vmatpush1.msra.mxu0 %v4937
    %8837 = vmatprep.subr.mxu0 0.0
    %8838 = vmatpush2.msra.mxu0 0.0
    %8839 = vmatprep.subr.mxu0 0.0
    %8840 = vmatpush2.msra.mxu0 0.0
    %8841 = vmatprep.subr.mxu0 0.0
    %8842 = vmatpush2.msra.mxu0 0.0
    %8843 = vmatprep.subr.mxu0 0.0
    %8844 = vmatpush2.msra.mxu0 0.0
    %8845 = vmatprep.subr.mxu0 0.0
    %8846 = vmatpush2.msra.mxu0 0.0
    %8847 = vmatprep.subr.mxu0 0.0
    %8848 = vmatpush2.msra.mxu0 0.0
    %8849 = vmatprep.subr.mxu0 0.0
    %8850 = vmatpush2.msra.mxu0 0.0
    %8851 = vmatprep.subr.mxu0 0.0
    %8852 = vmatpush2.msra.mxu0 0.0
    %8853 = vmatprep.subr.mxu0 0.0
    %8854 = vmatpush2.msra.mxu0 0.0
    %8855 = vmatprep.subr.mxu0 0.0
    %8856 = vmatpush2.msra.mxu0 0.0
    %8857 = vmatprep.subr.mxu0 0.0
    %8858 = vmatpush2.msra.mxu0 0.0
    %8859 = vmatprep.subr.mxu0 0.0
    %8860 = vmatpush2.msra.mxu0 0.0
    %8861 = vmatprep.subr.mxu0 0.0
    %8862 = vmatpush2.msra.mxu0 0.0
    %8863 = vmatprep.subr.mxu0 0.0
    %8864 = vmatpush2.msra.mxu0 0.0
    %8865 = vmatprep.subr.mxu0 0.0
    %8866 = vmatpush2.msra.mxu0 0.0
    %8867 = vmatprep.subr.mxu0 0.0
    %8868 = vmatpush2.msra.mxu0 0.0
    %8869 = vmatprep.mubr.f32.mxu0 0.0
    %8870 = vmatmul.mubr.f32.gmra.mxu0 %v8732
    %v8871 = vpop.f32.mrf.mxu0
    %v8872 = vadd.f32 0.0, %v8871
    %v8873 = vpop.f32.mrf.mxu0
    %v8874 = vadd.f32 0.0, %v8873
    %8875 = vdwg.mxu0
    %v8876 = vadd.f32 %v8656, %v8801
    %v8877 = vadd.f32 %v8658, %v8803
    %v8878 = vadd.f32 %v8727, %v8872
    %v8879 = vadd.f32 %v8729, %v8874
    %v8880 = vxor.u32 %v8876, 2147483648
    %v8881 = vmul.f32 %v8880, 1.442695
    %v8882 = vpow.pop %v8881
    %v8883 = vadd.f32 %v8882, 1.0
    %v8884 = vrcp.pop %v8883
    %v8885 = vmul.f32 1.0, %v8884
    %v8886 = vxor.u32 %v8877, 2147483648
    %v8887 = vmul.f32 %v8886, 1.442695
    %v8888 = vpow.pop %v8887
    %v8889 = vadd.f32 %v8888, 1.0
    %v8890 = vrcp.pop %v8889
    %v8891 = vmul.f32 1.0, %v8890
    %v8892 = vtanh.pop %v8878
    %v8893 = vxor.u32 %v8879, 2147483648
    %v8894 = vmul.f32 %v8893, 1.442695
    %v8895 = vpow.pop %v8894
    %v8896 = vadd.f32 %v8895, 1.0
    %v8897 = vrcp.pop %v8896
    %v8898 = vmul.f32 1.0, %v8897
    %v8899 = vmul.f32 %v8891, %v8411
    %v8900 = vmul.f32 %v8885, %v8892
    %v8901 = vadd.f32 %v8899, %v8900
    %v8902 = vtanh.pop %v8901
    %v8903 = vmul.f32 %v8898, %v8902
    %s8904 = scalar_lea.vmem [#allocation3], 14
    %8905 = vst.msk [vmem:[%s8904] sm:$0x3] %vm5474, %v8903
    %v8906 = vld [vmem:[#allocation3] sm:$0x3]
    %v8907 = vld [vmem:[#allocation3 + $0x2] sm:$0x3]
    %v8908 = vld [vmem:[#allocation3 + $0x4] sm:$0x3]
    %v8909 = vld [vmem:[#allocation3 + $0x6] sm:$0x3]
    %v8910 = vld [vmem:[#allocation3 + $0x8] sm:$0x3]
    %v8911 = vld [vmem:[#allocation3 + $0xa] sm:$0x3]
    %v8912 = vld [vmem:[#allocation3 + $0xc] sm:$0x3]
    %v8913 = vld [vmem:[#allocation3 + $0xe] sm:$0x3]
    %v8914 = vld [vmem:[%s13] sm:$0xff]
    %v8915 = vld [vmem:[%s13 + $0x8] sm:$0xff]
    %v8916 = vld [vmem:[%s13 + $0x10] sm:$0xff]
    %v8917 = vld [vmem:[%s13 + $0x18] sm:$0xff]
    %v8918 = vld [vmem:[%s13 + $0x20] sm:$0xff]
    %v8919 = vld [vmem:[%s13 + $0x28] sm:$0xff]
    %v8920 = vld [vmem:[%s13 + $0x30] sm:$0xff]
    %v8921 = vld [vmem:[%s13 + $0x38] sm:$0xff]
    %v8922 = vld [vmem:[%s14] sm:$0x1]
    %v8924 = vlaneseq
    %v8925 = vshrl.u32 %v8924, 7
    %v8926 = vsub.s32 0, %v8925
    %v8927 = vrot.slane %v8922, %v8926
    %v8937 = vcombine.low %v8906, %v8907
    %v8938 = vcombine.low %v8908, %v8909
    %v8940 = vunpack.c.l.s4 1983009808
    %v8941 = vunpack.c.0.s8 %v8940
    %v8942 = vlaneseq
    %v8943 = vshrl.u32 %v8942, 7
    %v8944 = vsub.s32 %v8941, %v8943
    %v8945 = vrot.slane %v8937, %v8944
    %v8947 = vunpack.c.l.s4 1983009808
    %v8948 = vunpack.c.0.s8 %v8947
    %v8949 = vlaneseq
    %v8950 = vshrl.u32 %v8949, 7
    %v8951 = vsub.s32 %v8948, %v8950
    %v8952 = vrot.slane %v8938, %v8951
    %v8953 = vcombine.low %v8945, %v8952
    %v8954 = vcombine.low %v8910, %v8911
    %v8955 = vcombine.low %v8912, %v8913
    %v8957 = vunpack.c.l.s4 1983009808
    %v8958 = vunpack.c.0.s8 %v8957
    %v8959 = vlaneseq
    %v8960 = vshrl.u32 %v8959, 7
    %v8961 = vsub.s32 %v8958, %v8960
    %v8962 = vrot.slane %v8954, %v8961
    %v8964 = vunpack.c.l.s4 1983009808
    %v8965 = vunpack.c.0.s8 %v8964
    %v8966 = vlaneseq
    %v8967 = vshrl.u32 %v8966, 7
    %v8968 = vsub.s32 %v8965, %v8967
    %v8969 = vrot.slane %v8955, %v8968
    %v8970 = vcombine.low %v8962, %v8969
    %v8971 = vsel %vm569, %v8953, 0
    %v8973 = vsel %vm569, %v8970, 0
    %8975 = vmatprep.subr.mxu0 0.0
    %8976 = vmatpush1.msra.mxu0 0.0
    %8977 = vmatprep.subr.mxu0 0.0
    %8978 = vmatpush1.msra.mxu0 0.0
    %8979 = vmatprep.subr.mxu0 0.0
    %8980 = vmatpush1.msra.mxu0 0.0
    %8981 = vmatprep.subr.mxu0 0.0
    %8982 = vmatpush1.msra.mxu0 0.0
    %8983 = vmatprep.subr.mxu0 0.0
    %8984 = vmatpush1.msra.mxu0 0.0
    %8985 = vmatprep.subr.mxu0 0.0
    %8986 = vmatpush1.msra.mxu0 0.0
    %8987 = vmatprep.subr.mxu0 0.0
    %8988 = vmatpush1.msra.mxu0 0.0
    %8989 = vmatprep.subr.mxu0 0.0
    %8990 = vmatpush1.msra.mxu0 0.0
    %8991 = vmatprep.subr.mxu0 0.0
    %8992 = vmatpush1.msra.mxu0 %v8921
    %8993 = vmatprep.subr.mxu0 0.0
    %8994 = vmatpush1.msra.mxu0 %v8920
    %8995 = vmatprep.subr.mxu0 0.0
    %8996 = vmatpush1.msra.mxu0 %v8919
    %8997 = vmatprep.subr.mxu0 0.0
    %8998 = vmatpush1.msra.mxu0 %v8918
    %8999 = vmatprep.subr.mxu0 0.0
    %9000 = vmatpush1.msra.mxu0 %v8917
    %9001 = vmatprep.subr.mxu0 0.0
    %9002 = vmatpush1.msra.mxu0 %v8916
    %9003 = vmatprep.subr.mxu0 0.0
    %9004 = vmatpush1.msra.mxu0 %v8915
    %9005 = vmatprep.subr.mxu0 0.0
    %9006 = vmatpush1.msra.mxu0 %v8914
    %9007 = vmatprep.subr.mxu0 0.0
    %9008 = vmatpush2.msra.mxu0 0.0
    %9009 = vmatprep.subr.mxu0 0.0
    %9010 = vmatpush2.msra.mxu0 0.0
    %9011 = vmatprep.subr.mxu0 0.0
    %9012 = vmatpush2.msra.mxu0 0.0
    %9013 = vmatprep.subr.mxu0 0.0
    %9014 = vmatpush2.msra.mxu0 0.0
    %9015 = vmatprep.subr.mxu0 0.0
    %9016 = vmatpush2.msra.mxu0 0.0
    %9017 = vmatprep.subr.mxu0 0.0
    %9018 = vmatpush2.msra.mxu0 0.0
    %9019 = vmatprep.subr.mxu0 0.0
    %9020 = vmatpush2.msra.mxu0 0.0
    %9021 = vmatprep.subr.mxu0 0.0
    %9022 = vmatpush2.msra.mxu0 0.0
    %9023 = vmatprep.subr.mxu0 0.0
    %9024 = vmatpush2.msra.mxu0 0.0
    %9025 = vmatprep.subr.mxu0 0.0
    %9026 = vmatpush2.msra.mxu0 0.0
    %9027 = vmatprep.subr.mxu0 0.0
    %9028 = vmatpush2.msra.mxu0 0.0
    %9029 = vmatprep.subr.mxu0 0.0
    %9030 = vmatpush2.msra.mxu0 0.0
    %9031 = vmatprep.subr.mxu0 0.0
    %9032 = vmatpush2.msra.mxu0 0.0
    %9033 = vmatprep.subr.mxu0 0.0
    %9034 = vmatpush2.msra.mxu0 0.0
    %9035 = vmatprep.subr.mxu0 0.0
    %9036 = vmatpush2.msra.mxu0 0.0
    %9037 = vmatprep.subr.mxu0 0.0
    %9038 = vmatpush2.msra.mxu0 0.0
    %9039 = vmatprep.mubr.f32.mxu0 0.0
    %9040 = vmatmul.mubr.f32.gmra.mxu0 %v8971
    %v9041 = vpop.f32.mrf.mxu0
    %v9042 = vadd.f32 %v8927, %v9041
    %v9043 = vpop.f32.mrf.mxu0
    %9044 = vmatprep.mubr.f32.mxu0 0.0
    %9045 = vmatmul.mubr.f32.gmra.mxu0 %v8973
    %v9046 = vpop.f32.mrf.mxu0
    %v9047 = vadd.f32 %v8927, %v9046
    %v9048 = vpop.f32.mrf.mxu0
    %9049 = vdwg.mxu0
    %v9052 = vcombine.high %v9042, %v9042
    %v9054 = vunpack.c.l.s4 1983009808
    %v9055 = vunpack.c.0.s8 %v9054
    %v9056 = vlaneseq
    %v9057 = vshrl.u32 %v9056, 7
    %v9058 = vsub.s32 %v9055, %v9057
    %v9059 = vrot.slane %v9042, %v9058
    %v9061 = vunpack.c.l.s4 1983009808
    %v9062 = vunpack.c.0.s8 %v9061
    %v9063 = vlaneseq
    %v9064 = vshrl.u32 %v9063, 7
    %v9065 = vsub.s32 %v9062, %v9064
    %v9066 = vrot.slane %v9052, %v9065
    %v9067 = vcombine.high %v9059, %v9059
    %v9068 = vcombine.high %v9066, %v9066
    %v9069 = vcombine.high %v9047, %v9047
    %v9071 = vunpack.c.l.s4 1983009808
    %v9072 = vunpack.c.0.s8 %v9071
    %v9073 = vlaneseq
    %v9074 = vshrl.u32 %v9073, 7
    %v9075 = vsub.s32 %v9072, %v9074
    %v9076 = vrot.slane %v9047, %v9075
    %v9078 = vunpack.c.l.s4 1983009808
    %v9079 = vunpack.c.0.s8 %v9078
    %v9080 = vlaneseq
    %v9081 = vshrl.u32 %v9080, 7
    %v9082 = vsub.s32 %v9079, %v9081
    %v9083 = vrot.slane %v9069, %v9082
    %v9084 = vcombine.high %v9076, %v9076
    %v9085 = vcombine.high %v9083, %v9083
    %vm9094 = vcmask 25600
    %9095 = vst.msk [vmem:[%s15] sm:$0x3] %vm9094, %v9059
    %9096 = vst.msk [vmem:[%s15 + $0x2] sm:$0x3] %vm9094, %v9067
    %9097 = vst.msk [vmem:[%s15 + $0x4] sm:$0x3] %vm9094, %v9066
    %9098 = vst.msk [vmem:[%s15 + $0x6] sm:$0x3] %vm9094, %v9068
    %9099 = vst.msk [vmem:[%s15 + $0x8] sm:$0x3] %vm9094, %v9076
    %9100 = vst.msk [vmem:[%s15 + $0xa] sm:$0x3] %vm9094, %v9084
    %9101 = vst.msk [vmem:[%s15 + $0xc] sm:$0x3] %vm9094, %v9083
    %9102 = vst.msk [vmem:[%s15 + $0xe] sm:$0x3] %vm9094, %v9085
    // Predicated region
    $region90: #{lstm_autoencoder_forward.1} parent=1 // pred_check
      _
    $region91: #{lstm_autoencoder_forward.1} parent=1 // pred_check_branch
      %9104 = sbr.rel (0) target = $region93
    $region92: #{lstm_autoencoder_forward.1} parent=1 // pred_region
      _
    $region93: #{lstm_autoencoder_forward.1} parent=1 // pred_fallthru
      _
    // Predicated region
    $region94: #{lstm_autoencoder_forward.1} parent=1 // pred_check
      _
    $region95: #{lstm_autoencoder_forward.1} parent=1 // pred_check_branch
      %9106 = sbr.rel (0) target = $region97
    $region96: #{lstm_autoencoder_forward.1} parent=1 // pred_region
      _
    $region97: #{lstm_autoencoder_forward.1} parent=1 // pred_fallthru
      _
    %9107 = vsyncpa [#allocation5], 1
    %9108 = vsyncpa [#allocation7], 1
    %9109 = vsyncpa [#allocation10], 1
    %9110 = vsyncpa [#allocation13], 1

</llo_original>
